<compile_context>
chip_gen: v6e
topology: v6e:2x2x1
jax: 0.10.0
libtpu: 0.0.40
codegen_flags: <defaults>
</compile_context>

<pallas_src>
import math

import jax
import jax.numpy as jnp
from jax.experimental import pallas as pl
from jax.experimental.pallas import tpu as pltpu

# ---- small-shape constants (reference module used S=50, W=25) --------------
B = 2        # batch
S = 6        # sentences per sample
W = 8        # words per sentence
EMB = 16     # embedding_dim
HID = 50     # hidden_dim (hard-wired to 50 by the reference forward)
VOCAB = 40
EPS = 1e-5

NP = 8               # padded sentence slots per batch (power of two, >= S)
NH = B * NP          # rows per half  (16): row = b*NP + l, valid when l < S
N2 = 2 * NH          # both halves stacked (32): half1 rows [0,NH), half2 [NH,2NH)

VMEM = pltpu.MemorySpace.VMEM


# ----------------------------- fused kernel ---------------------------------
def fused_attrcnn_kernel(*refs):
    (tok_ref, emb_ref,
     wih_ref, whh_ref, bih_ref, bhh_ref,
     bns_ref, bnh_ref,
     u_ref, c_ref, m1_ref,
     wv_ref, bv_ref, wo_ref, bo_ref,
     wsa_ref, wsx_ref, wsc_ref, bs_ref,
     c1w_ref, c1b_ref,
     c2aw_ref, c2ab_ref, c2bw_ref, c2bb_ref,
     c3aw_ref, c3ab_ref, c3bw_ref, c3bb_ref,
     c4w_ref, c4b_ref,
     wbig_ref, l1b_ref,
     l2w_ref, l2b_ref, l3w_ref, l3b_ref,
     out_ref) = refs

    f32 = jnp.float32

    # ---- embedding gather as a one-hot matmul (table lives in VMEM) --------
    tok = tok_ref[...]                                            # (W*N2, 1) i32, rows t*N2 + n2
    onehot = (tok == jax.lax.broadcasted_iota(jnp.int32, (W * N2, VOCAB), 1)).astype(f32)
    x_emb = jnp.dot(onehot, emb_ref[...], preferred_element_type=f32)   # (W*N2, EMB)

    # ---- GRU: input projection hoisted out of the recurrence ---------------
    gx_all = jnp.dot(x_emb, wih_ref[...], preferred_element_type=f32) + bih_ref[...]  # (W*N2, 3H)

    whh_t = whh_ref[...]
    bhh = bhh_ref[...]
    bn_s = bns_ref[...]            # (N2, 1) fused BatchNorm2d (eval) per-axis-1 channel
    bn_h = bnh_ref[...]
    u_row = u_ref[...]             # (N2, HID)  q==0 score vector (per half)
    c_row = c_ref[...]             # (N2, 1)    q==0 score constant
    m1 = m1_ref[...]               # (N2, 1)    1.0 for half-1 rows
    m2 = 1.0 - m1
    wv_big = wv_ref[...]           # (HID, 2*HID)  [Wv1^T | Wv2^T]
    bv_row = bv_ref[...]           # (N2, HID)

    h = jnp.zeros((N2, HID), f32)
    s_cols = []
    v_list = []
    for t in range(W):                                    # static unrolled recurrence
        gx = gx_all[t * N2:(t + 1) * N2, :]               # aligned sublane slice
        gh = jnp.dot(h, whh_t, preferred_element_type=f32) + bhh
        r = jax.nn.sigmoid(gx[:, 0:HID] + gh[:, 0:HID])
        z = jax.nn.sigmoid(gx[:, HID:2 * HID] + gh[:, HID:2 * HID])
        n = jnp.tanh(gx[:, 2 * HID:3 * HID] + r * gh[:, 2 * HID:3 * HID])
        h = (1.0 - z) * n + z * h
        # fused BatchNorm2d(eval) + ReLU on the GRU output
        xbn = jnp.maximum(h * bn_s + bn_h, 0.0)
        # query == 0  =>  score is a dot with a precomputed per-half vector
        s_cols.append(jnp.sum(xbn * u_row, axis=1, keepdims=True) + c_row)
        vf = jnp.dot(xbn, wv_big, preferred_element_type=f32)           # both halves' V proj
        v_list.append(vf[:, 0:HID] * m1 + vf[:, HID:2 * HID] * m2 + bv_row)

    # ---- attention with q == 0: weights independent of target position -----
    scores = jnp.concatenate(s_cols, axis=1)              # (N2, W)
    scores = scores - jnp.max(scores, axis=1, keepdims=True)
    e = jnp.exp(scores)
    a = e / jnp.sum(e, axis=1, keepdims=True)             # attention dropout = id (eval)
    ctx = jnp.zeros((N2, HID), f32)
    for t in range(W):
        ctx = ctx + a[:, t:t + 1] * v_list[t]
    of = jnp.dot(ctx, wo_ref[...], preferred_element_type=f32)          # (N2, 2*HID)
    att = of[:, 0:HID] * m1 + of[:, HID:2 * HID] * m2 + bo_ref[...]     # (N2, HID)
    att1 = att[0:NH, :]                                   # aligned slices (0, 16)
    att2 = att[NH:2 * NH, :]

    # ---- seqEncoder: Linear([att1 | x3 | att2]) + ReLU + max over words -----
    c_att = (jnp.dot(att1, wsa_ref[...], preferred_element_type=f32)
             + jnp.dot(att2, wsc_ref[...], preferred_element_type=f32)
             + bs_ref[...])                               # (NH, 100), constant over words
    wsx = wsx_ref[...]
    seq = None
    for t in range(W):
        x3_t = x_emb[t * N2:t * N2 + NH, :]               # first-half embeddings at word t
        yt = jnp.maximum(c_att + jnp.dot(x3_t, wsx, preferred_element_type=f32), 0.0)
        seq = yt if seq is None else jnp.maximum(seq, yt)  # MaxPool over the word axis

    # ---- four Conv1d branches as shift-matrix matmuls (eval BN folded) ------
    ri = jax.lax.broadcasted_iota(jnp.int32, (NH, NH), 0)
    ci = jax.lax.broadcasted_iota(jnp.int32, (NH, NH), 1)
    valid = ((ri & (NP - 1)) < S) & ((ci & (NP - 1)) < S)   # NP is a power of two
    shift = {s: ((ci == ri + s) & valid).astype(f32) for s in range(-2, 3)}

    def conv_same(x, w_ref, b_ref):
        k_taps = w_ref.shape[0]
        p = (k_taps - 1) // 2
        acc = b_ref[...] * jnp.ones((NH, 1), f32)
        for k in range(k_taps):
            y = jnp.dot(x, w_ref[k], preferred_element_type=f32)
            if k_taps > 1:
                y = jnp.dot(shift[k - p], y, preferred_element_type=f32)
            acc = acc + y
        return acc

    c1 = conv_same(seq, c1w_ref, c1b_ref)                            # Conv1d k=1
    t2 = jnp.maximum(conv_same(seq, c2aw_ref, c2ab_ref), 0.0)        # k=1 + BN + ReLU
    c2 = conv_same(t2, c2bw_ref, c2bb_ref)                           # k=3 pad=1
    t3 = jnp.maximum(conv_same(seq, c3aw_ref, c3ab_ref), 0.0)        # k=3 pad=1 + BN + ReLU
    c3 = conv_same(t3, c3bw_ref, c3bb_ref)                           # k=5 pad=2
    c4 = conv_same(seq, c4w_ref, c4b_ref)                            # k=3 pad=1
    cat = jnp.concatenate([c1, c2, c3, c4], axis=1)                  # (NH, 200)

    # ---- head: Linear(+folded BN)+ReLU x2, Linear, softmax ------------------
    # torch flattens (B, 200, S) channel-major; that ordering is folded into
    # wbig (shape (S, 200, 100)) at parameter-packing time, so we only need a
    # per-sentence row-selection matmul here.
    bi = jax.lax.broadcasted_iota(jnp.int32, (B, NH), 0)
    ni = jax.lax.broadcasted_iota(jnp.int32, (B, NH), 1)
    y = l1b_ref[...] * jnp.ones((B, 1), f32)
    for l in range(S):
        sel = (ni == bi * NP + l).astype(f32)                        # picks row b*NP + l
        row = jnp.dot(sel, cat, preferred_element_type=f32)          # (B, 200)
        y = y + jnp.dot(row, wbig_ref[l], preferred_element_type=f32)
    y = jnp.maximum(y, 0.0)                                          # Dropout=id, BN folded
    y = jnp.maximum(jnp.dot(y, l2w_ref[...], preferred_element_type=f32) + l2b_ref[...], 0.0)
    y = jnp.dot(y, l3w_ref[...], preferred_element_type=f32) + l3b_ref[...]
    y = y - jnp.max(y, axis=1, keepdims=True)
    e2 = jnp.exp(y)
    out_ref[...] = e2 / jnp.sum(e2, axis=1, keepdims=True)           # softmax(dim=1)


# ------------------------------ raw parameters --------------------------------
def init_params(key):
    keys = jax.random.split(key, 96)
    ki = iter(keys)

    def nrm(shape, s=0.1):
        return jax.random.normal(next(ki), shape, jnp.float32) * s

    def bn(nf):
        gamma = 1.0 + nrm((nf,), 0.1)
        beta = nrm((nf,), 0.1)
        rm = nrm((nf,), 0.1)
        rv = 1.0 + jax.random.uniform(next(ki), (nf,), jnp.float32) * 0.5
        scale = gamma / jnp.sqrt(rv + EPS)
        shift = beta - rm * scale
        return scale, shift

    p = {}
    p['embed'] = nrm((VOCAB, EMB), 0.3)

    # gru1 (shared by both halves in the reference forward)
    p['gru_wih'] = nrm((3 * HID, EMB))
    p['gru_whh'] = nrm((3 * HID, HID))
    p['gru_bih'] = nrm((3 * HID,), 0.05)
    p['gru_bhh'] = nrm((3 * HID,), 0.05)

    # gru1_bn / gru2_bn : per-axis-1 channel (num_features = S), eval mode
    p['bn1'] = bn(S)
    p['bn2'] = bn(S)

    # MultiheadAttention 1 and 2 (num_heads = 1)
    for name in ('att1', 'att2'):
        p[f'{name}_inw'] = nrm((3 * HID, HID))
        p[f'{name}_inb'] = nrm((3 * HID,), 0.05)
        p[f'{name}_outw'] = nrm((HID, HID))
        p[f'{name}_outb'] = nrm((HID,), 0.05)

    # seqEncoder Linear(EMB+100 -> 100)
    p['seq_w'] = nrm((100, EMB + 100))
    p['seq_b'] = nrm((100,), 0.05)

    # Conv1d weights in torch layout (Cout, Cin, K)
    p['c1_w'] = nrm((50, 100, 1)); p['c1_b'] = nrm((50,), 0.05)
    p['c2a_w'] = nrm((100, 100, 1)); p['c2a_b'] = nrm((100,), 0.05); p['c2_bn'] = bn(100)
    p['c2b_w'] = nrm((50, 100, 3)); p['c2b_b'] = nrm((50,), 0.05)
    p['c3a_w'] = nrm((100, 100, 3)); p['c3a_b'] = nrm((100,), 0.05); p['c3_bn'] = bn(100)
    p['c3b_w'] = nrm((50, 100, 5)); p['c3b_b'] = nrm((50,), 0.05)
    p['c4_w'] = nrm((50, 100, 3)); p['c4_b'] = nrm((50,), 0.05)

    # head
    p['l1_w'] = nrm((100, S * 200)); p['l1_b'] = nrm((100,), 0.05); p['l1_bn'] = bn(100)
    p['l2_w'] = nrm((50, 100)); p['l2_b'] = nrm((50,), 0.05); p['l2_bn'] = bn(50)
    p['l3_w'] = nrm((2, 50)); p['l3_b'] = nrm((2,), 0.05)
    return p


# --------------------- one-time packing into kernel operands -----------------
def pack_params(p):
    f32 = jnp.float32
    inv_sqrt_h = 1.0 / math.sqrt(HID)

    def rows_from_channel(v):                 # (S,) -> (NH,) with rows b*NP + l
        v = jnp.pad(v, (0, NP - S))
        return jnp.tile(v, B)

    def per_row_halves(v1, v2):               # -> (N2, 1)
        return jnp.concatenate([rows_from_channel(v1),
                                rows_from_channel(v2)]).reshape(N2, 1)

    def tile_half_vec(v1, v2):                # each (HID,) -> (N2, HID)
        return jnp.concatenate([jnp.tile(v1[None, :], (NH, 1)),
                                jnp.tile(v2[None, :], (NH, 1))], axis=0)

    bn1_s, bn1_h = p['bn1']; bn2_s, bn2_h = p['bn2']
    bn_scale = per_row_halves(bn1_s, bn2_s)
    bn_shift = per_row_halves(bn1_h, bn2_h)

    def att_parts(name):
        inw = p[f'{name}_inw']; inb = p[f'{name}_inb']
        wk = inw[HID:2 * HID]; wv = inw[2 * HID:3 * HID]
        bq = inb[0:HID]; bk = inb[HID:2 * HID]; bv = inb[2 * HID:3 * HID]
        u = jnp.dot(wk.T, bq) * inv_sqrt_h            # score vector (q == 0)
        cc = jnp.dot(bq, bk) * inv_sqrt_h             # score constant
        return u, cc, wv.T, bv, p[f'{name}_outw'].T, p[f'{name}_outb']

    u1, cc1, wvt1, bv1, wot1, bo1 = att_parts('att1')
    u2, cc2, wvt2, bv2, wot2, bo2 = att_parts('att2')
    u_row = tile_half_vec(u1, u2)
    c_row = jnp.concatenate([cc1 * jnp.ones((NH, 1), f32),
                             cc2 * jnp.ones((NH, 1), f32)], axis=0)
    m1 = jnp.concatenate([jnp.ones((NH, 1), f32), jnp.zeros((NH, 1), f32)], axis=0)
    wv_big = jnp.concatenate([wvt1, wvt2], axis=1)
    bv_row = tile_half_vec(bv1, bv2)
    wo_big = jnp.concatenate([wot1, wot2], axis=1)
    bo_row = tile_half_vec(bo1, bo2)

    seq_wt = p['seq_w'].T                                   # (EMB+100, 100)
    wseq_a = seq_wt[0:HID]
    wseq_x = seq_wt[HID:HID + EMB]
    wseq_c = seq_wt[HID + EMB:]
    b_seq = p['seq_b'].reshape(1, 100)

    def convw(w):                                           # (Cout,Cin,K) -> (K,Cin,Cout)
        return jnp.transpose(w, (2, 1, 0))

    c1_w = convw(p['c1_w']); c1_b = p['c1_b'].reshape(1, -1)
    s2, h2 = p['c2_bn']
    c2a_w = convw(p['c2a_w']) * s2[None, None, :]
    c2a_b = (p['c2a_b'] * s2 + h2).reshape(1, -1)
    c2b_w = convw(p['c2b_w']); c2b_b = p['c2b_b'].reshape(1, -1)
    s3, h3 = p['c3_bn']
    c3a_w = convw(p['c3a_w']) * s3[None, None, :]
    c3a_b = (p['c3a_b'] * s3 + h3).reshape(1, -1)
    c3b_w = convw(p['c3b_w']); c3b_b = p['c3b_b'].reshape(1, -1)
    c4_w = convw(p['c4_w']); c4_b = p['c4_b'].reshape(1, -1)

    # line1: re-order weight rows to match torch's (B, 200, S) channel-major
    # flatten, fold BN(100) scale, so the kernel only does per-row matmuls.
    s_l1, h_l1 = p['l1_bn']
    wbig = (p['l1_w'].T.reshape(200, S, 100).transpose(1, 0, 2)
            * s_l1[None, None, :])                          # (S, 200, 100)
    l1_b = (p['l1_b'] * s_l1 + h_l1).reshape(1, 100)
    s_l2, h_l2 = p['l2_bn']
    l2_w = p['l2_w'].T * s_l2[None, :]
    l2_b = (p['l2_b'] * s_l2 + h_l2).reshape(1, 50)
    l3_w = p['l3_w'].T
    l3_b = p['l3_b'].reshape(1, 2)

    return [
        p['embed'],
        p['gru_wih'].T, p['gru_whh'].T,
        p['gru_bih'].reshape(1, -1), p['gru_bhh'].reshape(1, -1),
        bn_scale, bn_shift,
        u_row, c_row, m1,
        wv_big, bv_row, wo_big, bo_row,
        wseq_a, wseq_x, wseq_c, b_seq,
        c1_w, c1_b, c2a_w, c2a_b, c2b_w, c2b_b,
        c3a_w, c3a_b, c3b_w, c3b_b, c4_w, c4_b,
        wbig, l1_b, l2_w, l2_b, l3_w, l3_b,
    ]


# ------------------------------ forward ---------------------------------------
def _prep_tokens(x_tokens):
    """(B, S, 2W) int32 -> (W*N2, 1) int32, rows ordered t*N2 + (half*NH + b*NP + l)."""
    x1 = x_tokens[:, :, :W]
    x2 = x_tokens[:, :, W:]

    def pad_half(t):
        t = jnp.pad(t, ((0, 0), (0, NP - S), (0, 0)))      # (B, NP, W)
        return t.reshape(B * NP, W)                         # rows b*NP + l

    tok = jnp.concatenate([pad_half(x1), pad_half(x2)], axis=0)   # (N2, W)
    tok = jnp.transpose(tok, (1, 0)).reshape(W * N2, 1)           # time-major flat
    return tok.astype(jnp.int32)


def attrcnn_forward(packed, x_tokens):
    tok = _prep_tokens(x_tokens)
    args = [tok] + list(packed)
    return pl.pallas_call(
        fused_attrcnn_kernel,
        out_shape=jax.ShapeDtypeStruct((B, 2), jnp.float32),
        in_specs=[pl.BlockSpec(memory_space=VMEM) for _ in args],
        out_specs=pl.BlockSpec(memory_space=VMEM),
    )(*args)


if __name__ == "__main__":
    key = jax.random.PRNGKey(0)
    pkey, xkey = jax.random.split(key)
    raw = init_params(pkey)
    packed = pack_params(raw)
    x = jax.random.randint(xkey, (B, S, 2 * W), 0, VOCAB, dtype=jnp.int32)

    fwd = jax.jit(attrcnn_forward)
    out = jax.block_until_ready(fwd(packed, x))

    assert out.shape == (B, 2)
    assert bool(jnp.all(jnp.isfinite(out)))
    assert bool(jnp.allclose(jnp.sum(out, axis=1), 1.0, atol=1e-4))
    print("KERNEL_OK")
</pallas_src>

<mosaic_0001>
module attributes {stable_mosaic.version = 11 : i64} {
  func.func @fused_attrcnn_kernel(%arg0: memref<256x1xi32, #tpu.memory_space<vmem>>, %arg1: memref<40x16xf32, #tpu.memory_space<vmem>>, %arg2: memref<16x150xf32, #tpu.memory_space<vmem>>, %arg3: memref<50x150xf32, #tpu.memory_space<vmem>>, %arg4: memref<1x150xf32, #tpu.memory_space<vmem>>, %arg5: memref<1x150xf32, #tpu.memory_space<vmem>>, %arg6: memref<32x1xf32, #tpu.memory_space<vmem>>, %arg7: memref<32x1xf32, #tpu.memory_space<vmem>>, %arg8: memref<32x50xf32, #tpu.memory_space<vmem>>, %arg9: memref<32x1xf32, #tpu.memory_space<vmem>>, %arg10: memref<32x1xf32, #tpu.memory_space<vmem>>, %arg11: memref<50x100xf32, #tpu.memory_space<vmem>>, %arg12: memref<32x50xf32, #tpu.memory_space<vmem>>, %arg13: memref<50x100xf32, #tpu.memory_space<vmem>>, %arg14: memref<32x50xf32, #tpu.memory_space<vmem>>, %arg15: memref<50x100xf32, #tpu.memory_space<vmem>>, %arg16: memref<16x100xf32, #tpu.memory_space<vmem>>, %arg17: memref<50x100xf32, #tpu.memory_space<vmem>>, %arg18: memref<1x100xf32, #tpu.memory_space<vmem>>, %arg19: memref<1x100x50xf32, #tpu.memory_space<vmem>>, %arg20: memref<1x50xf32, #tpu.memory_space<vmem>>, %arg21: memref<1x100x100xf32, #tpu.memory_space<vmem>>, %arg22: memref<1x100xf32, #tpu.memory_space<vmem>>, %arg23: memref<3x100x50xf32, #tpu.memory_space<vmem>>, %arg24: memref<1x50xf32, #tpu.memory_space<vmem>>, %arg25: memref<3x100x100xf32, #tpu.memory_space<vmem>>, %arg26: memref<1x100xf32, #tpu.memory_space<vmem>>, %arg27: memref<5x100x50xf32, #tpu.memory_space<vmem>>, %arg28: memref<1x50xf32, #tpu.memory_space<vmem>>, %arg29: memref<3x100x50xf32, #tpu.memory_space<vmem>>, %arg30: memref<1x50xf32, #tpu.memory_space<vmem>>, %arg31: memref<6x200x100xf32, #tpu.memory_space<vmem>>, %arg32: memref<1x100xf32, #tpu.memory_space<vmem>>, %arg33: memref<100x50xf32, #tpu.memory_space<vmem>>, %arg34: memref<1x50xf32, #tpu.memory_space<vmem>>, %arg35: memref<50x2xf32, #tpu.memory_space<vmem>>, %arg36: memref<1x2xf32, #tpu.memory_space<vmem>>, %arg37: memref<2x2xf32, #tpu.memory_space<vmem>>) attributes {dimension_semantics = [], scalar_prefetch = 0 : i64, scratch_operands = 0 : i64, tpu.core_type = #tpu.core_type<tc>} {
    %c0 = arith.constant 0 : index
    %c0_0 = arith.constant 0 : index
    %0 = vector.load %arg0[%c0, %c0_0] : memref<256x1xi32, #tpu.memory_space<vmem>>, vector<256x1xi32>
    %1 = tpu.iota {dimensions = array<i32: 1>} : vector<256x40xi32>
    %2 = vector.broadcast %0 : vector<256x1xi32> to vector<256x40xi32>
    %3 = arith.cmpi eq, %2, %1 : vector<256x40xi32>
    %4 = arith.extui %3 : vector<256x40xi1> to vector<256x40xi32>
    %5 = arith.sitofp %4 : vector<256x40xi32> to vector<256x40xf32>
    %c0_1 = arith.constant 0 : index
    %c0_2 = arith.constant 0 : index
    %6 = vector.load %arg1[%c0_1, %c0_2] : memref<40x16xf32, #tpu.memory_space<vmem>>, vector<40x16xf32>
    %cst = arith.constant dense<0.000000e+00> : vector<256x16xf32>
    %7 = tpu.matmul %5, %6, %cst {dimension_numbers = #tpu.dot_dimension_numbers<[1], [0], [0], [1], [0, 0, 1, 1], [], []>} : vector<256x40xf32>, vector<40x16xf32>, vector<256x16xf32> -> vector<256x16xf32>
    %c0_3 = arith.constant 0 : index
    %c0_4 = arith.constant 0 : index
    %8 = vector.load %arg2[%c0_3, %c0_4] : memref<16x150xf32, #tpu.memory_space<vmem>>, vector<16x150xf32>
    %cst_5 = arith.constant dense<0.000000e+00> : vector<256x150xf32>
    %9 = tpu.matmul %7, %8, %cst_5 {dimension_numbers = #tpu.dot_dimension_numbers<[1], [0], [0], [1], [0, 0, 1, 1], [], []>} : vector<256x16xf32>, vector<16x150xf32>, vector<256x150xf32> -> vector<256x150xf32>
    %c0_6 = arith.constant 0 : index
    %c0_7 = arith.constant 0 : index
    %10 = vector.load %arg4[%c0_6, %c0_7] : memref<1x150xf32, #tpu.memory_space<vmem>>, vector<1x150xf32>
    %11 = vector.broadcast %10 : vector<1x150xf32> to vector<256x150xf32>
    %12 = arith.addf %9, %11 : vector<256x150xf32>
    %c0_8 = arith.constant 0 : index
    %c0_9 = arith.constant 0 : index
    %13 = vector.load %arg3[%c0_8, %c0_9] : memref<50x150xf32, #tpu.memory_space<vmem>>, vector<50x150xf32>
    %c0_10 = arith.constant 0 : index
    %c0_11 = arith.constant 0 : index
    %14 = vector.load %arg5[%c0_10, %c0_11] : memref<1x150xf32, #tpu.memory_space<vmem>>, vector<1x150xf32>
    %c0_12 = arith.constant 0 : index
    %c0_13 = arith.constant 0 : index
    %15 = vector.load %arg6[%c0_12, %c0_13] : memref<32x1xf32, #tpu.memory_space<vmem>>, vector<32x1xf32>
    %c0_14 = arith.constant 0 : index
    %c0_15 = arith.constant 0 : index
    %16 = vector.load %arg7[%c0_14, %c0_15] : memref<32x1xf32, #tpu.memory_space<vmem>>, vector<32x1xf32>
    %c0_16 = arith.constant 0 : index
    %c0_17 = arith.constant 0 : index
    %17 = vector.load %arg8[%c0_16, %c0_17] : memref<32x50xf32, #tpu.memory_space<vmem>>, vector<32x50xf32>
    %c0_18 = arith.constant 0 : index
    %c0_19 = arith.constant 0 : index
    %18 = vector.load %arg9[%c0_18, %c0_19] : memref<32x1xf32, #tpu.memory_space<vmem>>, vector<32x1xf32>
    %c0_20 = arith.constant 0 : index
    %c0_21 = arith.constant 0 : index
    %19 = vector.load %arg10[%c0_20, %c0_21] : memref<32x1xf32, #tpu.memory_space<vmem>>, vector<32x1xf32>
    %cst_22 = arith.constant 1.000000e+00 : f32
    %20 = vector.broadcast %cst_22 : f32 to vector<32x1xf32>
    %21 = arith.subf %20, %19 : vector<32x1xf32>
    %c0_23 = arith.constant 0 : index
    %c0_24 = arith.constant 0 : index
    %22 = vector.load %arg11[%c0_23, %c0_24] : memref<50x100xf32, #tpu.memory_space<vmem>>, vector<50x100xf32>
    %c0_25 = arith.constant 0 : index
    %c0_26 = arith.constant 0 : index
    %23 = vector.load %arg12[%c0_25, %c0_26] : memref<32x50xf32, #tpu.memory_space<vmem>>, vector<32x50xf32>
    %cst_27 = arith.constant 0.000000e+00 : f32
    %24 = vector.broadcast %cst_27 : f32 to vector<32x50xf32>
    %25 = vector.extract_strided_slice %12 {offsets = [0, 0], sizes = [32, 150], strides = [1, 1]} : vector<256x150xf32> to vector<32x150xf32>
    %cst_28 = arith.constant dense<0.000000e+00> : vector<32x150xf32>
    %26 = tpu.matmul %24, %13, %cst_28 {dimension_numbers = #tpu.dot_dimension_numbers<[1], [0], [0], [1], [0, 0, 1, 1], [], []>} : vector<32x50xf32>, vector<50x150xf32>, vector<32x150xf32> -> vector<32x150xf32>
    %27 = vector.broadcast %14 : vector<1x150xf32> to vector<32x150xf32>
    %28 = arith.addf %26, %27 : vector<32x150xf32>
    %29 = vector.extract_strided_slice %25 {offsets = [0, 0], sizes = [32, 50], strides = [1, 1]} : vector<32x150xf32> to vector<32x50xf32>
    %30 = vector.extract_strided_slice %28 {offsets = [0, 0], sizes = [32, 50], strides = [1, 1]} : vector<32x150xf32> to vector<32x50xf32>
    %31 = arith.addf %29, %30 : vector<32x50xf32>
    %32 = arith.negf %31 : vector<32x50xf32>
    %33 = math.exp %32 : vector<32x50xf32>
    %cst_29 = arith.constant 1.000000e+00 : f32
    %34 = vector.broadcast %cst_29 : f32 to vector<32x50xf32>
    %35 = arith.addf %34, %33 : vector<32x50xf32>
    %36 = arith.divf %34, %35 : vector<32x50xf32>
    %37 = vector.extract_strided_slice %25 {offsets = [0, 50], sizes = [32, 50], strides = [1, 1]} : vector<32x150xf32> to vector<32x50xf32>
    %38 = vector.extract_strided_slice %28 {offsets = [0, 50], sizes = [32, 50], strides = [1, 1]} : vector<32x150xf32> to vector<32x50xf32>
    %39 = arith.addf %37, %38 : vector<32x50xf32>
    %40 = arith.negf %39 : vector<32x50xf32>
    %41 = math.exp %40 : vector<32x50xf32>
    %cst_30 = arith.constant 1.000000e+00 : f32
    %42 = vector.broadcast %cst_30 : f32 to vector<32x50xf32>
    %43 = arith.addf %42, %41 : vector<32x50xf32>
    %44 = arith.divf %42, %43 : vector<32x50xf32>
    %45 = vector.extract_strided_slice %25 {offsets = [0, 100], sizes = [32, 50], strides = [1, 1]} : vector<32x150xf32> to vector<32x50xf32>
    %46 = vector.extract_strided_slice %28 {offsets = [0, 100], sizes = [32, 50], strides = [1, 1]} : vector<32x150xf32> to vector<32x50xf32>
    %47 = arith.mulf %36, %46 : vector<32x50xf32>
    %48 = arith.addf %45, %47 : vector<32x50xf32>
    %49 = math.tanh %48 : vector<32x50xf32>
    %cst_31 = arith.constant 1.000000e+00 : f32
    %50 = vector.broadcast %cst_31 : f32 to vector<32x50xf32>
    %51 = arith.subf %50, %44 : vector<32x50xf32>
    %52 = arith.mulf %51, %49 : vector<32x50xf32>
    %53 = arith.mulf %44, %24 : vector<32x50xf32>
    %54 = arith.addf %52, %53 : vector<32x50xf32>
    %55 = vector.broadcast %15 : vector<32x1xf32> to vector<32x50xf32>
    %56 = arith.mulf %54, %55 : vector<32x50xf32>
    %57 = vector.broadcast %16 : vector<32x1xf32> to vector<32x50xf32>
    %58 = arith.addf %56, %57 : vector<32x50xf32>
    %cst_32 = arith.constant 0.000000e+00 : f32
    %59 = vector.broadcast %cst_32 : f32 to vector<32x50xf32>
    %60 = arith.maximumf %58, %59 : vector<32x50xf32>
    %61 = arith.mulf %60, %17 : vector<32x50xf32>
    %cst_33 = arith.constant dense<0.000000e+00> : vector<32xf32>
    %62 = vector.multi_reduction <add>, %61, %cst_33 [1] : vector<32x50xf32> to vector<32xf32>
    %63 = vector.shape_cast %62 : vector<32xf32> to vector<32x1xf32>
    %64 = arith.addf %63, %18 : vector<32x1xf32>
    %cst_34 = arith.constant dense<0.000000e+00> : vector<32x100xf32>
    %65 = tpu.matmul %60, %22, %cst_34 {dimension_numbers = #tpu.dot_dimension_numbers<[1], [0], [0], [1], [0, 0, 1, 1], [], []>} : vector<32x50xf32>, vector<50x100xf32>, vector<32x100xf32> -> vector<32x100xf32>
    %66 = vector.extract_strided_slice %65 {offsets = [0, 0], sizes = [32, 50], strides = [1, 1]} : vector<32x100xf32> to vector<32x50xf32>
    %67 = vector.broadcast %19 : vector<32x1xf32> to vector<32x50xf32>
    %68 = arith.mulf %66, %67 : vector<32x50xf32>
    %69 = vector.extract_strided_slice %65 {offsets = [0, 50], sizes = [32, 50], strides = [1, 1]} : vector<32x100xf32> to vector<32x50xf32>
    %70 = vector.broadcast %21 : vector<32x1xf32> to vector<32x50xf32>
    %71 = arith.mulf %69, %70 : vector<32x50xf32>
    %72 = arith.addf %68, %71 : vector<32x50xf32>
    %73 = arith.addf %72, %23 : vector<32x50xf32>
    %74 = vector.extract_strided_slice %12 {offsets = [32, 0], sizes = [32, 150], strides = [1, 1]} : vector<256x150xf32> to vector<32x150xf32>
    %cst_35 = arith.constant dense<0.000000e+00> : vector<32x150xf32>
    %75 = tpu.matmul %54, %13, %cst_35 {dimension_numbers = #tpu.dot_dimension_numbers<[1], [0], [0], [1], [0, 0, 1, 1], [], []>} : vector<32x50xf32>, vector<50x150xf32>, vector<32x150xf32> -> vector<32x150xf32>
    %76 = vector.broadcast %14 : vector<1x150xf32> to vector<32x150xf32>
    %77 = arith.addf %75, %76 : vector<32x150xf32>
    %78 = vector.extract_strided_slice %74 {offsets = [0, 0], sizes = [32, 50], strides = [1, 1]} : vector<32x150xf32> to vector<32x50xf32>
    %79 = vector.extract_strided_slice %77 {offsets = [0, 0], sizes = [32, 50], strides = [1, 1]} : vector<32x150xf32> to vector<32x50xf32>
    %80 = arith.addf %78, %79 : vector<32x50xf32>
    %81 = arith.negf %80 : vector<32x50xf32>
    %82 = math.exp %81 : vector<32x50xf32>
    %cst_36 = arith.constant 1.000000e+00 : f32
    %83 = vector.broadcast %cst_36 : f32 to vector<32x50xf32>
    %84 = arith.addf %83, %82 : vector<32x50xf32>
    %85 = arith.divf %83, %84 : vector<32x50xf32>
    %86 = vector.extract_strided_slice %74 {offsets = [0, 50], sizes = [32, 50], strides = [1, 1]} : vector<32x150xf32> to vector<32x50xf32>
    %87 = vector.extract_strided_slice %77 {offsets = [0, 50], sizes = [32, 50], strides = [1, 1]} : vector<32x150xf32> to vector<32x50xf32>
    %88 = arith.addf %86, %87 : vector<32x50xf32>
    %89 = arith.negf %88 : vector<32x50xf32>
    %90 = math.exp %89 : vector<32x50xf32>
    %cst_37 = arith.constant 1.000000e+00 : f32
    %91 = vector.broadcast %cst_37 : f32 to vector<32x50xf32>
    %92 = arith.addf %91, %90 : vector<32x50xf32>
    %93 = arith.divf %91, %92 : vector<32x50xf32>
    %94 = vector.extract_strided_slice %74 {offsets = [0, 100], sizes = [32, 50], strides = [1, 1]} : vector<32x150xf32> to vector<32x50xf32>
    %95 = vector.extract_strided_slice %77 {offsets = [0, 100], sizes = [32, 50], strides = [1, 1]} : vector<32x150xf32> to vector<32x50xf32>
    %96 = arith.mulf %85, %95 : vector<32x50xf32>
    %97 = arith.addf %94, %96 : vector<32x50xf32>
    %98 = math.tanh %97 : vector<32x50xf32>
    %cst_38 = arith.constant 1.000000e+00 : f32
    %99 = vector.broadcast %cst_38 : f32 to vector<32x50xf32>
    %100 = arith.subf %99, %93 : vector<32x50xf32>
    %101 = arith.mulf %100, %98 : vector<32x50xf32>
    %102 = arith.mulf %93, %54 : vector<32x50xf32>
    %103 = arith.addf %101, %102 : vector<32x50xf32>
    %104 = vector.broadcast %15 : vector<32x1xf32> to vector<32x50xf32>
    %105 = arith.mulf %103, %104 : vector<32x50xf32>
    %106 = vector.broadcast %16 : vector<32x1xf32> to vector<32x50xf32>
    %107 = arith.addf %105, %106 : vector<32x50xf32>
    %cst_39 = arith.constant 0.000000e+00 : f32
    %108 = vector.broadcast %cst_39 : f32 to vector<32x50xf32>
    %109 = arith.maximumf %107, %108 : vector<32x50xf32>
    %110 = arith.mulf %109, %17 : vector<32x50xf32>
    %cst_40 = arith.constant dense<0.000000e+00> : vector<32xf32>
    %111 = vector.multi_reduction <add>, %110, %cst_40 [1] : vector<32x50xf32> to vector<32xf32>
    %112 = vector.shape_cast %111 : vector<32xf32> to vector<32x1xf32>
    %113 = arith.addf %112, %18 : vector<32x1xf32>
    %cst_41 = arith.constant dense<0.000000e+00> : vector<32x100xf32>
    %114 = tpu.matmul %109, %22, %cst_41 {dimension_numbers = #tpu.dot_dimension_numbers<[1], [0], [0], [1], [0, 0, 1, 1], [], []>} : vector<32x50xf32>, vector<50x100xf32>, vector<32x100xf32> -> vector<32x100xf32>
    %115 = vector.extract_strided_slice %114 {offsets = [0, 0], sizes = [32, 50], strides = [1, 1]} : vector<32x100xf32> to vector<32x50xf32>
    %116 = vector.broadcast %19 : vector<32x1xf32> to vector<32x50xf32>
    %117 = arith.mulf %115, %116 : vector<32x50xf32>
    %118 = vector.extract_strided_slice %114 {offsets = [0, 50], sizes = [32, 50], strides = [1, 1]} : vector<32x100xf32> to vector<32x50xf32>
    %119 = vector.broadcast %21 : vector<32x1xf32> to vector<32x50xf32>
    %120 = arith.mulf %118, %119 : vector<32x50xf32>
    %121 = arith.addf %117, %120 : vector<32x50xf32>
    %122 = arith.addf %121, %23 : vector<32x50xf32>
    %123 = vector.extract_strided_slice %12 {offsets = [64, 0], sizes = [32, 150], strides = [1, 1]} : vector<256x150xf32> to vector<32x150xf32>
    %cst_42 = arith.constant dense<0.000000e+00> : vector<32x150xf32>
    %124 = tpu.matmul %103, %13, %cst_42 {dimension_numbers = #tpu.dot_dimension_numbers<[1], [0], [0], [1], [0, 0, 1, 1], [], []>} : vector<32x50xf32>, vector<50x150xf32>, vector<32x150xf32> -> vector<32x150xf32>
    %125 = vector.broadcast %14 : vector<1x150xf32> to vector<32x150xf32>
    %126 = arith.addf %124, %125 : vector<32x150xf32>
    %127 = vector.extract_strided_slice %123 {offsets = [0, 0], sizes = [32, 50], strides = [1, 1]} : vector<32x150xf32> to vector<32x50xf32>
    %128 = vector.extract_strided_slice %126 {offsets = [0, 0], sizes = [32, 50], strides = [1, 1]} : vector<32x150xf32> to vector<32x50xf32>
    %129 = arith.addf %127, %128 : vector<32x50xf32>
    %130 = arith.negf %129 : vector<32x50xf32>
    %131 = math.exp %130 : vector<32x50xf32>
    %cst_43 = arith.constant 1.000000e+00 : f32
    %132 = vector.broadcast %cst_43 : f32 to vector<32x50xf32>
    %133 = arith.addf %132, %131 : vector<32x50xf32>
    %134 = arith.divf %132, %133 : vector<32x50xf32>
    %135 = vector.extract_strided_slice %123 {offsets = [0, 50], sizes = [32, 50], strides = [1, 1]} : vector<32x150xf32> to vector<32x50xf32>
    %136 = vector.extract_strided_slice %126 {offsets = [0, 50], sizes = [32, 50], strides = [1, 1]} : vector<32x150xf32> to vector<32x50xf32>
    %137 = arith.addf %135, %136 : vector<32x50xf32>
    %138 = arith.negf %137 : vector<32x50xf32>
    %139 = math.exp %138 : vector<32x50xf32>
    %cst_44 = arith.constant 1.000000e+00 : f32
    %140 = vector.broadcast %cst_44 : f32 to vector<32x50xf32>
    %141 = arith.addf %140, %139 : vector<32x50xf32>
    %142 = arith.divf %140, %141 : vector<32x50xf32>
    %143 = vector.extract_strided_slice %123 {offsets = [0, 100], sizes = [32, 50], strides = [1, 1]} : vector<32x150xf32> to vector<32x50xf32>
    %144 = vector.extract_strided_slice %126 {offsets = [0, 100], sizes = [32, 50], strides = [1, 1]} : vector<32x150xf32> to vector<32x50xf32>
    %145 = arith.mulf %134, %144 : vector<32x50xf32>
    %146 = arith.addf %143, %145 : vector<32x50xf32>
    %147 = math.tanh %146 : vector<32x50xf32>
    %cst_45 = arith.constant 1.000000e+00 : f32
    %148 = vector.broadcast %cst_45 : f32 to vector<32x50xf32>
    %149 = arith.subf %148, %142 : vector<32x50xf32>
    %150 = arith.mulf %149, %147 : vector<32x50xf32>
    %151 = arith.mulf %142, %103 : vector<32x50xf32>
    %152 = arith.addf %150, %151 : vector<32x50xf32>
    %153 = vector.broadcast %15 : vector<32x1xf32> to vector<32x50xf32>
    %154 = arith.mulf %152, %153 : vector<32x50xf32>
    %155 = vector.broadcast %16 : vector<32x1xf32> to vector<32x50xf32>
    %156 = arith.addf %154, %155 : vector<32x50xf32>
    %cst_46 = arith.constant 0.000000e+00 : f32
    %157 = vector.broadcast %cst_46 : f32 to vector<32x50xf32>
    %158 = arith.maximumf %156, %157 : vector<32x50xf32>
    %159 = arith.mulf %158, %17 : vector<32x50xf32>
    %cst_47 = arith.constant dense<0.000000e+00> : vector<32xf32>
    %160 = vector.multi_reduction <add>, %159, %cst_47 [1] : vector<32x50xf32> to vector<32xf32>
    %161 = vector.shape_cast %160 : vector<32xf32> to vector<32x1xf32>
    %162 = arith.addf %161, %18 : vector<32x1xf32>
    %cst_48 = arith.constant dense<0.000000e+00> : vector<32x100xf32>
    %163 = tpu.matmul %158, %22, %cst_48 {dimension_numbers = #tpu.dot_dimension_numbers<[1], [0], [0], [1], [0, 0, 1, 1], [], []>} : vector<32x50xf32>, vector<50x100xf32>, vector<32x100xf32> -> vector<32x100xf32>
    %164 = vector.extract_strided_slice %163 {offsets = [0, 0], sizes = [32, 50], strides = [1, 1]} : vector<32x100xf32> to vector<32x50xf32>
    %165 = vector.broadcast %19 : vector<32x1xf32> to vector<32x50xf32>
    %166 = arith.mulf %164, %165 : vector<32x50xf32>
    %167 = vector.extract_strided_slice %163 {offsets = [0, 50], sizes = [32, 50], strides = [1, 1]} : vector<32x100xf32> to vector<32x50xf32>
    %168 = vector.broadcast %21 : vector<32x1xf32> to vector<32x50xf32>
    %169 = arith.mulf %167, %168 : vector<32x50xf32>
    %170 = arith.addf %166, %169 : vector<32x50xf32>
    %171 = arith.addf %170, %23 : vector<32x50xf32>
    %172 = vector.extract_strided_slice %12 {offsets = [96, 0], sizes = [32, 150], strides = [1, 1]} : vector<256x150xf32> to vector<32x150xf32>
    %cst_49 = arith.constant dense<0.000000e+00> : vector<32x150xf32>
    %173 = tpu.matmul %152, %13, %cst_49 {dimension_numbers = #tpu.dot_dimension_numbers<[1], [0], [0], [1], [0, 0, 1, 1], [], []>} : vector<32x50xf32>, vector<50x150xf32>, vector<32x150xf32> -> vector<32x150xf32>
    %174 = vector.broadcast %14 : vector<1x150xf32> to vector<32x150xf32>
    %175 = arith.addf %173, %174 : vector<32x150xf32>
    %176 = vector.extract_strided_slice %172 {offsets = [0, 0], sizes = [32, 50], strides = [1, 1]} : vector<32x150xf32> to vector<32x50xf32>
    %177 = vector.extract_strided_slice %175 {offsets = [0, 0], sizes = [32, 50], strides = [1, 1]} : vector<32x150xf32> to vector<32x50xf32>
    %178 = arith.addf %176, %177 : vector<32x50xf32>
    %179 = arith.negf %178 : vector<32x50xf32>
    %180 = math.exp %179 : vector<32x50xf32>
    %cst_50 = arith.constant 1.000000e+00 : f32
    %181 = vector.broadcast %cst_50 : f32 to vector<32x50xf32>
    %182 = arith.addf %181, %180 : vector<32x50xf32>
    %183 = arith.divf %181, %182 : vector<32x50xf32>
    %184 = vector.extract_strided_slice %172 {offsets = [0, 50], sizes = [32, 50], strides = [1, 1]} : vector<32x150xf32> to vector<32x50xf32>
    %185 = vector.extract_strided_slice %175 {offsets = [0, 50], sizes = [32, 50], strides = [1, 1]} : vector<32x150xf32> to vector<32x50xf32>
    %186 = arith.addf %184, %185 : vector<32x50xf32>
    %187 = arith.negf %186 : vector<32x50xf32>
    %188 = math.exp %187 : vector<32x50xf32>
    %cst_51 = arith.constant 1.000000e+00 : f32
    %189 = vector.broadcast %cst_51 : f32 to vector<32x50xf32>
    %190 = arith.addf %189, %188 : vector<32x50xf32>
    %191 = arith.divf %189, %190 : vector<32x50xf32>
    %192 = vector.extract_strided_slice %172 {offsets = [0, 100], sizes = [32, 50], strides = [1, 1]} : vector<32x150xf32> to vector<32x50xf32>
    %193 = vector.extract_strided_slice %175 {offsets = [0, 100], sizes = [32, 50], strides = [1, 1]} : vector<32x150xf32> to vector<32x50xf32>
    %194 = arith.mulf %183, %193 : vector<32x50xf32>
    %195 = arith.addf %192, %194 : vector<32x50xf32>
    %196 = math.tanh %195 : vector<32x50xf32>
    %cst_52 = arith.constant 1.000000e+00 : f32
    %197 = vector.broadcast %cst_52 : f32 to vector<32x50xf32>
    %198 = arith.subf %197, %191 : vector<32x50xf32>
    %199 = arith.mulf %198, %196 : vector<32x50xf32>
    %200 = arith.mulf %191, %152 : vector<32x50xf32>
    %201 = arith.addf %199, %200 : vector<32x50xf32>
    %202 = vector.broadcast %15 : vector<32x1xf32> to vector<32x50xf32>
    %203 = arith.mulf %201, %202 : vector<32x50xf32>
    %204 = vector.broadcast %16 : vector<32x1xf32> to vector<32x50xf32>
    %205 = arith.addf %203, %204 : vector<32x50xf32>
    %cst_53 = arith.constant 0.000000e+00 : f32
    %206 = vector.broadcast %cst_53 : f32 to vector<32x50xf32>
    %207 = arith.maximumf %205, %206 : vector<32x50xf32>
    %208 = arith.mulf %207, %17 : vector<32x50xf32>
    %cst_54 = arith.constant dense<0.000000e+00> : vector<32xf32>
    %209 = vector.multi_reduction <add>, %208, %cst_54 [1] : vector<32x50xf32> to vector<32xf32>
    %210 = vector.shape_cast %209 : vector<32xf32> to vector<32x1xf32>
    %211 = arith.addf %210, %18 : vector<32x1xf32>
    %cst_55 = arith.constant dense<0.000000e+00> : vector<32x100xf32>
    %212 = tpu.matmul %207, %22, %cst_55 {dimension_numbers = #tpu.dot_dimension_numbers<[1], [0], [0], [1], [0, 0, 1, 1], [], []>} : vector<32x50xf32>, vector<50x100xf32>, vector<32x100xf32> -> vector<32x100xf32>
    %213 = vector.extract_strided_slice %212 {offsets = [0, 0], sizes = [32, 50], strides = [1, 1]} : vector<32x100xf32> to vector<32x50xf32>
    %214 = vector.broadcast %19 : vector<32x1xf32> to vector<32x50xf32>
    %215 = arith.mulf %213, %214 : vector<32x50xf32>
    %216 = vector.extract_strided_slice %212 {offsets = [0, 50], sizes = [32, 50], strides = [1, 1]} : vector<32x100xf32> to vector<32x50xf32>
    %217 = vector.broadcast %21 : vector<32x1xf32> to vector<32x50xf32>
    %218 = arith.mulf %216, %217 : vector<32x50xf32>
    %219 = arith.addf %215, %218 : vector<32x50xf32>
    %220 = arith.addf %219, %23 : vector<32x50xf32>
    %221 = vector.extract_strided_slice %12 {offsets = [128, 0], sizes = [32, 150], strides = [1, 1]} : vector<256x150xf32> to vector<32x150xf32>
    %cst_56 = arith.constant dense<0.000000e+00> : vector<32x150xf32>
    %222 = tpu.matmul %201, %13, %cst_56 {dimension_numbers = #tpu.dot_dimension_numbers<[1], [0], [0], [1], [0, 0, 1, 1], [], []>} : vector<32x50xf32>, vector<50x150xf32>, vector<32x150xf32> -> vector<32x150xf32>
    %223 = vector.broadcast %14 : vector<1x150xf32> to vector<32x150xf32>
    %224 = arith.addf %222, %223 : vector<32x150xf32>
    %225 = vector.extract_strided_slice %221 {offsets = [0, 0], sizes = [32, 50], strides = [1, 1]} : vector<32x150xf32> to vector<32x50xf32>
    %226 = vector.extract_strided_slice %224 {offsets = [0, 0], sizes = [32, 50], strides = [1, 1]} : vector<32x150xf32> to vector<32x50xf32>
    %227 = arith.addf %225, %226 : vector<32x50xf32>
    %228 = arith.negf %227 : vector<32x50xf32>
    %229 = math.exp %228 : vector<32x50xf32>
    %cst_57 = arith.constant 1.000000e+00 : f32
    %230 = vector.broadcast %cst_57 : f32 to vector<32x50xf32>
    %231 = arith.addf %230, %229 : vector<32x50xf32>
    %232 = arith.divf %230, %231 : vector<32x50xf32>
    %233 = vector.extract_strided_slice %221 {offsets = [0, 50], sizes = [32, 50], strides = [1, 1]} : vector<32x150xf32> to vector<32x50xf32>
    %234 = vector.extract_strided_slice %224 {offsets = [0, 50], sizes = [32, 50], strides = [1, 1]} : vector<32x150xf32> to vector<32x50xf32>
    %235 = arith.addf %233, %234 : vector<32x50xf32>
    %236 = arith.negf %235 : vector<32x50xf32>
    %237 = math.exp %236 : vector<32x50xf32>
    %cst_58 = arith.constant 1.000000e+00 : f32
    %238 = vector.broadcast %cst_58 : f32 to vector<32x50xf32>
    %239 = arith.addf %238, %237 : vector<32x50xf32>
    %240 = arith.divf %238, %239 : vector<32x50xf32>
    %241 = vector.extract_strided_slice %221 {offsets = [0, 100], sizes = [32, 50], strides = [1, 1]} : vector<32x150xf32> to vector<32x50xf32>
    %242 = vector.extract_strided_slice %224 {offsets = [0, 100], sizes = [32, 50], strides = [1, 1]} : vector<32x150xf32> to vector<32x50xf32>
    %243 = arith.mulf %232, %242 : vector<32x50xf32>
    %244 = arith.addf %241, %243 : vector<32x50xf32>
    %245 = math.tanh %244 : vector<32x50xf32>
    %cst_59 = arith.constant 1.000000e+00 : f32
    %246 = vector.broadcast %cst_59 : f32 to vector<32x50xf32>
    %247 = arith.subf %246, %240 : vector<32x50xf32>
    %248 = arith.mulf %247, %245 : vector<32x50xf32>
    %249 = arith.mulf %240, %201 : vector<32x50xf32>
    %250 = arith.addf %248, %249 : vector<32x50xf32>
    %251 = vector.broadcast %15 : vector<32x1xf32> to vector<32x50xf32>
    %252 = arith.mulf %250, %251 : vector<32x50xf32>
    %253 = vector.broadcast %16 : vector<32x1xf32> to vector<32x50xf32>
    %254 = arith.addf %252, %253 : vector<32x50xf32>
    %cst_60 = arith.constant 0.000000e+00 : f32
    %255 = vector.broadcast %cst_60 : f32 to vector<32x50xf32>
    %256 = arith.maximumf %254, %255 : vector<32x50xf32>
    %257 = arith.mulf %256, %17 : vector<32x50xf32>
    %cst_61 = arith.constant dense<0.000000e+00> : vector<32xf32>
    %258 = vector.multi_reduction <add>, %257, %cst_61 [1] : vector<32x50xf32> to vector<32xf32>
    %259 = vector.shape_cast %258 : vector<32xf32> to vector<32x1xf32>
    %260 = arith.addf %259, %18 : vector<32x1xf32>
    %cst_62 = arith.constant dense<0.000000e+00> : vector<32x100xf32>
    %261 = tpu.matmul %256, %22, %cst_62 {dimension_numbers = #tpu.dot_dimension_numbers<[1], [0], [0], [1], [0, 0, 1, 1], [], []>} : vector<32x50xf32>, vector<50x100xf32>, vector<32x100xf32> -> vector<32x100xf32>
    %262 = vector.extract_strided_slice %261 {offsets = [0, 0], sizes = [32, 50], strides = [1, 1]} : vector<32x100xf32> to vector<32x50xf32>
    %263 = vector.broadcast %19 : vector<32x1xf32> to vector<32x50xf32>
    %264 = arith.mulf %262, %263 : vector<32x50xf32>
    %265 = vector.extract_strided_slice %261 {offsets = [0, 50], sizes = [32, 50], strides = [1, 1]} : vector<32x100xf32> to vector<32x50xf32>
    %266 = vector.broadcast %21 : vector<32x1xf32> to vector<32x50xf32>
    %267 = arith.mulf %265, %266 : vector<32x50xf32>
    %268 = arith.addf %264, %267 : vector<32x50xf32>
    %269 = arith.addf %268, %23 : vector<32x50xf32>
    %270 = vector.extract_strided_slice %12 {offsets = [160, 0], sizes = [32, 150], strides = [1, 1]} : vector<256x150xf32> to vector<32x150xf32>
    %cst_63 = arith.constant dense<0.000000e+00> : vector<32x150xf32>
    %271 = tpu.matmul %250, %13, %cst_63 {dimension_numbers = #tpu.dot_dimension_numbers<[1], [0], [0], [1], [0, 0, 1, 1], [], []>} : vector<32x50xf32>, vector<50x150xf32>, vector<32x150xf32> -> vector<32x150xf32>
    %272 = vector.broadcast %14 : vector<1x150xf32> to vector<32x150xf32>
    %273 = arith.addf %271, %272 : vector<32x150xf32>
    %274 = vector.extract_strided_slice %270 {offsets = [0, 0], sizes = [32, 50], strides = [1, 1]} : vector<32x150xf32> to vector<32x50xf32>
    %275 = vector.extract_strided_slice %273 {offsets = [0, 0], sizes = [32, 50], strides = [1, 1]} : vector<32x150xf32> to vector<32x50xf32>
    %276 = arith.addf %274, %275 : vector<32x50xf32>
    %277 = arith.negf %276 : vector<32x50xf32>
    %278 = math.exp %277 : vector<32x50xf32>
    %cst_64 = arith.constant 1.000000e+00 : f32
    %279 = vector.broadcast %cst_64 : f32 to vector<32x50xf32>
    %280 = arith.addf %279, %278 : vector<32x50xf32>
    %281 = arith.divf %279, %280 : vector<32x50xf32>
    %282 = vector.extract_strided_slice %270 {offsets = [0, 50], sizes = [32, 50], strides = [1, 1]} : vector<32x150xf32> to vector<32x50xf32>
    %283 = vector.extract_strided_slice %273 {offsets = [0, 50], sizes = [32, 50], strides = [1, 1]} : vector<32x150xf32> to vector<32x50xf32>
    %284 = arith.addf %282, %283 : vector<32x50xf32>
    %285 = arith.negf %284 : vector<32x50xf32>
    %286 = math.exp %285 : vector<32x50xf32>
    %cst_65 = arith.constant 1.000000e+00 : f32
    %287 = vector.broadcast %cst_65 : f32 to vector<32x50xf32>
    %288 = arith.addf %287, %286 : vector<32x50xf32>
    %289 = arith.divf %287, %288 : vector<32x50xf32>
    %290 = vector.extract_strided_slice %270 {offsets = [0, 100], sizes = [32, 50], strides = [1, 1]} : vector<32x150xf32> to vector<32x50xf32>
    %291 = vector.extract_strided_slice %273 {offsets = [0, 100], sizes = [32, 50], strides = [1, 1]} : vector<32x150xf32> to vector<32x50xf32>
    %292 = arith.mulf %281, %291 : vector<32x50xf32>
    %293 = arith.addf %290, %292 : vector<32x50xf32>
    %294 = math.tanh %293 : vector<32x50xf32>
    %cst_66 = arith.constant 1.000000e+00 : f32
    %295 = vector.broadcast %cst_66 : f32 to vector<32x50xf32>
    %296 = arith.subf %295, %289 : vector<32x50xf32>
    %297 = arith.mulf %296, %294 : vector<32x50xf32>
    %298 = arith.mulf %289, %250 : vector<32x50xf32>
    %299 = arith.addf %297, %298 : vector<32x50xf32>
    %300 = vector.broadcast %15 : vector<32x1xf32> to vector<32x50xf32>
    %301 = arith.mulf %299, %300 : vector<32x50xf32>
    %302 = vector.broadcast %16 : vector<32x1xf32> to vector<32x50xf32>
    %303 = arith.addf %301, %302 : vector<32x50xf32>
    %cst_67 = arith.constant 0.000000e+00 : f32
    %304 = vector.broadcast %cst_67 : f32 to vector<32x50xf32>
    %305 = arith.maximumf %303, %304 : vector<32x50xf32>
    %306 = arith.mulf %305, %17 : vector<32x50xf32>
    %cst_68 = arith.constant dense<0.000000e+00> : vector<32xf32>
    %307 = vector.multi_reduction <add>, %306, %cst_68 [1] : vector<32x50xf32> to vector<32xf32>
    %308 = vector.shape_cast %307 : vector<32xf32> to vector<32x1xf32>
    %309 = arith.addf %308, %18 : vector<32x1xf32>
    %cst_69 = arith.constant dense<0.000000e+00> : vector<32x100xf32>
    %310 = tpu.matmul %305, %22, %cst_69 {dimension_numbers = #tpu.dot_dimension_numbers<[1], [0], [0], [1], [0, 0, 1, 1], [], []>} : vector<32x50xf32>, vector<50x100xf32>, vector<32x100xf32> -> vector<32x100xf32>
    %311 = vector.extract_strided_slice %310 {offsets = [0, 0], sizes = [32, 50], strides = [1, 1]} : vector<32x100xf32> to vector<32x50xf32>
    %312 = vector.broadcast %19 : vector<32x1xf32> to vector<32x50xf32>
    %313 = arith.mulf %311, %312 : vector<32x50xf32>
    %314 = vector.extract_strided_slice %310 {offsets = [0, 50], sizes = [32, 50], strides = [1, 1]} : vector<32x100xf32> to vector<32x50xf32>
    %315 = vector.broadcast %21 : vector<32x1xf32> to vector<32x50xf32>
    %316 = arith.mulf %314, %315 : vector<32x50xf32>
    %317 = arith.addf %313, %316 : vector<32x50xf32>
    %318 = arith.addf %317, %23 : vector<32x50xf32>
    %319 = vector.extract_strided_slice %12 {offsets = [192, 0], sizes = [32, 150], strides = [1, 1]} : vector<256x150xf32> to vector<32x150xf32>
    %cst_70 = arith.constant dense<0.000000e+00> : vector<32x150xf32>
    %320 = tpu.matmul %299, %13, %cst_70 {dimension_numbers = #tpu.dot_dimension_numbers<[1], [0], [0], [1], [0, 0, 1, 1], [], []>} : vector<32x50xf32>, vector<50x150xf32>, vector<32x150xf32> -> vector<32x150xf32>
    %321 = vector.broadcast %14 : vector<1x150xf32> to vector<32x150xf32>
    %322 = arith.addf %320, %321 : vector<32x150xf32>
    %323 = vector.extract_strided_slice %319 {offsets = [0, 0], sizes = [32, 50], strides = [1, 1]} : vector<32x150xf32> to vector<32x50xf32>
    %324 = vector.extract_strided_slice %322 {offsets = [0, 0], sizes = [32, 50], strides = [1, 1]} : vector<32x150xf32> to vector<32x50xf32>
    %325 = arith.addf %323, %324 : vector<32x50xf32>
    %326 = arith.negf %325 : vector<32x50xf32>
    %327 = math.exp %326 : vector<32x50xf32>
    %cst_71 = arith.constant 1.000000e+00 : f32
    %328 = vector.broadcast %cst_71 : f32 to vector<32x50xf32>
    %329 = arith.addf %328, %327 : vector<32x50xf32>
    %330 = arith.divf %328, %329 : vector<32x50xf32>
    %331 = vector.extract_strided_slice %319 {offsets = [0, 50], sizes = [32, 50], strides = [1, 1]} : vector<32x150xf32> to vector<32x50xf32>
    %332 = vector.extract_strided_slice %322 {offsets = [0, 50], sizes = [32, 50], strides = [1, 1]} : vector<32x150xf32> to vector<32x50xf32>
    %333 = arith.addf %331, %332 : vector<32x50xf32>
    %334 = arith.negf %333 : vector<32x50xf32>
    %335 = math.exp %334 : vector<32x50xf32>
    %cst_72 = arith.constant 1.000000e+00 : f32
    %336 = vector.broadcast %cst_72 : f32 to vector<32x50xf32>
    %337 = arith.addf %336, %335 : vector<32x50xf32>
    %338 = arith.divf %336, %337 : vector<32x50xf32>
    %339 = vector.extract_strided_slice %319 {offsets = [0, 100], sizes = [32, 50], strides = [1, 1]} : vector<32x150xf32> to vector<32x50xf32>
    %340 = vector.extract_strided_slice %322 {offsets = [0, 100], sizes = [32, 50], strides = [1, 1]} : vector<32x150xf32> to vector<32x50xf32>
    %341 = arith.mulf %330, %340 : vector<32x50xf32>
    %342 = arith.addf %339, %341 : vector<32x50xf32>
    %343 = math.tanh %342 : vector<32x50xf32>
    %cst_73 = arith.constant 1.000000e+00 : f32
    %344 = vector.broadcast %cst_73 : f32 to vector<32x50xf32>
    %345 = arith.subf %344, %338 : vector<32x50xf32>
    %346 = arith.mulf %345, %343 : vector<32x50xf32>
    %347 = arith.mulf %338, %299 : vector<32x50xf32>
    %348 = arith.addf %346, %347 : vector<32x50xf32>
    %349 = vector.broadcast %15 : vector<32x1xf32> to vector<32x50xf32>
    %350 = arith.mulf %348, %349 : vector<32x50xf32>
    %351 = vector.broadcast %16 : vector<32x1xf32> to vector<32x50xf32>
    %352 = arith.addf %350, %351 : vector<32x50xf32>
    %cst_74 = arith.constant 0.000000e+00 : f32
    %353 = vector.broadcast %cst_74 : f32 to vector<32x50xf32>
    %354 = arith.maximumf %352, %353 : vector<32x50xf32>
    %355 = arith.mulf %354, %17 : vector<32x50xf32>
    %cst_75 = arith.constant dense<0.000000e+00> : vector<32xf32>
    %356 = vector.multi_reduction <add>, %355, %cst_75 [1] : vector<32x50xf32> to vector<32xf32>
    %357 = vector.shape_cast %356 : vector<32xf32> to vector<32x1xf32>
    %358 = arith.addf %357, %18 : vector<32x1xf32>
    %cst_76 = arith.constant dense<0.000000e+00> : vector<32x100xf32>
    %359 = tpu.matmul %354, %22, %cst_76 {dimension_numbers = #tpu.dot_dimension_numbers<[1], [0], [0], [1], [0, 0, 1, 1], [], []>} : vector<32x50xf32>, vector<50x100xf32>, vector<32x100xf32> -> vector<32x100xf32>
    %360 = vector.extract_strided_slice %359 {offsets = [0, 0], sizes = [32, 50], strides = [1, 1]} : vector<32x100xf32> to vector<32x50xf32>
    %361 = vector.broadcast %19 : vector<32x1xf32> to vector<32x50xf32>
    %362 = arith.mulf %360, %361 : vector<32x50xf32>
    %363 = vector.extract_strided_slice %359 {offsets = [0, 50], sizes = [32, 50], strides = [1, 1]} : vector<32x100xf32> to vector<32x50xf32>
    %364 = vector.broadcast %21 : vector<32x1xf32> to vector<32x50xf32>
    %365 = arith.mulf %363, %364 : vector<32x50xf32>
    %366 = arith.addf %362, %365 : vector<32x50xf32>
    %367 = arith.addf %366, %23 : vector<32x50xf32>
    %368 = vector.extract_strided_slice %12 {offsets = [224, 0], sizes = [32, 150], strides = [1, 1]} : vector<256x150xf32> to vector<32x150xf32>
    %cst_77 = arith.constant dense<0.000000e+00> : vector<32x150xf32>
    %369 = tpu.matmul %348, %13, %cst_77 {dimension_numbers = #tpu.dot_dimension_numbers<[1], [0], [0], [1], [0, 0, 1, 1], [], []>} : vector<32x50xf32>, vector<50x150xf32>, vector<32x150xf32> -> vector<32x150xf32>
    %370 = vector.broadcast %14 : vector<1x150xf32> to vector<32x150xf32>
    %371 = arith.addf %369, %370 : vector<32x150xf32>
    %372 = vector.extract_strided_slice %368 {offsets = [0, 0], sizes = [32, 50], strides = [1, 1]} : vector<32x150xf32> to vector<32x50xf32>
    %373 = vector.extract_strided_slice %371 {offsets = [0, 0], sizes = [32, 50], strides = [1, 1]} : vector<32x150xf32> to vector<32x50xf32>
    %374 = arith.addf %372, %373 : vector<32x50xf32>
    %375 = arith.negf %374 : vector<32x50xf32>
    %376 = math.exp %375 : vector<32x50xf32>
    %cst_78 = arith.constant 1.000000e+00 : f32
    %377 = vector.broadcast %cst_78 : f32 to vector<32x50xf32>
    %378 = arith.addf %377, %376 : vector<32x50xf32>
    %379 = arith.divf %377, %378 : vector<32x50xf32>
    %380 = vector.extract_strided_slice %368 {offsets = [0, 50], sizes = [32, 50], strides = [1, 1]} : vector<32x150xf32> to vector<32x50xf32>
    %381 = vector.extract_strided_slice %371 {offsets = [0, 50], sizes = [32, 50], strides = [1, 1]} : vector<32x150xf32> to vector<32x50xf32>
    %382 = arith.addf %380, %381 : vector<32x50xf32>
    %383 = arith.negf %382 : vector<32x50xf32>
    %384 = math.exp %383 : vector<32x50xf32>
    %cst_79 = arith.constant 1.000000e+00 : f32
    %385 = vector.broadcast %cst_79 : f32 to vector<32x50xf32>
    %386 = arith.addf %385, %384 : vector<32x50xf32>
    %387 = arith.divf %385, %386 : vector<32x50xf32>
    %388 = vector.extract_strided_slice %368 {offsets = [0, 100], sizes = [32, 50], strides = [1, 1]} : vector<32x150xf32> to vector<32x50xf32>
    %389 = vector.extract_strided_slice %371 {offsets = [0, 100], sizes = [32, 50], strides = [1, 1]} : vector<32x150xf32> to vector<32x50xf32>
    %390 = arith.mulf %379, %389 : vector<32x50xf32>
    %391 = arith.addf %388, %390 : vector<32x50xf32>
    %392 = math.tanh %391 : vector<32x50xf32>
    %cst_80 = arith.constant 1.000000e+00 : f32
    %393 = vector.broadcast %cst_80 : f32 to vector<32x50xf32>
    %394 = arith.subf %393, %387 : vector<32x50xf32>
    %395 = arith.mulf %394, %392 : vector<32x50xf32>
    %396 = arith.mulf %387, %348 : vector<32x50xf32>
    %397 = arith.addf %395, %396 : vector<32x50xf32>
    %398 = vector.broadcast %15 : vector<32x1xf32> to vector<32x50xf32>
    %399 = arith.mulf %397, %398 : vector<32x50xf32>
    %400 = vector.broadcast %16 : vector<32x1xf32> to vector<32x50xf32>
    %401 = arith.addf %399, %400 : vector<32x50xf32>
    %cst_81 = arith.constant 0.000000e+00 : f32
    %402 = vector.broadcast %cst_81 : f32 to vector<32x50xf32>
    %403 = arith.maximumf %401, %402 : vector<32x50xf32>
    %404 = arith.mulf %403, %17 : vector<32x50xf32>
    %cst_82 = arith.constant dense<0.000000e+00> : vector<32xf32>
    %405 = vector.multi_reduction <add>, %404, %cst_82 [1] : vector<32x50xf32> to vector<32xf32>
    %406 = vector.shape_cast %405 : vector<32xf32> to vector<32x1xf32>
    %407 = arith.addf %406, %18 : vector<32x1xf32>
    %cst_83 = arith.constant dense<0.000000e+00> : vector<32x100xf32>
    %408 = tpu.matmul %403, %22, %cst_83 {dimension_numbers = #tpu.dot_dimension_numbers<[1], [0], [0], [1], [0, 0, 1, 1], [], []>} : vector<32x50xf32>, vector<50x100xf32>, vector<32x100xf32> -> vector<32x100xf32>
    %409 = vector.extract_strided_slice %408 {offsets = [0, 0], sizes = [32, 50], strides = [1, 1]} : vector<32x100xf32> to vector<32x50xf32>
    %410 = vector.broadcast %19 : vector<32x1xf32> to vector<32x50xf32>
    %411 = arith.mulf %409, %410 : vector<32x50xf32>
    %412 = vector.extract_strided_slice %408 {offsets = [0, 50], sizes = [32, 50], strides = [1, 1]} : vector<32x100xf32> to vector<32x50xf32>
    %413 = vector.broadcast %21 : vector<32x1xf32> to vector<32x50xf32>
    %414 = arith.mulf %412, %413 : vector<32x50xf32>
    %415 = arith.addf %411, %414 : vector<32x50xf32>
    %416 = arith.addf %415, %23 : vector<32x50xf32>
    %417 = tpu.concatenate %64, %113, %162, %211, %260, %309, %358, %407 in 1 : vector<32x1xf32>, vector<32x1xf32>, vector<32x1xf32>, vector<32x1xf32>, vector<32x1xf32>, vector<32x1xf32>, vector<32x1xf32>, vector<32x1xf32> -> vector<32x8xf32>
    %cst_84 = arith.constant dense<0xFF800000> : vector<32xf32>
    %418 = vector.multi_reduction <maximumf>, %417, %cst_84 [1] : vector<32x8xf32> to vector<32xf32>
    %419 = vector.shape_cast %418 : vector<32xf32> to vector<32x1xf32>
    %420 = vector.broadcast %419 : vector<32x1xf32> to vector<32x8xf32>
    %421 = arith.subf %417, %420 : vector<32x8xf32>
    %422 = math.exp %421 : vector<32x8xf32>
    %cst_85 = arith.constant dense<0.000000e+00> : vector<32xf32>
    %423 = vector.multi_reduction <add>, %422, %cst_85 [1] : vector<32x8xf32> to vector<32xf32>
    %424 = vector.shape_cast %423 : vector<32xf32> to vector<32x1xf32>
    %425 = vector.broadcast %424 : vector<32x1xf32> to vector<32x8xf32>
    %426 = arith.divf %422, %425 : vector<32x8xf32>
    %cst_86 = arith.constant 0.000000e+00 : f32
    %427 = vector.broadcast %cst_86 : f32 to vector<32x50xf32>
    %428 = vector.extract_strided_slice %426 {offsets = [0, 0], sizes = [32, 1], strides = [1, 1]} : vector<32x8xf32> to vector<32x1xf32>
    %429 = vector.broadcast %428 : vector<32x1xf32> to vector<32x50xf32>
    %430 = arith.mulf %429, %73 : vector<32x50xf32>
    %431 = arith.addf %427, %430 : vector<32x50xf32>
    %432 = vector.extract_strided_slice %426 {offsets = [0, 1], sizes = [32, 1], strides = [1, 1]} : vector<32x8xf32> to vector<32x1xf32>
    %433 = vector.broadcast %432 : vector<32x1xf32> to vector<32x50xf32>
    %434 = arith.mulf %433, %122 : vector<32x50xf32>
    %435 = arith.addf %431, %434 : vector<32x50xf32>
    %436 = vector.extract_strided_slice %426 {offsets = [0, 2], sizes = [32, 1], strides = [1, 1]} : vector<32x8xf32> to vector<32x1xf32>
    %437 = vector.broadcast %436 : vector<32x1xf32> to vector<32x50xf32>
    %438 = arith.mulf %437, %171 : vector<32x50xf32>
    %439 = arith.addf %435, %438 : vector<32x50xf32>
    %440 = vector.extract_strided_slice %426 {offsets = [0, 3], sizes = [32, 1], strides = [1, 1]} : vector<32x8xf32> to vector<32x1xf32>
    %441 = vector.broadcast %440 : vector<32x1xf32> to vector<32x50xf32>
    %442 = arith.mulf %441, %220 : vector<32x50xf32>
    %443 = arith.addf %439, %442 : vector<32x50xf32>
    %444 = vector.extract_strided_slice %426 {offsets = [0, 4], sizes = [32, 1], strides = [1, 1]} : vector<32x8xf32> to vector<32x1xf32>
    %445 = vector.broadcast %444 : vector<32x1xf32> to vector<32x50xf32>
    %446 = arith.mulf %445, %269 : vector<32x50xf32>
    %447 = arith.addf %443, %446 : vector<32x50xf32>
    %448 = vector.extract_strided_slice %426 {offsets = [0, 5], sizes = [32, 1], strides = [1, 1]} : vector<32x8xf32> to vector<32x1xf32>
    %449 = vector.broadcast %448 : vector<32x1xf32> to vector<32x50xf32>
    %450 = arith.mulf %449, %318 : vector<32x50xf32>
    %451 = arith.addf %447, %450 : vector<32x50xf32>
    %452 = vector.extract_strided_slice %426 {offsets = [0, 6], sizes = [32, 1], strides = [1, 1]} : vector<32x8xf32> to vector<32x1xf32>
    %453 = vector.broadcast %452 : vector<32x1xf32> to vector<32x50xf32>
    %454 = arith.mulf %453, %367 : vector<32x50xf32>
    %455 = arith.addf %451, %454 : vector<32x50xf32>
    %456 = vector.extract_strided_slice %426 {offsets = [0, 7], sizes = [32, 1], strides = [1, 1]} : vector<32x8xf32> to vector<32x1xf32>
    %457 = vector.broadcast %456 : vector<32x1xf32> to vector<32x50xf32>
    %458 = arith.mulf %457, %416 : vector<32x50xf32>
    %459 = arith.addf %455, %458 : vector<32x50xf32>
    %c0_87 = arith.constant 0 : index
    %c0_88 = arith.constant 0 : index
    %460 = vector.load %arg13[%c0_87, %c0_88] : memref<50x100xf32, #tpu.memory_space<vmem>>, vector<50x100xf32>
    %cst_89 = arith.constant dense<0.000000e+00> : vector<32x100xf32>
    %461 = tpu.matmul %459, %460, %cst_89 {dimension_numbers = #tpu.dot_dimension_numbers<[1], [0], [0], [1], [0, 0, 1, 1], [], []>} : vector<32x50xf32>, vector<50x100xf32>, vector<32x100xf32> -> vector<32x100xf32>
    %462 = vector.extract_strided_slice %461 {offsets = [0, 0], sizes = [32, 50], strides = [1, 1]} : vector<32x100xf32> to vector<32x50xf32>
    %463 = vector.broadcast %19 : vector<32x1xf32> to vector<32x50xf32>
    %464 = arith.mulf %462, %463 : vector<32x50xf32>
    %465 = vector.extract_strided_slice %461 {offsets = [0, 50], sizes = [32, 50], strides = [1, 1]} : vector<32x100xf32> to vector<32x50xf32>
    %466 = vector.broadcast %21 : vector<32x1xf32> to vector<32x50xf32>
    %467 = arith.mulf %465, %466 : vector<32x50xf32>
    %468 = arith.addf %464, %467 : vector<32x50xf32>
    %c0_90 = arith.constant 0 : index
    %c0_91 = arith.constant 0 : index
    %469 = vector.load %arg14[%c0_90, %c0_91] : memref<32x50xf32, #tpu.memory_space<vmem>>, vector<32x50xf32>
    %470 = arith.addf %468, %469 : vector<32x50xf32>
    %471 = vector.extract_strided_slice %470 {offsets = [0, 0], sizes = [16, 50], strides = [1, 1]} : vector<32x50xf32> to vector<16x50xf32>
    %472 = vector.extract_strided_slice %470 {offsets = [16, 0], sizes = [16, 50], strides = [1, 1]} : vector<32x50xf32> to vector<16x50xf32>
    %c0_92 = arith.constant 0 : index
    %c0_93 = arith.constant 0 : index
    %473 = vector.load %arg15[%c0_92, %c0_93] : memref<50x100xf32, #tpu.memory_space<vmem>>, vector<50x100xf32>
    %cst_94 = arith.constant dense<0.000000e+00> : vector<16x100xf32>
    %474 = tpu.matmul %471, %473, %cst_94 {dimension_numbers = #tpu.dot_dimension_numbers<[1], [0], [0], [1], [0, 0, 1, 1], [], []>} : vector<16x50xf32>, vector<50x100xf32>, vector<16x100xf32> -> vector<16x100xf32>
    %c0_95 = arith.constant 0 : index
    %c0_96 = arith.constant 0 : index
    %475 = vector.load %arg17[%c0_95, %c0_96] : memref<50x100xf32, #tpu.memory_space<vmem>>, vector<50x100xf32>
    %cst_97 = arith.constant dense<0.000000e+00> : vector<16x100xf32>
    %476 = tpu.matmul %472, %475, %cst_97 {dimension_numbers = #tpu.dot_dimension_numbers<[1], [0], [0], [1], [0, 0, 1, 1], [], []>} : vector<16x50xf32>, vector<50x100xf32>, vector<16x100xf32> -> vector<16x100xf32>
    %477 = arith.addf %474, %476 : vector<16x100xf32>
    %c0_98 = arith.constant 0 : index
    %c0_99 = arith.constant 0 : index
    %478 = vector.load %arg18[%c0_98, %c0_99] : memref<1x100xf32, #tpu.memory_space<vmem>>, vector<1x100xf32>
    %479 = vector.broadcast %478 : vector<1x100xf32> to vector<16x100xf32>
    %480 = arith.addf %477, %479 : vector<16x100xf32>
    %c0_100 = arith.constant 0 : index
    %c0_101 = arith.constant 0 : index
    %481 = vector.load %arg16[%c0_100, %c0_101] : memref<16x100xf32, #tpu.memory_space<vmem>>, vector<16x100xf32>
    %482 = vector.extract_strided_slice %7 {offsets = [0, 0], sizes = [16, 16], strides = [1, 1]} : vector<256x16xf32> to vector<16x16xf32>
    %cst_102 = arith.constant dense<0.000000e+00> : vector<16x100xf32>
    %483 = tpu.matmul %482, %481, %cst_102 {dimension_numbers = #tpu.dot_dimension_numbers<[1], [0], [0], [1], [0, 0, 1, 1], [], []>} : vector<16x16xf32>, vector<16x100xf32>, vector<16x100xf32> -> vector<16x100xf32>
    %484 = arith.addf %480, %483 : vector<16x100xf32>
    %cst_103 = arith.constant 0.000000e+00 : f32
    %485 = vector.broadcast %cst_103 : f32 to vector<16x100xf32>
    %486 = arith.maximumf %484, %485 : vector<16x100xf32>
    %487 = vector.extract_strided_slice %7 {offsets = [32, 0], sizes = [16, 16], strides = [1, 1]} : vector<256x16xf32> to vector<16x16xf32>
    %cst_104 = arith.constant dense<0.000000e+00> : vector<16x100xf32>
    %488 = tpu.matmul %487, %481, %cst_104 {dimension_numbers = #tpu.dot_dimension_numbers<[1], [0], [0], [1], [0, 0, 1, 1], [], []>} : vector<16x16xf32>, vector<16x100xf32>, vector<16x100xf32> -> vector<16x100xf32>
    %489 = arith.addf %480, %488 : vector<16x100xf32>
    %cst_105 = arith.constant 0.000000e+00 : f32
    %490 = vector.broadcast %cst_105 : f32 to vector<16x100xf32>
    %491 = arith.maximumf %489, %490 : vector<16x100xf32>
    %492 = arith.maximumf %486, %491 : vector<16x100xf32>
    %493 = vector.extract_strided_slice %7 {offsets = [64, 0], sizes = [16, 16], strides = [1, 1]} : vector<256x16xf32> to vector<16x16xf32>
    %cst_106 = arith.constant dense<0.000000e+00> : vector<16x100xf32>
    %494 = tpu.matmul %493, %481, %cst_106 {dimension_numbers = #tpu.dot_dimension_numbers<[1], [0], [0], [1], [0, 0, 1, 1], [], []>} : vector<16x16xf32>, vector<16x100xf32>, vector<16x100xf32> -> vector<16x100xf32>
    %495 = arith.addf %480, %494 : vector<16x100xf32>
    %cst_107 = arith.constant 0.000000e+00 : f32
    %496 = vector.broadcast %cst_107 : f32 to vector<16x100xf32>
    %497 = arith.maximumf %495, %496 : vector<16x100xf32>
    %498 = arith.maximumf %492, %497 : vector<16x100xf32>
    %499 = vector.extract_strided_slice %7 {offsets = [96, 0], sizes = [16, 16], strides = [1, 1]} : vector<256x16xf32> to vector<16x16xf32>
    %cst_108 = arith.constant dense<0.000000e+00> : vector<16x100xf32>
    %500 = tpu.matmul %499, %481, %cst_108 {dimension_numbers = #tpu.dot_dimension_numbers<[1], [0], [0], [1], [0, 0, 1, 1], [], []>} : vector<16x16xf32>, vector<16x100xf32>, vector<16x100xf32> -> vector<16x100xf32>
    %501 = arith.addf %480, %500 : vector<16x100xf32>
    %cst_109 = arith.constant 0.000000e+00 : f32
    %502 = vector.broadcast %cst_109 : f32 to vector<16x100xf32>
    %503 = arith.maximumf %501, %502 : vector<16x100xf32>
    %504 = arith.maximumf %498, %503 : vector<16x100xf32>
    %505 = vector.extract_strided_slice %7 {offsets = [128, 0], sizes = [16, 16], strides = [1, 1]} : vector<256x16xf32> to vector<16x16xf32>
    %cst_110 = arith.constant dense<0.000000e+00> : vector<16x100xf32>
    %506 = tpu.matmul %505, %481, %cst_110 {dimension_numbers = #tpu.dot_dimension_numbers<[1], [0], [0], [1], [0, 0, 1, 1], [], []>} : vector<16x16xf32>, vector<16x100xf32>, vector<16x100xf32> -> vector<16x100xf32>
    %507 = arith.addf %480, %506 : vector<16x100xf32>
    %cst_111 = arith.constant 0.000000e+00 : f32
    %508 = vector.broadcast %cst_111 : f32 to vector<16x100xf32>
    %509 = arith.maximumf %507, %508 : vector<16x100xf32>
    %510 = arith.maximumf %504, %509 : vector<16x100xf32>
    %511 = vector.extract_strided_slice %7 {offsets = [160, 0], sizes = [16, 16], strides = [1, 1]} : vector<256x16xf32> to vector<16x16xf32>
    %cst_112 = arith.constant dense<0.000000e+00> : vector<16x100xf32>
    %512 = tpu.matmul %511, %481, %cst_112 {dimension_numbers = #tpu.dot_dimension_numbers<[1], [0], [0], [1], [0, 0, 1, 1], [], []>} : vector<16x16xf32>, vector<16x100xf32>, vector<16x100xf32> -> vector<16x100xf32>
    %513 = arith.addf %480, %512 : vector<16x100xf32>
    %cst_113 = arith.constant 0.000000e+00 : f32
    %514 = vector.broadcast %cst_113 : f32 to vector<16x100xf32>
    %515 = arith.maximumf %513, %514 : vector<16x100xf32>
    %516 = arith.maximumf %510, %515 : vector<16x100xf32>
    %517 = vector.extract_strided_slice %7 {offsets = [192, 0], sizes = [16, 16], strides = [1, 1]} : vector<256x16xf32> to vector<16x16xf32>
    %cst_114 = arith.constant dense<0.000000e+00> : vector<16x100xf32>
    %518 = tpu.matmul %517, %481, %cst_114 {dimension_numbers = #tpu.dot_dimension_numbers<[1], [0], [0], [1], [0, 0, 1, 1], [], []>} : vector<16x16xf32>, vector<16x100xf32>, vector<16x100xf32> -> vector<16x100xf32>
    %519 = arith.addf %480, %518 : vector<16x100xf32>
    %cst_115 = arith.constant 0.000000e+00 : f32
    %520 = vector.broadcast %cst_115 : f32 to vector<16x100xf32>
    %521 = arith.maximumf %519, %520 : vector<16x100xf32>
    %522 = arith.maximumf %516, %521 : vector<16x100xf32>
    %523 = vector.extract_strided_slice %7 {offsets = [224, 0], sizes = [16, 16], strides = [1, 1]} : vector<256x16xf32> to vector<16x16xf32>
    %cst_116 = arith.constant dense<0.000000e+00> : vector<16x100xf32>
    %524 = tpu.matmul %523, %481, %cst_116 {dimension_numbers = #tpu.dot_dimension_numbers<[1], [0], [0], [1], [0, 0, 1, 1], [], []>} : vector<16x16xf32>, vector<16x100xf32>, vector<16x100xf32> -> vector<16x100xf32>
    %525 = arith.addf %480, %524 : vector<16x100xf32>
    %cst_117 = arith.constant 0.000000e+00 : f32
    %526 = vector.broadcast %cst_117 : f32 to vector<16x100xf32>
    %527 = arith.maximumf %525, %526 : vector<16x100xf32>
    %528 = arith.maximumf %522, %527 : vector<16x100xf32>
    %529 = tpu.iota {dimensions = array<i32: 0>} : vector<16x16xi32>
    %530 = tpu.iota {dimensions = array<i32: 1>} : vector<16x16xi32>
    %c7_i32 = arith.constant 7 : i32
    %531 = vector.broadcast %c7_i32 : i32 to vector<16x16xi32>
    %532 = arith.andi %529, %531 : vector<16x16xi32>
    %c6_i32 = arith.constant 6 : i32
    %533 = vector.broadcast %c6_i32 : i32 to vector<16x16xi32>
    %534 = arith.cmpi slt, %532, %533 : vector<16x16xi32>
    %c7_i32_118 = arith.constant 7 : i32
    %535 = vector.broadcast %c7_i32_118 : i32 to vector<16x16xi32>
    %536 = arith.andi %530, %535 : vector<16x16xi32>
    %c6_i32_119 = arith.constant 6 : i32
    %537 = vector.broadcast %c6_i32_119 : i32 to vector<16x16xi32>
    %538 = arith.cmpi slt, %536, %537 : vector<16x16xi32>
    %539 = arith.andi %534, %538 : vector<16x16xi1>
    %c-2_i32 = arith.constant -2 : i32
    %540 = vector.broadcast %c-2_i32 : i32 to vector<16x16xi32>
    %541 = arith.addi %529, %540 : vector<16x16xi32>
    %542 = arith.cmpi eq, %530, %541 : vector<16x16xi32>
    %543 = arith.andi %542, %539 : vector<16x16xi1>
    %544 = arith.extui %543 : vector<16x16xi1> to vector<16x16xi32>
    %545 = arith.sitofp %544 : vector<16x16xi32> to vector<16x16xf32>
    %c-1_i32 = arith.constant -1 : i32
    %546 = vector.broadcast %c-1_i32 : i32 to vector<16x16xi32>
    %547 = arith.addi %529, %546 : vector<16x16xi32>
    %548 = arith.cmpi eq, %530, %547 : vector<16x16xi32>
    %549 = arith.andi %548, %539 : vector<16x16xi1>
    %550 = arith.extui %549 : vector<16x16xi1> to vector<16x16xi32>
    %551 = arith.sitofp %550 : vector<16x16xi32> to vector<16x16xf32>
    %c0_i32 = arith.constant 0 : i32
    %552 = vector.broadcast %c0_i32 : i32 to vector<16x16xi32>
    %553 = arith.addi %529, %552 : vector<16x16xi32>
    %554 = arith.cmpi eq, %530, %553 : vector<16x16xi32>
    %555 = arith.andi %554, %539 : vector<16x16xi1>
    %556 = arith.extui %555 : vector<16x16xi1> to vector<16x16xi32>
    %557 = arith.sitofp %556 : vector<16x16xi32> to vector<16x16xf32>
    %c1_i32 = arith.constant 1 : i32
    %558 = vector.broadcast %c1_i32 : i32 to vector<16x16xi32>
    %559 = arith.addi %529, %558 : vector<16x16xi32>
    %560 = arith.cmpi eq, %530, %559 : vector<16x16xi32>
    %561 = arith.andi %560, %539 : vector<16x16xi1>
    %562 = arith.extui %561 : vector<16x16xi1> to vector<16x16xi32>
    %563 = arith.sitofp %562 : vector<16x16xi32> to vector<16x16xf32>
    %c2_i32 = arith.constant 2 : i32
    %564 = vector.broadcast %c2_i32 : i32 to vector<16x16xi32>
    %565 = arith.addi %529, %564 : vector<16x16xi32>
    %566 = arith.cmpi eq, %530, %565 : vector<16x16xi32>
    %567 = arith.andi %566, %539 : vector<16x16xi1>
    %568 = arith.extui %567 : vector<16x16xi1> to vector<16x16xi32>
    %569 = arith.sitofp %568 : vector<16x16xi32> to vector<16x16xf32>
    %c0_120 = arith.constant 0 : index
    %c0_121 = arith.constant 0 : index
    %570 = vector.load %arg20[%c0_120, %c0_121] : memref<1x50xf32, #tpu.memory_space<vmem>>, vector<1x50xf32>
    %cst_122 = arith.constant 1.000000e+00 : f32
    %571 = vector.broadcast %cst_122 : f32 to vector<16x1xf32>
    %572 = vector.broadcast %570 : vector<1x50xf32> to vector<16x50xf32>
    %573 = vector.broadcast %571 : vector<16x1xf32> to vector<16x50xf32>
    %574 = arith.mulf %572, %573 : vector<16x50xf32>
    %c0_123 = arith.constant 0 : index
    %c0_124 = arith.constant 0 : index
    %c0_125 = arith.constant 0 : index
    %575 = vector.load %arg19[%c0_123, %c0_124, %c0_125] : memref<1x100x50xf32, #tpu.memory_space<vmem>>, vector<1x100x50xf32>
    %576 = vector.shape_cast %575 : vector<1x100x50xf32> to vector<100x50xf32>
    %cst_126 = arith.constant dense<0.000000e+00> : vector<16x50xf32>
    %577 = tpu.matmul %528, %576, %cst_126 {dimension_numbers = #tpu.dot_dimension_numbers<[1], [0], [0], [1], [0, 0, 1, 1], [], []>} : vector<16x100xf32>, vector<100x50xf32>, vector<16x50xf32> -> vector<16x50xf32>
    %578 = arith.addf %574, %577 : vector<16x50xf32>
    %c0_127 = arith.constant 0 : index
    %c0_128 = arith.constant 0 : index
    %579 = vector.load %arg22[%c0_127, %c0_128] : memref<1x100xf32, #tpu.memory_space<vmem>>, vector<1x100xf32>
    %cst_129 = arith.constant 1.000000e+00 : f32
    %580 = vector.broadcast %cst_129 : f32 to vector<16x1xf32>
    %581 = vector.broadcast %579 : vector<1x100xf32> to vector<16x100xf32>
    %582 = vector.broadcast %580 : vector<16x1xf32> to vector<16x100xf32>
    %583 = arith.mulf %581, %582 : vector<16x100xf32>
    %c0_130 = arith.constant 0 : index
    %c0_131 = arith.constant 0 : index
    %c0_132 = arith.constant 0 : index
    %584 = vector.load %arg21[%c0_130, %c0_131, %c0_132] : memref<1x100x100xf32, #tpu.memory_space<vmem>>, vector<1x100x100xf32>
    %585 = vector.shape_cast %584 : vector<1x100x100xf32> to vector<100x100xf32>
    %cst_133 = arith.constant dense<0.000000e+00> : vector<16x100xf32>
    %586 = tpu.matmul %528, %585, %cst_133 {dimension_numbers = #tpu.dot_dimension_numbers<[1], [0], [0], [1], [0, 0, 1, 1], [], []>} : vector<16x100xf32>, vector<100x100xf32>, vector<16x100xf32> -> vector<16x100xf32>
    %587 = arith.addf %583, %586 : vector<16x100xf32>
    %cst_134 = arith.constant 0.000000e+00 : f32
    %588 = vector.broadcast %cst_134 : f32 to vector<16x100xf32>
    %589 = arith.maximumf %587, %588 : vector<16x100xf32>
    %c0_135 = arith.constant 0 : index
    %c0_136 = arith.constant 0 : index
    %590 = vector.load %arg24[%c0_135, %c0_136] : memref<1x50xf32, #tpu.memory_space<vmem>>, vector<1x50xf32>
    %cst_137 = arith.constant 1.000000e+00 : f32
    %591 = vector.broadcast %cst_137 : f32 to vector<16x1xf32>
    %592 = vector.broadcast %590 : vector<1x50xf32> to vector<16x50xf32>
    %593 = vector.broadcast %591 : vector<16x1xf32> to vector<16x50xf32>
    %594 = arith.mulf %592, %593 : vector<16x50xf32>
    %c0_138 = arith.constant 0 : index
    %c0_139 = arith.constant 0 : index
    %c0_140 = arith.constant 0 : index
    %595 = vector.load %arg23[%c0_138, %c0_139, %c0_140] : memref<3x100x50xf32, #tpu.memory_space<vmem>>, vector<1x100x50xf32>
    %596 = vector.shape_cast %595 : vector<1x100x50xf32> to vector<100x50xf32>
    %cst_141 = arith.constant dense<0.000000e+00> : vector<16x50xf32>
    %597 = tpu.matmul %589, %596, %cst_141 {dimension_numbers = #tpu.dot_dimension_numbers<[1], [0], [0], [1], [0, 0, 1, 1], [], []>} : vector<16x100xf32>, vector<100x50xf32>, vector<16x50xf32> -> vector<16x50xf32>
    %cst_142 = arith.constant dense<0.000000e+00> : vector<16x50xf32>
    %598 = tpu.matmul %551, %597, %cst_142 {dimension_numbers = #tpu.dot_dimension_numbers<[1], [0], [0], [1], [0, 0, 1, 1], [], []>} : vector<16x16xf32>, vector<16x50xf32>, vector<16x50xf32> -> vector<16x50xf32>
    %599 = arith.addf %594, %598 : vector<16x50xf32>
    %c1 = arith.constant 1 : index
    %c0_143 = arith.constant 0 : index
    %c0_144 = arith.constant 0 : index
    %600 = vector.load %arg23[%c1, %c0_143, %c0_144] : memref<3x100x50xf32, #tpu.memory_space<vmem>>, vector<1x100x50xf32>
    %601 = vector.shape_cast %600 : vector<1x100x50xf32> to vector<100x50xf32>
    %cst_145 = arith.constant dense<0.000000e+00> : vector<16x50xf32>
    %602 = tpu.matmul %589, %601, %cst_145 {dimension_numbers = #tpu.dot_dimension_numbers<[1], [0], [0], [1], [0, 0, 1, 1], [], []>} : vector<16x100xf32>, vector<100x50xf32>, vector<16x50xf32> -> vector<16x50xf32>
    %cst_146 = arith.constant dense<0.000000e+00> : vector<16x50xf32>
    %603 = tpu.matmul %557, %602, %cst_146 {dimension_numbers = #tpu.dot_dimension_numbers<[1], [0], [0], [1], [0, 0, 1, 1], [], []>} : vector<16x16xf32>, vector<16x50xf32>, vector<16x50xf32> -> vector<16x50xf32>
    %604 = arith.addf %599, %603 : vector<16x50xf32>
    %c2 = arith.constant 2 : index
    %c0_147 = arith.constant 0 : index
    %c0_148 = arith.constant 0 : index
    %605 = vector.load %arg23[%c2, %c0_147, %c0_148] : memref<3x100x50xf32, #tpu.memory_space<vmem>>, vector<1x100x50xf32>
    %606 = vector.shape_cast %605 : vector<1x100x50xf32> to vector<100x50xf32>
    %cst_149 = arith.constant dense<0.000000e+00> : vector<16x50xf32>
    %607 = tpu.matmul %589, %606, %cst_149 {dimension_numbers = #tpu.dot_dimension_numbers<[1], [0], [0], [1], [0, 0, 1, 1], [], []>} : vector<16x100xf32>, vector<100x50xf32>, vector<16x50xf32> -> vector<16x50xf32>
    %cst_150 = arith.constant dense<0.000000e+00> : vector<16x50xf32>
    %608 = tpu.matmul %563, %607, %cst_150 {dimension_numbers = #tpu.dot_dimension_numbers<[1], [0], [0], [1], [0, 0, 1, 1], [], []>} : vector<16x16xf32>, vector<16x50xf32>, vector<16x50xf32> -> vector<16x50xf32>
    %609 = arith.addf %604, %608 : vector<16x50xf32>
    %c0_151 = arith.constant 0 : index
    %c0_152 = arith.constant 0 : index
    %610 = vector.load %arg26[%c0_151, %c0_152] : memref<1x100xf32, #tpu.memory_space<vmem>>, vector<1x100xf32>
    %cst_153 = arith.constant 1.000000e+00 : f32
    %611 = vector.broadcast %cst_153 : f32 to vector<16x1xf32>
    %612 = vector.broadcast %610 : vector<1x100xf32> to vector<16x100xf32>
    %613 = vector.broadcast %611 : vector<16x1xf32> to vector<16x100xf32>
    %614 = arith.mulf %612, %613 : vector<16x100xf32>
    %c0_154 = arith.constant 0 : index
    %c0_155 = arith.constant 0 : index
    %c0_156 = arith.constant 0 : index
    %615 = vector.load %arg25[%c0_154, %c0_155, %c0_156] : memref<3x100x100xf32, #tpu.memory_space<vmem>>, vector<1x100x100xf32>
    %616 = vector.shape_cast %615 : vector<1x100x100xf32> to vector<100x100xf32>
    %cst_157 = arith.constant dense<0.000000e+00> : vector<16x100xf32>
    %617 = tpu.matmul %528, %616, %cst_157 {dimension_numbers = #tpu.dot_dimension_numbers<[1], [0], [0], [1], [0, 0, 1, 1], [], []>} : vector<16x100xf32>, vector<100x100xf32>, vector<16x100xf32> -> vector<16x100xf32>
    %cst_158 = arith.constant dense<0.000000e+00> : vector<16x100xf32>
    %618 = tpu.matmul %551, %617, %cst_158 {dimension_numbers = #tpu.dot_dimension_numbers<[1], [0], [0], [1], [0, 0, 1, 1], [], []>} : vector<16x16xf32>, vector<16x100xf32>, vector<16x100xf32> -> vector<16x100xf32>
    %619 = arith.addf %614, %618 : vector<16x100xf32>
    %c1_159 = arith.constant 1 : index
    %c0_160 = arith.constant 0 : index
    %c0_161 = arith.constant 0 : index
    %620 = vector.load %arg25[%c1_159, %c0_160, %c0_161] : memref<3x100x100xf32, #tpu.memory_space<vmem>>, vector<1x100x100xf32>
    %621 = vector.shape_cast %620 : vector<1x100x100xf32> to vector<100x100xf32>
    %cst_162 = arith.constant dense<0.000000e+00> : vector<16x100xf32>
    %622 = tpu.matmul %528, %621, %cst_162 {dimension_numbers = #tpu.dot_dimension_numbers<[1], [0], [0], [1], [0, 0, 1, 1], [], []>} : vector<16x100xf32>, vector<100x100xf32>, vector<16x100xf32> -> vector<16x100xf32>
    %cst_163 = arith.constant dense<0.000000e+00> : vector<16x100xf32>
    %623 = tpu.matmul %557, %622, %cst_163 {dimension_numbers = #tpu.dot_dimension_numbers<[1], [0], [0], [1], [0, 0, 1, 1], [], []>} : vector<16x16xf32>, vector<16x100xf32>, vector<16x100xf32> -> vector<16x100xf32>
    %624 = arith.addf %619, %623 : vector<16x100xf32>
    %c2_164 = arith.constant 2 : index
    %c0_165 = arith.constant 0 : index
    %c0_166 = arith.constant 0 : index
    %625 = vector.load %arg25[%c2_164, %c0_165, %c0_166] : memref<3x100x100xf32, #tpu.memory_space<vmem>>, vector<1x100x100xf32>
    %626 = vector.shape_cast %625 : vector<1x100x100xf32> to vector<100x100xf32>
    %cst_167 = arith.constant dense<0.000000e+00> : vector<16x100xf32>
    %627 = tpu.matmul %528, %626, %cst_167 {dimension_numbers = #tpu.dot_dimension_numbers<[1], [0], [0], [1], [0, 0, 1, 1], [], []>} : vector<16x100xf32>, vector<100x100xf32>, vector<16x100xf32> -> vector<16x100xf32>
    %cst_168 = arith.constant dense<0.000000e+00> : vector<16x100xf32>
    %628 = tpu.matmul %563, %627, %cst_168 {dimension_numbers = #tpu.dot_dimension_numbers<[1], [0], [0], [1], [0, 0, 1, 1], [], []>} : vector<16x16xf32>, vector<16x100xf32>, vector<16x100xf32> -> vector<16x100xf32>
    %629 = arith.addf %624, %628 : vector<16x100xf32>
    %cst_169 = arith.constant 0.000000e+00 : f32
    %630 = vector.broadcast %cst_169 : f32 to vector<16x100xf32>
    %631 = arith.maximumf %629, %630 : vector<16x100xf32>
    %c0_170 = arith.constant 0 : index
    %c0_171 = arith.constant 0 : index
    %632 = vector.load %arg28[%c0_170, %c0_171] : memref<1x50xf32, #tpu.memory_space<vmem>>, vector<1x50xf32>
    %cst_172 = arith.constant 1.000000e+00 : f32
    %633 = vector.broadcast %cst_172 : f32 to vector<16x1xf32>
    %634 = vector.broadcast %632 : vector<1x50xf32> to vector<16x50xf32>
    %635 = vector.broadcast %633 : vector<16x1xf32> to vector<16x50xf32>
    %636 = arith.mulf %634, %635 : vector<16x50xf32>
    %c0_173 = arith.constant 0 : index
    %c0_174 = arith.constant 0 : index
    %c0_175 = arith.constant 0 : index
    %637 = vector.load %arg27[%c0_173, %c0_174, %c0_175] : memref<5x100x50xf32, #tpu.memory_space<vmem>>, vector<1x100x50xf32>
    %638 = vector.shape_cast %637 : vector<1x100x50xf32> to vector<100x50xf32>
    %cst_176 = arith.constant dense<0.000000e+00> : vector<16x50xf32>
    %639 = tpu.matmul %631, %638, %cst_176 {dimension_numbers = #tpu.dot_dimension_numbers<[1], [0], [0], [1], [0, 0, 1, 1], [], []>} : vector<16x100xf32>, vector<100x50xf32>, vector<16x50xf32> -> vector<16x50xf32>
    %cst_177 = arith.constant dense<0.000000e+00> : vector<16x50xf32>
    %640 = tpu.matmul %545, %639, %cst_177 {dimension_numbers = #tpu.dot_dimension_numbers<[1], [0], [0], [1], [0, 0, 1, 1], [], []>} : vector<16x16xf32>, vector<16x50xf32>, vector<16x50xf32> -> vector<16x50xf32>
    %641 = arith.addf %636, %640 : vector<16x50xf32>
    %c1_178 = arith.constant 1 : index
    %c0_179 = arith.constant 0 : index
    %c0_180 = arith.constant 0 : index
    %642 = vector.load %arg27[%c1_178, %c0_179, %c0_180] : memref<5x100x50xf32, #tpu.memory_space<vmem>>, vector<1x100x50xf32>
    %643 = vector.shape_cast %642 : vector<1x100x50xf32> to vector<100x50xf32>
    %cst_181 = arith.constant dense<0.000000e+00> : vector<16x50xf32>
    %644 = tpu.matmul %631, %643, %cst_181 {dimension_numbers = #tpu.dot_dimension_numbers<[1], [0], [0], [1], [0, 0, 1, 1], [], []>} : vector<16x100xf32>, vector<100x50xf32>, vector<16x50xf32> -> vector<16x50xf32>
    %cst_182 = arith.constant dense<0.000000e+00> : vector<16x50xf32>
    %645 = tpu.matmul %551, %644, %cst_182 {dimension_numbers = #tpu.dot_dimension_numbers<[1], [0], [0], [1], [0, 0, 1, 1], [], []>} : vector<16x16xf32>, vector<16x50xf32>, vector<16x50xf32> -> vector<16x50xf32>
    %646 = arith.addf %641, %645 : vector<16x50xf32>
    %c2_183 = arith.constant 2 : index
    %c0_184 = arith.constant 0 : index
    %c0_185 = arith.constant 0 : index
    %647 = vector.load %arg27[%c2_183, %c0_184, %c0_185] : memref<5x100x50xf32, #tpu.memory_space<vmem>>, vector<1x100x50xf32>
    %648 = vector.shape_cast %647 : vector<1x100x50xf32> to vector<100x50xf32>
    %cst_186 = arith.constant dense<0.000000e+00> : vector<16x50xf32>
    %649 = tpu.matmul %631, %648, %cst_186 {dimension_numbers = #tpu.dot_dimension_numbers<[1], [0], [0], [1], [0, 0, 1, 1], [], []>} : vector<16x100xf32>, vector<100x50xf32>, vector<16x50xf32> -> vector<16x50xf32>
    %cst_187 = arith.constant dense<0.000000e+00> : vector<16x50xf32>
    %650 = tpu.matmul %557, %649, %cst_187 {dimension_numbers = #tpu.dot_dimension_numbers<[1], [0], [0], [1], [0, 0, 1, 1], [], []>} : vector<16x16xf32>, vector<16x50xf32>, vector<16x50xf32> -> vector<16x50xf32>
    %651 = arith.addf %646, %650 : vector<16x50xf32>
    %c3 = arith.constant 3 : index
    %c0_188 = arith.constant 0 : index
    %c0_189 = arith.constant 0 : index
    %652 = vector.load %arg27[%c3, %c0_188, %c0_189] : memref<5x100x50xf32, #tpu.memory_space<vmem>>, vector<1x100x50xf32>
    %653 = vector.shape_cast %652 : vector<1x100x50xf32> to vector<100x50xf32>
    %cst_190 = arith.constant dense<0.000000e+00> : vector<16x50xf32>
    %654 = tpu.matmul %631, %653, %cst_190 {dimension_numbers = #tpu.dot_dimension_numbers<[1], [0], [0], [1], [0, 0, 1, 1], [], []>} : vector<16x100xf32>, vector<100x50xf32>, vector<16x50xf32> -> vector<16x50xf32>
    %cst_191 = arith.constant dense<0.000000e+00> : vector<16x50xf32>
    %655 = tpu.matmul %563, %654, %cst_191 {dimension_numbers = #tpu.dot_dimension_numbers<[1], [0], [0], [1], [0, 0, 1, 1], [], []>} : vector<16x16xf32>, vector<16x50xf32>, vector<16x50xf32> -> vector<16x50xf32>
    %656 = arith.addf %651, %655 : vector<16x50xf32>
    %c4 = arith.constant 4 : index
    %c0_192 = arith.constant 0 : index
    %c0_193 = arith.constant 0 : index
    %657 = vector.load %arg27[%c4, %c0_192, %c0_193] : memref<5x100x50xf32, #tpu.memory_space<vmem>>, vector<1x100x50xf32>
    %658 = vector.shape_cast %657 : vector<1x100x50xf32> to vector<100x50xf32>
    %cst_194 = arith.constant dense<0.000000e+00> : vector<16x50xf32>
    %659 = tpu.matmul %631, %658, %cst_194 {dimension_numbers = #tpu.dot_dimension_numbers<[1], [0], [0], [1], [0, 0, 1, 1], [], []>} : vector<16x100xf32>, vector<100x50xf32>, vector<16x50xf32> -> vector<16x50xf32>
    %cst_195 = arith.constant dense<0.000000e+00> : vector<16x50xf32>
    %660 = tpu.matmul %569, %659, %cst_195 {dimension_numbers = #tpu.dot_dimension_numbers<[1], [0], [0], [1], [0, 0, 1, 1], [], []>} : vector<16x16xf32>, vector<16x50xf32>, vector<16x50xf32> -> vector<16x50xf32>
    %661 = arith.addf %656, %660 : vector<16x50xf32>
    %c0_196 = arith.constant 0 : index
    %c0_197 = arith.constant 0 : index
    %662 = vector.load %arg30[%c0_196, %c0_197] : memref<1x50xf32, #tpu.memory_space<vmem>>, vector<1x50xf32>
    %cst_198 = arith.constant 1.000000e+00 : f32
    %663 = vector.broadcast %cst_198 : f32 to vector<16x1xf32>
    %664 = vector.broadcast %662 : vector<1x50xf32> to vector<16x50xf32>
    %665 = vector.broadcast %663 : vector<16x1xf32> to vector<16x50xf32>
    %666 = arith.mulf %664, %665 : vector<16x50xf32>
    %c0_199 = arith.constant 0 : index
    %c0_200 = arith.constant 0 : index
    %c0_201 = arith.constant 0 : index
    %667 = vector.load %arg29[%c0_199, %c0_200, %c0_201] : memref<3x100x50xf32, #tpu.memory_space<vmem>>, vector<1x100x50xf32>
    %668 = vector.shape_cast %667 : vector<1x100x50xf32> to vector<100x50xf32>
    %cst_202 = arith.constant dense<0.000000e+00> : vector<16x50xf32>
    %669 = tpu.matmul %528, %668, %cst_202 {dimension_numbers = #tpu.dot_dimension_numbers<[1], [0], [0], [1], [0, 0, 1, 1], [], []>} : vector<16x100xf32>, vector<100x50xf32>, vector<16x50xf32> -> vector<16x50xf32>
    %cst_203 = arith.constant dense<0.000000e+00> : vector<16x50xf32>
    %670 = tpu.matmul %551, %669, %cst_203 {dimension_numbers = #tpu.dot_dimension_numbers<[1], [0], [0], [1], [0, 0, 1, 1], [], []>} : vector<16x16xf32>, vector<16x50xf32>, vector<16x50xf32> -> vector<16x50xf32>
    %671 = arith.addf %666, %670 : vector<16x50xf32>
    %c1_204 = arith.constant 1 : index
    %c0_205 = arith.constant 0 : index
    %c0_206 = arith.constant 0 : index
    %672 = vector.load %arg29[%c1_204, %c0_205, %c0_206] : memref<3x100x50xf32, #tpu.memory_space<vmem>>, vector<1x100x50xf32>
    %673 = vector.shape_cast %672 : vector<1x100x50xf32> to vector<100x50xf32>
    %cst_207 = arith.constant dense<0.000000e+00> : vector<16x50xf32>
    %674 = tpu.matmul %528, %673, %cst_207 {dimension_numbers = #tpu.dot_dimension_numbers<[1], [0], [0], [1], [0, 0, 1, 1], [], []>} : vector<16x100xf32>, vector<100x50xf32>, vector<16x50xf32> -> vector<16x50xf32>
    %cst_208 = arith.constant dense<0.000000e+00> : vector<16x50xf32>
    %675 = tpu.matmul %557, %674, %cst_208 {dimension_numbers = #tpu.dot_dimension_numbers<[1], [0], [0], [1], [0, 0, 1, 1], [], []>} : vector<16x16xf32>, vector<16x50xf32>, vector<16x50xf32> -> vector<16x50xf32>
    %676 = arith.addf %671, %675 : vector<16x50xf32>
    %c2_209 = arith.constant 2 : index
    %c0_210 = arith.constant 0 : index
    %c0_211 = arith.constant 0 : index
    %677 = vector.load %arg29[%c2_209, %c0_210, %c0_211] : memref<3x100x50xf32, #tpu.memory_space<vmem>>, vector<1x100x50xf32>
    %678 = vector.shape_cast %677 : vector<1x100x50xf32> to vector<100x50xf32>
    %cst_212 = arith.constant dense<0.000000e+00> : vector<16x50xf32>
    %679 = tpu.matmul %528, %678, %cst_212 {dimension_numbers = #tpu.dot_dimension_numbers<[1], [0], [0], [1], [0, 0, 1, 1], [], []>} : vector<16x100xf32>, vector<100x50xf32>, vector<16x50xf32> -> vector<16x50xf32>
    %cst_213 = arith.constant dense<0.000000e+00> : vector<16x50xf32>
    %680 = tpu.matmul %563, %679, %cst_213 {dimension_numbers = #tpu.dot_dimension_numbers<[1], [0], [0], [1], [0, 0, 1, 1], [], []>} : vector<16x16xf32>, vector<16x50xf32>, vector<16x50xf32> -> vector<16x50xf32>
    %681 = arith.addf %676, %680 : vector<16x50xf32>
    %682 = tpu.concatenate %578, %609, %661, %681 in 1 : vector<16x50xf32>, vector<16x50xf32>, vector<16x50xf32>, vector<16x50xf32> -> vector<16x200xf32>
    %683 = tpu.iota {dimensions = array<i32: 0>} : vector<2x16xi32>
    %684 = tpu.iota {dimensions = array<i32: 1>} : vector<2x16xi32>
    %c0_214 = arith.constant 0 : index
    %c0_215 = arith.constant 0 : index
    %685 = vector.load %arg32[%c0_214, %c0_215] : memref<1x100xf32, #tpu.memory_space<vmem>>, vector<1x100xf32>
    %cst_216 = arith.constant 1.000000e+00 : f32
    %686 = vector.broadcast %cst_216 : f32 to vector<2x1xf32>
    %687 = vector.broadcast %685 : vector<1x100xf32> to vector<2x100xf32>
    %688 = vector.broadcast %686 : vector<2x1xf32> to vector<2x100xf32>
    %689 = arith.mulf %687, %688 : vector<2x100xf32>
    %c8_i32 = arith.constant 8 : i32
    %690 = vector.broadcast %c8_i32 : i32 to vector<2x16xi32>
    %691 = arith.muli %683, %690 : vector<2x16xi32>
    %c0_i32_217 = arith.constant 0 : i32
    %692 = vector.broadcast %c0_i32_217 : i32 to vector<2x16xi32>
    %693 = arith.addi %691, %692 : vector<2x16xi32>
    %694 = arith.cmpi eq, %684, %693 : vector<2x16xi32>
    %695 = arith.extui %694 : vector<2x16xi1> to vector<2x16xi32>
    %696 = arith.sitofp %695 : vector<2x16xi32> to vector<2x16xf32>
    %cst_218 = arith.constant dense<0.000000e+00> : vector<2x200xf32>
    %697 = tpu.matmul %696, %682, %cst_218 {dimension_numbers = #tpu.dot_dimension_numbers<[1], [0], [0], [1], [0, 0, 1, 1], [], []>} : vector<2x16xf32>, vector<16x200xf32>, vector<2x200xf32> -> vector<2x200xf32>
    %c0_219 = arith.constant 0 : index
    %c0_220 = arith.constant 0 : index
    %c0_221 = arith.constant 0 : index
    %698 = vector.load %arg31[%c0_219, %c0_220, %c0_221] : memref<6x200x100xf32, #tpu.memory_space<vmem>>, vector<1x200x100xf32>
    %699 = vector.shape_cast %698 : vector<1x200x100xf32> to vector<200x100xf32>
    %cst_222 = arith.constant dense<0.000000e+00> : vector<2x100xf32>
    %700 = tpu.matmul %697, %699, %cst_222 {dimension_numbers = #tpu.dot_dimension_numbers<[1], [0], [0], [1], [0, 0, 1, 1], [], []>} : vector<2x200xf32>, vector<200x100xf32>, vector<2x100xf32> -> vector<2x100xf32>
    %701 = arith.addf %689, %700 : vector<2x100xf32>
    %c8_i32_223 = arith.constant 8 : i32
    %702 = vector.broadcast %c8_i32_223 : i32 to vector<2x16xi32>
    %703 = arith.muli %683, %702 : vector<2x16xi32>
    %c1_i32_224 = arith.constant 1 : i32
    %704 = vector.broadcast %c1_i32_224 : i32 to vector<2x16xi32>
    %705 = arith.addi %703, %704 : vector<2x16xi32>
    %706 = arith.cmpi eq, %684, %705 : vector<2x16xi32>
    %707 = arith.extui %706 : vector<2x16xi1> to vector<2x16xi32>
    %708 = arith.sitofp %707 : vector<2x16xi32> to vector<2x16xf32>
    %cst_225 = arith.constant dense<0.000000e+00> : vector<2x200xf32>
    %709 = tpu.matmul %708, %682, %cst_225 {dimension_numbers = #tpu.dot_dimension_numbers<[1], [0], [0], [1], [0, 0, 1, 1], [], []>} : vector<2x16xf32>, vector<16x200xf32>, vector<2x200xf32> -> vector<2x200xf32>
    %c1_226 = arith.constant 1 : index
    %c0_227 = arith.constant 0 : index
    %c0_228 = arith.constant 0 : index
    %710 = vector.load %arg31[%c1_226, %c0_227, %c0_228] : memref<6x200x100xf32, #tpu.memory_space<vmem>>, vector<1x200x100xf32>
    %711 = vector.shape_cast %710 : vector<1x200x100xf32> to vector<200x100xf32>
    %cst_229 = arith.constant dense<0.000000e+00> : vector<2x100xf32>
    %712 = tpu.matmul %709, %711, %cst_229 {dimension_numbers = #tpu.dot_dimension_numbers<[1], [0], [0], [1], [0, 0, 1, 1], [], []>} : vector<2x200xf32>, vector<200x100xf32>, vector<2x100xf32> -> vector<2x100xf32>
    %713 = arith.addf %701, %712 : vector<2x100xf32>
    %c8_i32_230 = arith.constant 8 : i32
    %714 = vector.broadcast %c8_i32_230 : i32 to vector<2x16xi32>
    %715 = arith.muli %683, %714 : vector<2x16xi32>
    %c2_i32_231 = arith.constant 2 : i32
    %716 = vector.broadcast %c2_i32_231 : i32 to vector<2x16xi32>
    %717 = arith.addi %715, %716 : vector<2x16xi32>
    %718 = arith.cmpi eq, %684, %717 : vector<2x16xi32>
    %719 = arith.extui %718 : vector<2x16xi1> to vector<2x16xi32>
    %720 = arith.sitofp %719 : vector<2x16xi32> to vector<2x16xf32>
    %cst_232 = arith.constant dense<0.000000e+00> : vector<2x200xf32>
    %721 = tpu.matmul %720, %682, %cst_232 {dimension_numbers = #tpu.dot_dimension_numbers<[1], [0], [0], [1], [0, 0, 1, 1], [], []>} : vector<2x16xf32>, vector<16x200xf32>, vector<2x200xf32> -> vector<2x200xf32>
    %c2_233 = arith.constant 2 : index
    %c0_234 = arith.constant 0 : index
    %c0_235 = arith.constant 0 : index
    %722 = vector.load %arg31[%c2_233, %c0_234, %c0_235] : memref<6x200x100xf32, #tpu.memory_space<vmem>>, vector<1x200x100xf32>
    %723 = vector.shape_cast %722 : vector<1x200x100xf32> to vector<200x100xf32>
    %cst_236 = arith.constant dense<0.000000e+00> : vector<2x100xf32>
    %724 = tpu.matmul %721, %723, %cst_236 {dimension_numbers = #tpu.dot_dimension_numbers<[1], [0], [0], [1], [0, 0, 1, 1], [], []>} : vector<2x200xf32>, vector<200x100xf32>, vector<2x100xf32> -> vector<2x100xf32>
    %725 = arith.addf %713, %724 : vector<2x100xf32>
    %c8_i32_237 = arith.constant 8 : i32
    %726 = vector.broadcast %c8_i32_237 : i32 to vector<2x16xi32>
    %727 = arith.muli %683, %726 : vector<2x16xi32>
    %c3_i32 = arith.constant 3 : i32
    %728 = vector.broadcast %c3_i32 : i32 to vector<2x16xi32>
    %729 = arith.addi %727, %728 : vector<2x16xi32>
    %730 = arith.cmpi eq, %684, %729 : vector<2x16xi32>
    %731 = arith.extui %730 : vector<2x16xi1> to vector<2x16xi32>
    %732 = arith.sitofp %731 : vector<2x16xi32> to vector<2x16xf32>
    %cst_238 = arith.constant dense<0.000000e+00> : vector<2x200xf32>
    %733 = tpu.matmul %732, %682, %cst_238 {dimension_numbers = #tpu.dot_dimension_numbers<[1], [0], [0], [1], [0, 0, 1, 1], [], []>} : vector<2x16xf32>, vector<16x200xf32>, vector<2x200xf32> -> vector<2x200xf32>
    %c3_239 = arith.constant 3 : index
    %c0_240 = arith.constant 0 : index
    %c0_241 = arith.constant 0 : index
    %734 = vector.load %arg31[%c3_239, %c0_240, %c0_241] : memref<6x200x100xf32, #tpu.memory_space<vmem>>, vector<1x200x100xf32>
    %735 = vector.shape_cast %734 : vector<1x200x100xf32> to vector<200x100xf32>
    %cst_242 = arith.constant dense<0.000000e+00> : vector<2x100xf32>
    %736 = tpu.matmul %733, %735, %cst_242 {dimension_numbers = #tpu.dot_dimension_numbers<[1], [0], [0], [1], [0, 0, 1, 1], [], []>} : vector<2x200xf32>, vector<200x100xf32>, vector<2x100xf32> -> vector<2x100xf32>
    %737 = arith.addf %725, %736 : vector<2x100xf32>
    %c8_i32_243 = arith.constant 8 : i32
    %738 = vector.broadcast %c8_i32_243 : i32 to vector<2x16xi32>
    %739 = arith.muli %683, %738 : vector<2x16xi32>
    %c4_i32 = arith.constant 4 : i32
    %740 = vector.broadcast %c4_i32 : i32 to vector<2x16xi32>
    %741 = arith.addi %739, %740 : vector<2x16xi32>
    %742 = arith.cmpi eq, %684, %741 : vector<2x16xi32>
    %743 = arith.extui %742 : vector<2x16xi1> to vector<2x16xi32>
    %744 = arith.sitofp %743 : vector<2x16xi32> to vector<2x16xf32>
    %cst_244 = arith.constant dense<0.000000e+00> : vector<2x200xf32>
    %745 = tpu.matmul %744, %682, %cst_244 {dimension_numbers = #tpu.dot_dimension_numbers<[1], [0], [0], [1], [0, 0, 1, 1], [], []>} : vector<2x16xf32>, vector<16x200xf32>, vector<2x200xf32> -> vector<2x200xf32>
    %c4_245 = arith.constant 4 : index
    %c0_246 = arith.constant 0 : index
    %c0_247 = arith.constant 0 : index
    %746 = vector.load %arg31[%c4_245, %c0_246, %c0_247] : memref<6x200x100xf32, #tpu.memory_space<vmem>>, vector<1x200x100xf32>
    %747 = vector.shape_cast %746 : vector<1x200x100xf32> to vector<200x100xf32>
    %cst_248 = arith.constant dense<0.000000e+00> : vector<2x100xf32>
    %748 = tpu.matmul %745, %747, %cst_248 {dimension_numbers = #tpu.dot_dimension_numbers<[1], [0], [0], [1], [0, 0, 1, 1], [], []>} : vector<2x200xf32>, vector<200x100xf32>, vector<2x100xf32> -> vector<2x100xf32>
    %749 = arith.addf %737, %748 : vector<2x100xf32>
    %c8_i32_249 = arith.constant 8 : i32
    %750 = vector.broadcast %c8_i32_249 : i32 to vector<2x16xi32>
    %751 = arith.muli %683, %750 : vector<2x16xi32>
    %c5_i32 = arith.constant 5 : i32
    %752 = vector.broadcast %c5_i32 : i32 to vector<2x16xi32>
    %753 = arith.addi %751, %752 : vector<2x16xi32>
    %754 = arith.cmpi eq, %684, %753 : vector<2x16xi32>
    %755 = arith.extui %754 : vector<2x16xi1> to vector<2x16xi32>
    %756 = arith.sitofp %755 : vector<2x16xi32> to vector<2x16xf32>
    %cst_250 = arith.constant dense<0.000000e+00> : vector<2x200xf32>
    %757 = tpu.matmul %756, %682, %cst_250 {dimension_numbers = #tpu.dot_dimension_numbers<[1], [0], [0], [1], [0, 0, 1, 1], [], []>} : vector<2x16xf32>, vector<16x200xf32>, vector<2x200xf32> -> vector<2x200xf32>
    %c5 = arith.constant 5 : index
    %c0_251 = arith.constant 0 : index
    %c0_252 = arith.constant 0 : index
    %758 = vector.load %arg31[%c5, %c0_251, %c0_252] : memref<6x200x100xf32, #tpu.memory_space<vmem>>, vector<1x200x100xf32>
    %759 = vector.shape_cast %758 : vector<1x200x100xf32> to vector<200x100xf32>
    %cst_253 = arith.constant dense<0.000000e+00> : vector<2x100xf32>
    %760 = tpu.matmul %757, %759, %cst_253 {dimension_numbers = #tpu.dot_dimension_numbers<[1], [0], [0], [1], [0, 0, 1, 1], [], []>} : vector<2x200xf32>, vector<200x100xf32>, vector<2x100xf32> -> vector<2x100xf32>
    %761 = arith.addf %749, %760 : vector<2x100xf32>
    %cst_254 = arith.constant 0.000000e+00 : f32
    %762 = vector.broadcast %cst_254 : f32 to vector<2x100xf32>
    %763 = arith.maximumf %761, %762 : vector<2x100xf32>
    %c0_255 = arith.constant 0 : index
    %c0_256 = arith.constant 0 : index
    %764 = vector.load %arg33[%c0_255, %c0_256] : memref<100x50xf32, #tpu.memory_space<vmem>>, vector<100x50xf32>
    %cst_257 = arith.constant dense<0.000000e+00> : vector<2x50xf32>
    %765 = tpu.matmul %763, %764, %cst_257 {dimension_numbers = #tpu.dot_dimension_numbers<[1], [0], [0], [1], [0, 0, 1, 1], [], []>} : vector<2x100xf32>, vector<100x50xf32>, vector<2x50xf32> -> vector<2x50xf32>
    %c0_258 = arith.constant 0 : index
    %c0_259 = arith.constant 0 : index
    %766 = vector.load %arg34[%c0_258, %c0_259] : memref<1x50xf32, #tpu.memory_space<vmem>>, vector<1x50xf32>
    %767 = vector.broadcast %766 : vector<1x50xf32> to vector<2x50xf32>
    %768 = arith.addf %765, %767 : vector<2x50xf32>
    %cst_260 = arith.constant 0.000000e+00 : f32
    %769 = vector.broadcast %cst_260 : f32 to vector<2x50xf32>
    %770 = arith.maximumf %768, %769 : vector<2x50xf32>
    %c0_261 = arith.constant 0 : index
    %c0_262 = arith.constant 0 : index
    %771 = vector.load %arg35[%c0_261, %c0_262] : memref<50x2xf32, #tpu.memory_space<vmem>>, vector<50x2xf32>
    %cst_263 = arith.constant dense<0.000000e+00> : vector<2x2xf32>
    %772 = tpu.matmul %770, %771, %cst_263 {dimension_numbers = #tpu.dot_dimension_numbers<[1], [0], [0], [1], [0, 0, 1, 1], [], []>} : vector<2x50xf32>, vector<50x2xf32>, vector<2x2xf32> -> vector<2x2xf32>
    %c0_264 = arith.constant 0 : index
    %c0_265 = arith.constant 0 : index
    %773 = vector.load %arg36[%c0_264, %c0_265] : memref<1x2xf32, #tpu.memory_space<vmem>>, vector<1x2xf32>
    %774 = vector.broadcast %773 : vector<1x2xf32> to vector<2x2xf32>
    %775 = arith.addf %772, %774 : vector<2x2xf32>
    %cst_266 = arith.constant dense<0xFF800000> : vector<2xf32>
    %776 = vector.multi_reduction <maximumf>, %775, %cst_266 [1] : vector<2x2xf32> to vector<2xf32>
    %777 = vector.shape_cast %776 : vector<2xf32> to vector<2x1xf32>
    %778 = vector.broadcast %777 : vector<2x1xf32> to vector<2x2xf32>
    %779 = arith.subf %775, %778 : vector<2x2xf32>
    %780 = math.exp %779 : vector<2x2xf32>
    %cst_267 = arith.constant dense<0.000000e+00> : vector<2xf32>
    %781 = vector.multi_reduction <add>, %780, %cst_267 [1] : vector<2x2xf32> to vector<2xf32>
    %782 = vector.shape_cast %781 : vector<2xf32> to vector<2x1xf32>
    %783 = vector.broadcast %782 : vector<2x1xf32> to vector<2x2xf32>
    %784 = arith.divf %780, %783 : vector<2x2xf32>
    %c0_268 = arith.constant 0 : index
    %c0_269 = arith.constant 0 : index
    %785 = vector.load %arg37[%c0_268, %c0_269] : memref<2x2xf32, #tpu.memory_space<vmem>>, vector<2x2xf32>
    tpu.vector_store %arg37[%c0_268, %c0_269], %784 {strides = array<i32>} : memref<2x2xf32, #tpu.memory_space<vmem>>, vector<2x2xf32>,
    return
  }
}

</mosaic_0001>

<llo_original>
// kernel: attrcnn_forward.1
$region0: #{attrcnn_forward.1}
  #allocation0 [shape = 'u32[]', space=smem, size = 0x4, offset = 0x4, fixed_abs, tag = 'smem constant byte address 0x4 - core index']
  #allocation1 [shape = 'u32[144,128]{1,0:T(1,128)}', space=vmem, size = 0x12000, scoped, tag = 'internal scratch']
  %s0 = inlined_call_operand.smem [shape: u32[38], index: -1, kind: input, shape index: {}]
  %s1 = sld [smem:[%s0]]
  %s2 = scalar_lea.smem %s0, 1
  %s3 = sld [smem:[%s2]]
  %s4 = scalar_lea.smem %s0, 2
  %s5 = sld [smem:[%s4]]
  %s6 = scalar_lea.smem %s0, 3
  %s7 = sld [smem:[%s6]]
  %s8 = scalar_lea.smem %s0, 4
  %s9 = sld [smem:[%s8]]
  %s10 = scalar_lea.smem %s0, 5
  %s11 = sld [smem:[%s10]]
  %s12 = scalar_lea.smem %s0, 6
  %s13 = sld [smem:[%s12]]
  %s14 = scalar_lea.smem %s0, 7
  %s15 = sld [smem:[%s14]]
  %s16 = scalar_lea.smem %s0, 8
  %s17 = sld [smem:[%s16]]
  %s18 = scalar_lea.smem %s0, 9
  %s19 = sld [smem:[%s18]]
  %s20 = scalar_lea.smem %s0, 10
  %s21 = sld [smem:[%s20]]
  %s22 = scalar_lea.smem %s0, 11
  %s23 = sld [smem:[%s22]]
  %s24 = scalar_lea.smem %s0, 12
  %s25 = sld [smem:[%s24]]
  %s26 = scalar_lea.smem %s0, 13
  %s27 = sld [smem:[%s26]]
  %s28 = scalar_lea.smem %s0, 14
  %s29 = sld [smem:[%s28]]
  %s30 = scalar_lea.smem %s0, 15
  %s31 = sld [smem:[%s30]]
  %s32 = scalar_lea.smem %s0, 16
  %s33 = sld [smem:[%s32]]
  %s34 = scalar_lea.smem %s0, 17
  %s35 = sld [smem:[%s34]]
  %s36 = scalar_lea.smem %s0, 18
  %s37 = sld [smem:[%s36]]
  %s38 = scalar_lea.smem %s0, 19
  %s39 = sld [smem:[%s38]]
  %s40 = scalar_lea.smem %s0, 20
  %s41 = sld [smem:[%s40]]
  %s42 = scalar_lea.smem %s0, 21
  %s43 = sld [smem:[%s42]]
  %s44 = scalar_lea.smem %s0, 22
  %s45 = sld [smem:[%s44]]
  %s46 = scalar_lea.smem %s0, 23
  %s47 = sld [smem:[%s46]]
  %s48 = scalar_lea.smem %s0, 24
  %s49 = sld [smem:[%s48]]
  %s50 = scalar_lea.smem %s0, 25
  %s51 = sld [smem:[%s50]]
  %s52 = scalar_lea.smem %s0, 26
  %s53 = sld [smem:[%s52]]
  %s54 = scalar_lea.smem %s0, 27
  %s55 = sld [smem:[%s54]]
  %s56 = scalar_lea.smem %s0, 28
  %s57 = sld [smem:[%s56]]
  %s58 = scalar_lea.smem %s0, 29
  %s59 = sld [smem:[%s58]]
  %s60 = scalar_lea.smem %s0, 30
  %s61 = sld [smem:[%s60]]
  %s62 = scalar_lea.smem %s0, 31
  %s63 = sld [smem:[%s62]]
  %s64 = scalar_lea.smem %s0, 32
  %s65 = sld [smem:[%s64]]
  %s66 = scalar_lea.smem %s0, 33
  %s67 = sld [smem:[%s66]]
  %s68 = scalar_lea.smem %s0, 34
  %s69 = sld [smem:[%s68]]
  %s70 = scalar_lea.smem %s0, 35
  %s71 = sld [smem:[%s70]]
  %s72 = scalar_lea.smem %s0, 36
  %s73 = sld [smem:[%s72]]
  %s74 = scalar_lea.smem %s0, 37
  %s75 = sld [smem:[%s74]]
  %s76 = sld [smem:[#allocation0]]
  $region158: #{attrcnn_forward.1} parent=0
    _
  %s78 = ssub.s32 1, %s76
  %s79 = scalar_select 0, %s78, %s76
  $region1: #{attrcnn_forward.1} parent=0
    #allocation2 [shape = 'u8[1024]{0}', space=vmem, size = 0x400, scoped, tag = 'output window, operand 0, single buffered']
    #allocation3 [shape = 's32[1]{0}', space=sflag, size = 0x4, scoped, tag = 'scoped memory for attrcnn_forward.1']
    %80 = vsyncpa [#allocation3], 0
    // Predicated region
    $region2: #{attrcnn_forward.1} parent=1 // pred_check
      _
    $region3: #{attrcnn_forward.1} parent=1 // pred_check_branch
      %82 = sbr.rel (0) target = $region5
    $region4: #{attrcnn_forward.1} parent=1 // pred_region
      _
    $region5: #{attrcnn_forward.1} parent=1 // pred_fallthru
      _
    // Predicated region
    $region6: #{attrcnn_forward.1} parent=1 // pred_check
      _
    $region7: #{attrcnn_forward.1} parent=1 // pred_check_branch
      %84 = sbr.rel (0) target = $region9
    $region8: #{attrcnn_forward.1} parent=1 // pred_region
      _
    $region9: #{attrcnn_forward.1} parent=1 // pred_fallthru
      _
    // Predicated region
    $region10: #{attrcnn_forward.1} parent=1 // pred_check
      _
    $region11: #{attrcnn_forward.1} parent=1 // pred_check_branch
      %86 = sbr.rel (0) target = $region13
    $region12: #{attrcnn_forward.1} parent=1 // pred_region
      _
    $region13: #{attrcnn_forward.1} parent=1 // pred_fallthru
      _
    // Predicated region
    $region14: #{attrcnn_forward.1} parent=1 // pred_check
      _
    $region15: #{attrcnn_forward.1} parent=1 // pred_check_branch
      %88 = sbr.rel (0) target = $region17
    $region16: #{attrcnn_forward.1} parent=1 // pred_region
      _
    $region17: #{attrcnn_forward.1} parent=1 // pred_fallthru
      _
    // Predicated region
    $region18: #{attrcnn_forward.1} parent=1 // pred_check
      _
    $region19: #{attrcnn_forward.1} parent=1 // pred_check_branch
      %90 = sbr.rel (0) target = $region21
    $region20: #{attrcnn_forward.1} parent=1 // pred_region
      _
    $region21: #{attrcnn_forward.1} parent=1 // pred_fallthru
      _
    // Predicated region
    $region22: #{attrcnn_forward.1} parent=1 // pred_check
      _
    $region23: #{attrcnn_forward.1} parent=1 // pred_check_branch
      %92 = sbr.rel (0) target = $region25
    $region24: #{attrcnn_forward.1} parent=1 // pred_region
      _
    $region25: #{attrcnn_forward.1} parent=1 // pred_fallthru
      _
    // Predicated region
    $region26: #{attrcnn_forward.1} parent=1 // pred_check
      _
    $region27: #{attrcnn_forward.1} parent=1 // pred_check_branch
      %94 = sbr.rel (0) target = $region29
    $region28: #{attrcnn_forward.1} parent=1 // pred_region
      _
    $region29: #{attrcnn_forward.1} parent=1 // pred_fallthru
      _
    // Predicated region
    $region30: #{attrcnn_forward.1} parent=1 // pred_check
      _
    $region31: #{attrcnn_forward.1} parent=1 // pred_check_branch
      %96 = sbr.rel (0) target = $region33
    $region32: #{attrcnn_forward.1} parent=1 // pred_region
      _
    $region33: #{attrcnn_forward.1} parent=1 // pred_fallthru
      _
    // Predicated region
    $region34: #{attrcnn_forward.1} parent=1 // pred_check
      _
    $region35: #{attrcnn_forward.1} parent=1 // pred_check_branch
      %98 = sbr.rel (0) target = $region37
    $region36: #{attrcnn_forward.1} parent=1 // pred_region
      _
    $region37: #{attrcnn_forward.1} parent=1 // pred_fallthru
      _
    // Predicated region
    $region38: #{attrcnn_forward.1} parent=1 // pred_check
      _
    $region39: #{attrcnn_forward.1} parent=1 // pred_check_branch
      %100 = sbr.rel (0) target = $region41
    $region40: #{attrcnn_forward.1} parent=1 // pred_region
      _
    $region41: #{attrcnn_forward.1} parent=1 // pred_fallthru
      _
    // Predicated region
    $region42: #{attrcnn_forward.1} parent=1 // pred_check
      _
    $region43: #{attrcnn_forward.1} parent=1 // pred_check_branch
      %102 = sbr.rel (0) target = $region45
    $region44: #{attrcnn_forward.1} parent=1 // pred_region
      _
    $region45: #{attrcnn_forward.1} parent=1 // pred_fallthru
      _
    // Predicated region
    $region46: #{attrcnn_forward.1} parent=1 // pred_check
      _
    $region47: #{attrcnn_forward.1} parent=1 // pred_check_branch
      %104 = sbr.rel (0) target = $region49
    $region48: #{attrcnn_forward.1} parent=1 // pred_region
      _
    $region49: #{attrcnn_forward.1} parent=1 // pred_fallthru
      _
    // Predicated region
    $region50: #{attrcnn_forward.1} parent=1 // pred_check
      _
    $region51: #{attrcnn_forward.1} parent=1 // pred_check_branch
      %106 = sbr.rel (0) target = $region53
    $region52: #{attrcnn_forward.1} parent=1 // pred_region
      _
    $region53: #{attrcnn_forward.1} parent=1 // pred_fallthru
      _
    // Predicated region
    $region54: #{attrcnn_forward.1} parent=1 // pred_check
      _
    $region55: #{attrcnn_forward.1} parent=1 // pred_check_branch
      %108 = sbr.rel (0) target = $region57
    $region56: #{attrcnn_forward.1} parent=1 // pred_region
      _
    $region57: #{attrcnn_forward.1} parent=1 // pred_fallthru
      _
    // Predicated region
    $region58: #{attrcnn_forward.1} parent=1 // pred_check
      _
    $region59: #{attrcnn_forward.1} parent=1 // pred_check_branch
      %110 = sbr.rel (0) target = $region61
    $region60: #{attrcnn_forward.1} parent=1 // pred_region
      _
    $region61: #{attrcnn_forward.1} parent=1 // pred_fallthru
      _
    // Predicated region
    $region62: #{attrcnn_forward.1} parent=1 // pred_check
      _
    $region63: #{attrcnn_forward.1} parent=1 // pred_check_branch
      %112 = sbr.rel (0) target = $region65
    $region64: #{attrcnn_forward.1} parent=1 // pred_region
      _
    $region65: #{attrcnn_forward.1} parent=1 // pred_fallthru
      _
    // Predicated region
    $region66: #{attrcnn_forward.1} parent=1 // pred_check
      _
    $region67: #{attrcnn_forward.1} parent=1 // pred_check_branch
      %114 = sbr.rel (0) target = $region69
    $region68: #{attrcnn_forward.1} parent=1 // pred_region
      _
    $region69: #{attrcnn_forward.1} parent=1 // pred_fallthru
      _
    // Predicated region
    $region70: #{attrcnn_forward.1} parent=1 // pred_check
      _
    $region71: #{attrcnn_forward.1} parent=1 // pred_check_branch
      %116 = sbr.rel (0) target = $region73
    $region72: #{attrcnn_forward.1} parent=1 // pred_region
      _
    $region73: #{attrcnn_forward.1} parent=1 // pred_fallthru
      _
    // Predicated region
    $region74: #{attrcnn_forward.1} parent=1 // pred_check
      _
    $region75: #{attrcnn_forward.1} parent=1 // pred_check_branch
      %118 = sbr.rel (0) target = $region77
    $region76: #{attrcnn_forward.1} parent=1 // pred_region
      _
    $region77: #{attrcnn_forward.1} parent=1 // pred_fallthru
      _
    // Predicated region
    $region78: #{attrcnn_forward.1} parent=1 // pred_check
      _
    $region79: #{attrcnn_forward.1} parent=1 // pred_check_branch
      %120 = sbr.rel (0) target = $region81
    $region80: #{attrcnn_forward.1} parent=1 // pred_region
      _
    $region81: #{attrcnn_forward.1} parent=1 // pred_fallthru
      _
    // Predicated region
    $region82: #{attrcnn_forward.1} parent=1 // pred_check
      _
    $region83: #{attrcnn_forward.1} parent=1 // pred_check_branch
      %122 = sbr.rel (0) target = $region85
    $region84: #{attrcnn_forward.1} parent=1 // pred_region
      _
    $region85: #{attrcnn_forward.1} parent=1 // pred_fallthru
      _
    // Predicated region
    $region86: #{attrcnn_forward.1} parent=1 // pred_check
      _
    $region87: #{attrcnn_forward.1} parent=1 // pred_check_branch
      %124 = sbr.rel (0) target = $region89
    $region88: #{attrcnn_forward.1} parent=1 // pred_region
      _
    $region89: #{attrcnn_forward.1} parent=1 // pred_fallthru
      _
    // Predicated region
    $region90: #{attrcnn_forward.1} parent=1 // pred_check
      _
    $region91: #{attrcnn_forward.1} parent=1 // pred_check_branch
      %126 = sbr.rel (0) target = $region93
    $region92: #{attrcnn_forward.1} parent=1 // pred_region
      _
    $region93: #{attrcnn_forward.1} parent=1 // pred_fallthru
      _
    // Predicated region
    $region94: #{attrcnn_forward.1} parent=1 // pred_check
      _
    $region95: #{attrcnn_forward.1} parent=1 // pred_check_branch
      %128 = sbr.rel (0) target = $region97
    $region96: #{attrcnn_forward.1} parent=1 // pred_region
      _
    $region97: #{attrcnn_forward.1} parent=1 // pred_fallthru
      _
    // Predicated region
    $region98: #{attrcnn_forward.1} parent=1 // pred_check
      _
    $region99: #{attrcnn_forward.1} parent=1 // pred_check_branch
      %130 = sbr.rel (0) target = $region101
    $region100: #{attrcnn_forward.1} parent=1 // pred_region
      _
    $region101: #{attrcnn_forward.1} parent=1 // pred_fallthru
      _
    // Predicated region
    $region102: #{attrcnn_forward.1} parent=1 // pred_check
      _
    $region103: #{attrcnn_forward.1} parent=1 // pred_check_branch
      %132 = sbr.rel (0) target = $region105
    $region104: #{attrcnn_forward.1} parent=1 // pred_region
      _
    $region105: #{attrcnn_forward.1} parent=1 // pred_fallthru
      _
    // Predicated region
    $region106: #{attrcnn_forward.1} parent=1 // pred_check
      _
    $region107: #{attrcnn_forward.1} parent=1 // pred_check_branch
      %134 = sbr.rel (0) target = $region109
    $region108: #{attrcnn_forward.1} parent=1 // pred_region
      _
    $region109: #{attrcnn_forward.1} parent=1 // pred_fallthru
      _
    // Predicated region
    $region110: #{attrcnn_forward.1} parent=1 // pred_check
      _
    $region111: #{attrcnn_forward.1} parent=1 // pred_check_branch
      %136 = sbr.rel (0) target = $region113
    $region112: #{attrcnn_forward.1} parent=1 // pred_region
      _
    $region113: #{attrcnn_forward.1} parent=1 // pred_fallthru
      _
    // Predicated region
    $region114: #{attrcnn_forward.1} parent=1 // pred_check
      _
    $region115: #{attrcnn_forward.1} parent=1 // pred_check_branch
      %138 = sbr.rel (0) target = $region117
    $region116: #{attrcnn_forward.1} parent=1 // pred_region
      _
    $region117: #{attrcnn_forward.1} parent=1 // pred_fallthru
      _
    // Predicated region
    $region118: #{attrcnn_forward.1} parent=1 // pred_check
      _
    $region119: #{attrcnn_forward.1} parent=1 // pred_check_branch
      %140 = sbr.rel (0) target = $region121
    $region120: #{attrcnn_forward.1} parent=1 // pred_region
      _
    $region121: #{attrcnn_forward.1} parent=1 // pred_fallthru
      _
    // Predicated region
    $region122: #{attrcnn_forward.1} parent=1 // pred_check
      _
    $region123: #{attrcnn_forward.1} parent=1 // pred_check_branch
      %142 = sbr.rel (0) target = $region125
    $region124: #{attrcnn_forward.1} parent=1 // pred_region
      _
    $region125: #{attrcnn_forward.1} parent=1 // pred_fallthru
      _
    // Predicated region
    $region126: #{attrcnn_forward.1} parent=1 // pred_check
      _
    $region127: #{attrcnn_forward.1} parent=1 // pred_check_branch
      %144 = sbr.rel (0) target = $region129
    $region128: #{attrcnn_forward.1} parent=1 // pred_region
      _
    $region129: #{attrcnn_forward.1} parent=1 // pred_fallthru
      _
    // Predicated region
    $region130: #{attrcnn_forward.1} parent=1 // pred_check
      _
    $region131: #{attrcnn_forward.1} parent=1 // pred_check_branch
      %146 = sbr.rel (0) target = $region133
    $region132: #{attrcnn_forward.1} parent=1 // pred_region
      _
    $region133: #{attrcnn_forward.1} parent=1 // pred_fallthru
      _
    // Predicated region
    $region134: #{attrcnn_forward.1} parent=1 // pred_check
      _
    $region135: #{attrcnn_forward.1} parent=1 // pred_check_branch
      %148 = sbr.rel (0) target = $region137
    $region136: #{attrcnn_forward.1} parent=1 // pred_region
      _
    $region137: #{attrcnn_forward.1} parent=1 // pred_fallthru
      _
    // Predicated region
    $region138: #{attrcnn_forward.1} parent=1 // pred_check
      _
    $region139: #{attrcnn_forward.1} parent=1 // pred_check_branch
      %150 = sbr.rel (0) target = $region141
    $region140: #{attrcnn_forward.1} parent=1 // pred_region
      _
    $region141: #{attrcnn_forward.1} parent=1 // pred_fallthru
      _
    // Predicated region
    $region142: #{attrcnn_forward.1} parent=1 // pred_check
      _
    $region143: #{attrcnn_forward.1} parent=1 // pred_check_branch
      %152 = sbr.rel (0) target = $region145
    $region144: #{attrcnn_forward.1} parent=1 // pred_region
      _
    $region145: #{attrcnn_forward.1} parent=1 // pred_fallthru
      _
    // Predicated region
    $region146: #{attrcnn_forward.1} parent=1 // pred_check
      _
    $region147: #{attrcnn_forward.1} parent=1 // pred_check_branch
      %154 = sbr.rel (0) target = $region149
    $region148: #{attrcnn_forward.1} parent=1 // pred_region
      _
    $region149: #{attrcnn_forward.1} parent=1 // pred_fallthru
      _
    %v155 = vld [vmem:[%s1] sm:$0xff]
    %v156 = vld [vmem:[%s1 + $0x8] sm:$0xff]
    %v157 = vld [vmem:[%s1 + $0x10] sm:$0xff]
    %v158 = vld [vmem:[%s1 + $0x18] sm:$0xff]
    %v159 = vld [vmem:[%s1 + $0x20] sm:$0xff]
    %v160 = vld [vmem:[%s1 + $0x28] sm:$0xff]
    %v161 = vld [vmem:[%s1 + $0x30] sm:$0xff]
    %v162 = vld [vmem:[%s1 + $0x38] sm:$0xff]
    %v163 = vld [vmem:[%s1 + $0x40] sm:$0xff]
    %v164 = vld [vmem:[%s1 + $0x48] sm:$0xff]
    %v165 = vld [vmem:[%s1 + $0x50] sm:$0xff]
    %v166 = vld [vmem:[%s1 + $0x58] sm:$0xff]
    %v167 = vld [vmem:[%s1 + $0x60] sm:$0xff]
    %v168 = vld [vmem:[%s1 + $0x68] sm:$0xff]
    %v169 = vld [vmem:[%s1 + $0x70] sm:$0xff]
    %v170 = vld [vmem:[%s1 + $0x78] sm:$0xff]
    %v171 = vld [vmem:[%s1 + $0x80] sm:$0xff]
    %v172 = vld [vmem:[%s1 + $0x88] sm:$0xff]
    %v173 = vld [vmem:[%s1 + $0x90] sm:$0xff]
    %v174 = vld [vmem:[%s1 + $0x98] sm:$0xff]
    %v175 = vld [vmem:[%s1 + $0xa0] sm:$0xff]
    %v176 = vld [vmem:[%s1 + $0xa8] sm:$0xff]
    %v177 = vld [vmem:[%s1 + $0xb0] sm:$0xff]
    %v178 = vld [vmem:[%s1 + $0xb8] sm:$0xff]
    %v179 = vld [vmem:[%s1 + $0xc0] sm:$0xff]
    %v180 = vld [vmem:[%s1 + $0xc8] sm:$0xff]
    %v181 = vld [vmem:[%s1 + $0xd0] sm:$0xff]
    %v182 = vld [vmem:[%s1 + $0xd8] sm:$0xff]
    %v183 = vld [vmem:[%s1 + $0xe0] sm:$0xff]
    %v184 = vld [vmem:[%s1 + $0xe8] sm:$0xff]
    %v185 = vld [vmem:[%s1 + $0xf0] sm:$0xff]
    %v186 = vld [vmem:[%s1 + $0xf8] sm:$0xff]
    %v187 = vlaneseq
    %v188 = vand.u32 %v187, 127
    %189 = vset.pattern.permute.xlu0 0
    %190 = vperm.xlu0 %189, %v155
    %v191 = vpop.permute.xlu0 %190
    %192 = vset.pattern.permute.xlu0 0
    %193 = vperm.xlu0 %192, %v156
    %v194 = vpop.permute.xlu0 %193
    %195 = vset.pattern.permute.xlu0 0
    %196 = vperm.xlu0 %195, %v157
    %v197 = vpop.permute.xlu0 %196
    %198 = vset.pattern.permute.xlu0 0
    %199 = vperm.xlu0 %198, %v158
    %v200 = vpop.permute.xlu0 %199
    %201 = vset.pattern.permute.xlu0 0
    %202 = vperm.xlu0 %201, %v159
    %v203 = vpop.permute.xlu0 %202
    %204 = vset.pattern.permute.xlu0 0
    %205 = vperm.xlu0 %204, %v160
    %v206 = vpop.permute.xlu0 %205
    %207 = vset.pattern.permute.xlu0 0
    %208 = vperm.xlu0 %207, %v161
    %v209 = vpop.permute.xlu0 %208
    %210 = vset.pattern.permute.xlu0 0
    %211 = vperm.xlu0 %210, %v162
    %v212 = vpop.permute.xlu0 %211
    %213 = vset.pattern.permute.xlu0 0
    %214 = vperm.xlu0 %213, %v163
    %v215 = vpop.permute.xlu0 %214
    %216 = vset.pattern.permute.xlu0 0
    %217 = vperm.xlu0 %216, %v164
    %v218 = vpop.permute.xlu0 %217
    %219 = vset.pattern.permute.xlu0 0
    %220 = vperm.xlu0 %219, %v165
    %v221 = vpop.permute.xlu0 %220
    %222 = vset.pattern.permute.xlu0 0
    %223 = vperm.xlu0 %222, %v166
    %v224 = vpop.permute.xlu0 %223
    %225 = vset.pattern.permute.xlu0 0
    %226 = vperm.xlu0 %225, %v167
    %v227 = vpop.permute.xlu0 %226
    %228 = vset.pattern.permute.xlu0 0
    %229 = vperm.xlu0 %228, %v168
    %v230 = vpop.permute.xlu0 %229
    %231 = vset.pattern.permute.xlu0 0
    %232 = vperm.xlu0 %231, %v169
    %v233 = vpop.permute.xlu0 %232
    %234 = vset.pattern.permute.xlu0 0
    %235 = vperm.xlu0 %234, %v170
    %v236 = vpop.permute.xlu0 %235
    %237 = vset.pattern.permute.xlu0 0
    %238 = vperm.xlu0 %237, %v171
    %v239 = vpop.permute.xlu0 %238
    %240 = vset.pattern.permute.xlu0 0
    %241 = vperm.xlu0 %240, %v172
    %v242 = vpop.permute.xlu0 %241
    %243 = vset.pattern.permute.xlu0 0
    %244 = vperm.xlu0 %243, %v173
    %v245 = vpop.permute.xlu0 %244
    %246 = vset.pattern.permute.xlu0 0
    %247 = vperm.xlu0 %246, %v174
    %v248 = vpop.permute.xlu0 %247
    %249 = vset.pattern.permute.xlu0 0
    %250 = vperm.xlu0 %249, %v175
    %v251 = vpop.permute.xlu0 %250
    %252 = vset.pattern.permute.xlu0 0
    %253 = vperm.xlu0 %252, %v176
    %v254 = vpop.permute.xlu0 %253
    %255 = vset.pattern.permute.xlu0 0
    %256 = vperm.xlu0 %255, %v177
    %v257 = vpop.permute.xlu0 %256
    %258 = vset.pattern.permute.xlu0 0
    %259 = vperm.xlu0 %258, %v178
    %v260 = vpop.permute.xlu0 %259
    %261 = vset.pattern.permute.xlu0 0
    %262 = vperm.xlu0 %261, %v179
    %v263 = vpop.permute.xlu0 %262
    %264 = vset.pattern.permute.xlu0 0
    %265 = vperm.xlu0 %264, %v180
    %v266 = vpop.permute.xlu0 %265
    %267 = vset.pattern.permute.xlu0 0
    %268 = vperm.xlu0 %267, %v181
    %v269 = vpop.permute.xlu0 %268
    %270 = vset.pattern.permute.xlu0 0
    %271 = vperm.xlu0 %270, %v182
    %v272 = vpop.permute.xlu0 %271
    %273 = vset.pattern.permute.xlu0 0
    %274 = vperm.xlu0 %273, %v183
    %v275 = vpop.permute.xlu0 %274
    %276 = vset.pattern.permute.xlu0 0
    %277 = vperm.xlu0 %276, %v184
    %v278 = vpop.permute.xlu0 %277
    %279 = vset.pattern.permute.xlu0 0
    %280 = vperm.xlu0 %279, %v185
    %v281 = vpop.permute.xlu0 %280
    %282 = vset.pattern.permute.xlu0 0
    %283 = vperm.xlu0 %282, %v186
    %v284 = vpop.permute.xlu0 %283
    %vm285 = vcmp.eq.s32.totalorder %v191, %v188
    %vm286 = vcmp.eq.s32.totalorder %v194, %v188
    %vm287 = vcmp.eq.s32.totalorder %v197, %v188
    %vm288 = vcmp.eq.s32.totalorder %v200, %v188
    %vm289 = vcmp.eq.s32.totalorder %v203, %v188
    %vm290 = vcmp.eq.s32.totalorder %v206, %v188
    %vm291 = vcmp.eq.s32.totalorder %v209, %v188
    %vm292 = vcmp.eq.s32.totalorder %v212, %v188
    %vm293 = vcmp.eq.s32.totalorder %v215, %v188
    %vm294 = vcmp.eq.s32.totalorder %v218, %v188
    %vm295 = vcmp.eq.s32.totalorder %v221, %v188
    %vm296 = vcmp.eq.s32.totalorder %v224, %v188
    %vm297 = vcmp.eq.s32.totalorder %v227, %v188
    %vm298 = vcmp.eq.s32.totalorder %v230, %v188
    %vm299 = vcmp.eq.s32.totalorder %v233, %v188
    %vm300 = vcmp.eq.s32.totalorder %v236, %v188
    %vm301 = vcmp.eq.s32.totalorder %v239, %v188
    %vm302 = vcmp.eq.s32.totalorder %v242, %v188
    %vm303 = vcmp.eq.s32.totalorder %v245, %v188
    %vm304 = vcmp.eq.s32.totalorder %v248, %v188
    %vm305 = vcmp.eq.s32.totalorder %v251, %v188
    %vm306 = vcmp.eq.s32.totalorder %v254, %v188
    %vm307 = vcmp.eq.s32.totalorder %v257, %v188
    %vm308 = vcmp.eq.s32.totalorder %v260, %v188
    %vm309 = vcmp.eq.s32.totalorder %v263, %v188
    %vm310 = vcmp.eq.s32.totalorder %v266, %v188
    %vm311 = vcmp.eq.s32.totalorder %v269, %v188
    %vm312 = vcmp.eq.s32.totalorder %v272, %v188
    %vm313 = vcmp.eq.s32.totalorder %v275, %v188
    %vm314 = vcmp.eq.s32.totalorder %v278, %v188
    %vm315 = vcmp.eq.s32.totalorder %v281, %v188
    %vm316 = vcmp.eq.s32.totalorder %v284, %v188
    %v317 = vsel %vm285, 1, 0
    %v318 = vsel %vm286, 1, 0
    %v319 = vsel %vm287, 1, 0
    %v320 = vsel %vm288, 1, 0
    %v321 = vsel %vm289, 1, 0
    %v322 = vsel %vm290, 1, 0
    %v323 = vsel %vm291, 1, 0
    %v324 = vsel %vm292, 1, 0
    %v325 = vsel %vm293, 1, 0
    %v326 = vsel %vm294, 1, 0
    %v327 = vsel %vm295, 1, 0
    %v328 = vsel %vm296, 1, 0
    %v329 = vsel %vm297, 1, 0
    %v330 = vsel %vm298, 1, 0
    %v331 = vsel %vm299, 1, 0
    %v332 = vsel %vm300, 1, 0
    %v333 = vsel %vm301, 1, 0
    %v334 = vsel %vm302, 1, 0
    %v335 = vsel %vm303, 1, 0
    %v336 = vsel %vm304, 1, 0
    %v337 = vsel %vm305, 1, 0
    %v338 = vsel %vm306, 1, 0
    %v339 = vsel %vm307, 1, 0
    %v340 = vsel %vm308, 1, 0
    %v341 = vsel %vm309, 1, 0
    %v342 = vsel %vm310, 1, 0
    %v343 = vsel %vm311, 1, 0
    %v344 = vsel %vm312, 1, 0
    %v345 = vsel %vm313, 1, 0
    %v346 = vsel %vm314, 1, 0
    %v347 = vsel %vm315, 1, 0
    %v348 = vsel %vm316, 1, 0
    %v349 = vcvt.s32.f32 %v317
    %v350 = vcvt.s32.f32 %v318
    %v351 = vcvt.s32.f32 %v319
    %v352 = vcvt.s32.f32 %v320
    %v353 = vcvt.s32.f32 %v321
    %v354 = vcvt.s32.f32 %v322
    %v355 = vcvt.s32.f32 %v323
    %v356 = vcvt.s32.f32 %v324
    %v357 = vcvt.s32.f32 %v325
    %v358 = vcvt.s32.f32 %v326
    %v359 = vcvt.s32.f32 %v327
    %v360 = vcvt.s32.f32 %v328
    %v361 = vcvt.s32.f32 %v329
    %v362 = vcvt.s32.f32 %v330
    %v363 = vcvt.s32.f32 %v331
    %v364 = vcvt.s32.f32 %v332
    %v365 = vcvt.s32.f32 %v333
    %v366 = vcvt.s32.f32 %v334
    %v367 = vcvt.s32.f32 %v335
    %v368 = vcvt.s32.f32 %v336
    %v369 = vcvt.s32.f32 %v337
    %v370 = vcvt.s32.f32 %v338
    %v371 = vcvt.s32.f32 %v339
    %v372 = vcvt.s32.f32 %v340
    %v373 = vcvt.s32.f32 %v341
    %v374 = vcvt.s32.f32 %v342
    %v375 = vcvt.s32.f32 %v343
    %v376 = vcvt.s32.f32 %v344
    %v377 = vcvt.s32.f32 %v345
    %v378 = vcvt.s32.f32 %v346
    %v379 = vcvt.s32.f32 %v347
    %v380 = vcvt.s32.f32 %v348
    %v381 = vld [vmem:[%s3] sm:$0xff]
    %v382 = vld [vmem:[%s3 + $0x8] sm:$0xff]
    %v383 = vld [vmem:[%s3 + $0x10] sm:$0xff]
    %v384 = vld [vmem:[%s3 + $0x18] sm:$0xff]
    %v385 = vld [vmem:[%s3 + $0x20] sm:$0xff]
    %vm386 = vcmask 326656
    %v388 = vsel %vm386, %v349, 0
    %v391 = vsel %vm386, %v350, 0
    %v394 = vsel %vm386, %v351, 0
    %v397 = vsel %vm386, %v352, 0
    %v400 = vsel %vm386, %v353, 0
    %v403 = vsel %vm386, %v354, 0
    %v406 = vsel %vm386, %v355, 0
    %v409 = vsel %vm386, %v356, 0
    %v412 = vsel %vm386, %v357, 0
    %v415 = vsel %vm386, %v358, 0
    %v418 = vsel %vm386, %v359, 0
    %v421 = vsel %vm386, %v360, 0
    %v424 = vsel %vm386, %v361, 0
    %v427 = vsel %vm386, %v362, 0
    %v430 = vsel %vm386, %v363, 0
    %v433 = vsel %vm386, %v364, 0
    %v436 = vsel %vm386, %v365, 0
    %v439 = vsel %vm386, %v366, 0
    %v442 = vsel %vm386, %v367, 0
    %v445 = vsel %vm386, %v368, 0
    %v448 = vsel %vm386, %v369, 0
    %v451 = vsel %vm386, %v370, 0
    %v454 = vsel %vm386, %v371, 0
    %v457 = vsel %vm386, %v372, 0
    %v460 = vsel %vm386, %v373, 0
    %v463 = vsel %vm386, %v374, 0
    %v466 = vsel %vm386, %v375, 0
    %v469 = vsel %vm386, %v376, 0
    %v472 = vsel %vm386, %v377, 0
    %v475 = vsel %vm386, %v378, 0
    %v478 = vsel %vm386, %v379, 0
    %v481 = vsel %vm386, %v380, 0
    %483 = vmatprep.subr.mxu0 0.0
    %484 = vmatpush1.msra.mxu0 0.0
    %485 = vmatprep.subr.mxu0 0.0
    %486 = vmatpush1.msra.mxu0 0.0
    %487 = vmatprep.subr.mxu0 0.0
    %488 = vmatpush1.msra.mxu0 0.0
    %489 = vmatprep.subr.mxu0 0.0
    %490 = vmatpush1.msra.mxu0 0.0
    %491 = vmatprep.subr.mxu0 0.0
    %492 = vmatpush1.msra.mxu0 0.0
    %493 = vmatprep.subr.mxu0 0.0
    %494 = vmatpush1.msra.mxu0 0.0
    %495 = vmatprep.subr.mxu0 0.0
    %496 = vmatpush1.msra.mxu0 0.0
    %497 = vmatprep.subr.mxu0 0.0
    %498 = vmatpush1.msra.mxu0 0.0
    %499 = vmatprep.subr.mxu0 0.0
    %500 = vmatpush1.msra.mxu0 0.0
    %501 = vmatprep.subr.mxu0 0.0
    %502 = vmatpush1.msra.mxu0 0.0
    %503 = vmatprep.subr.mxu0 0.0
    %504 = vmatpush1.msra.mxu0 0.0
    %505 = vmatprep.subr.mxu0 0.0
    %506 = vmatpush1.msra.mxu0 %v385
    %507 = vmatprep.subr.mxu0 0.0
    %508 = vmatpush1.msra.mxu0 %v384
    %509 = vmatprep.subr.mxu0 0.0
    %510 = vmatpush1.msra.mxu0 %v383
    %511 = vmatprep.subr.mxu0 0.0
    %512 = vmatpush1.msra.mxu0 %v382
    %513 = vmatprep.subr.mxu0 0.0
    %514 = vmatpush1.msra.mxu0 %v381
    %515 = vmatprep.subr.mxu0 0.0
    %516 = vmatpush2.msra.mxu0 0.0
    %517 = vmatprep.subr.mxu0 0.0
    %518 = vmatpush2.msra.mxu0 0.0
    %519 = vmatprep.subr.mxu0 0.0
    %520 = vmatpush2.msra.mxu0 0.0
    %521 = vmatprep.subr.mxu0 0.0
    %522 = vmatpush2.msra.mxu0 0.0
    %523 = vmatprep.subr.mxu0 0.0
    %524 = vmatpush2.msra.mxu0 0.0
    %525 = vmatprep.subr.mxu0 0.0
    %526 = vmatpush2.msra.mxu0 0.0
    %527 = vmatprep.subr.mxu0 0.0
    %528 = vmatpush2.msra.mxu0 0.0
    %529 = vmatprep.subr.mxu0 0.0
    %530 = vmatpush2.msra.mxu0 0.0
    %531 = vmatprep.subr.mxu0 0.0
    %532 = vmatpush2.msra.mxu0 0.0
    %533 = vmatprep.subr.mxu0 0.0
    %534 = vmatpush2.msra.mxu0 0.0
    %535 = vmatprep.subr.mxu0 0.0
    %536 = vmatpush2.msra.mxu0 0.0
    %537 = vmatprep.subr.mxu0 0.0
    %538 = vmatpush2.msra.mxu0 0.0
    %539 = vmatprep.subr.mxu0 0.0
    %540 = vmatpush2.msra.mxu0 0.0
    %541 = vmatprep.subr.mxu0 0.0
    %542 = vmatpush2.msra.mxu0 0.0
    %543 = vmatprep.subr.mxu0 0.0
    %544 = vmatpush2.msra.mxu0 0.0
    %545 = vmatprep.subr.mxu0 0.0
    %546 = vmatpush2.msra.mxu0 0.0
    %547 = vmatprep.mubr.f32.mxu0 0.0
    %548 = vmatmul.mubr.f32.gmra.mxu0 %v388
    %v549 = vpop.f32.mrf.mxu0
    %v550 = vadd.f32 0.0, %v549
    %v551 = vpop.f32.mrf.mxu0
    %552 = vmatprep.mubr.f32.mxu0 0.0
    %553 = vmatmul.mubr.f32.gmra.mxu0 %v391
    %v554 = vpop.f32.mrf.mxu0
    %v555 = vadd.f32 0.0, %v554
    %v556 = vpop.f32.mrf.mxu0
    %557 = vmatprep.mubr.f32.mxu0 0.0
    %558 = vmatmul.mubr.f32.gmra.mxu0 %v394
    %v559 = vpop.f32.mrf.mxu0
    %v560 = vadd.f32 0.0, %v559
    %v561 = vpop.f32.mrf.mxu0
    %562 = vmatprep.mubr.f32.mxu0 0.0
    %563 = vmatmul.mubr.f32.gmra.mxu0 %v397
    %v564 = vpop.f32.mrf.mxu0
    %v565 = vadd.f32 0.0, %v564
    %v566 = vpop.f32.mrf.mxu0
    %567 = vmatprep.mubr.f32.mxu0 0.0
    %568 = vmatmul.mubr.f32.gmra.mxu0 %v400
    %v569 = vpop.f32.mrf.mxu0
    %v570 = vadd.f32 0.0, %v569
    %v571 = vpop.f32.mrf.mxu0
    %572 = vmatprep.mubr.f32.mxu0 0.0
    %573 = vmatmul.mubr.f32.gmra.mxu0 %v403
    %v574 = vpop.f32.mrf.mxu0
    %v575 = vadd.f32 0.0, %v574
    %v576 = vpop.f32.mrf.mxu0
    %577 = vmatprep.mubr.f32.mxu0 0.0
    %578 = vmatmul.mubr.f32.gmra.mxu0 %v406
    %v579 = vpop.f32.mrf.mxu0
    %v580 = vadd.f32 0.0, %v579
    %v581 = vpop.f32.mrf.mxu0
    %582 = vmatprep.mubr.f32.mxu0 0.0
    %583 = vmatmul.mubr.f32.gmra.mxu0 %v409
    %v584 = vpop.f32.mrf.mxu0
    %v585 = vadd.f32 0.0, %v584
    %v586 = vpop.f32.mrf.mxu0
    %587 = vmatprep.mubr.f32.mxu0 0.0
    %588 = vmatmul.mubr.f32.gmra.mxu0 %v412
    %v589 = vpop.f32.mrf.mxu0
    %v590 = vadd.f32 0.0, %v589
    %v591 = vpop.f32.mrf.mxu0
    %592 = vmatprep.mubr.f32.mxu0 0.0
    %593 = vmatmul.mubr.f32.gmra.mxu0 %v415
    %v594 = vpop.f32.mrf.mxu0
    %v595 = vadd.f32 0.0, %v594
    %v596 = vpop.f32.mrf.mxu0
    %597 = vmatprep.mubr.f32.mxu0 0.0
    %598 = vmatmul.mubr.f32.gmra.mxu0 %v418
    %v599 = vpop.f32.mrf.mxu0
    %v600 = vadd.f32 0.0, %v599
    %v601 = vpop.f32.mrf.mxu0
    %602 = vmatprep.mubr.f32.mxu0 0.0
    %603 = vmatmul.mubr.f32.gmra.mxu0 %v421
    %v604 = vpop.f32.mrf.mxu0
    %v605 = vadd.f32 0.0, %v604
    %v606 = vpop.f32.mrf.mxu0
    %607 = vmatprep.mubr.f32.mxu0 0.0
    %608 = vmatmul.mubr.f32.gmra.mxu0 %v424
    %v609 = vpop.f32.mrf.mxu0
    %v610 = vadd.f32 0.0, %v609
    %v611 = vpop.f32.mrf.mxu0
    %612 = vmatprep.mubr.f32.mxu0 0.0
    %613 = vmatmul.mubr.f32.gmra.mxu0 %v427
    %v614 = vpop.f32.mrf.mxu0
    %v615 = vadd.f32 0.0, %v614
    %v616 = vpop.f32.mrf.mxu0
    %617 = vmatprep.mubr.f32.mxu0 0.0
    %618 = vmatmul.mubr.f32.gmra.mxu0 %v430
    %v619 = vpop.f32.mrf.mxu0
    %v620 = vadd.f32 0.0, %v619
    %v621 = vpop.f32.mrf.mxu0
    %622 = vmatprep.mubr.f32.mxu0 0.0
    %623 = vmatmul.mubr.f32.gmra.mxu0 %v433
    %v624 = vpop.f32.mrf.mxu0
    %v625 = vadd.f32 0.0, %v624
    %v626 = vpop.f32.mrf.mxu0
    %627 = vmatprep.mubr.f32.mxu0 0.0
    %628 = vmatmul.mubr.f32.gmra.mxu0 %v436
    %v629 = vpop.f32.mrf.mxu0
    %v630 = vadd.f32 0.0, %v629
    %v631 = vpop.f32.mrf.mxu0
    %632 = vmatprep.mubr.f32.mxu0 0.0
    %633 = vmatmul.mubr.f32.gmra.mxu0 %v439
    %v634 = vpop.f32.mrf.mxu0
    %v635 = vadd.f32 0.0, %v634
    %v636 = vpop.f32.mrf.mxu0
    %637 = vmatprep.mubr.f32.mxu0 0.0
    %638 = vmatmul.mubr.f32.gmra.mxu0 %v442
    %v639 = vpop.f32.mrf.mxu0
    %v640 = vadd.f32 0.0, %v639
    %v641 = vpop.f32.mrf.mxu0
    %642 = vmatprep.mubr.f32.mxu0 0.0
    %643 = vmatmul.mubr.f32.gmra.mxu0 %v445
    %v644 = vpop.f32.mrf.mxu0
    %v645 = vadd.f32 0.0, %v644
    %v646 = vpop.f32.mrf.mxu0
    %647 = vmatprep.mubr.f32.mxu0 0.0
    %648 = vmatmul.mubr.f32.gmra.mxu0 %v448
    %v649 = vpop.f32.mrf.mxu0
    %v650 = vadd.f32 0.0, %v649
    %v651 = vpop.f32.mrf.mxu0
    %652 = vmatprep.mubr.f32.mxu0 0.0
    %653 = vmatmul.mubr.f32.gmra.mxu0 %v451
    %v654 = vpop.f32.mrf.mxu0
    %v655 = vadd.f32 0.0, %v654
    %v656 = vpop.f32.mrf.mxu0
    %657 = vmatprep.mubr.f32.mxu0 0.0
    %658 = vmatmul.mubr.f32.gmra.mxu0 %v454
    %v659 = vpop.f32.mrf.mxu0
    %v660 = vadd.f32 0.0, %v659
    %v661 = vpop.f32.mrf.mxu0
    %662 = vmatprep.mubr.f32.mxu0 0.0
    %663 = vmatmul.mubr.f32.gmra.mxu0 %v457
    %v664 = vpop.f32.mrf.mxu0
    %v665 = vadd.f32 0.0, %v664
    %v666 = vpop.f32.mrf.mxu0
    %667 = vmatprep.mubr.f32.mxu0 0.0
    %668 = vmatmul.mubr.f32.gmra.mxu0 %v460
    %v669 = vpop.f32.mrf.mxu0
    %v670 = vadd.f32 0.0, %v669
    %v671 = vpop.f32.mrf.mxu0
    %672 = vmatprep.mubr.f32.mxu0 0.0
    %673 = vmatmul.mubr.f32.gmra.mxu0 %v463
    %v674 = vpop.f32.mrf.mxu0
    %v675 = vadd.f32 0.0, %v674
    %v676 = vpop.f32.mrf.mxu0
    %677 = vmatprep.mubr.f32.mxu0 0.0
    %678 = vmatmul.mubr.f32.gmra.mxu0 %v466
    %v679 = vpop.f32.mrf.mxu0
    %v680 = vadd.f32 0.0, %v679
    %v681 = vpop.f32.mrf.mxu0
    %682 = vmatprep.mubr.f32.mxu0 0.0
    %683 = vmatmul.mubr.f32.gmra.mxu0 %v469
    %v684 = vpop.f32.mrf.mxu0
    %v685 = vadd.f32 0.0, %v684
    %v686 = vpop.f32.mrf.mxu0
    %687 = vmatprep.mubr.f32.mxu0 0.0
    %688 = vmatmul.mubr.f32.gmra.mxu0 %v472
    %v689 = vpop.f32.mrf.mxu0
    %v690 = vadd.f32 0.0, %v689
    %v691 = vpop.f32.mrf.mxu0
    %692 = vmatprep.mubr.f32.mxu0 0.0
    %693 = vmatmul.mubr.f32.gmra.mxu0 %v475
    %v694 = vpop.f32.mrf.mxu0
    %v695 = vadd.f32 0.0, %v694
    %v696 = vpop.f32.mrf.mxu0
    %697 = vmatprep.mubr.f32.mxu0 0.0
    %698 = vmatmul.mubr.f32.gmra.mxu0 %v478
    %v699 = vpop.f32.mrf.mxu0
    %v700 = vadd.f32 0.0, %v699
    %v701 = vpop.f32.mrf.mxu0
    %702 = vmatprep.mubr.f32.mxu0 0.0
    %703 = vmatmul.mubr.f32.gmra.mxu0 %v481
    %v704 = vpop.f32.mrf.mxu0
    %v705 = vadd.f32 0.0, %v704
    %v706 = vpop.f32.mrf.mxu0
    %707 = vdwg.mxu0
    %v708 = vld [vmem:[%s5] sm:$0xff]
    %v709 = vld [vmem:[%s5 + $0x8] sm:$0xff]
    %v710 = vld [vmem:[%s5 + $0x10] sm:$0xff]
    %v711 = vld [vmem:[%s5 + $0x18] sm:$0xff]
    %v712 = vld [vmem:[%s9] sm:$0x3]
    %v714 = vlaneseq
    %v715 = vshrl.u32 %v714, 7
    %v716 = vsub.s32 0, %v715
    %v717 = vrot.slane %v712, %v716
    %v718 = vlaneseq
    %v719 = vshrl.u32 %v718, 7
    %v720 = vsub.s32 1, %v719
    %v721 = vrot.slane %v712, %v720
    %vm724 = vcmask 130048
    %v726 = vsel %vm724, %v550, 0
    %v729 = vsel %vm724, %v555, 0
    %v732 = vsel %vm724, %v560, 0
    %v735 = vsel %vm724, %v565, 0
    %v738 = vsel %vm724, %v570, 0
    %v741 = vsel %vm724, %v575, 0
    %v744 = vsel %vm724, %v580, 0
    %v747 = vsel %vm724, %v585, 0
    %v750 = vsel %vm724, %v590, 0
    %v753 = vsel %vm724, %v595, 0
    %v756 = vsel %vm724, %v600, 0
    %v759 = vsel %vm724, %v605, 0
    %v762 = vsel %vm724, %v610, 0
    %v765 = vsel %vm724, %v615, 0
    %v768 = vsel %vm724, %v620, 0
    %v771 = vsel %vm724, %v625, 0
    %v774 = vsel %vm724, %v630, 0
    %v777 = vsel %vm724, %v635, 0
    %v780 = vsel %vm724, %v640, 0
    %v783 = vsel %vm724, %v645, 0
    %v786 = vsel %vm724, %v650, 0
    %v789 = vsel %vm724, %v655, 0
    %v792 = vsel %vm724, %v660, 0
    %v795 = vsel %vm724, %v665, 0
    %v798 = vsel %vm724, %v670, 0
    %v801 = vsel %vm724, %v675, 0
    %v804 = vsel %vm724, %v680, 0
    %v807 = vsel %vm724, %v685, 0
    %v810 = vsel %vm724, %v690, 0
    %v813 = vsel %vm724, %v695, 0
    %v816 = vsel %vm724, %v700, 0
    %v819 = vsel %vm724, %v705, 0
    %821 = vmatprep.subr.mxu0 0.0
    %822 = vmatpush1.msra.mxu0 0.0
    %823 = vmatprep.subr.mxu0 0.0
    %824 = vmatpush1.msra.mxu0 0.0
    %825 = vmatprep.subr.mxu0 0.0
    %826 = vmatpush1.msra.mxu0 0.0
    %827 = vmatprep.subr.mxu0 0.0
    %828 = vmatpush1.msra.mxu0 0.0
    %829 = vmatprep.subr.mxu0 0.0
    %830 = vmatpush1.msra.mxu0 0.0
    %831 = vmatprep.subr.mxu0 0.0
    %832 = vmatpush1.msra.mxu0 0.0
    %833 = vmatprep.subr.mxu0 0.0
    %834 = vmatpush1.msra.mxu0 0.0
    %835 = vmatprep.subr.mxu0 0.0
    %836 = vmatpush1.msra.mxu0 0.0
    %837 = vmatprep.subr.mxu0 0.0
    %838 = vmatpush1.msra.mxu0 0.0
    %839 = vmatprep.subr.mxu0 0.0
    %840 = vmatpush1.msra.mxu0 0.0
    %841 = vmatprep.subr.mxu0 0.0
    %842 = vmatpush1.msra.mxu0 0.0
    %843 = vmatprep.subr.mxu0 0.0
    %844 = vmatpush1.msra.mxu0 0.0
    %845 = vmatprep.subr.mxu0 0.0
    %846 = vmatpush1.msra.mxu0 0.0
    %847 = vmatprep.subr.mxu0 0.0
    %848 = vmatpush1.msra.mxu0 0.0
    %849 = vmatprep.subr.mxu0 %v711
    %850 = vmatpush1.msra.mxu0 %v710
    %851 = vmatprep.subr.mxu0 %v709
    %852 = vmatpush1.msra.mxu0 %v708
    %853 = vmatprep.subr.mxu0 0.0
    %854 = vmatpush2.msra.mxu0 0.0
    %855 = vmatprep.subr.mxu0 0.0
    %856 = vmatpush2.msra.mxu0 0.0
    %857 = vmatprep.subr.mxu0 0.0
    %858 = vmatpush2.msra.mxu0 0.0
    %859 = vmatprep.subr.mxu0 0.0
    %860 = vmatpush2.msra.mxu0 0.0
    %861 = vmatprep.subr.mxu0 0.0
    %862 = vmatpush2.msra.mxu0 0.0
    %863 = vmatprep.subr.mxu0 0.0
    %864 = vmatpush2.msra.mxu0 0.0
    %865 = vmatprep.subr.mxu0 0.0
    %866 = vmatpush2.msra.mxu0 0.0
    %867 = vmatprep.subr.mxu0 0.0
    %868 = vmatpush2.msra.mxu0 0.0
    %869 = vmatprep.subr.mxu0 0.0
    %870 = vmatpush2.msra.mxu0 0.0
    %871 = vmatprep.subr.mxu0 0.0
    %872 = vmatpush2.msra.mxu0 0.0
    %873 = vmatprep.subr.mxu0 0.0
    %874 = vmatpush2.msra.mxu0 0.0
    %875 = vmatprep.subr.mxu0 0.0
    %876 = vmatpush2.msra.mxu0 0.0
    %877 = vmatprep.subr.mxu0 0.0
    %878 = vmatpush2.msra.mxu0 0.0
    %879 = vmatprep.subr.mxu0 0.0
    %880 = vmatpush2.msra.mxu0 0.0
    %881 = vmatprep.subr.mxu0 0.0
    %882 = vmatpush2.msra.mxu0 0.0
    %883 = vmatprep.subr.mxu0 0.0
    %884 = vmatpush2.msra.mxu0 0.0
    %885 = vmatprep.mubr.f32.mxu0 0.0
    %886 = vmatmul.mubr.f32.gmra.mxu0 %v726
    %v887 = vpop.f32.mrf.mxu0
    %v888 = vadd.f32 %v717, %v887
    %v889 = vpop.f32.mrf.mxu0
    %v890 = vadd.f32 %v721, %v889
    %891 = vmatprep.mubr.f32.mxu0 0.0
    %892 = vmatmul.mubr.f32.gmra.mxu0 %v729
    %v893 = vpop.f32.mrf.mxu0
    %v894 = vadd.f32 %v717, %v893
    %v895 = vpop.f32.mrf.mxu0
    %v896 = vadd.f32 %v721, %v895
    %897 = vmatprep.mubr.f32.mxu0 0.0
    %898 = vmatmul.mubr.f32.gmra.mxu0 %v732
    %v899 = vpop.f32.mrf.mxu0
    %v900 = vadd.f32 %v717, %v899
    %v901 = vpop.f32.mrf.mxu0
    %v902 = vadd.f32 %v721, %v901
    %903 = vmatprep.mubr.f32.mxu0 0.0
    %904 = vmatmul.mubr.f32.gmra.mxu0 %v735
    %v905 = vpop.f32.mrf.mxu0
    %v906 = vadd.f32 %v717, %v905
    %v907 = vpop.f32.mrf.mxu0
    %v908 = vadd.f32 %v721, %v907
    %909 = vmatprep.mubr.f32.mxu0 0.0
    %910 = vmatmul.mubr.f32.gmra.mxu0 %v738
    %v911 = vpop.f32.mrf.mxu0
    %v912 = vadd.f32 %v717, %v911
    %v913 = vpop.f32.mrf.mxu0
    %v914 = vadd.f32 %v721, %v913
    %915 = vmatprep.mubr.f32.mxu0 0.0
    %916 = vmatmul.mubr.f32.gmra.mxu0 %v741
    %v917 = vpop.f32.mrf.mxu0
    %v918 = vadd.f32 %v717, %v917
    %v919 = vpop.f32.mrf.mxu0
    %v920 = vadd.f32 %v721, %v919
    %921 = vmatprep.mubr.f32.mxu0 0.0
    %922 = vmatmul.mubr.f32.gmra.mxu0 %v744
    %v923 = vpop.f32.mrf.mxu0
    %v924 = vadd.f32 %v717, %v923
    %v925 = vpop.f32.mrf.mxu0
    %v926 = vadd.f32 %v721, %v925
    %927 = vmatprep.mubr.f32.mxu0 0.0
    %928 = vmatmul.mubr.f32.gmra.mxu0 %v747
    %v929 = vpop.f32.mrf.mxu0
    %v930 = vadd.f32 %v717, %v929
    %v931 = vpop.f32.mrf.mxu0
    %v932 = vadd.f32 %v721, %v931
    %933 = vmatprep.mubr.f32.mxu0 0.0
    %934 = vmatmul.mubr.f32.gmra.mxu0 %v750
    %v935 = vpop.f32.mrf.mxu0
    %v936 = vadd.f32 %v717, %v935
    %v937 = vpop.f32.mrf.mxu0
    %v938 = vadd.f32 %v721, %v937
    %939 = vmatprep.mubr.f32.mxu0 0.0
    %940 = vmatmul.mubr.f32.gmra.mxu0 %v753
    %v941 = vpop.f32.mrf.mxu0
    %v942 = vadd.f32 %v717, %v941
    %v943 = vpop.f32.mrf.mxu0
    %v944 = vadd.f32 %v721, %v943
    %945 = vmatprep.mubr.f32.mxu0 0.0
    %946 = vmatmul.mubr.f32.gmra.mxu0 %v756
    %v947 = vpop.f32.mrf.mxu0
    %v948 = vadd.f32 %v717, %v947
    %v949 = vpop.f32.mrf.mxu0
    %v950 = vadd.f32 %v721, %v949
    %951 = vmatprep.mubr.f32.mxu0 0.0
    %952 = vmatmul.mubr.f32.gmra.mxu0 %v759
    %v953 = vpop.f32.mrf.mxu0
    %v954 = vadd.f32 %v717, %v953
    %v955 = vpop.f32.mrf.mxu0
    %v956 = vadd.f32 %v721, %v955
    %957 = vmatprep.mubr.f32.mxu0 0.0
    %958 = vmatmul.mubr.f32.gmra.mxu0 %v762
    %v959 = vpop.f32.mrf.mxu0
    %v960 = vadd.f32 %v717, %v959
    %v961 = vpop.f32.mrf.mxu0
    %v962 = vadd.f32 %v721, %v961
    %963 = vmatprep.mubr.f32.mxu0 0.0
    %964 = vmatmul.mubr.f32.gmra.mxu0 %v765
    %v965 = vpop.f32.mrf.mxu0
    %v966 = vadd.f32 %v717, %v965
    %v967 = vpop.f32.mrf.mxu0
    %v968 = vadd.f32 %v721, %v967
    %969 = vmatprep.mubr.f32.mxu0 0.0
    %970 = vmatmul.mubr.f32.gmra.mxu0 %v768
    %v971 = vpop.f32.mrf.mxu0
    %v972 = vadd.f32 %v717, %v971
    %v973 = vpop.f32.mrf.mxu0
    %v974 = vadd.f32 %v721, %v973
    %975 = vmatprep.mubr.f32.mxu0 0.0
    %976 = vmatmul.mubr.f32.gmra.mxu0 %v771
    %v977 = vpop.f32.mrf.mxu0
    %v978 = vadd.f32 %v717, %v977
    %v979 = vpop.f32.mrf.mxu0
    %v980 = vadd.f32 %v721, %v979
    %981 = vmatprep.mubr.f32.mxu0 0.0
    %982 = vmatmul.mubr.f32.gmra.mxu0 %v774
    %v983 = vpop.f32.mrf.mxu0
    %v984 = vadd.f32 %v717, %v983
    %v985 = vpop.f32.mrf.mxu0
    %v986 = vadd.f32 %v721, %v985
    %987 = vmatprep.mubr.f32.mxu0 0.0
    %988 = vmatmul.mubr.f32.gmra.mxu0 %v777
    %v989 = vpop.f32.mrf.mxu0
    %v990 = vadd.f32 %v717, %v989
    %v991 = vpop.f32.mrf.mxu0
    %v992 = vadd.f32 %v721, %v991
    %993 = vmatprep.mubr.f32.mxu0 0.0
    %994 = vmatmul.mubr.f32.gmra.mxu0 %v780
    %v995 = vpop.f32.mrf.mxu0
    %v996 = vadd.f32 %v717, %v995
    %v997 = vpop.f32.mrf.mxu0
    %v998 = vadd.f32 %v721, %v997
    %999 = vmatprep.mubr.f32.mxu0 0.0
    %1000 = vmatmul.mubr.f32.gmra.mxu0 %v783
    %v1001 = vpop.f32.mrf.mxu0
    %v1002 = vadd.f32 %v717, %v1001
    %v1003 = vpop.f32.mrf.mxu0
    %v1004 = vadd.f32 %v721, %v1003
    %1005 = vmatprep.mubr.f32.mxu0 0.0
    %1006 = vmatmul.mubr.f32.gmra.mxu0 %v786
    %v1007 = vpop.f32.mrf.mxu0
    %v1008 = vadd.f32 %v717, %v1007
    %v1009 = vpop.f32.mrf.mxu0
    %v1010 = vadd.f32 %v721, %v1009
    %1011 = vmatprep.mubr.f32.mxu0 0.0
    %1012 = vmatmul.mubr.f32.gmra.mxu0 %v789
    %v1013 = vpop.f32.mrf.mxu0
    %v1014 = vadd.f32 %v717, %v1013
    %v1015 = vpop.f32.mrf.mxu0
    %v1016 = vadd.f32 %v721, %v1015
    %1017 = vmatprep.mubr.f32.mxu0 0.0
    %1018 = vmatmul.mubr.f32.gmra.mxu0 %v792
    %v1019 = vpop.f32.mrf.mxu0
    %v1020 = vadd.f32 %v717, %v1019
    %v1021 = vpop.f32.mrf.mxu0
    %v1022 = vadd.f32 %v721, %v1021
    %1023 = vmatprep.mubr.f32.mxu0 0.0
    %1024 = vmatmul.mubr.f32.gmra.mxu0 %v795
    %v1025 = vpop.f32.mrf.mxu0
    %v1026 = vadd.f32 %v717, %v1025
    %v1027 = vpop.f32.mrf.mxu0
    %v1028 = vadd.f32 %v721, %v1027
    %1029 = vmatprep.mubr.f32.mxu0 0.0
    %1030 = vmatmul.mubr.f32.gmra.mxu0 %v798
    %v1031 = vpop.f32.mrf.mxu0
    %v1032 = vadd.f32 %v717, %v1031
    %v1033 = vpop.f32.mrf.mxu0
    %v1034 = vadd.f32 %v721, %v1033
    %1035 = vmatprep.mubr.f32.mxu0 0.0
    %1036 = vmatmul.mubr.f32.gmra.mxu0 %v801
    %v1037 = vpop.f32.mrf.mxu0
    %v1038 = vadd.f32 %v717, %v1037
    %v1039 = vpop.f32.mrf.mxu0
    %v1040 = vadd.f32 %v721, %v1039
    %1041 = vmatprep.mubr.f32.mxu0 0.0
    %1042 = vmatmul.mubr.f32.gmra.mxu0 %v804
    %v1043 = vpop.f32.mrf.mxu0
    %v1044 = vadd.f32 %v717, %v1043
    %v1045 = vpop.f32.mrf.mxu0
    %v1046 = vadd.f32 %v721, %v1045
    %1047 = vmatprep.mubr.f32.mxu0 0.0
    %1048 = vmatmul.mubr.f32.gmra.mxu0 %v807
    %v1049 = vpop.f32.mrf.mxu0
    %v1050 = vadd.f32 %v717, %v1049
    %v1051 = vpop.f32.mrf.mxu0
    %v1052 = vadd.f32 %v721, %v1051
    %1053 = vmatprep.mubr.f32.mxu0 0.0
    %1054 = vmatmul.mubr.f32.gmra.mxu0 %v810
    %v1055 = vpop.f32.mrf.mxu0
    %v1056 = vadd.f32 %v717, %v1055
    %v1057 = vpop.f32.mrf.mxu0
    %v1058 = vadd.f32 %v721, %v1057
    %1059 = vmatprep.mubr.f32.mxu0 0.0
    %1060 = vmatmul.mubr.f32.gmra.mxu0 %v813
    %v1061 = vpop.f32.mrf.mxu0
    %v1062 = vadd.f32 %v717, %v1061
    %v1063 = vpop.f32.mrf.mxu0
    %v1064 = vadd.f32 %v721, %v1063
    %1065 = vmatprep.mubr.f32.mxu0 0.0
    %1066 = vmatmul.mubr.f32.gmra.mxu0 %v816
    %v1067 = vpop.f32.mrf.mxu0
    %v1068 = vadd.f32 %v717, %v1067
    %v1069 = vpop.f32.mrf.mxu0
    %v1070 = vadd.f32 %v721, %v1069
    %1071 = vmatprep.mubr.f32.mxu0 0.0
    %1072 = vmatmul.mubr.f32.gmra.mxu0 %v819
    %v1073 = vpop.f32.mrf.mxu0
    %v1074 = vadd.f32 %v717, %v1073
    %v1075 = vpop.f32.mrf.mxu0
    %v1076 = vadd.f32 %v721, %v1075
    %1077 = vdwg.mxu0
    %v1078 = vld [vmem:[%s7] sm:$0xff]
    %v1079 = vld [vmem:[%s7 + $0x8] sm:$0xff]
    %v1080 = vld [vmem:[%s7 + $0x10] sm:$0xff]
    %v1081 = vld [vmem:[%s7 + $0x18] sm:$0xff]
    %v1082 = vld [vmem:[%s7 + $0x20] sm:$0xff]
    %v1083 = vld [vmem:[%s7 + $0x28] sm:$0xff]
    %v1084 = vld [vmem:[%s7 + $0x30] sm:$0xff]
    %v1085 = vld [vmem:[%s7 + $0x38] sm:$0xff]
    %v1086 = vld [vmem:[%s7 + $0x40] sm:$0xff]
    %v1087 = vld [vmem:[%s7 + $0x48] sm:$0xff]
    %v1088 = vld [vmem:[%s7 + $0x50] sm:$0xff]
    %v1089 = vld [vmem:[%s7 + $0x58] sm:$0xff]
    %v1090 = vld [vmem:[%s7 + $0x60] sm:$0x3]
    %v1091 = vld [vmem:[%s7 + $0x68] sm:$0x3]
    %v1092 = vld [vmem:[%s11] sm:$0x3]
    %v1093 = vld [vmem:[%s13] sm:$0xff]
    %v1094 = vld [vmem:[%s13 + $0x8] sm:$0xff]
    %v1095 = vld [vmem:[%s13 + $0x10] sm:$0xff]
    %v1096 = vld [vmem:[%s13 + $0x18] sm:$0xff]
    %v1097 = vld [vmem:[%s15] sm:$0xff]
    %v1098 = vld [vmem:[%s15 + $0x8] sm:$0xff]
    %v1099 = vld [vmem:[%s15 + $0x10] sm:$0xff]
    %v1100 = vld [vmem:[%s15 + $0x18] sm:$0xff]
    %v1101 = vld [vmem:[%s17] sm:$0xff]
    %v1102 = vld [vmem:[%s17 + $0x8] sm:$0xff]
    %v1103 = vld [vmem:[%s17 + $0x10] sm:$0xff]
    %v1104 = vld [vmem:[%s17 + $0x18] sm:$0xff]
    %v1105 = vld [vmem:[%s19] sm:$0xff]
    %v1106 = vld [vmem:[%s19 + $0x8] sm:$0xff]
    %v1107 = vld [vmem:[%s19 + $0x10] sm:$0xff]
    %v1108 = vld [vmem:[%s19 + $0x18] sm:$0xff]
    %v1109 = vld [vmem:[%s21] sm:$0xff]
    %v1110 = vld [vmem:[%s21 + $0x8] sm:$0xff]
    %v1111 = vld [vmem:[%s21 + $0x10] sm:$0xff]
    %v1112 = vld [vmem:[%s21 + $0x18] sm:$0xff]
    %v1113 = vsub.f32 1.0, %v1109
    %v1114 = vsub.f32 1.0, %v1110
    %v1115 = vsub.f32 1.0, %v1111
    %v1116 = vsub.f32 1.0, %v1112
    %v1117 = vld [vmem:[%s23] sm:$0xff]
    %v1118 = vld [vmem:[%s23 + $0x8] sm:$0xff]
    %v1119 = vld [vmem:[%s23 + $0x10] sm:$0xff]
    %v1120 = vld [vmem:[%s23 + $0x18] sm:$0xff]
    %v1121 = vld [vmem:[%s23 + $0x20] sm:$0xff]
    %v1122 = vld [vmem:[%s23 + $0x28] sm:$0xff]
    %v1123 = vld [vmem:[%s23 + $0x30] sm:$0x3]
    %v1124 = vld [vmem:[%s25] sm:$0xff]
    %v1125 = vld [vmem:[%s25 + $0x8] sm:$0xff]
    %v1126 = vld [vmem:[%s25 + $0x10] sm:$0xff]
    %v1127 = vld [vmem:[%s25 + $0x18] sm:$0xff]
    %v1129 = vlaneseq
    %v1130 = vshrl.u32 %v1129, 7
    %v1131 = vsub.s32 0, %v1130
    %v1132 = vrot.slane %v1092, %v1131
    %v1133 = vlaneseq
    %v1134 = vshrl.u32 %v1133, 7
    %v1135 = vsub.s32 1, %v1134
    %v1136 = vrot.slane %v1092, %v1135
    %vm1139 = vcmask 408576
    %v1141 = vsel %vm1139, 0.0, 0
    %vm1143 = vcmask 1041408
    %v1145 = vsel %vm1143, %v1090, 0
    %v1148 = vsel %vm1143, %v1091, 0
    %1150 = vmatprep.subr.mxu0 0.0
    %1151 = vmatpush1.msra.mxu0 0.0
    %1152 = vmatprep.subr.mxu0 0.0
    %1153 = vmatpush1.msra.mxu0 0.0
    %1154 = vmatprep.subr.mxu0 0.0
    %1155 = vmatpush1.msra.mxu0 0.0
    %1156 = vmatprep.subr.mxu0 0.0
    %1157 = vmatpush1.msra.mxu0 0.0
    %1158 = vmatprep.subr.mxu0 0.0
    %1159 = vmatpush1.msra.mxu0 0.0
    %1160 = vmatprep.subr.mxu0 0.0
    %1161 = vmatpush1.msra.mxu0 0.0
    %1162 = vmatprep.subr.mxu0 0.0
    %1163 = vmatpush1.msra.mxu0 0.0
    %1164 = vmatprep.subr.mxu0 0.0
    %1165 = vmatpush1.msra.mxu0 0.0
    %1166 = vmatprep.subr.mxu0 0.0
    %1167 = vmatpush1.msra.mxu0 0.0
    %1168 = vmatprep.subr.mxu0 %v1148
    %1169 = vmatpush1.msra.mxu0 %v1145
    %1170 = vmatprep.subr.mxu0 %v1089
    %1171 = vmatpush1.msra.mxu0 %v1088
    %1172 = vmatprep.subr.mxu0 %v1087
    %1173 = vmatpush1.msra.mxu0 %v1086
    %1174 = vmatprep.subr.mxu0 %v1085
    %1175 = vmatpush1.msra.mxu0 %v1084
    %1176 = vmatprep.subr.mxu0 %v1083
    %1177 = vmatpush1.msra.mxu0 %v1082
    %1178 = vmatprep.subr.mxu0 %v1081
    %1179 = vmatpush1.msra.mxu0 %v1080
    %1180 = vmatprep.subr.mxu0 %v1079
    %1181 = vmatpush1.msra.mxu0 %v1078
    %1182 = vmatprep.subr.mxu0 0.0
    %1183 = vmatpush2.msra.mxu0 0.0
    %1184 = vmatprep.subr.mxu0 0.0
    %1185 = vmatpush2.msra.mxu0 0.0
    %1186 = vmatprep.subr.mxu0 0.0
    %1187 = vmatpush2.msra.mxu0 0.0
    %1188 = vmatprep.subr.mxu0 0.0
    %1189 = vmatpush2.msra.mxu0 0.0
    %1190 = vmatprep.subr.mxu0 0.0
    %1191 = vmatpush2.msra.mxu0 0.0
    %1192 = vmatprep.subr.mxu0 0.0
    %1193 = vmatpush2.msra.mxu0 0.0
    %1194 = vmatprep.subr.mxu0 0.0
    %1195 = vmatpush2.msra.mxu0 0.0
    %1196 = vmatprep.subr.mxu0 0.0
    %1197 = vmatpush2.msra.mxu0 0.0
    %1198 = vmatprep.subr.mxu0 0.0
    %1199 = vmatpush2.msra.mxu0 0.0
    %1200 = vmatprep.subr.mxu0 0.0
    %1201 = vmatpush2.msra.mxu0 0.0
    %1202 = vmatprep.subr.mxu0 0.0
    %1203 = vmatpush2.msra.mxu0 0.0
    %1204 = vmatprep.subr.mxu0 0.0
    %1205 = vmatpush2.msra.mxu0 0.0
    %1206 = vmatprep.subr.mxu0 0.0
    %1207 = vmatpush2.msra.mxu0 0.0
    %1208 = vmatprep.subr.mxu0 0.0
    %1209 = vmatpush2.msra.mxu0 0.0
    %1210 = vmatprep.subr.mxu0 0.0
    %1211 = vmatpush2.msra.mxu0 0.0
    %1212 = vmatprep.subr.mxu0 0.0
    %1213 = vmatpush2.msra.mxu0 0.0
    %1214 = vmatprep.mubr.f32.mxu0 0.0
    %1215 = vmatmul.mubr.f32.gmra.mxu0 %v1141
    %v1216 = vpop.f32.mrf.mxu0
    %v1217 = vadd.f32 %v1132, %v1216
    %v1218 = vpop.f32.mrf.mxu0
    %v1219 = vadd.f32 %v1136, %v1218
    %1220 = vmatprep.mubr.f32.mxu0 0.0
    %1221 = vmatmul.mubr.f32.gmra.mxu0 %v1141
    %v1222 = vpop.f32.mrf.mxu0
    %v1223 = vadd.f32 %v1132, %v1222
    %v1224 = vpop.f32.mrf.mxu0
    %v1225 = vadd.f32 %v1136, %v1224
    %1226 = vmatprep.mubr.f32.mxu0 0.0
    %1227 = vmatmul.mubr.f32.gmra.mxu0 %v1141
    %v1228 = vpop.f32.mrf.mxu0
    %v1229 = vadd.f32 %v1132, %v1228
    %v1230 = vpop.f32.mrf.mxu0
    %v1231 = vadd.f32 %v1136, %v1230
    %1232 = vmatprep.mubr.f32.mxu0 0.0
    %1233 = vmatmul.mubr.f32.gmra.mxu0 %v1141
    %v1234 = vpop.f32.mrf.mxu0
    %v1235 = vadd.f32 %v1132, %v1234
    %v1236 = vpop.f32.mrf.mxu0
    %v1237 = vadd.f32 %v1136, %v1236
    %1238 = vdwg.mxu0
    %v1239 = vadd.f32 %v888, %v1217
    %v1240 = vadd.f32 %v894, %v1223
    %v1241 = vadd.f32 %v900, %v1229
    %v1242 = vadd.f32 %v906, %v1235
    %v1243 = vxor.u32 %v1239, 2147483648
    %v1244 = vxor.u32 %v1240, 2147483648
    %v1245 = vxor.u32 %v1241, 2147483648
    %v1246 = vxor.u32 %v1242, 2147483648
    %v1247 = vmul.f32 %v1243, 1.442695
    %v1248 = vpow.pop %v1247
    %v1249 = vmul.f32 %v1244, 1.442695
    %v1250 = vpow.pop %v1249
    %v1251 = vmul.f32 %v1245, 1.442695
    %v1252 = vpow.pop %v1251
    %v1253 = vmul.f32 %v1246, 1.442695
    %v1254 = vpow.pop %v1253
    %v1255 = vadd.f32 %v1248, 1.0
    %v1256 = vadd.f32 %v1250, 1.0
    %v1257 = vadd.f32 %v1252, 1.0
    %v1258 = vadd.f32 %v1254, 1.0
    %v1259 = vrcp.pop %v1255
    %v1260 = vmul.f32 1.0, %v1259
    %v1261 = vrcp.pop %v1256
    %v1262 = vmul.f32 1.0, %v1261
    %v1263 = vrcp.pop %v1257
    %v1264 = vmul.f32 1.0, %v1263
    %v1265 = vrcp.pop %v1258
    %v1266 = vmul.f32 1.0, %v1265
    %1275 = vrot.lane.b32.xlu0 %v1217, 28
    %v1276 = vpop.permute.xlu0 %1275
    %1277 = vrot.lane.b32.xlu0 %v1219, 28
    %v1278 = vpop.permute.xlu0 %1277
    %1279 = vrot.lane.b32.xlu0 %v1223, 28
    %v1280 = vpop.permute.xlu0 %1279
    %1281 = vrot.lane.b32.xlu0 %v1225, 28
    %v1282 = vpop.permute.xlu0 %1281
    %1283 = vrot.lane.b32.xlu0 %v1229, 28
    %v1284 = vpop.permute.xlu0 %1283
    %1285 = vrot.lane.b32.xlu0 %v1231, 28
    %v1286 = vpop.permute.xlu0 %1285
    %1287 = vrot.lane.b32.xlu0 %v1235, 28
    %v1288 = vpop.permute.xlu0 %1287
    %1289 = vrot.lane.b32.xlu0 %v1237, 28
    %v1290 = vpop.permute.xlu0 %1289
    %vm1291 = vcmask 228352
    %v1292 = vsel %vm1291, %v1276, %v1278
    %v1293 = vsel %vm1291, %v1280, %v1282
    %v1294 = vsel %vm1291, %v1284, %v1286
    %v1295 = vsel %vm1291, %v1288, %v1290
    %v1300 = vmul.f32 %v1260, %v1292
    %v1301 = vmul.f32 %v1262, %v1293
    %v1302 = vmul.f32 %v1264, %v1294
    %v1303 = vmul.f32 %v1266, %v1295
    %1308 = vrot.lane.b32.xlu0 %v1300, 100
    %v1309 = vpop.permute.xlu0 %1308
    %1310 = vrot.lane.b32.xlu0 %v1301, 100
    %v1311 = vpop.permute.xlu0 %1310
    %1312 = vrot.lane.b32.xlu0 %v1302, 100
    %v1313 = vpop.permute.xlu0 %1312
    %1314 = vrot.lane.b32.xlu0 %v1303, 100
    %v1315 = vpop.permute.xlu0 %1314
    %v1320 = vadd.f32 %v888, %v1309
    %v1321 = vadd.f32 %v890, %v1309
    %v1322 = vadd.f32 %v894, %v1311
    %v1323 = vadd.f32 %v896, %v1311
    %v1324 = vadd.f32 %v900, %v1313
    %v1325 = vadd.f32 %v902, %v1313
    %v1326 = vadd.f32 %v906, %v1315
    %v1327 = vadd.f32 %v908, %v1315
    %v1328 = vtanh.pop %v1320
    %v1329 = vtanh.pop %v1321
    %v1330 = vtanh.pop %v1322
    %v1331 = vtanh.pop %v1323
    %v1332 = vtanh.pop %v1324
    %v1333 = vtanh.pop %v1325
    %v1334 = vtanh.pop %v1326
    %v1335 = vtanh.pop %v1327
    %v1336 = vsub.f32 1.0, %v1260
    %v1337 = vsub.f32 1.0, %v1262
    %v1338 = vsub.f32 1.0, %v1264
    %v1339 = vsub.f32 1.0, %v1266
    %1348 = vrot.lane.b32.xlu0 %v1328, 78
    %v1349 = vpop.permute.xlu0 %1348
    %1350 = vrot.lane.b32.xlu0 %v1329, 78
    %v1351 = vpop.permute.xlu0 %1350
    %1352 = vrot.lane.b32.xlu0 %v1330, 78
    %v1353 = vpop.permute.xlu0 %1352
    %1354 = vrot.lane.b32.xlu0 %v1331, 78
    %v1355 = vpop.permute.xlu0 %1354
    %1356 = vrot.lane.b32.xlu0 %v1332, 78
    %v1357 = vpop.permute.xlu0 %1356
    %1358 = vrot.lane.b32.xlu0 %v1333, 78
    %v1359 = vpop.permute.xlu0 %1358
    %1360 = vrot.lane.b32.xlu0 %v1334, 78
    %v1361 = vpop.permute.xlu0 %1360
    %1362 = vrot.lane.b32.xlu0 %v1335, 78
    %v1363 = vpop.permute.xlu0 %1362
    %vm1364 = vcmask 637952
    %v1365 = vsel %vm1364, %v1349, %v1351
    %v1366 = vsel %vm1364, %v1353, %v1355
    %v1367 = vsel %vm1364, %v1357, %v1359
    %v1368 = vsel %vm1364, %v1361, %v1363
    %v1373 = vmul.f32 %v1336, %v1365
    %v1374 = vmul.f32 %v1337, %v1366
    %v1375 = vmul.f32 %v1338, %v1367
    %v1376 = vmul.f32 %v1339, %v1368
    %v1377 = vmul.f32 %v1260, 0.0
    %v1378 = vmul.f32 %v1262, 0.0
    %v1379 = vmul.f32 %v1264, 0.0
    %v1380 = vmul.f32 %v1266, 0.0
    %v1381 = vadd.f32 %v1373, %v1377
    %v1382 = vadd.f32 %v1374, %v1378
    %v1383 = vadd.f32 %v1375, %v1379
    %v1384 = vadd.f32 %v1376, %v1380
    %1386 = vset.pattern.permute.xlu0 0
    %1387 = vperm.xlu0 %1386, %v1093
    %v1388 = vpop.permute.xlu0 %1387
    %1391 = vset.pattern.permute.xlu0 0
    %1392 = vperm.xlu0 %1391, %v1094
    %v1393 = vpop.permute.xlu0 %1392
    %1396 = vset.pattern.permute.xlu0 0
    %1397 = vperm.xlu0 %1396, %v1095
    %v1398 = vpop.permute.xlu0 %1397
    %1401 = vset.pattern.permute.xlu0 0
    %1402 = vperm.xlu0 %1401, %v1096
    %v1403 = vpop.permute.xlu0 %1402
    %v1405 = vmul.f32 %v1381, %v1388
    %v1406 = vmul.f32 %v1382, %v1393
    %v1407 = vmul.f32 %v1383, %v1398
    %v1408 = vmul.f32 %v1384, %v1403
    %1410 = vset.pattern.permute.xlu0 0
    %1411 = vperm.xlu0 %1410, %v1097
    %v1412 = vpop.permute.xlu0 %1411
    %1415 = vset.pattern.permute.xlu0 0
    %1416 = vperm.xlu0 %1415, %v1098
    %v1417 = vpop.permute.xlu0 %1416
    %1420 = vset.pattern.permute.xlu0 0
    %1421 = vperm.xlu0 %1420, %v1099
    %v1422 = vpop.permute.xlu0 %1421
    %1425 = vset.pattern.permute.xlu0 0
    %1426 = vperm.xlu0 %1425, %v1100
    %v1427 = vpop.permute.xlu0 %1426
    %v1429 = vadd.f32 %v1405, %v1412
    %v1430 = vadd.f32 %v1406, %v1417
    %v1431 = vadd.f32 %v1407, %v1422
    %v1432 = vadd.f32 %v1408, %v1427
    %v1433 = vmax.f32 %v1429, 0.0
    %v1434 = vmax.f32 %v1430, 0.0
    %v1435 = vmax.f32 %v1431, 0.0
    %v1436 = vmax.f32 %v1432, 0.0
    %1441 = vrot.lane.b32.xlu0 %v1101, 50
    %v1442 = vpop.permute.xlu0 %1441
    %1443 = vrot.lane.b32.xlu0 %v1102, 50
    %v1444 = vpop.permute.xlu0 %1443
    %1445 = vrot.lane.b32.xlu0 %v1103, 50
    %v1446 = vpop.permute.xlu0 %1445
    %1447 = vrot.lane.b32.xlu0 %v1104, 50
    %v1448 = vpop.permute.xlu0 %1447
    %v1453 = vmul.f32 %v1433, %v1442
    %v1454 = vmul.f32 %v1434, %v1444
    %v1455 = vmul.f32 %v1435, %v1446
    %v1456 = vmul.f32 %v1436, %v1448
    %1461 = vrot.lane.b32.xlu0 %v1453, 78
    %v1462 = vpop.permute.xlu0 %1461
    %1463 = vrot.lane.b32.xlu0 %v1454, 78
    %v1464 = vpop.permute.xlu0 %1463
    %1465 = vrot.lane.b32.xlu0 %v1455, 78
    %v1466 = vpop.permute.xlu0 %1465
    %1467 = vrot.lane.b32.xlu0 %v1456, 78
    %v1468 = vpop.permute.xlu0 %1467
    %v1473 = vsel %vm1139, %v1462, 0.0
    %1474 = vadd.xlane.f32.xlu0 %v1473
    %v1475 = vpop.xlane.xlu0 %1474
    %v1476 = vsel %vm1139, %v1464, 0.0
    %1477 = vadd.xlane.f32.xlu0 %v1476
    %v1478 = vpop.xlane.xlu0 %1477
    %v1479 = vsel %vm1139, %v1466, 0.0
    %1480 = vadd.xlane.f32.xlu0 %v1479
    %v1481 = vpop.xlane.xlu0 %1480
    %v1482 = vsel %vm1139, %v1468, 0.0
    %1483 = vadd.xlane.f32.xlu0 %v1482
    %v1484 = vpop.xlane.xlu0 %1483
    %v1485 = vadd.f32 %v1475, %v1105
    %v1486 = vadd.f32 %v1478, %v1106
    %v1487 = vadd.f32 %v1481, %v1107
    %v1488 = vadd.f32 %v1484, %v1108
    %1493 = vrot.lane.b32.xlu0 %v1433, 78
    %v1494 = vpop.permute.xlu0 %1493
    %1495 = vrot.lane.b32.xlu0 %v1434, 78
    %v1496 = vpop.permute.xlu0 %1495
    %1497 = vrot.lane.b32.xlu0 %v1435, 78
    %v1498 = vpop.permute.xlu0 %1497
    %1499 = vrot.lane.b32.xlu0 %v1436, 78
    %v1500 = vpop.permute.xlu0 %1499
    %v1501 = vsel %vm1139, %v1494, 0
    %v1503 = vsel %vm1139, %v1496, 0
    %v1505 = vsel %vm1139, %v1498, 0
    %v1507 = vsel %vm1139, %v1500, 0
    %v1510 = vsel %vm1143, %v1123, 0
    %1512 = vmatprep.subr.mxu0 0.0
    %1513 = vmatpush1.msra.mxu0 0.0
    %1514 = vmatprep.subr.mxu0 0.0
    %1515 = vmatpush1.msra.mxu0 0.0
    %1516 = vmatprep.subr.mxu0 0.0
    %1517 = vmatpush1.msra.mxu0 0.0
    %1518 = vmatprep.subr.mxu0 0.0
    %1519 = vmatpush1.msra.mxu0 0.0
    %1520 = vmatprep.subr.mxu0 0.0
    %1521 = vmatpush1.msra.mxu0 0.0
    %1522 = vmatprep.subr.mxu0 0.0
    %1523 = vmatpush1.msra.mxu0 0.0
    %1524 = vmatprep.subr.mxu0 0.0
    %1525 = vmatpush1.msra.mxu0 0.0
    %1526 = vmatprep.subr.mxu0 0.0
    %1527 = vmatpush1.msra.mxu0 0.0
    %1528 = vmatprep.subr.mxu0 0.0
    %1529 = vmatpush1.msra.mxu0 0.0
    %1530 = vmatprep.subr.mxu0 0.0
    %1531 = vmatpush1.msra.mxu0 %v1510
    %1532 = vmatprep.subr.mxu0 0.0
    %1533 = vmatpush1.msra.mxu0 %v1122
    %1534 = vmatprep.subr.mxu0 0.0
    %1535 = vmatpush1.msra.mxu0 %v1121
    %1536 = vmatprep.subr.mxu0 0.0
    %1537 = vmatpush1.msra.mxu0 %v1120
    %1538 = vmatprep.subr.mxu0 0.0
    %1539 = vmatpush1.msra.mxu0 %v1119
    %1540 = vmatprep.subr.mxu0 0.0
    %1541 = vmatpush1.msra.mxu0 %v1118
    %1542 = vmatprep.subr.mxu0 0.0
    %1543 = vmatpush1.msra.mxu0 %v1117
    %1544 = vmatprep.subr.mxu0 0.0
    %1545 = vmatpush2.msra.mxu0 0.0
    %1546 = vmatprep.subr.mxu0 0.0
    %1547 = vmatpush2.msra.mxu0 0.0
    %1548 = vmatprep.subr.mxu0 0.0
    %1549 = vmatpush2.msra.mxu0 0.0
    %1550 = vmatprep.subr.mxu0 0.0
    %1551 = vmatpush2.msra.mxu0 0.0
    %1552 = vmatprep.subr.mxu0 0.0
    %1553 = vmatpush2.msra.mxu0 0.0
    %1554 = vmatprep.subr.mxu0 0.0
    %1555 = vmatpush2.msra.mxu0 0.0
    %1556 = vmatprep.subr.mxu0 0.0
    %1557 = vmatpush2.msra.mxu0 0.0
    %1558 = vmatprep.subr.mxu0 0.0
    %1559 = vmatpush2.msra.mxu0 0.0
    %1560 = vmatprep.subr.mxu0 0.0
    %1561 = vmatpush2.msra.mxu0 0.0
    %1562 = vmatprep.subr.mxu0 0.0
    %1563 = vmatpush2.msra.mxu0 0.0
    %1564 = vmatprep.subr.mxu0 0.0
    %1565 = vmatpush2.msra.mxu0 0.0
    %1566 = vmatprep.subr.mxu0 0.0
    %1567 = vmatpush2.msra.mxu0 0.0
    %1568 = vmatprep.subr.mxu0 0.0
    %1569 = vmatpush2.msra.mxu0 0.0
    %1570 = vmatprep.subr.mxu0 0.0
    %1571 = vmatpush2.msra.mxu0 0.0
    %1572 = vmatprep.subr.mxu0 0.0
    %1573 = vmatpush2.msra.mxu0 0.0
    %1574 = vmatprep.subr.mxu0 0.0
    %1575 = vmatpush2.msra.mxu0 0.0
    %1576 = vmatprep.mubr.f32.mxu0 0.0
    %1577 = vmatmul.mubr.f32.gmra.mxu0 %v1501
    %v1578 = vpop.f32.mrf.mxu0
    %v1579 = vadd.f32 0.0, %v1578
    %v1580 = vpop.f32.mrf.mxu0
    %1581 = vmatprep.mubr.f32.mxu0 0.0
    %1582 = vmatmul.mubr.f32.gmra.mxu0 %v1503
    %v1583 = vpop.f32.mrf.mxu0
    %v1584 = vadd.f32 0.0, %v1583
    %v1585 = vpop.f32.mrf.mxu0
    %1586 = vmatprep.mubr.f32.mxu0 0.0
    %1587 = vmatmul.mubr.f32.gmra.mxu0 %v1505
    %v1588 = vpop.f32.mrf.mxu0
    %v1589 = vadd.f32 0.0, %v1588
    %v1590 = vpop.f32.mrf.mxu0
    %1591 = vmatprep.mubr.f32.mxu0 0.0
    %1592 = vmatmul.mubr.f32.gmra.mxu0 %v1507
    %v1593 = vpop.f32.mrf.mxu0
    %v1594 = vadd.f32 0.0, %v1593
    %v1595 = vpop.f32.mrf.mxu0
    %1596 = vdwg.mxu0
    %1598 = vset.pattern.permute.xlu0 0
    %1599 = vperm.xlu0 %1598, %v1109
    %v1600 = vpop.permute.xlu0 %1599
    %1603 = vset.pattern.permute.xlu0 0
    %1604 = vperm.xlu0 %1603, %v1110
    %v1605 = vpop.permute.xlu0 %1604
    %1608 = vset.pattern.permute.xlu0 0
    %1609 = vperm.xlu0 %1608, %v1111
    %v1610 = vpop.permute.xlu0 %1609
    %1613 = vset.pattern.permute.xlu0 0
    %1614 = vperm.xlu0 %1613, %v1112
    %v1615 = vpop.permute.xlu0 %1614
    %v1617 = vmul.f32 %v1579, %v1600
    %v1618 = vmul.f32 %v1584, %v1605
    %v1619 = vmul.f32 %v1589, %v1610
    %v1620 = vmul.f32 %v1594, %v1615
    %1622 = vset.pattern.permute.xlu0 0
    %1623 = vperm.xlu0 %1622, %v1113
    %v1624 = vpop.permute.xlu0 %1623
    %1627 = vset.pattern.permute.xlu0 0
    %1628 = vperm.xlu0 %1627, %v1114
    %v1629 = vpop.permute.xlu0 %1628
    %1632 = vset.pattern.permute.xlu0 0
    %1633 = vperm.xlu0 %1632, %v1115
    %v1634 = vpop.permute.xlu0 %1633
    %1637 = vset.pattern.permute.xlu0 0
    %1638 = vperm.xlu0 %1637, %v1116
    %v1639 = vpop.permute.xlu0 %1638
    %v1641 = vmul.f32 %v1579, %v1624
    %v1642 = vmul.f32 %v1584, %v1629
    %v1643 = vmul.f32 %v1589, %v1634
    %v1644 = vmul.f32 %v1594, %v1639
    %1649 = vrot.lane.b32.xlu0 %v1641, 78
    %v1650 = vpop.permute.xlu0 %1649
    %1651 = vrot.lane.b32.xlu0 %v1642, 78
    %v1652 = vpop.permute.xlu0 %1651
    %1653 = vrot.lane.b32.xlu0 %v1643, 78
    %v1654 = vpop.permute.xlu0 %1653
    %1655 = vrot.lane.b32.xlu0 %v1644, 78
    %v1656 = vpop.permute.xlu0 %1655
    %v1661 = vadd.f32 %v1617, %v1650
    %v1662 = vadd.f32 %v1618, %v1652
    %v1663 = vadd.f32 %v1619, %v1654
    %v1664 = vadd.f32 %v1620, %v1656
    %v1665 = vadd.f32 %v1661, %v1124
    %v1666 = vadd.f32 %v1662, %v1125
    %v1667 = vadd.f32 %v1663, %v1126
    %v1668 = vadd.f32 %v1664, %v1127
    %1673 = vrot.lane.b32.xlu0 %v1381, 78
    %v1674 = vpop.permute.xlu0 %1673
    %1675 = vrot.lane.b32.xlu0 %v1382, 78
    %v1676 = vpop.permute.xlu0 %1675
    %1677 = vrot.lane.b32.xlu0 %v1383, 78
    %v1678 = vpop.permute.xlu0 %1677
    %1679 = vrot.lane.b32.xlu0 %v1384, 78
    %v1680 = vpop.permute.xlu0 %1679
    %v1681 = vsel %vm1139, %v1674, 0
    %v1683 = vsel %vm1139, %v1676, 0
    %v1685 = vsel %vm1139, %v1678, 0
    %v1687 = vsel %vm1139, %v1680, 0
    %1689 = vmatprep.subr.mxu0 0.0
    %1690 = vmatpush1.msra.mxu0 0.0
    %1691 = vmatprep.subr.mxu0 0.0
    %1692 = vmatpush1.msra.mxu0 0.0
    %1693 = vmatprep.subr.mxu0 0.0
    %1694 = vmatpush1.msra.mxu0 0.0
    %1695 = vmatprep.subr.mxu0 0.0
    %1696 = vmatpush1.msra.mxu0 0.0
    %1697 = vmatprep.subr.mxu0 0.0
    %1698 = vmatpush1.msra.mxu0 0.0
    %1699 = vmatprep.subr.mxu0 0.0
    %1700 = vmatpush1.msra.mxu0 0.0
    %1701 = vmatprep.subr.mxu0 0.0
    %1702 = vmatpush1.msra.mxu0 0.0
    %1703 = vmatprep.subr.mxu0 0.0
    %1704 = vmatpush1.msra.mxu0 0.0
    %1705 = vmatprep.subr.mxu0 0.0
    %1706 = vmatpush1.msra.mxu0 0.0
    %1707 = vmatprep.subr.mxu0 %v1148
    %1708 = vmatpush1.msra.mxu0 %v1145
    %1709 = vmatprep.subr.mxu0 %v1089
    %1710 = vmatpush1.msra.mxu0 %v1088
    %1711 = vmatprep.subr.mxu0 %v1087
    %1712 = vmatpush1.msra.mxu0 %v1086
    %1713 = vmatprep.subr.mxu0 %v1085
    %1714 = vmatpush1.msra.mxu0 %v1084
    %1715 = vmatprep.subr.mxu0 %v1083
    %1716 = vmatpush1.msra.mxu0 %v1082
    %1717 = vmatprep.subr.mxu0 %v1081
    %1718 = vmatpush1.msra.mxu0 %v1080
    %1719 = vmatprep.subr.mxu0 %v1079
    %1720 = vmatpush1.msra.mxu0 %v1078
    %1721 = vmatprep.subr.mxu0 0.0
    %1722 = vmatpush2.msra.mxu0 0.0
    %1723 = vmatprep.subr.mxu0 0.0
    %1724 = vmatpush2.msra.mxu0 0.0
    %1725 = vmatprep.subr.mxu0 0.0
    %1726 = vmatpush2.msra.mxu0 0.0
    %1727 = vmatprep.subr.mxu0 0.0
    %1728 = vmatpush2.msra.mxu0 0.0
    %1729 = vmatprep.subr.mxu0 0.0
    %1730 = vmatpush2.msra.mxu0 0.0
    %1731 = vmatprep.subr.mxu0 0.0
    %1732 = vmatpush2.msra.mxu0 0.0
    %1733 = vmatprep.subr.mxu0 0.0
    %1734 = vmatpush2.msra.mxu0 0.0
    %1735 = vmatprep.subr.mxu0 0.0
    %1736 = vmatpush2.msra.mxu0 0.0
    %1737 = vmatprep.subr.mxu0 0.0
    %1738 = vmatpush2.msra.mxu0 0.0
    %1739 = vmatprep.subr.mxu0 0.0
    %1740 = vmatpush2.msra.mxu0 0.0
    %1741 = vmatprep.subr.mxu0 0.0
    %1742 = vmatpush2.msra.mxu0 0.0
    %1743 = vmatprep.subr.mxu0 0.0
    %1744 = vmatpush2.msra.mxu0 0.0
    %1745 = vmatprep.subr.mxu0 0.0
    %1746 = vmatpush2.msra.mxu0 0.0
    %1747 = vmatprep.subr.mxu0 0.0
    %1748 = vmatpush2.msra.mxu0 0.0
    %1749 = vmatprep.subr.mxu0 0.0
    %1750 = vmatpush2.msra.mxu0 0.0
    %1751 = vmatprep.subr.mxu0 0.0
    %1752 = vmatpush2.msra.mxu0 0.0
    %1753 = vmatprep.mubr.f32.mxu0 0.0
    %1754 = vmatmul.mubr.f32.gmra.mxu0 %v1681
    %v1755 = vpop.f32.mrf.mxu0
    %v1756 = vadd.f32 %v1132, %v1755
    %v1757 = vpop.f32.mrf.mxu0
    %v1758 = vadd.f32 %v1136, %v1757
    %1759 = vmatprep.mubr.f32.mxu0 0.0
    %1760 = vmatmul.mubr.f32.gmra.mxu0 %v1683
    %v1761 = vpop.f32.mrf.mxu0
    %v1762 = vadd.f32 %v1132, %v1761
    %v1763 = vpop.f32.mrf.mxu0
    %v1764 = vadd.f32 %v1136, %v1763
    %1765 = vmatprep.mubr.f32.mxu0 0.0
    %1766 = vmatmul.mubr.f32.gmra.mxu0 %v1685
    %v1767 = vpop.f32.mrf.mxu0
    %v1768 = vadd.f32 %v1132, %v1767
    %v1769 = vpop.f32.mrf.mxu0
    %v1770 = vadd.f32 %v1136, %v1769
    %1771 = vmatprep.mubr.f32.mxu0 0.0
    %1772 = vmatmul.mubr.f32.gmra.mxu0 %v1687
    %v1773 = vpop.f32.mrf.mxu0
    %v1774 = vadd.f32 %v1132, %v1773
    %v1775 = vpop.f32.mrf.mxu0
    %v1776 = vadd.f32 %v1136, %v1775
    %1777 = vdwg.mxu0
    %v1778 = vadd.f32 %v912, %v1756
    %v1779 = vadd.f32 %v918, %v1762
    %v1780 = vadd.f32 %v924, %v1768
    %v1781 = vadd.f32 %v930, %v1774
    %v1782 = vxor.u32 %v1778, 2147483648
    %v1783 = vxor.u32 %v1779, 2147483648
    %v1784 = vxor.u32 %v1780, 2147483648
    %v1785 = vxor.u32 %v1781, 2147483648
    %v1786 = vmul.f32 %v1782, 1.442695
    %v1787 = vpow.pop %v1786
    %v1788 = vmul.f32 %v1783, 1.442695
    %v1789 = vpow.pop %v1788
    %v1790 = vmul.f32 %v1784, 1.442695
    %v1791 = vpow.pop %v1790
    %v1792 = vmul.f32 %v1785, 1.442695
    %v1793 = vpow.pop %v1792
    %v1794 = vadd.f32 %v1787, 1.0
    %v1795 = vadd.f32 %v1789, 1.0
    %v1796 = vadd.f32 %v1791, 1.0
    %v1797 = vadd.f32 %v1793, 1.0
    %v1798 = vrcp.pop %v1794
    %v1799 = vmul.f32 1.0, %v1798
    %v1800 = vrcp.pop %v1795
    %v1801 = vmul.f32 1.0, %v1800
    %v1802 = vrcp.pop %v1796
    %v1803 = vmul.f32 1.0, %v1802
    %v1804 = vrcp.pop %v1797
    %v1805 = vmul.f32 1.0, %v1804
    %1814 = vrot.lane.b32.xlu0 %v1756, 28
    %v1815 = vpop.permute.xlu0 %1814
    %1816 = vrot.lane.b32.xlu0 %v1758, 28
    %v1817 = vpop.permute.xlu0 %1816
    %1818 = vrot.lane.b32.xlu0 %v1762, 28
    %v1819 = vpop.permute.xlu0 %1818
    %1820 = vrot.lane.b32.xlu0 %v1764, 28
    %v1821 = vpop.permute.xlu0 %1820
    %1822 = vrot.lane.b32.xlu0 %v1768, 28
    %v1823 = vpop.permute.xlu0 %1822
    %1824 = vrot.lane.b32.xlu0 %v1770, 28
    %v1825 = vpop.permute.xlu0 %1824
    %1826 = vrot.lane.b32.xlu0 %v1774, 28
    %v1827 = vpop.permute.xlu0 %1826
    %1828 = vrot.lane.b32.xlu0 %v1776, 28
    %v1829 = vpop.permute.xlu0 %1828
    %v1830 = vsel %vm1291, %v1815, %v1817
    %v1831 = vsel %vm1291, %v1819, %v1821
    %v1832 = vsel %vm1291, %v1823, %v1825
    %v1833 = vsel %vm1291, %v1827, %v1829
    %v1838 = vmul.f32 %v1799, %v1830
    %v1839 = vmul.f32 %v1801, %v1831
    %v1840 = vmul.f32 %v1803, %v1832
    %v1841 = vmul.f32 %v1805, %v1833
    %1846 = vrot.lane.b32.xlu0 %v1838, 100
    %v1847 = vpop.permute.xlu0 %1846
    %1848 = vrot.lane.b32.xlu0 %v1839, 100
    %v1849 = vpop.permute.xlu0 %1848
    %1850 = vrot.lane.b32.xlu0 %v1840, 100
    %v1851 = vpop.permute.xlu0 %1850
    %1852 = vrot.lane.b32.xlu0 %v1841, 100
    %v1853 = vpop.permute.xlu0 %1852
    %v1858 = vadd.f32 %v912, %v1847
    %v1859 = vadd.f32 %v914, %v1847
    %v1860 = vadd.f32 %v918, %v1849
    %v1861 = vadd.f32 %v920, %v1849
    %v1862 = vadd.f32 %v924, %v1851
    %v1863 = vadd.f32 %v926, %v1851
    %v1864 = vadd.f32 %v930, %v1853
    %v1865 = vadd.f32 %v932, %v1853
    %v1866 = vtanh.pop %v1858
    %v1867 = vtanh.pop %v1859
    %v1868 = vtanh.pop %v1860
    %v1869 = vtanh.pop %v1861
    %v1870 = vtanh.pop %v1862
    %v1871 = vtanh.pop %v1863
    %v1872 = vtanh.pop %v1864
    %v1873 = vtanh.pop %v1865
    %v1874 = vsub.f32 1.0, %v1799
    %v1875 = vsub.f32 1.0, %v1801
    %v1876 = vsub.f32 1.0, %v1803
    %v1877 = vsub.f32 1.0, %v1805
    %1886 = vrot.lane.b32.xlu0 %v1866, 78
    %v1887 = vpop.permute.xlu0 %1886
    %1888 = vrot.lane.b32.xlu0 %v1867, 78
    %v1889 = vpop.permute.xlu0 %1888
    %1890 = vrot.lane.b32.xlu0 %v1868, 78
    %v1891 = vpop.permute.xlu0 %1890
    %1892 = vrot.lane.b32.xlu0 %v1869, 78
    %v1893 = vpop.permute.xlu0 %1892
    %1894 = vrot.lane.b32.xlu0 %v1870, 78
    %v1895 = vpop.permute.xlu0 %1894
    %1896 = vrot.lane.b32.xlu0 %v1871, 78
    %v1897 = vpop.permute.xlu0 %1896
    %1898 = vrot.lane.b32.xlu0 %v1872, 78
    %v1899 = vpop.permute.xlu0 %1898
    %1900 = vrot.lane.b32.xlu0 %v1873, 78
    %v1901 = vpop.permute.xlu0 %1900
    %v1902 = vsel %vm1364, %v1887, %v1889
    %v1903 = vsel %vm1364, %v1891, %v1893
    %v1904 = vsel %vm1364, %v1895, %v1897
    %v1905 = vsel %vm1364, %v1899, %v1901
    %v1910 = vmul.f32 %v1874, %v1902
    %v1911 = vmul.f32 %v1875, %v1903
    %v1912 = vmul.f32 %v1876, %v1904
    %v1913 = vmul.f32 %v1877, %v1905
    %v1914 = vmul.f32 %v1799, %v1381
    %v1915 = vmul.f32 %v1801, %v1382
    %v1916 = vmul.f32 %v1803, %v1383
    %v1917 = vmul.f32 %v1805, %v1384
    %v1918 = vadd.f32 %v1910, %v1914
    %v1919 = vadd.f32 %v1911, %v1915
    %v1920 = vadd.f32 %v1912, %v1916
    %v1921 = vadd.f32 %v1913, %v1917
    %v1922 = vmul.f32 %v1918, %v1388
    %v1923 = vmul.f32 %v1919, %v1393
    %v1924 = vmul.f32 %v1920, %v1398
    %v1925 = vmul.f32 %v1921, %v1403
    %v1926 = vadd.f32 %v1922, %v1412
    %v1927 = vadd.f32 %v1923, %v1417
    %v1928 = vadd.f32 %v1924, %v1422
    %v1929 = vadd.f32 %v1925, %v1427
    %v1930 = vmax.f32 %v1926, 0.0
    %v1931 = vmax.f32 %v1927, 0.0
    %v1932 = vmax.f32 %v1928, 0.0
    %v1933 = vmax.f32 %v1929, 0.0
    %v1934 = vmul.f32 %v1930, %v1442
    %v1935 = vmul.f32 %v1931, %v1444
    %v1936 = vmul.f32 %v1932, %v1446
    %v1937 = vmul.f32 %v1933, %v1448
    %1942 = vrot.lane.b32.xlu0 %v1934, 78
    %v1943 = vpop.permute.xlu0 %1942
    %1944 = vrot.lane.b32.xlu0 %v1935, 78
    %v1945 = vpop.permute.xlu0 %1944
    %1946 = vrot.lane.b32.xlu0 %v1936, 78
    %v1947 = vpop.permute.xlu0 %1946
    %1948 = vrot.lane.b32.xlu0 %v1937, 78
    %v1949 = vpop.permute.xlu0 %1948
    %v1954 = vsel %vm1139, %v1943, 0.0
    %1955 = vadd.xlane.f32.xlu0 %v1954
    %v1956 = vpop.xlane.xlu0 %1955
    %v1957 = vsel %vm1139, %v1945, 0.0
    %1958 = vadd.xlane.f32.xlu0 %v1957
    %v1959 = vpop.xlane.xlu0 %1958
    %v1960 = vsel %vm1139, %v1947, 0.0
    %1961 = vadd.xlane.f32.xlu0 %v1960
    %v1962 = vpop.xlane.xlu0 %1961
    %v1963 = vsel %vm1139, %v1949, 0.0
    %1964 = vadd.xlane.f32.xlu0 %v1963
    %v1965 = vpop.xlane.xlu0 %1964
    %v1966 = vadd.f32 %v1956, %v1105
    %v1967 = vadd.f32 %v1959, %v1106
    %v1968 = vadd.f32 %v1962, %v1107
    %v1969 = vadd.f32 %v1965, %v1108
    %1974 = vrot.lane.b32.xlu0 %v1930, 78
    %v1975 = vpop.permute.xlu0 %1974
    %1976 = vrot.lane.b32.xlu0 %v1931, 78
    %v1977 = vpop.permute.xlu0 %1976
    %1978 = vrot.lane.b32.xlu0 %v1932, 78
    %v1979 = vpop.permute.xlu0 %1978
    %1980 = vrot.lane.b32.xlu0 %v1933, 78
    %v1981 = vpop.permute.xlu0 %1980
    %v1982 = vsel %vm1139, %v1975, 0
    %v1984 = vsel %vm1139, %v1977, 0
    %v1986 = vsel %vm1139, %v1979, 0
    %v1988 = vsel %vm1139, %v1981, 0
    %1990 = vmatprep.subr.mxu0 0.0
    %1991 = vmatpush1.msra.mxu0 0.0
    %1992 = vmatprep.subr.mxu0 0.0
    %1993 = vmatpush1.msra.mxu0 0.0
    %1994 = vmatprep.subr.mxu0 0.0
    %1995 = vmatpush1.msra.mxu0 0.0
    %1996 = vmatprep.subr.mxu0 0.0
    %1997 = vmatpush1.msra.mxu0 0.0
    %1998 = vmatprep.subr.mxu0 0.0
    %1999 = vmatpush1.msra.mxu0 0.0
    %2000 = vmatprep.subr.mxu0 0.0
    %2001 = vmatpush1.msra.mxu0 0.0
    %2002 = vmatprep.subr.mxu0 0.0
    %2003 = vmatpush1.msra.mxu0 0.0
    %2004 = vmatprep.subr.mxu0 0.0
    %2005 = vmatpush1.msra.mxu0 0.0
    %2006 = vmatprep.subr.mxu0 0.0
    %2007 = vmatpush1.msra.mxu0 0.0
    %2008 = vmatprep.subr.mxu0 0.0
    %2009 = vmatpush1.msra.mxu0 %v1510
    %2010 = vmatprep.subr.mxu0 0.0
    %2011 = vmatpush1.msra.mxu0 %v1122
    %2012 = vmatprep.subr.mxu0 0.0
    %2013 = vmatpush1.msra.mxu0 %v1121
    %2014 = vmatprep.subr.mxu0 0.0
    %2015 = vmatpush1.msra.mxu0 %v1120
    %2016 = vmatprep.subr.mxu0 0.0
    %2017 = vmatpush1.msra.mxu0 %v1119
    %2018 = vmatprep.subr.mxu0 0.0
    %2019 = vmatpush1.msra.mxu0 %v1118
    %2020 = vmatprep.subr.mxu0 0.0
    %2021 = vmatpush1.msra.mxu0 %v1117
    %2022 = vmatprep.subr.mxu0 0.0
    %2023 = vmatpush2.msra.mxu0 0.0
    %2024 = vmatprep.subr.mxu0 0.0
    %2025 = vmatpush2.msra.mxu0 0.0
    %2026 = vmatprep.subr.mxu0 0.0
    %2027 = vmatpush2.msra.mxu0 0.0
    %2028 = vmatprep.subr.mxu0 0.0
    %2029 = vmatpush2.msra.mxu0 0.0
    %2030 = vmatprep.subr.mxu0 0.0
    %2031 = vmatpush2.msra.mxu0 0.0
    %2032 = vmatprep.subr.mxu0 0.0
    %2033 = vmatpush2.msra.mxu0 0.0
    %2034 = vmatprep.subr.mxu0 0.0
    %2035 = vmatpush2.msra.mxu0 0.0
    %2036 = vmatprep.subr.mxu0 0.0
    %2037 = vmatpush2.msra.mxu0 0.0
    %2038 = vmatprep.subr.mxu0 0.0
    %2039 = vmatpush2.msra.mxu0 0.0
    %2040 = vmatprep.subr.mxu0 0.0
    %2041 = vmatpush2.msra.mxu0 0.0
    %2042 = vmatprep.subr.mxu0 0.0
    %2043 = vmatpush2.msra.mxu0 0.0
    %2044 = vmatprep.subr.mxu0 0.0
    %2045 = vmatpush2.msra.mxu0 0.0
    %2046 = vmatprep.subr.mxu0 0.0
    %2047 = vmatpush2.msra.mxu0 0.0
    %2048 = vmatprep.subr.mxu0 0.0
    %2049 = vmatpush2.msra.mxu0 0.0
    %2050 = vmatprep.subr.mxu0 0.0
    %2051 = vmatpush2.msra.mxu0 0.0
    %2052 = vmatprep.subr.mxu0 0.0
    %2053 = vmatpush2.msra.mxu0 0.0
    %2054 = vmatprep.mubr.f32.mxu0 0.0
    %2055 = vmatmul.mubr.f32.gmra.mxu0 %v1982
    %v2056 = vpop.f32.mrf.mxu0
    %v2057 = vadd.f32 0.0, %v2056
    %v2058 = vpop.f32.mrf.mxu0
    %2059 = vmatprep.mubr.f32.mxu0 0.0
    %2060 = vmatmul.mubr.f32.gmra.mxu0 %v1984
    %v2061 = vpop.f32.mrf.mxu0
    %v2062 = vadd.f32 0.0, %v2061
    %v2063 = vpop.f32.mrf.mxu0
    %2064 = vmatprep.mubr.f32.mxu0 0.0
    %2065 = vmatmul.mubr.f32.gmra.mxu0 %v1986
    %v2066 = vpop.f32.mrf.mxu0
    %v2067 = vadd.f32 0.0, %v2066
    %v2068 = vpop.f32.mrf.mxu0
    %2069 = vmatprep.mubr.f32.mxu0 0.0
    %2070 = vmatmul.mubr.f32.gmra.mxu0 %v1988
    %v2071 = vpop.f32.mrf.mxu0
    %v2072 = vadd.f32 0.0, %v2071
    %v2073 = vpop.f32.mrf.mxu0
    %2074 = vdwg.mxu0
    %v2075 = vmul.f32 %v2057, %v1600
    %v2076 = vmul.f32 %v2062, %v1605
    %v2077 = vmul.f32 %v2067, %v1610
    %v2078 = vmul.f32 %v2072, %v1615
    %v2079 = vmul.f32 %v2057, %v1624
    %v2080 = vmul.f32 %v2062, %v1629
    %v2081 = vmul.f32 %v2067, %v1634
    %v2082 = vmul.f32 %v2072, %v1639
    %2087 = vrot.lane.b32.xlu0 %v2079, 78
    %v2088 = vpop.permute.xlu0 %2087
    %2089 = vrot.lane.b32.xlu0 %v2080, 78
    %v2090 = vpop.permute.xlu0 %2089
    %2091 = vrot.lane.b32.xlu0 %v2081, 78
    %v2092 = vpop.permute.xlu0 %2091
    %2093 = vrot.lane.b32.xlu0 %v2082, 78
    %v2094 = vpop.permute.xlu0 %2093
    %v2099 = vadd.f32 %v2075, %v2088
    %v2100 = vadd.f32 %v2076, %v2090
    %v2101 = vadd.f32 %v2077, %v2092
    %v2102 = vadd.f32 %v2078, %v2094
    %v2103 = vadd.f32 %v2099, %v1124
    %v2104 = vadd.f32 %v2100, %v1125
    %v2105 = vadd.f32 %v2101, %v1126
    %v2106 = vadd.f32 %v2102, %v1127
    %2111 = vrot.lane.b32.xlu0 %v1918, 78
    %v2112 = vpop.permute.xlu0 %2111
    %2113 = vrot.lane.b32.xlu0 %v1919, 78
    %v2114 = vpop.permute.xlu0 %2113
    %2115 = vrot.lane.b32.xlu0 %v1920, 78
    %v2116 = vpop.permute.xlu0 %2115
    %2117 = vrot.lane.b32.xlu0 %v1921, 78
    %v2118 = vpop.permute.xlu0 %2117
    %v2119 = vsel %vm1139, %v2112, 0
    %v2121 = vsel %vm1139, %v2114, 0
    %v2123 = vsel %vm1139, %v2116, 0
    %v2125 = vsel %vm1139, %v2118, 0
    %2127 = vmatprep.subr.mxu0 0.0
    %2128 = vmatpush1.msra.mxu0 0.0
    %2129 = vmatprep.subr.mxu0 0.0
    %2130 = vmatpush1.msra.mxu0 0.0
    %2131 = vmatprep.subr.mxu0 0.0
    %2132 = vmatpush1.msra.mxu0 0.0
    %2133 = vmatprep.subr.mxu0 0.0
    %2134 = vmatpush1.msra.mxu0 0.0
    %2135 = vmatprep.subr.mxu0 0.0
    %2136 = vmatpush1.msra.mxu0 0.0
    %2137 = vmatprep.subr.mxu0 0.0
    %2138 = vmatpush1.msra.mxu0 0.0
    %2139 = vmatprep.subr.mxu0 0.0
    %2140 = vmatpush1.msra.mxu0 0.0
    %2141 = vmatprep.subr.mxu0 0.0
    %2142 = vmatpush1.msra.mxu0 0.0
    %2143 = vmatprep.subr.mxu0 0.0
    %2144 = vmatpush1.msra.mxu0 0.0
    %2145 = vmatprep.subr.mxu0 %v1148
    %2146 = vmatpush1.msra.mxu0 %v1145
    %2147 = vmatprep.subr.mxu0 %v1089
    %2148 = vmatpush1.msra.mxu0 %v1088
    %2149 = vmatprep.subr.mxu0 %v1087
    %2150 = vmatpush1.msra.mxu0 %v1086
    %2151 = vmatprep.subr.mxu0 %v1085
    %2152 = vmatpush1.msra.mxu0 %v1084
    %2153 = vmatprep.subr.mxu0 %v1083
    %2154 = vmatpush1.msra.mxu0 %v1082
    %2155 = vmatprep.subr.mxu0 %v1081
    %2156 = vmatpush1.msra.mxu0 %v1080
    %2157 = vmatprep.subr.mxu0 %v1079
    %2158 = vmatpush1.msra.mxu0 %v1078
    %2159 = vmatprep.subr.mxu0 0.0
    %2160 = vmatpush2.msra.mxu0 0.0
    %2161 = vmatprep.subr.mxu0 0.0
    %2162 = vmatpush2.msra.mxu0 0.0
    %2163 = vmatprep.subr.mxu0 0.0
    %2164 = vmatpush2.msra.mxu0 0.0
    %2165 = vmatprep.subr.mxu0 0.0
    %2166 = vmatpush2.msra.mxu0 0.0
    %2167 = vmatprep.subr.mxu0 0.0
    %2168 = vmatpush2.msra.mxu0 0.0
    %2169 = vmatprep.subr.mxu0 0.0
    %2170 = vmatpush2.msra.mxu0 0.0
    %2171 = vmatprep.subr.mxu0 0.0
    %2172 = vmatpush2.msra.mxu0 0.0
    %2173 = vmatprep.subr.mxu0 0.0
    %2174 = vmatpush2.msra.mxu0 0.0
    %2175 = vmatprep.subr.mxu0 0.0
    %2176 = vmatpush2.msra.mxu0 0.0
    %2177 = vmatprep.subr.mxu0 0.0
    %2178 = vmatpush2.msra.mxu0 0.0
    %2179 = vmatprep.subr.mxu0 0.0
    %2180 = vmatpush2.msra.mxu0 0.0
    %2181 = vmatprep.subr.mxu0 0.0
    %2182 = vmatpush2.msra.mxu0 0.0
    %2183 = vmatprep.subr.mxu0 0.0
    %2184 = vmatpush2.msra.mxu0 0.0
    %2185 = vmatprep.subr.mxu0 0.0
    %2186 = vmatpush2.msra.mxu0 0.0
    %2187 = vmatprep.subr.mxu0 0.0
    %2188 = vmatpush2.msra.mxu0 0.0
    %2189 = vmatprep.subr.mxu0 0.0
    %2190 = vmatpush2.msra.mxu0 0.0
    %2191 = vmatprep.mubr.f32.mxu0 0.0
    %2192 = vmatmul.mubr.f32.gmra.mxu0 %v2119
    %v2193 = vpop.f32.mrf.mxu0
    %v2194 = vadd.f32 %v1132, %v2193
    %v2195 = vpop.f32.mrf.mxu0
    %v2196 = vadd.f32 %v1136, %v2195
    %2197 = vmatprep.mubr.f32.mxu0 0.0
    %2198 = vmatmul.mubr.f32.gmra.mxu0 %v2121
    %v2199 = vpop.f32.mrf.mxu0
    %v2200 = vadd.f32 %v1132, %v2199
    %v2201 = vpop.f32.mrf.mxu0
    %v2202 = vadd.f32 %v1136, %v2201
    %2203 = vmatprep.mubr.f32.mxu0 0.0
    %2204 = vmatmul.mubr.f32.gmra.mxu0 %v2123
    %v2205 = vpop.f32.mrf.mxu0
    %v2206 = vadd.f32 %v1132, %v2205
    %v2207 = vpop.f32.mrf.mxu0
    %v2208 = vadd.f32 %v1136, %v2207
    %2209 = vmatprep.mubr.f32.mxu0 0.0
    %2210 = vmatmul.mubr.f32.gmra.mxu0 %v2125
    %v2211 = vpop.f32.mrf.mxu0
    %v2212 = vadd.f32 %v1132, %v2211
    %v2213 = vpop.f32.mrf.mxu0
    %v2214 = vadd.f32 %v1136, %v2213
    %2215 = vdwg.mxu0
    %v2216 = vadd.f32 %v936, %v2194
    %v2217 = vadd.f32 %v942, %v2200
    %v2218 = vadd.f32 %v948, %v2206
    %v2219 = vadd.f32 %v954, %v2212
    %v2220 = vxor.u32 %v2216, 2147483648
    %v2221 = vxor.u32 %v2217, 2147483648
    %v2222 = vxor.u32 %v2218, 2147483648
    %v2223 = vxor.u32 %v2219, 2147483648
    %v2224 = vmul.f32 %v2220, 1.442695
    %v2225 = vpow.pop %v2224
    %v2226 = vmul.f32 %v2221, 1.442695
    %v2227 = vpow.pop %v2226
    %v2228 = vmul.f32 %v2222, 1.442695
    %v2229 = vpow.pop %v2228
    %v2230 = vmul.f32 %v2223, 1.442695
    %v2231 = vpow.pop %v2230
    %v2232 = vadd.f32 %v2225, 1.0
    %v2233 = vadd.f32 %v2227, 1.0
    %v2234 = vadd.f32 %v2229, 1.0
    %v2235 = vadd.f32 %v2231, 1.0
    %v2236 = vrcp.pop %v2232
    %v2237 = vmul.f32 1.0, %v2236
    %v2238 = vrcp.pop %v2233
    %v2239 = vmul.f32 1.0, %v2238
    %v2240 = vrcp.pop %v2234
    %v2241 = vmul.f32 1.0, %v2240
    %v2242 = vrcp.pop %v2235
    %v2243 = vmul.f32 1.0, %v2242
    %2252 = vrot.lane.b32.xlu0 %v2194, 28
    %v2253 = vpop.permute.xlu0 %2252
    %2254 = vrot.lane.b32.xlu0 %v2196, 28
    %v2255 = vpop.permute.xlu0 %2254
    %2256 = vrot.lane.b32.xlu0 %v2200, 28
    %v2257 = vpop.permute.xlu0 %2256
    %2258 = vrot.lane.b32.xlu0 %v2202, 28
    %v2259 = vpop.permute.xlu0 %2258
    %2260 = vrot.lane.b32.xlu0 %v2206, 28
    %v2261 = vpop.permute.xlu0 %2260
    %2262 = vrot.lane.b32.xlu0 %v2208, 28
    %v2263 = vpop.permute.xlu0 %2262
    %2264 = vrot.lane.b32.xlu0 %v2212, 28
    %v2265 = vpop.permute.xlu0 %2264
    %2266 = vrot.lane.b32.xlu0 %v2214, 28
    %v2267 = vpop.permute.xlu0 %2266
    %v2268 = vsel %vm1291, %v2253, %v2255
    %v2269 = vsel %vm1291, %v2257, %v2259
    %v2270 = vsel %vm1291, %v2261, %v2263
    %v2271 = vsel %vm1291, %v2265, %v2267
    %v2276 = vmul.f32 %v2237, %v2268
    %v2277 = vmul.f32 %v2239, %v2269
    %v2278 = vmul.f32 %v2241, %v2270
    %v2279 = vmul.f32 %v2243, %v2271
    %2284 = vrot.lane.b32.xlu0 %v2276, 100
    %v2285 = vpop.permute.xlu0 %2284
    %2286 = vrot.lane.b32.xlu0 %v2277, 100
    %v2287 = vpop.permute.xlu0 %2286
    %2288 = vrot.lane.b32.xlu0 %v2278, 100
    %v2289 = vpop.permute.xlu0 %2288
    %2290 = vrot.lane.b32.xlu0 %v2279, 100
    %v2291 = vpop.permute.xlu0 %2290
    %v2296 = vadd.f32 %v936, %v2285
    %v2297 = vadd.f32 %v938, %v2285
    %v2298 = vadd.f32 %v942, %v2287
    %v2299 = vadd.f32 %v944, %v2287
    %v2300 = vadd.f32 %v948, %v2289
    %v2301 = vadd.f32 %v950, %v2289
    %v2302 = vadd.f32 %v954, %v2291
    %v2303 = vadd.f32 %v956, %v2291
    %v2304 = vtanh.pop %v2296
    %v2305 = vtanh.pop %v2297
    %v2306 = vtanh.pop %v2298
    %v2307 = vtanh.pop %v2299
    %v2308 = vtanh.pop %v2300
    %v2309 = vtanh.pop %v2301
    %v2310 = vtanh.pop %v2302
    %v2311 = vtanh.pop %v2303
    %v2312 = vsub.f32 1.0, %v2237
    %v2313 = vsub.f32 1.0, %v2239
    %v2314 = vsub.f32 1.0, %v2241
    %v2315 = vsub.f32 1.0, %v2243
    %2324 = vrot.lane.b32.xlu0 %v2304, 78
    %v2325 = vpop.permute.xlu0 %2324
    %2326 = vrot.lane.b32.xlu0 %v2305, 78
    %v2327 = vpop.permute.xlu0 %2326
    %2328 = vrot.lane.b32.xlu0 %v2306, 78
    %v2329 = vpop.permute.xlu0 %2328
    %2330 = vrot.lane.b32.xlu0 %v2307, 78
    %v2331 = vpop.permute.xlu0 %2330
    %2332 = vrot.lane.b32.xlu0 %v2308, 78
    %v2333 = vpop.permute.xlu0 %2332
    %2334 = vrot.lane.b32.xlu0 %v2309, 78
    %v2335 = vpop.permute.xlu0 %2334
    %2336 = vrot.lane.b32.xlu0 %v2310, 78
    %v2337 = vpop.permute.xlu0 %2336
    %2338 = vrot.lane.b32.xlu0 %v2311, 78
    %v2339 = vpop.permute.xlu0 %2338
    %v2340 = vsel %vm1364, %v2325, %v2327
    %v2341 = vsel %vm1364, %v2329, %v2331
    %v2342 = vsel %vm1364, %v2333, %v2335
    %v2343 = vsel %vm1364, %v2337, %v2339
    %v2348 = vmul.f32 %v2312, %v2340
    %v2349 = vmul.f32 %v2313, %v2341
    %v2350 = vmul.f32 %v2314, %v2342
    %v2351 = vmul.f32 %v2315, %v2343
    %v2352 = vmul.f32 %v2237, %v1918
    %v2353 = vmul.f32 %v2239, %v1919
    %v2354 = vmul.f32 %v2241, %v1920
    %v2355 = vmul.f32 %v2243, %v1921
    %v2356 = vadd.f32 %v2348, %v2352
    %v2357 = vadd.f32 %v2349, %v2353
    %v2358 = vadd.f32 %v2350, %v2354
    %v2359 = vadd.f32 %v2351, %v2355
    %v2360 = vmul.f32 %v2356, %v1388
    %v2361 = vmul.f32 %v2357, %v1393
    %v2362 = vmul.f32 %v2358, %v1398
    %v2363 = vmul.f32 %v2359, %v1403
    %v2364 = vadd.f32 %v2360, %v1412
    %v2365 = vadd.f32 %v2361, %v1417
    %v2366 = vadd.f32 %v2362, %v1422
    %v2367 = vadd.f32 %v2363, %v1427
    %v2368 = vmax.f32 %v2364, 0.0
    %v2369 = vmax.f32 %v2365, 0.0
    %v2370 = vmax.f32 %v2366, 0.0
    %v2371 = vmax.f32 %v2367, 0.0
    %v2372 = vmul.f32 %v2368, %v1442
    %v2373 = vmul.f32 %v2369, %v1444
    %v2374 = vmul.f32 %v2370, %v1446
    %v2375 = vmul.f32 %v2371, %v1448
    %2380 = vrot.lane.b32.xlu0 %v2372, 78
    %v2381 = vpop.permute.xlu0 %2380
    %2382 = vrot.lane.b32.xlu0 %v2373, 78
    %v2383 = vpop.permute.xlu0 %2382
    %2384 = vrot.lane.b32.xlu0 %v2374, 78
    %v2385 = vpop.permute.xlu0 %2384
    %2386 = vrot.lane.b32.xlu0 %v2375, 78
    %v2387 = vpop.permute.xlu0 %2386
    %v2392 = vsel %vm1139, %v2381, 0.0
    %2393 = vadd.xlane.f32.xlu0 %v2392
    %v2394 = vpop.xlane.xlu0 %2393
    %v2395 = vsel %vm1139, %v2383, 0.0
    %2396 = vadd.xlane.f32.xlu0 %v2395
    %v2397 = vpop.xlane.xlu0 %2396
    %v2398 = vsel %vm1139, %v2385, 0.0
    %2399 = vadd.xlane.f32.xlu0 %v2398
    %v2400 = vpop.xlane.xlu0 %2399
    %v2401 = vsel %vm1139, %v2387, 0.0
    %2402 = vadd.xlane.f32.xlu0 %v2401
    %v2403 = vpop.xlane.xlu0 %2402
    %v2404 = vadd.f32 %v2394, %v1105
    %v2405 = vadd.f32 %v2397, %v1106
    %v2406 = vadd.f32 %v2400, %v1107
    %v2407 = vadd.f32 %v2403, %v1108
    %2412 = vrot.lane.b32.xlu0 %v2368, 78
    %v2413 = vpop.permute.xlu0 %2412
    %2414 = vrot.lane.b32.xlu0 %v2369, 78
    %v2415 = vpop.permute.xlu0 %2414
    %2416 = vrot.lane.b32.xlu0 %v2370, 78
    %v2417 = vpop.permute.xlu0 %2416
    %2418 = vrot.lane.b32.xlu0 %v2371, 78
    %v2419 = vpop.permute.xlu0 %2418
    %v2420 = vsel %vm1139, %v2413, 0
    %v2422 = vsel %vm1139, %v2415, 0
    %v2424 = vsel %vm1139, %v2417, 0
    %v2426 = vsel %vm1139, %v2419, 0
    %2428 = vmatprep.subr.mxu0 0.0
    %2429 = vmatpush1.msra.mxu0 0.0
    %2430 = vmatprep.subr.mxu0 0.0
    %2431 = vmatpush1.msra.mxu0 0.0
    %2432 = vmatprep.subr.mxu0 0.0
    %2433 = vmatpush1.msra.mxu0 0.0
    %2434 = vmatprep.subr.mxu0 0.0
    %2435 = vmatpush1.msra.mxu0 0.0
    %2436 = vmatprep.subr.mxu0 0.0
    %2437 = vmatpush1.msra.mxu0 0.0
    %2438 = vmatprep.subr.mxu0 0.0
    %2439 = vmatpush1.msra.mxu0 0.0
    %2440 = vmatprep.subr.mxu0 0.0
    %2441 = vmatpush1.msra.mxu0 0.0
    %2442 = vmatprep.subr.mxu0 0.0
    %2443 = vmatpush1.msra.mxu0 0.0
    %2444 = vmatprep.subr.mxu0 0.0
    %2445 = vmatpush1.msra.mxu0 0.0
    %2446 = vmatprep.subr.mxu0 0.0
    %2447 = vmatpush1.msra.mxu0 %v1510
    %2448 = vmatprep.subr.mxu0 0.0
    %2449 = vmatpush1.msra.mxu0 %v1122
    %2450 = vmatprep.subr.mxu0 0.0
    %2451 = vmatpush1.msra.mxu0 %v1121
    %2452 = vmatprep.subr.mxu0 0.0
    %2453 = vmatpush1.msra.mxu0 %v1120
    %2454 = vmatprep.subr.mxu0 0.0
    %2455 = vmatpush1.msra.mxu0 %v1119
    %2456 = vmatprep.subr.mxu0 0.0
    %2457 = vmatpush1.msra.mxu0 %v1118
    %2458 = vmatprep.subr.mxu0 0.0
    %2459 = vmatpush1.msra.mxu0 %v1117
    %2460 = vmatprep.subr.mxu0 0.0
    %2461 = vmatpush2.msra.mxu0 0.0
    %2462 = vmatprep.subr.mxu0 0.0
    %2463 = vmatpush2.msra.mxu0 0.0
    %2464 = vmatprep.subr.mxu0 0.0
    %2465 = vmatpush2.msra.mxu0 0.0
    %2466 = vmatprep.subr.mxu0 0.0
    %2467 = vmatpush2.msra.mxu0 0.0
    %2468 = vmatprep.subr.mxu0 0.0
    %2469 = vmatpush2.msra.mxu0 0.0
    %2470 = vmatprep.subr.mxu0 0.0
    %2471 = vmatpush2.msra.mxu0 0.0
    %2472 = vmatprep.subr.mxu0 0.0
    %2473 = vmatpush2.msra.mxu0 0.0
    %2474 = vmatprep.subr.mxu0 0.0
    %2475 = vmatpush2.msra.mxu0 0.0
    %2476 = vmatprep.subr.mxu0 0.0
    %2477 = vmatpush2.msra.mxu0 0.0
    %2478 = vmatprep.subr.mxu0 0.0
    %2479 = vmatpush2.msra.mxu0 0.0
    %2480 = vmatprep.subr.mxu0 0.0
    %2481 = vmatpush2.msra.mxu0 0.0
    %2482 = vmatprep.subr.mxu0 0.0
    %2483 = vmatpush2.msra.mxu0 0.0
    %2484 = vmatprep.subr.mxu0 0.0
    %2485 = vmatpush2.msra.mxu0 0.0
    %2486 = vmatprep.subr.mxu0 0.0
    %2487 = vmatpush2.msra.mxu0 0.0
    %2488 = vmatprep.subr.mxu0 0.0
    %2489 = vmatpush2.msra.mxu0 0.0
    %2490 = vmatprep.subr.mxu0 0.0
    %2491 = vmatpush2.msra.mxu0 0.0
    %2492 = vmatprep.mubr.f32.mxu0 0.0
    %2493 = vmatmul.mubr.f32.gmra.mxu0 %v2420
    %v2494 = vpop.f32.mrf.mxu0
    %v2495 = vadd.f32 0.0, %v2494
    %v2496 = vpop.f32.mrf.mxu0
    %2497 = vmatprep.mubr.f32.mxu0 0.0
    %2498 = vmatmul.mubr.f32.gmra.mxu0 %v2422
    %v2499 = vpop.f32.mrf.mxu0
    %v2500 = vadd.f32 0.0, %v2499
    %v2501 = vpop.f32.mrf.mxu0
    %2502 = vmatprep.mubr.f32.mxu0 0.0
    %2503 = vmatmul.mubr.f32.gmra.mxu0 %v2424
    %v2504 = vpop.f32.mrf.mxu0
    %v2505 = vadd.f32 0.0, %v2504
    %v2506 = vpop.f32.mrf.mxu0
    %2507 = vmatprep.mubr.f32.mxu0 0.0
    %2508 = vmatmul.mubr.f32.gmra.mxu0 %v2426
    %v2509 = vpop.f32.mrf.mxu0
    %v2510 = vadd.f32 0.0, %v2509
    %v2511 = vpop.f32.mrf.mxu0
    %2512 = vdwg.mxu0
    %v2513 = vmul.f32 %v2495, %v1600
    %v2514 = vmul.f32 %v2500, %v1605
    %v2515 = vmul.f32 %v2505, %v1610
    %v2516 = vmul.f32 %v2510, %v1615
    %v2517 = vmul.f32 %v2495, %v1624
    %v2518 = vmul.f32 %v2500, %v1629
    %v2519 = vmul.f32 %v2505, %v1634
    %v2520 = vmul.f32 %v2510, %v1639
    %2525 = vrot.lane.b32.xlu0 %v2517, 78
    %v2526 = vpop.permute.xlu0 %2525
    %2527 = vrot.lane.b32.xlu0 %v2518, 78
    %v2528 = vpop.permute.xlu0 %2527
    %2529 = vrot.lane.b32.xlu0 %v2519, 78
    %v2530 = vpop.permute.xlu0 %2529
    %2531 = vrot.lane.b32.xlu0 %v2520, 78
    %v2532 = vpop.permute.xlu0 %2531
    %v2537 = vadd.f32 %v2513, %v2526
    %v2538 = vadd.f32 %v2514, %v2528
    %v2539 = vadd.f32 %v2515, %v2530
    %v2540 = vadd.f32 %v2516, %v2532
    %v2541 = vadd.f32 %v2537, %v1124
    %v2542 = vadd.f32 %v2538, %v1125
    %v2543 = vadd.f32 %v2539, %v1126
    %v2544 = vadd.f32 %v2540, %v1127
    %2549 = vrot.lane.b32.xlu0 %v2356, 78
    %v2550 = vpop.permute.xlu0 %2549
    %2551 = vrot.lane.b32.xlu0 %v2357, 78
    %v2552 = vpop.permute.xlu0 %2551
    %2553 = vrot.lane.b32.xlu0 %v2358, 78
    %v2554 = vpop.permute.xlu0 %2553
    %2555 = vrot.lane.b32.xlu0 %v2359, 78
    %v2556 = vpop.permute.xlu0 %2555
    %v2557 = vsel %vm1139, %v2550, 0
    %v2559 = vsel %vm1139, %v2552, 0
    %v2561 = vsel %vm1139, %v2554, 0
    %v2563 = vsel %vm1139, %v2556, 0
    %2565 = vmatprep.subr.mxu0 0.0
    %2566 = vmatpush1.msra.mxu0 0.0
    %2567 = vmatprep.subr.mxu0 0.0
    %2568 = vmatpush1.msra.mxu0 0.0
    %2569 = vmatprep.subr.mxu0 0.0
    %2570 = vmatpush1.msra.mxu0 0.0
    %2571 = vmatprep.subr.mxu0 0.0
    %2572 = vmatpush1.msra.mxu0 0.0
    %2573 = vmatprep.subr.mxu0 0.0
    %2574 = vmatpush1.msra.mxu0 0.0
    %2575 = vmatprep.subr.mxu0 0.0
    %2576 = vmatpush1.msra.mxu0 0.0
    %2577 = vmatprep.subr.mxu0 0.0
    %2578 = vmatpush1.msra.mxu0 0.0
    %2579 = vmatprep.subr.mxu0 0.0
    %2580 = vmatpush1.msra.mxu0 0.0
    %2581 = vmatprep.subr.mxu0 0.0
    %2582 = vmatpush1.msra.mxu0 0.0
    %2583 = vmatprep.subr.mxu0 %v1148
    %2584 = vmatpush1.msra.mxu0 %v1145
    %2585 = vmatprep.subr.mxu0 %v1089
    %2586 = vmatpush1.msra.mxu0 %v1088
    %2587 = vmatprep.subr.mxu0 %v1087
    %2588 = vmatpush1.msra.mxu0 %v1086
    %2589 = vmatprep.subr.mxu0 %v1085
    %2590 = vmatpush1.msra.mxu0 %v1084
    %2591 = vmatprep.subr.mxu0 %v1083
    %2592 = vmatpush1.msra.mxu0 %v1082
    %2593 = vmatprep.subr.mxu0 %v1081
    %2594 = vmatpush1.msra.mxu0 %v1080
    %2595 = vmatprep.subr.mxu0 %v1079
    %2596 = vmatpush1.msra.mxu0 %v1078
    %2597 = vmatprep.subr.mxu0 0.0
    %2598 = vmatpush2.msra.mxu0 0.0
    %2599 = vmatprep.subr.mxu0 0.0
    %2600 = vmatpush2.msra.mxu0 0.0
    %2601 = vmatprep.subr.mxu0 0.0
    %2602 = vmatpush2.msra.mxu0 0.0
    %2603 = vmatprep.subr.mxu0 0.0
    %2604 = vmatpush2.msra.mxu0 0.0
    %2605 = vmatprep.subr.mxu0 0.0
    %2606 = vmatpush2.msra.mxu0 0.0
    %2607 = vmatprep.subr.mxu0 0.0
    %2608 = vmatpush2.msra.mxu0 0.0
    %2609 = vmatprep.subr.mxu0 0.0
    %2610 = vmatpush2.msra.mxu0 0.0
    %2611 = vmatprep.subr.mxu0 0.0
    %2612 = vmatpush2.msra.mxu0 0.0
    %2613 = vmatprep.subr.mxu0 0.0
    %2614 = vmatpush2.msra.mxu0 0.0
    %2615 = vmatprep.subr.mxu0 0.0
    %2616 = vmatpush2.msra.mxu0 0.0
    %2617 = vmatprep.subr.mxu0 0.0
    %2618 = vmatpush2.msra.mxu0 0.0
    %2619 = vmatprep.subr.mxu0 0.0
    %2620 = vmatpush2.msra.mxu0 0.0
    %2621 = vmatprep.subr.mxu0 0.0
    %2622 = vmatpush2.msra.mxu0 0.0
    %2623 = vmatprep.subr.mxu0 0.0
    %2624 = vmatpush2.msra.mxu0 0.0
    %2625 = vmatprep.subr.mxu0 0.0
    %2626 = vmatpush2.msra.mxu0 0.0
    %2627 = vmatprep.subr.mxu0 0.0
    %2628 = vmatpush2.msra.mxu0 0.0
    %2629 = vmatprep.mubr.f32.mxu0 0.0
    %2630 = vmatmul.mubr.f32.gmra.mxu0 %v2557
    %v2631 = vpop.f32.mrf.mxu0
    %v2632 = vadd.f32 %v1132, %v2631
    %v2633 = vpop.f32.mrf.mxu0
    %v2634 = vadd.f32 %v1136, %v2633
    %2635 = vmatprep.mubr.f32.mxu0 0.0
    %2636 = vmatmul.mubr.f32.gmra.mxu0 %v2559
    %v2637 = vpop.f32.mrf.mxu0
    %v2638 = vadd.f32 %v1132, %v2637
    %v2639 = vpop.f32.mrf.mxu0
    %v2640 = vadd.f32 %v1136, %v2639
    %2641 = vmatprep.mubr.f32.mxu0 0.0
    %2642 = vmatmul.mubr.f32.gmra.mxu0 %v2561
    %v2643 = vpop.f32.mrf.mxu0
    %v2644 = vadd.f32 %v1132, %v2643
    %v2645 = vpop.f32.mrf.mxu0
    %v2646 = vadd.f32 %v1136, %v2645
    %2647 = vmatprep.mubr.f32.mxu0 0.0
    %2648 = vmatmul.mubr.f32.gmra.mxu0 %v2563
    %v2649 = vpop.f32.mrf.mxu0
    %v2650 = vadd.f32 %v1132, %v2649
    %v2651 = vpop.f32.mrf.mxu0
    %v2652 = vadd.f32 %v1136, %v2651
    %2653 = vdwg.mxu0
    %v2654 = vadd.f32 %v960, %v2632
    %v2655 = vadd.f32 %v966, %v2638
    %v2656 = vadd.f32 %v972, %v2644
    %v2657 = vadd.f32 %v978, %v2650
    %v2658 = vxor.u32 %v2654, 2147483648
    %v2659 = vxor.u32 %v2655, 2147483648
    %v2660 = vxor.u32 %v2656, 2147483648
    %v2661 = vxor.u32 %v2657, 2147483648
    %v2662 = vmul.f32 %v2658, 1.442695
    %v2663 = vpow.pop %v2662
    %v2664 = vmul.f32 %v2659, 1.442695
    %v2665 = vpow.pop %v2664
    %v2666 = vmul.f32 %v2660, 1.442695
    %v2667 = vpow.pop %v2666
    %v2668 = vmul.f32 %v2661, 1.442695
    %v2669 = vpow.pop %v2668
    %v2670 = vadd.f32 %v2663, 1.0
    %v2671 = vadd.f32 %v2665, 1.0
    %v2672 = vadd.f32 %v2667, 1.0
    %v2673 = vadd.f32 %v2669, 1.0
    %v2674 = vrcp.pop %v2670
    %v2675 = vmul.f32 1.0, %v2674
    %v2676 = vrcp.pop %v2671
    %v2677 = vmul.f32 1.0, %v2676
    %v2678 = vrcp.pop %v2672
    %v2679 = vmul.f32 1.0, %v2678
    %v2680 = vrcp.pop %v2673
    %v2681 = vmul.f32 1.0, %v2680
    %2690 = vrot.lane.b32.xlu0 %v2632, 28
    %v2691 = vpop.permute.xlu0 %2690
    %2692 = vrot.lane.b32.xlu0 %v2634, 28
    %v2693 = vpop.permute.xlu0 %2692
    %2694 = vrot.lane.b32.xlu0 %v2638, 28
    %v2695 = vpop.permute.xlu0 %2694
    %2696 = vrot.lane.b32.xlu0 %v2640, 28
    %v2697 = vpop.permute.xlu0 %2696
    %2698 = vrot.lane.b32.xlu0 %v2644, 28
    %v2699 = vpop.permute.xlu0 %2698
    %2700 = vrot.lane.b32.xlu0 %v2646, 28
    %v2701 = vpop.permute.xlu0 %2700
    %2702 = vrot.lane.b32.xlu0 %v2650, 28
    %v2703 = vpop.permute.xlu0 %2702
    %2704 = vrot.lane.b32.xlu0 %v2652, 28
    %v2705 = vpop.permute.xlu0 %2704
    %v2706 = vsel %vm1291, %v2691, %v2693
    %v2707 = vsel %vm1291, %v2695, %v2697
    %v2708 = vsel %vm1291, %v2699, %v2701
    %v2709 = vsel %vm1291, %v2703, %v2705
    %v2714 = vmul.f32 %v2675, %v2706
    %v2715 = vmul.f32 %v2677, %v2707
    %v2716 = vmul.f32 %v2679, %v2708
    %v2717 = vmul.f32 %v2681, %v2709
    %2722 = vrot.lane.b32.xlu0 %v2714, 100
    %v2723 = vpop.permute.xlu0 %2722
    %2724 = vrot.lane.b32.xlu0 %v2715, 100
    %v2725 = vpop.permute.xlu0 %2724
    %2726 = vrot.lane.b32.xlu0 %v2716, 100
    %v2727 = vpop.permute.xlu0 %2726
    %2728 = vrot.lane.b32.xlu0 %v2717, 100
    %v2729 = vpop.permute.xlu0 %2728
    %v2734 = vadd.f32 %v960, %v2723
    %v2735 = vadd.f32 %v962, %v2723
    %v2736 = vadd.f32 %v966, %v2725
    %v2737 = vadd.f32 %v968, %v2725
    %v2738 = vadd.f32 %v972, %v2727
    %v2739 = vadd.f32 %v974, %v2727
    %v2740 = vadd.f32 %v978, %v2729
    %v2741 = vadd.f32 %v980, %v2729
    %v2742 = vtanh.pop %v2734
    %v2743 = vtanh.pop %v2735
    %v2744 = vtanh.pop %v2736
    %v2745 = vtanh.pop %v2737
    %v2746 = vtanh.pop %v2738
    %v2747 = vtanh.pop %v2739
    %v2748 = vtanh.pop %v2740
    %v2749 = vtanh.pop %v2741
    %v2750 = vsub.f32 1.0, %v2675
    %v2751 = vsub.f32 1.0, %v2677
    %v2752 = vsub.f32 1.0, %v2679
    %v2753 = vsub.f32 1.0, %v2681
    %2762 = vrot.lane.b32.xlu0 %v2742, 78
    %v2763 = vpop.permute.xlu0 %2762
    %2764 = vrot.lane.b32.xlu0 %v2743, 78
    %v2765 = vpop.permute.xlu0 %2764
    %2766 = vrot.lane.b32.xlu0 %v2744, 78
    %v2767 = vpop.permute.xlu0 %2766
    %2768 = vrot.lane.b32.xlu0 %v2745, 78
    %v2769 = vpop.permute.xlu0 %2768
    %2770 = vrot.lane.b32.xlu0 %v2746, 78
    %v2771 = vpop.permute.xlu0 %2770
    %2772 = vrot.lane.b32.xlu0 %v2747, 78
    %v2773 = vpop.permute.xlu0 %2772
    %2774 = vrot.lane.b32.xlu0 %v2748, 78
    %v2775 = vpop.permute.xlu0 %2774
    %2776 = vrot.lane.b32.xlu0 %v2749, 78
    %v2777 = vpop.permute.xlu0 %2776
    %v2778 = vsel %vm1364, %v2763, %v2765
    %v2779 = vsel %vm1364, %v2767, %v2769
    %v2780 = vsel %vm1364, %v2771, %v2773
    %v2781 = vsel %vm1364, %v2775, %v2777
    %v2786 = vmul.f32 %v2750, %v2778
    %v2787 = vmul.f32 %v2751, %v2779
    %v2788 = vmul.f32 %v2752, %v2780
    %v2789 = vmul.f32 %v2753, %v2781
    %v2790 = vmul.f32 %v2675, %v2356
    %v2791 = vmul.f32 %v2677, %v2357
    %v2792 = vmul.f32 %v2679, %v2358
    %v2793 = vmul.f32 %v2681, %v2359
    %v2794 = vadd.f32 %v2786, %v2790
    %v2795 = vadd.f32 %v2787, %v2791
    %v2796 = vadd.f32 %v2788, %v2792
    %v2797 = vadd.f32 %v2789, %v2793
    %v2798 = vmul.f32 %v2794, %v1388
    %v2799 = vmul.f32 %v2795, %v1393
    %v2800 = vmul.f32 %v2796, %v1398
    %v2801 = vmul.f32 %v2797, %v1403
    %v2802 = vadd.f32 %v2798, %v1412
    %v2803 = vadd.f32 %v2799, %v1417
    %v2804 = vadd.f32 %v2800, %v1422
    %v2805 = vadd.f32 %v2801, %v1427
    %v2806 = vmax.f32 %v2802, 0.0
    %v2807 = vmax.f32 %v2803, 0.0
    %v2808 = vmax.f32 %v2804, 0.0
    %v2809 = vmax.f32 %v2805, 0.0
    %v2810 = vmul.f32 %v2806, %v1442
    %v2811 = vmul.f32 %v2807, %v1444
    %v2812 = vmul.f32 %v2808, %v1446
    %v2813 = vmul.f32 %v2809, %v1448
    %2818 = vrot.lane.b32.xlu0 %v2810, 78
    %v2819 = vpop.permute.xlu0 %2818
    %2820 = vrot.lane.b32.xlu0 %v2811, 78
    %v2821 = vpop.permute.xlu0 %2820
    %2822 = vrot.lane.b32.xlu0 %v2812, 78
    %v2823 = vpop.permute.xlu0 %2822
    %2824 = vrot.lane.b32.xlu0 %v2813, 78
    %v2825 = vpop.permute.xlu0 %2824
    %v2830 = vsel %vm1139, %v2819, 0.0
    %2831 = vadd.xlane.f32.xlu0 %v2830
    %v2832 = vpop.xlane.xlu0 %2831
    %v2833 = vsel %vm1139, %v2821, 0.0
    %2834 = vadd.xlane.f32.xlu0 %v2833
    %v2835 = vpop.xlane.xlu0 %2834
    %v2836 = vsel %vm1139, %v2823, 0.0
    %2837 = vadd.xlane.f32.xlu0 %v2836
    %v2838 = vpop.xlane.xlu0 %2837
    %v2839 = vsel %vm1139, %v2825, 0.0
    %2840 = vadd.xlane.f32.xlu0 %v2839
    %v2841 = vpop.xlane.xlu0 %2840
    %v2842 = vadd.f32 %v2832, %v1105
    %v2843 = vadd.f32 %v2835, %v1106
    %v2844 = vadd.f32 %v2838, %v1107
    %v2845 = vadd.f32 %v2841, %v1108
    %2850 = vrot.lane.b32.xlu0 %v2806, 78
    %v2851 = vpop.permute.xlu0 %2850
    %2852 = vrot.lane.b32.xlu0 %v2807, 78
    %v2853 = vpop.permute.xlu0 %2852
    %2854 = vrot.lane.b32.xlu0 %v2808, 78
    %v2855 = vpop.permute.xlu0 %2854
    %2856 = vrot.lane.b32.xlu0 %v2809, 78
    %v2857 = vpop.permute.xlu0 %2856
    %v2858 = vsel %vm1139, %v2851, 0
    %v2860 = vsel %vm1139, %v2853, 0
    %v2862 = vsel %vm1139, %v2855, 0
    %v2864 = vsel %vm1139, %v2857, 0
    %2866 = vmatprep.subr.mxu0 0.0
    %2867 = vmatpush1.msra.mxu0 0.0
    %2868 = vmatprep.subr.mxu0 0.0
    %2869 = vmatpush1.msra.mxu0 0.0
    %2870 = vmatprep.subr.mxu0 0.0
    %2871 = vmatpush1.msra.mxu0 0.0
    %2872 = vmatprep.subr.mxu0 0.0
    %2873 = vmatpush1.msra.mxu0 0.0
    %2874 = vmatprep.subr.mxu0 0.0
    %2875 = vmatpush1.msra.mxu0 0.0
    %2876 = vmatprep.subr.mxu0 0.0
    %2877 = vmatpush1.msra.mxu0 0.0
    %2878 = vmatprep.subr.mxu0 0.0
    %2879 = vmatpush1.msra.mxu0 0.0
    %2880 = vmatprep.subr.mxu0 0.0
    %2881 = vmatpush1.msra.mxu0 0.0
    %2882 = vmatprep.subr.mxu0 0.0
    %2883 = vmatpush1.msra.mxu0 0.0
    %2884 = vmatprep.subr.mxu0 0.0
    %2885 = vmatpush1.msra.mxu0 %v1510
    %2886 = vmatprep.subr.mxu0 0.0
    %2887 = vmatpush1.msra.mxu0 %v1122
    %2888 = vmatprep.subr.mxu0 0.0
    %2889 = vmatpush1.msra.mxu0 %v1121
    %2890 = vmatprep.subr.mxu0 0.0
    %2891 = vmatpush1.msra.mxu0 %v1120
    %2892 = vmatprep.subr.mxu0 0.0
    %2893 = vmatpush1.msra.mxu0 %v1119
    %2894 = vmatprep.subr.mxu0 0.0
    %2895 = vmatpush1.msra.mxu0 %v1118
    %2896 = vmatprep.subr.mxu0 0.0
    %2897 = vmatpush1.msra.mxu0 %v1117
    %2898 = vmatprep.subr.mxu0 0.0
    %2899 = vmatpush2.msra.mxu0 0.0
    %2900 = vmatprep.subr.mxu0 0.0
    %2901 = vmatpush2.msra.mxu0 0.0
    %2902 = vmatprep.subr.mxu0 0.0
    %2903 = vmatpush2.msra.mxu0 0.0
    %2904 = vmatprep.subr.mxu0 0.0
    %2905 = vmatpush2.msra.mxu0 0.0
    %2906 = vmatprep.subr.mxu0 0.0
    %2907 = vmatpush2.msra.mxu0 0.0
    %2908 = vmatprep.subr.mxu0 0.0
    %2909 = vmatpush2.msra.mxu0 0.0
    %2910 = vmatprep.subr.mxu0 0.0
    %2911 = vmatpush2.msra.mxu0 0.0
    %2912 = vmatprep.subr.mxu0 0.0
    %2913 = vmatpush2.msra.mxu0 0.0
    %2914 = vmatprep.subr.mxu0 0.0
    %2915 = vmatpush2.msra.mxu0 0.0
    %2916 = vmatprep.subr.mxu0 0.0
    %2917 = vmatpush2.msra.mxu0 0.0
    %2918 = vmatprep.subr.mxu0 0.0
    %2919 = vmatpush2.msra.mxu0 0.0
    %2920 = vmatprep.subr.mxu0 0.0
    %2921 = vmatpush2.msra.mxu0 0.0
    %2922 = vmatprep.subr.mxu0 0.0
    %2923 = vmatpush2.msra.mxu0 0.0
    %2924 = vmatprep.subr.mxu0 0.0
    %2925 = vmatpush2.msra.mxu0 0.0
    %2926 = vmatprep.subr.mxu0 0.0
    %2927 = vmatpush2.msra.mxu0 0.0
    %2928 = vmatprep.subr.mxu0 0.0
    %2929 = vmatpush2.msra.mxu0 0.0
    %2930 = vmatprep.mubr.f32.mxu0 0.0
    %2931 = vmatmul.mubr.f32.gmra.mxu0 %v2858
    %v2932 = vpop.f32.mrf.mxu0
    %v2933 = vadd.f32 0.0, %v2932
    %v2934 = vpop.f32.mrf.mxu0
    %2935 = vmatprep.mubr.f32.mxu0 0.0
    %2936 = vmatmul.mubr.f32.gmra.mxu0 %v2860
    %v2937 = vpop.f32.mrf.mxu0
    %v2938 = vadd.f32 0.0, %v2937
    %v2939 = vpop.f32.mrf.mxu0
    %2940 = vmatprep.mubr.f32.mxu0 0.0
    %2941 = vmatmul.mubr.f32.gmra.mxu0 %v2862
    %v2942 = vpop.f32.mrf.mxu0
    %v2943 = vadd.f32 0.0, %v2942
    %v2944 = vpop.f32.mrf.mxu0
    %2945 = vmatprep.mubr.f32.mxu0 0.0
    %2946 = vmatmul.mubr.f32.gmra.mxu0 %v2864
    %v2947 = vpop.f32.mrf.mxu0
    %v2948 = vadd.f32 0.0, %v2947
    %v2949 = vpop.f32.mrf.mxu0
    %2950 = vdwg.mxu0
    %v2951 = vmul.f32 %v2933, %v1600
    %v2952 = vmul.f32 %v2938, %v1605
    %v2953 = vmul.f32 %v2943, %v1610
    %v2954 = vmul.f32 %v2948, %v1615
    %v2955 = vmul.f32 %v2933, %v1624
    %v2956 = vmul.f32 %v2938, %v1629
    %v2957 = vmul.f32 %v2943, %v1634
    %v2958 = vmul.f32 %v2948, %v1639
    %2963 = vrot.lane.b32.xlu0 %v2955, 78
    %v2964 = vpop.permute.xlu0 %2963
    %2965 = vrot.lane.b32.xlu0 %v2956, 78
    %v2966 = vpop.permute.xlu0 %2965
    %2967 = vrot.lane.b32.xlu0 %v2957, 78
    %v2968 = vpop.permute.xlu0 %2967
    %2969 = vrot.lane.b32.xlu0 %v2958, 78
    %v2970 = vpop.permute.xlu0 %2969
    %v2975 = vadd.f32 %v2951, %v2964
    %v2976 = vadd.f32 %v2952, %v2966
    %v2977 = vadd.f32 %v2953, %v2968
    %v2978 = vadd.f32 %v2954, %v2970
    %v2979 = vadd.f32 %v2975, %v1124
    %v2980 = vadd.f32 %v2976, %v1125
    %v2981 = vadd.f32 %v2977, %v1126
    %v2982 = vadd.f32 %v2978, %v1127
    %2987 = vrot.lane.b32.xlu0 %v2794, 78
    %v2988 = vpop.permute.xlu0 %2987
    %2989 = vrot.lane.b32.xlu0 %v2795, 78
    %v2990 = vpop.permute.xlu0 %2989
    %2991 = vrot.lane.b32.xlu0 %v2796, 78
    %v2992 = vpop.permute.xlu0 %2991
    %2993 = vrot.lane.b32.xlu0 %v2797, 78
    %v2994 = vpop.permute.xlu0 %2993
    %v2995 = vsel %vm1139, %v2988, 0
    %v2997 = vsel %vm1139, %v2990, 0
    %v2999 = vsel %vm1139, %v2992, 0
    %v3001 = vsel %vm1139, %v2994, 0
    %3003 = vmatprep.subr.mxu0 0.0
    %3004 = vmatpush1.msra.mxu0 0.0
    %3005 = vmatprep.subr.mxu0 0.0
    %3006 = vmatpush1.msra.mxu0 0.0
    %3007 = vmatprep.subr.mxu0 0.0
    %3008 = vmatpush1.msra.mxu0 0.0
    %3009 = vmatprep.subr.mxu0 0.0
    %3010 = vmatpush1.msra.mxu0 0.0
    %3011 = vmatprep.subr.mxu0 0.0
    %3012 = vmatpush1.msra.mxu0 0.0
    %3013 = vmatprep.subr.mxu0 0.0
    %3014 = vmatpush1.msra.mxu0 0.0
    %3015 = vmatprep.subr.mxu0 0.0
    %3016 = vmatpush1.msra.mxu0 0.0
    %3017 = vmatprep.subr.mxu0 0.0
    %3018 = vmatpush1.msra.mxu0 0.0
    %3019 = vmatprep.subr.mxu0 0.0
    %3020 = vmatpush1.msra.mxu0 0.0
    %3021 = vmatprep.subr.mxu0 %v1148
    %3022 = vmatpush1.msra.mxu0 %v1145
    %3023 = vmatprep.subr.mxu0 %v1089
    %3024 = vmatpush1.msra.mxu0 %v1088
    %3025 = vmatprep.subr.mxu0 %v1087
    %3026 = vmatpush1.msra.mxu0 %v1086
    %3027 = vmatprep.subr.mxu0 %v1085
    %3028 = vmatpush1.msra.mxu0 %v1084
    %3029 = vmatprep.subr.mxu0 %v1083
    %3030 = vmatpush1.msra.mxu0 %v1082
    %3031 = vmatprep.subr.mxu0 %v1081
    %3032 = vmatpush1.msra.mxu0 %v1080
    %3033 = vmatprep.subr.mxu0 %v1079
    %3034 = vmatpush1.msra.mxu0 %v1078
    %3035 = vmatprep.subr.mxu0 0.0
    %3036 = vmatpush2.msra.mxu0 0.0
    %3037 = vmatprep.subr.mxu0 0.0
    %3038 = vmatpush2.msra.mxu0 0.0
    %3039 = vmatprep.subr.mxu0 0.0
    %3040 = vmatpush2.msra.mxu0 0.0
    %3041 = vmatprep.subr.mxu0 0.0
    %3042 = vmatpush2.msra.mxu0 0.0
    %3043 = vmatprep.subr.mxu0 0.0
    %3044 = vmatpush2.msra.mxu0 0.0
    %3045 = vmatprep.subr.mxu0 0.0
    %3046 = vmatpush2.msra.mxu0 0.0
    %3047 = vmatprep.subr.mxu0 0.0
    %3048 = vmatpush2.msra.mxu0 0.0
    %3049 = vmatprep.subr.mxu0 0.0
    %3050 = vmatpush2.msra.mxu0 0.0
    %3051 = vmatprep.subr.mxu0 0.0
    %3052 = vmatpush2.msra.mxu0 0.0
    %3053 = vmatprep.subr.mxu0 0.0
    %3054 = vmatpush2.msra.mxu0 0.0
    %3055 = vmatprep.subr.mxu0 0.0
    %3056 = vmatpush2.msra.mxu0 0.0
    %3057 = vmatprep.subr.mxu0 0.0
    %3058 = vmatpush2.msra.mxu0 0.0
    %3059 = vmatprep.subr.mxu0 0.0
    %3060 = vmatpush2.msra.mxu0 0.0
    %3061 = vmatprep.subr.mxu0 0.0
    %3062 = vmatpush2.msra.mxu0 0.0
    %3063 = vmatprep.subr.mxu0 0.0
    %3064 = vmatpush2.msra.mxu0 0.0
    %3065 = vmatprep.subr.mxu0 0.0
    %3066 = vmatpush2.msra.mxu0 0.0
    %3067 = vmatprep.mubr.f32.mxu0 0.0
    %3068 = vmatmul.mubr.f32.gmra.mxu0 %v2995
    %v3069 = vpop.f32.mrf.mxu0
    %v3070 = vadd.f32 %v1132, %v3069
    %v3071 = vpop.f32.mrf.mxu0
    %v3072 = vadd.f32 %v1136, %v3071
    %3073 = vmatprep.mubr.f32.mxu0 0.0
    %3074 = vmatmul.mubr.f32.gmra.mxu0 %v2997
    %v3075 = vpop.f32.mrf.mxu0
    %v3076 = vadd.f32 %v1132, %v3075
    %v3077 = vpop.f32.mrf.mxu0
    %v3078 = vadd.f32 %v1136, %v3077
    %3079 = vmatprep.mubr.f32.mxu0 0.0
    %3080 = vmatmul.mubr.f32.gmra.mxu0 %v2999
    %v3081 = vpop.f32.mrf.mxu0
    %v3082 = vadd.f32 %v1132, %v3081
    %v3083 = vpop.f32.mrf.mxu0
    %v3084 = vadd.f32 %v1136, %v3083
    %3085 = vmatprep.mubr.f32.mxu0 0.0
    %3086 = vmatmul.mubr.f32.gmra.mxu0 %v3001
    %v3087 = vpop.f32.mrf.mxu0
    %v3088 = vadd.f32 %v1132, %v3087
    %v3089 = vpop.f32.mrf.mxu0
    %v3090 = vadd.f32 %v1136, %v3089
    %3091 = vdwg.mxu0
    %v3092 = vadd.f32 %v984, %v3070
    %v3093 = vadd.f32 %v990, %v3076
    %v3094 = vadd.f32 %v996, %v3082
    %v3095 = vadd.f32 %v1002, %v3088
    %v3096 = vxor.u32 %v3092, 2147483648
    %v3097 = vxor.u32 %v3093, 2147483648
    %v3098 = vxor.u32 %v3094, 2147483648
    %v3099 = vxor.u32 %v3095, 2147483648
    %v3100 = vmul.f32 %v3096, 1.442695
    %v3101 = vpow.pop %v3100
    %v3102 = vmul.f32 %v3097, 1.442695
    %v3103 = vpow.pop %v3102
    %v3104 = vmul.f32 %v3098, 1.442695
    %v3105 = vpow.pop %v3104
    %v3106 = vmul.f32 %v3099, 1.442695
    %v3107 = vpow.pop %v3106
    %v3108 = vadd.f32 %v3101, 1.0
    %v3109 = vadd.f32 %v3103, 1.0
    %v3110 = vadd.f32 %v3105, 1.0
    %v3111 = vadd.f32 %v3107, 1.0
    %v3112 = vrcp.pop %v3108
    %v3113 = vmul.f32 1.0, %v3112
    %v3114 = vrcp.pop %v3109
    %v3115 = vmul.f32 1.0, %v3114
    %v3116 = vrcp.pop %v3110
    %v3117 = vmul.f32 1.0, %v3116
    %v3118 = vrcp.pop %v3111
    %v3119 = vmul.f32 1.0, %v3118
    %3128 = vrot.lane.b32.xlu0 %v3070, 28
    %v3129 = vpop.permute.xlu0 %3128
    %3130 = vrot.lane.b32.xlu0 %v3072, 28
    %v3131 = vpop.permute.xlu0 %3130
    %3132 = vrot.lane.b32.xlu0 %v3076, 28
    %v3133 = vpop.permute.xlu0 %3132
    %3134 = vrot.lane.b32.xlu0 %v3078, 28
    %v3135 = vpop.permute.xlu0 %3134
    %3136 = vrot.lane.b32.xlu0 %v3082, 28
    %v3137 = vpop.permute.xlu0 %3136
    %3138 = vrot.lane.b32.xlu0 %v3084, 28
    %v3139 = vpop.permute.xlu0 %3138
    %3140 = vrot.lane.b32.xlu0 %v3088, 28
    %v3141 = vpop.permute.xlu0 %3140
    %3142 = vrot.lane.b32.xlu0 %v3090, 28
    %v3143 = vpop.permute.xlu0 %3142
    %v3144 = vsel %vm1291, %v3129, %v3131
    %v3145 = vsel %vm1291, %v3133, %v3135
    %v3146 = vsel %vm1291, %v3137, %v3139
    %v3147 = vsel %vm1291, %v3141, %v3143
    %v3152 = vmul.f32 %v3113, %v3144
    %v3153 = vmul.f32 %v3115, %v3145
    %v3154 = vmul.f32 %v3117, %v3146
    %v3155 = vmul.f32 %v3119, %v3147
    %3160 = vrot.lane.b32.xlu0 %v3152, 100
    %v3161 = vpop.permute.xlu0 %3160
    %3162 = vrot.lane.b32.xlu0 %v3153, 100
    %v3163 = vpop.permute.xlu0 %3162
    %3164 = vrot.lane.b32.xlu0 %v3154, 100
    %v3165 = vpop.permute.xlu0 %3164
    %3166 = vrot.lane.b32.xlu0 %v3155, 100
    %v3167 = vpop.permute.xlu0 %3166
    %v3172 = vadd.f32 %v984, %v3161
    %v3173 = vadd.f32 %v986, %v3161
    %v3174 = vadd.f32 %v990, %v3163
    %v3175 = vadd.f32 %v992, %v3163
    %v3176 = vadd.f32 %v996, %v3165
    %v3177 = vadd.f32 %v998, %v3165
    %v3178 = vadd.f32 %v1002, %v3167
    %v3179 = vadd.f32 %v1004, %v3167
    %v3180 = vtanh.pop %v3172
    %v3181 = vtanh.pop %v3173
    %v3182 = vtanh.pop %v3174
    %v3183 = vtanh.pop %v3175
    %v3184 = vtanh.pop %v3176
    %v3185 = vtanh.pop %v3177
    %v3186 = vtanh.pop %v3178
    %v3187 = vtanh.pop %v3179
    %v3188 = vsub.f32 1.0, %v3113
    %v3189 = vsub.f32 1.0, %v3115
    %v3190 = vsub.f32 1.0, %v3117
    %v3191 = vsub.f32 1.0, %v3119
    %3200 = vrot.lane.b32.xlu0 %v3180, 78
    %v3201 = vpop.permute.xlu0 %3200
    %3202 = vrot.lane.b32.xlu0 %v3181, 78
    %v3203 = vpop.permute.xlu0 %3202
    %3204 = vrot.lane.b32.xlu0 %v3182, 78
    %v3205 = vpop.permute.xlu0 %3204
    %3206 = vrot.lane.b32.xlu0 %v3183, 78
    %v3207 = vpop.permute.xlu0 %3206
    %3208 = vrot.lane.b32.xlu0 %v3184, 78
    %v3209 = vpop.permute.xlu0 %3208
    %3210 = vrot.lane.b32.xlu0 %v3185, 78
    %v3211 = vpop.permute.xlu0 %3210
    %3212 = vrot.lane.b32.xlu0 %v3186, 78
    %v3213 = vpop.permute.xlu0 %3212
    %3214 = vrot.lane.b32.xlu0 %v3187, 78
    %v3215 = vpop.permute.xlu0 %3214
    %v3216 = vsel %vm1364, %v3201, %v3203
    %v3217 = vsel %vm1364, %v3205, %v3207
    %v3218 = vsel %vm1364, %v3209, %v3211
    %v3219 = vsel %vm1364, %v3213, %v3215
    %v3224 = vmul.f32 %v3188, %v3216
    %v3225 = vmul.f32 %v3189, %v3217
    %v3226 = vmul.f32 %v3190, %v3218
    %v3227 = vmul.f32 %v3191, %v3219
    %v3228 = vmul.f32 %v3113, %v2794
    %v3229 = vmul.f32 %v3115, %v2795
    %v3230 = vmul.f32 %v3117, %v2796
    %v3231 = vmul.f32 %v3119, %v2797
    %v3232 = vadd.f32 %v3224, %v3228
    %v3233 = vadd.f32 %v3225, %v3229
    %v3234 = vadd.f32 %v3226, %v3230
    %v3235 = vadd.f32 %v3227, %v3231
    %v3236 = vmul.f32 %v3232, %v1388
    %v3237 = vmul.f32 %v3233, %v1393
    %v3238 = vmul.f32 %v3234, %v1398
    %v3239 = vmul.f32 %v3235, %v1403
    %v3240 = vadd.f32 %v3236, %v1412
    %v3241 = vadd.f32 %v3237, %v1417
    %v3242 = vadd.f32 %v3238, %v1422
    %v3243 = vadd.f32 %v3239, %v1427
    %v3244 = vmax.f32 %v3240, 0.0
    %v3245 = vmax.f32 %v3241, 0.0
    %v3246 = vmax.f32 %v3242, 0.0
    %v3247 = vmax.f32 %v3243, 0.0
    %v3248 = vmul.f32 %v3244, %v1442
    %v3249 = vmul.f32 %v3245, %v1444
    %v3250 = vmul.f32 %v3246, %v1446
    %v3251 = vmul.f32 %v3247, %v1448
    %3256 = vrot.lane.b32.xlu0 %v3248, 78
    %v3257 = vpop.permute.xlu0 %3256
    %3258 = vrot.lane.b32.xlu0 %v3249, 78
    %v3259 = vpop.permute.xlu0 %3258
    %3260 = vrot.lane.b32.xlu0 %v3250, 78
    %v3261 = vpop.permute.xlu0 %3260
    %3262 = vrot.lane.b32.xlu0 %v3251, 78
    %v3263 = vpop.permute.xlu0 %3262
    %v3268 = vsel %vm1139, %v3257, 0.0
    %3269 = vadd.xlane.f32.xlu0 %v3268
    %v3270 = vpop.xlane.xlu0 %3269
    %v3271 = vsel %vm1139, %v3259, 0.0
    %3272 = vadd.xlane.f32.xlu0 %v3271
    %v3273 = vpop.xlane.xlu0 %3272
    %v3274 = vsel %vm1139, %v3261, 0.0
    %3275 = vadd.xlane.f32.xlu0 %v3274
    %v3276 = vpop.xlane.xlu0 %3275
    %v3277 = vsel %vm1139, %v3263, 0.0
    %3278 = vadd.xlane.f32.xlu0 %v3277
    %v3279 = vpop.xlane.xlu0 %3278
    %v3280 = vadd.f32 %v3270, %v1105
    %v3281 = vadd.f32 %v3273, %v1106
    %v3282 = vadd.f32 %v3276, %v1107
    %v3283 = vadd.f32 %v3279, %v1108
    %3288 = vrot.lane.b32.xlu0 %v3244, 78
    %v3289 = vpop.permute.xlu0 %3288
    %3290 = vrot.lane.b32.xlu0 %v3245, 78
    %v3291 = vpop.permute.xlu0 %3290
    %3292 = vrot.lane.b32.xlu0 %v3246, 78
    %v3293 = vpop.permute.xlu0 %3292
    %3294 = vrot.lane.b32.xlu0 %v3247, 78
    %v3295 = vpop.permute.xlu0 %3294
    %v3296 = vsel %vm1139, %v3289, 0
    %v3298 = vsel %vm1139, %v3291, 0
    %v3300 = vsel %vm1139, %v3293, 0
    %v3302 = vsel %vm1139, %v3295, 0
    %3304 = vmatprep.subr.mxu0 0.0
    %3305 = vmatpush1.msra.mxu0 0.0
    %3306 = vmatprep.subr.mxu0 0.0
    %3307 = vmatpush1.msra.mxu0 0.0
    %3308 = vmatprep.subr.mxu0 0.0
    %3309 = vmatpush1.msra.mxu0 0.0
    %3310 = vmatprep.subr.mxu0 0.0
    %3311 = vmatpush1.msra.mxu0 0.0
    %3312 = vmatprep.subr.mxu0 0.0
    %3313 = vmatpush1.msra.mxu0 0.0
    %3314 = vmatprep.subr.mxu0 0.0
    %3315 = vmatpush1.msra.mxu0 0.0
    %3316 = vmatprep.subr.mxu0 0.0
    %3317 = vmatpush1.msra.mxu0 0.0
    %3318 = vmatprep.subr.mxu0 0.0
    %3319 = vmatpush1.msra.mxu0 0.0
    %3320 = vmatprep.subr.mxu0 0.0
    %3321 = vmatpush1.msra.mxu0 0.0
    %3322 = vmatprep.subr.mxu0 0.0
    %3323 = vmatpush1.msra.mxu0 %v1510
    %3324 = vmatprep.subr.mxu0 0.0
    %3325 = vmatpush1.msra.mxu0 %v1122
    %3326 = vmatprep.subr.mxu0 0.0
    %3327 = vmatpush1.msra.mxu0 %v1121
    %3328 = vmatprep.subr.mxu0 0.0
    %3329 = vmatpush1.msra.mxu0 %v1120
    %3330 = vmatprep.subr.mxu0 0.0
    %3331 = vmatpush1.msra.mxu0 %v1119
    %3332 = vmatprep.subr.mxu0 0.0
    %3333 = vmatpush1.msra.mxu0 %v1118
    %3334 = vmatprep.subr.mxu0 0.0
    %3335 = vmatpush1.msra.mxu0 %v1117
    %3336 = vmatprep.subr.mxu0 0.0
    %3337 = vmatpush2.msra.mxu0 0.0
    %3338 = vmatprep.subr.mxu0 0.0
    %3339 = vmatpush2.msra.mxu0 0.0
    %3340 = vmatprep.subr.mxu0 0.0
    %3341 = vmatpush2.msra.mxu0 0.0
    %3342 = vmatprep.subr.mxu0 0.0
    %3343 = vmatpush2.msra.mxu0 0.0
    %3344 = vmatprep.subr.mxu0 0.0
    %3345 = vmatpush2.msra.mxu0 0.0
    %3346 = vmatprep.subr.mxu0 0.0
    %3347 = vmatpush2.msra.mxu0 0.0
    %3348 = vmatprep.subr.mxu0 0.0
    %3349 = vmatpush2.msra.mxu0 0.0
    %3350 = vmatprep.subr.mxu0 0.0
    %3351 = vmatpush2.msra.mxu0 0.0
    %3352 = vmatprep.subr.mxu0 0.0
    %3353 = vmatpush2.msra.mxu0 0.0
    %3354 = vmatprep.subr.mxu0 0.0
    %3355 = vmatpush2.msra.mxu0 0.0
    %3356 = vmatprep.subr.mxu0 0.0
    %3357 = vmatpush2.msra.mxu0 0.0
    %3358 = vmatprep.subr.mxu0 0.0
    %3359 = vmatpush2.msra.mxu0 0.0
    %3360 = vmatprep.subr.mxu0 0.0
    %3361 = vmatpush2.msra.mxu0 0.0
    %3362 = vmatprep.subr.mxu0 0.0
    %3363 = vmatpush2.msra.mxu0 0.0
    %3364 = vmatprep.subr.mxu0 0.0
    %3365 = vmatpush2.msra.mxu0 0.0
    %3366 = vmatprep.subr.mxu0 0.0
    %3367 = vmatpush2.msra.mxu0 0.0
    %3368 = vmatprep.mubr.f32.mxu0 0.0
    %3369 = vmatmul.mubr.f32.gmra.mxu0 %v3296
    %v3370 = vpop.f32.mrf.mxu0
    %v3371 = vadd.f32 0.0, %v3370
    %v3372 = vpop.f32.mrf.mxu0
    %3373 = vmatprep.mubr.f32.mxu0 0.0
    %3374 = vmatmul.mubr.f32.gmra.mxu0 %v3298
    %v3375 = vpop.f32.mrf.mxu0
    %v3376 = vadd.f32 0.0, %v3375
    %v3377 = vpop.f32.mrf.mxu0
    %3378 = vmatprep.mubr.f32.mxu0 0.0
    %3379 = vmatmul.mubr.f32.gmra.mxu0 %v3300
    %v3380 = vpop.f32.mrf.mxu0
    %v3381 = vadd.f32 0.0, %v3380
    %v3382 = vpop.f32.mrf.mxu0
    %3383 = vmatprep.mubr.f32.mxu0 0.0
    %3384 = vmatmul.mubr.f32.gmra.mxu0 %v3302
    %v3385 = vpop.f32.mrf.mxu0
    %v3386 = vadd.f32 0.0, %v3385
    %v3387 = vpop.f32.mrf.mxu0
    %3388 = vdwg.mxu0
    %v3389 = vmul.f32 %v3371, %v1600
    %v3390 = vmul.f32 %v3376, %v1605
    %v3391 = vmul.f32 %v3381, %v1610
    %v3392 = vmul.f32 %v3386, %v1615
    %v3393 = vmul.f32 %v3371, %v1624
    %v3394 = vmul.f32 %v3376, %v1629
    %v3395 = vmul.f32 %v3381, %v1634
    %v3396 = vmul.f32 %v3386, %v1639
    %3401 = vrot.lane.b32.xlu0 %v3393, 78
    %v3402 = vpop.permute.xlu0 %3401
    %3403 = vrot.lane.b32.xlu0 %v3394, 78
    %v3404 = vpop.permute.xlu0 %3403
    %3405 = vrot.lane.b32.xlu0 %v3395, 78
    %v3406 = vpop.permute.xlu0 %3405
    %3407 = vrot.lane.b32.xlu0 %v3396, 78
    %v3408 = vpop.permute.xlu0 %3407
    %v3413 = vadd.f32 %v3389, %v3402
    %v3414 = vadd.f32 %v3390, %v3404
    %v3415 = vadd.f32 %v3391, %v3406
    %v3416 = vadd.f32 %v3392, %v3408
    %v3417 = vadd.f32 %v3413, %v1124
    %v3418 = vadd.f32 %v3414, %v1125
    %v3419 = vadd.f32 %v3415, %v1126
    %v3420 = vadd.f32 %v3416, %v1127
    %3425 = vrot.lane.b32.xlu0 %v3232, 78
    %v3426 = vpop.permute.xlu0 %3425
    %3427 = vrot.lane.b32.xlu0 %v3233, 78
    %v3428 = vpop.permute.xlu0 %3427
    %3429 = vrot.lane.b32.xlu0 %v3234, 78
    %v3430 = vpop.permute.xlu0 %3429
    %3431 = vrot.lane.b32.xlu0 %v3235, 78
    %v3432 = vpop.permute.xlu0 %3431
    %v3433 = vsel %vm1139, %v3426, 0
    %v3435 = vsel %vm1139, %v3428, 0
    %v3437 = vsel %vm1139, %v3430, 0
    %v3439 = vsel %vm1139, %v3432, 0
    %3441 = vmatprep.subr.mxu0 0.0
    %3442 = vmatpush1.msra.mxu0 0.0
    %3443 = vmatprep.subr.mxu0 0.0
    %3444 = vmatpush1.msra.mxu0 0.0
    %3445 = vmatprep.subr.mxu0 0.0
    %3446 = vmatpush1.msra.mxu0 0.0
    %3447 = vmatprep.subr.mxu0 0.0
    %3448 = vmatpush1.msra.mxu0 0.0
    %3449 = vmatprep.subr.mxu0 0.0
    %3450 = vmatpush1.msra.mxu0 0.0
    %3451 = vmatprep.subr.mxu0 0.0
    %3452 = vmatpush1.msra.mxu0 0.0
    %3453 = vmatprep.subr.mxu0 0.0
    %3454 = vmatpush1.msra.mxu0 0.0
    %3455 = vmatprep.subr.mxu0 0.0
    %3456 = vmatpush1.msra.mxu0 0.0
    %3457 = vmatprep.subr.mxu0 0.0
    %3458 = vmatpush1.msra.mxu0 0.0
    %3459 = vmatprep.subr.mxu0 %v1148
    %3460 = vmatpush1.msra.mxu0 %v1145
    %3461 = vmatprep.subr.mxu0 %v1089
    %3462 = vmatpush1.msra.mxu0 %v1088
    %3463 = vmatprep.subr.mxu0 %v1087
    %3464 = vmatpush1.msra.mxu0 %v1086
    %3465 = vmatprep.subr.mxu0 %v1085
    %3466 = vmatpush1.msra.mxu0 %v1084
    %3467 = vmatprep.subr.mxu0 %v1083
    %3468 = vmatpush1.msra.mxu0 %v1082
    %3469 = vmatprep.subr.mxu0 %v1081
    %3470 = vmatpush1.msra.mxu0 %v1080
    %3471 = vmatprep.subr.mxu0 %v1079
    %3472 = vmatpush1.msra.mxu0 %v1078
    %3473 = vmatprep.subr.mxu0 0.0
    %3474 = vmatpush2.msra.mxu0 0.0
    %3475 = vmatprep.subr.mxu0 0.0
    %3476 = vmatpush2.msra.mxu0 0.0
    %3477 = vmatprep.subr.mxu0 0.0
    %3478 = vmatpush2.msra.mxu0 0.0
    %3479 = vmatprep.subr.mxu0 0.0
    %3480 = vmatpush2.msra.mxu0 0.0
    %3481 = vmatprep.subr.mxu0 0.0
    %3482 = vmatpush2.msra.mxu0 0.0
    %3483 = vmatprep.subr.mxu0 0.0
    %3484 = vmatpush2.msra.mxu0 0.0
    %3485 = vmatprep.subr.mxu0 0.0
    %3486 = vmatpush2.msra.mxu0 0.0
    %3487 = vmatprep.subr.mxu0 0.0
    %3488 = vmatpush2.msra.mxu0 0.0
    %3489 = vmatprep.subr.mxu0 0.0
    %3490 = vmatpush2.msra.mxu0 0.0
    %3491 = vmatprep.subr.mxu0 0.0
    %3492 = vmatpush2.msra.mxu0 0.0
    %3493 = vmatprep.subr.mxu0 0.0
    %3494 = vmatpush2.msra.mxu0 0.0
    %3495 = vmatprep.subr.mxu0 0.0
    %3496 = vmatpush2.msra.mxu0 0.0
    %3497 = vmatprep.subr.mxu0 0.0
    %3498 = vmatpush2.msra.mxu0 0.0
    %3499 = vmatprep.subr.mxu0 0.0
    %3500 = vmatpush2.msra.mxu0 0.0
    %3501 = vmatprep.subr.mxu0 0.0
    %3502 = vmatpush2.msra.mxu0 0.0
    %3503 = vmatprep.subr.mxu0 0.0
    %3504 = vmatpush2.msra.mxu0 0.0
    %3505 = vmatprep.mubr.f32.mxu0 0.0
    %3506 = vmatmul.mubr.f32.gmra.mxu0 %v3433
    %v3507 = vpop.f32.mrf.mxu0
    %v3508 = vadd.f32 %v1132, %v3507
    %v3509 = vpop.f32.mrf.mxu0
    %v3510 = vadd.f32 %v1136, %v3509
    %3511 = vmatprep.mubr.f32.mxu0 0.0
    %3512 = vmatmul.mubr.f32.gmra.mxu0 %v3435
    %v3513 = vpop.f32.mrf.mxu0
    %v3514 = vadd.f32 %v1132, %v3513
    %v3515 = vpop.f32.mrf.mxu0
    %v3516 = vadd.f32 %v1136, %v3515
    %3517 = vmatprep.mubr.f32.mxu0 0.0
    %3518 = vmatmul.mubr.f32.gmra.mxu0 %v3437
    %v3519 = vpop.f32.mrf.mxu0
    %v3520 = vadd.f32 %v1132, %v3519
    %v3521 = vpop.f32.mrf.mxu0
    %v3522 = vadd.f32 %v1136, %v3521
    %3523 = vmatprep.mubr.f32.mxu0 0.0
    %3524 = vmatmul.mubr.f32.gmra.mxu0 %v3439
    %v3525 = vpop.f32.mrf.mxu0
    %v3526 = vadd.f32 %v1132, %v3525
    %v3527 = vpop.f32.mrf.mxu0
    %v3528 = vadd.f32 %v1136, %v3527
    %3529 = vdwg.mxu0
    %v3530 = vadd.f32 %v1008, %v3508
    %v3531 = vadd.f32 %v1014, %v3514
    %v3532 = vadd.f32 %v1020, %v3520
    %v3533 = vadd.f32 %v1026, %v3526
    %v3534 = vxor.u32 %v3530, 2147483648
    %v3535 = vxor.u32 %v3531, 2147483648
    %v3536 = vxor.u32 %v3532, 2147483648
    %v3537 = vxor.u32 %v3533, 2147483648
    %v3538 = vmul.f32 %v3534, 1.442695
    %v3539 = vpow.pop %v3538
    %v3540 = vmul.f32 %v3535, 1.442695
    %v3541 = vpow.pop %v3540
    %v3542 = vmul.f32 %v3536, 1.442695
    %v3543 = vpow.pop %v3542
    %v3544 = vmul.f32 %v3537, 1.442695
    %v3545 = vpow.pop %v3544
    %v3546 = vadd.f32 %v3539, 1.0
    %v3547 = vadd.f32 %v3541, 1.0
    %v3548 = vadd.f32 %v3543, 1.0
    %v3549 = vadd.f32 %v3545, 1.0
    %v3550 = vrcp.pop %v3546
    %v3551 = vmul.f32 1.0, %v3550
    %v3552 = vrcp.pop %v3547
    %v3553 = vmul.f32 1.0, %v3552
    %v3554 = vrcp.pop %v3548
    %v3555 = vmul.f32 1.0, %v3554
    %v3556 = vrcp.pop %v3549
    %v3557 = vmul.f32 1.0, %v3556
    %3566 = vrot.lane.b32.xlu0 %v3508, 28
    %v3567 = vpop.permute.xlu0 %3566
    %3568 = vrot.lane.b32.xlu0 %v3510, 28
    %v3569 = vpop.permute.xlu0 %3568
    %3570 = vrot.lane.b32.xlu0 %v3514, 28
    %v3571 = vpop.permute.xlu0 %3570
    %3572 = vrot.lane.b32.xlu0 %v3516, 28
    %v3573 = vpop.permute.xlu0 %3572
    %3574 = vrot.lane.b32.xlu0 %v3520, 28
    %v3575 = vpop.permute.xlu0 %3574
    %3576 = vrot.lane.b32.xlu0 %v3522, 28
    %v3577 = vpop.permute.xlu0 %3576
    %3578 = vrot.lane.b32.xlu0 %v3526, 28
    %v3579 = vpop.permute.xlu0 %3578
    %3580 = vrot.lane.b32.xlu0 %v3528, 28
    %v3581 = vpop.permute.xlu0 %3580
    %v3582 = vsel %vm1291, %v3567, %v3569
    %v3583 = vsel %vm1291, %v3571, %v3573
    %v3584 = vsel %vm1291, %v3575, %v3577
    %v3585 = vsel %vm1291, %v3579, %v3581
    %v3590 = vmul.f32 %v3551, %v3582
    %v3591 = vmul.f32 %v3553, %v3583
    %v3592 = vmul.f32 %v3555, %v3584
    %v3593 = vmul.f32 %v3557, %v3585
    %3598 = vrot.lane.b32.xlu0 %v3590, 100
    %v3599 = vpop.permute.xlu0 %3598
    %3600 = vrot.lane.b32.xlu0 %v3591, 100
    %v3601 = vpop.permute.xlu0 %3600
    %3602 = vrot.lane.b32.xlu0 %v3592, 100
    %v3603 = vpop.permute.xlu0 %3602
    %3604 = vrot.lane.b32.xlu0 %v3593, 100
    %v3605 = vpop.permute.xlu0 %3604
    %v3610 = vadd.f32 %v1008, %v3599
    %v3611 = vadd.f32 %v1010, %v3599
    %v3612 = vadd.f32 %v1014, %v3601
    %v3613 = vadd.f32 %v1016, %v3601
    %v3614 = vadd.f32 %v1020, %v3603
    %v3615 = vadd.f32 %v1022, %v3603
    %v3616 = vadd.f32 %v1026, %v3605
    %v3617 = vadd.f32 %v1028, %v3605
    %v3618 = vtanh.pop %v3610
    %v3619 = vtanh.pop %v3611
    %v3620 = vtanh.pop %v3612
    %v3621 = vtanh.pop %v3613
    %v3622 = vtanh.pop %v3614
    %v3623 = vtanh.pop %v3615
    %v3624 = vtanh.pop %v3616
    %v3625 = vtanh.pop %v3617
    %v3626 = vsub.f32 1.0, %v3551
    %v3627 = vsub.f32 1.0, %v3553
    %v3628 = vsub.f32 1.0, %v3555
    %v3629 = vsub.f32 1.0, %v3557
    %3638 = vrot.lane.b32.xlu0 %v3618, 78
    %v3639 = vpop.permute.xlu0 %3638
    %3640 = vrot.lane.b32.xlu0 %v3619, 78
    %v3641 = vpop.permute.xlu0 %3640
    %3642 = vrot.lane.b32.xlu0 %v3620, 78
    %v3643 = vpop.permute.xlu0 %3642
    %3644 = vrot.lane.b32.xlu0 %v3621, 78
    %v3645 = vpop.permute.xlu0 %3644
    %3646 = vrot.lane.b32.xlu0 %v3622, 78
    %v3647 = vpop.permute.xlu0 %3646
    %3648 = vrot.lane.b32.xlu0 %v3623, 78
    %v3649 = vpop.permute.xlu0 %3648
    %3650 = vrot.lane.b32.xlu0 %v3624, 78
    %v3651 = vpop.permute.xlu0 %3650
    %3652 = vrot.lane.b32.xlu0 %v3625, 78
    %v3653 = vpop.permute.xlu0 %3652
    %v3654 = vsel %vm1364, %v3639, %v3641
    %v3655 = vsel %vm1364, %v3643, %v3645
    %v3656 = vsel %vm1364, %v3647, %v3649
    %v3657 = vsel %vm1364, %v3651, %v3653
    %v3662 = vmul.f32 %v3626, %v3654
    %v3663 = vmul.f32 %v3627, %v3655
    %v3664 = vmul.f32 %v3628, %v3656
    %v3665 = vmul.f32 %v3629, %v3657
    %v3666 = vmul.f32 %v3551, %v3232
    %v3667 = vmul.f32 %v3553, %v3233
    %v3668 = vmul.f32 %v3555, %v3234
    %v3669 = vmul.f32 %v3557, %v3235
    %v3670 = vadd.f32 %v3662, %v3666
    %v3671 = vadd.f32 %v3663, %v3667
    %v3672 = vadd.f32 %v3664, %v3668
    %v3673 = vadd.f32 %v3665, %v3669
    %v3674 = vmul.f32 %v3670, %v1388
    %v3675 = vmul.f32 %v3671, %v1393
    %v3676 = vmul.f32 %v3672, %v1398
    %v3677 = vmul.f32 %v3673, %v1403
    %v3678 = vadd.f32 %v3674, %v1412
    %v3679 = vadd.f32 %v3675, %v1417
    %v3680 = vadd.f32 %v3676, %v1422
    %v3681 = vadd.f32 %v3677, %v1427
    %v3682 = vmax.f32 %v3678, 0.0
    %v3683 = vmax.f32 %v3679, 0.0
    %v3684 = vmax.f32 %v3680, 0.0
    %v3685 = vmax.f32 %v3681, 0.0
    %v3686 = vmul.f32 %v3682, %v1442
    %v3687 = vmul.f32 %v3683, %v1444
    %v3688 = vmul.f32 %v3684, %v1446
    %v3689 = vmul.f32 %v3685, %v1448
    %3694 = vrot.lane.b32.xlu0 %v3686, 78
    %v3695 = vpop.permute.xlu0 %3694
    %3696 = vrot.lane.b32.xlu0 %v3687, 78
    %v3697 = vpop.permute.xlu0 %3696
    %3698 = vrot.lane.b32.xlu0 %v3688, 78
    %v3699 = vpop.permute.xlu0 %3698
    %3700 = vrot.lane.b32.xlu0 %v3689, 78
    %v3701 = vpop.permute.xlu0 %3700
    %v3706 = vsel %vm1139, %v3695, 0.0
    %3707 = vadd.xlane.f32.xlu0 %v3706
    %v3708 = vpop.xlane.xlu0 %3707
    %v3709 = vsel %vm1139, %v3697, 0.0
    %3710 = vadd.xlane.f32.xlu0 %v3709
    %v3711 = vpop.xlane.xlu0 %3710
    %v3712 = vsel %vm1139, %v3699, 0.0
    %3713 = vadd.xlane.f32.xlu0 %v3712
    %v3714 = vpop.xlane.xlu0 %3713
    %v3715 = vsel %vm1139, %v3701, 0.0
    %3716 = vadd.xlane.f32.xlu0 %v3715
    %v3717 = vpop.xlane.xlu0 %3716
    %v3718 = vadd.f32 %v3708, %v1105
    %v3719 = vadd.f32 %v3711, %v1106
    %v3720 = vadd.f32 %v3714, %v1107
    %v3721 = vadd.f32 %v3717, %v1108
    %3726 = vrot.lane.b32.xlu0 %v3682, 78
    %v3727 = vpop.permute.xlu0 %3726
    %3728 = vrot.lane.b32.xlu0 %v3683, 78
    %v3729 = vpop.permute.xlu0 %3728
    %3730 = vrot.lane.b32.xlu0 %v3684, 78
    %v3731 = vpop.permute.xlu0 %3730
    %3732 = vrot.lane.b32.xlu0 %v3685, 78
    %v3733 = vpop.permute.xlu0 %3732
    %v3734 = vsel %vm1139, %v3727, 0
    %v3736 = vsel %vm1139, %v3729, 0
    %v3738 = vsel %vm1139, %v3731, 0
    %v3740 = vsel %vm1139, %v3733, 0
    %3742 = vmatprep.subr.mxu0 0.0
    %3743 = vmatpush1.msra.mxu0 0.0
    %3744 = vmatprep.subr.mxu0 0.0
    %3745 = vmatpush1.msra.mxu0 0.0
    %3746 = vmatprep.subr.mxu0 0.0
    %3747 = vmatpush1.msra.mxu0 0.0
    %3748 = vmatprep.subr.mxu0 0.0
    %3749 = vmatpush1.msra.mxu0 0.0
    %3750 = vmatprep.subr.mxu0 0.0
    %3751 = vmatpush1.msra.mxu0 0.0
    %3752 = vmatprep.subr.mxu0 0.0
    %3753 = vmatpush1.msra.mxu0 0.0
    %3754 = vmatprep.subr.mxu0 0.0
    %3755 = vmatpush1.msra.mxu0 0.0
    %3756 = vmatprep.subr.mxu0 0.0
    %3757 = vmatpush1.msra.mxu0 0.0
    %3758 = vmatprep.subr.mxu0 0.0
    %3759 = vmatpush1.msra.mxu0 0.0
    %3760 = vmatprep.subr.mxu0 0.0
    %3761 = vmatpush1.msra.mxu0 %v1510
    %3762 = vmatprep.subr.mxu0 0.0
    %3763 = vmatpush1.msra.mxu0 %v1122
    %3764 = vmatprep.subr.mxu0 0.0
    %3765 = vmatpush1.msra.mxu0 %v1121
    %3766 = vmatprep.subr.mxu0 0.0
    %3767 = vmatpush1.msra.mxu0 %v1120
    %3768 = vmatprep.subr.mxu0 0.0
    %3769 = vmatpush1.msra.mxu0 %v1119
    %3770 = vmatprep.subr.mxu0 0.0
    %3771 = vmatpush1.msra.mxu0 %v1118
    %3772 = vmatprep.subr.mxu0 0.0
    %3773 = vmatpush1.msra.mxu0 %v1117
    %3774 = vmatprep.subr.mxu0 0.0
    %3775 = vmatpush2.msra.mxu0 0.0
    %3776 = vmatprep.subr.mxu0 0.0
    %3777 = vmatpush2.msra.mxu0 0.0
    %3778 = vmatprep.subr.mxu0 0.0
    %3779 = vmatpush2.msra.mxu0 0.0
    %3780 = vmatprep.subr.mxu0 0.0
    %3781 = vmatpush2.msra.mxu0 0.0
    %3782 = vmatprep.subr.mxu0 0.0
    %3783 = vmatpush2.msra.mxu0 0.0
    %3784 = vmatprep.subr.mxu0 0.0
    %3785 = vmatpush2.msra.mxu0 0.0
    %3786 = vmatprep.subr.mxu0 0.0
    %3787 = vmatpush2.msra.mxu0 0.0
    %3788 = vmatprep.subr.mxu0 0.0
    %3789 = vmatpush2.msra.mxu0 0.0
    %3790 = vmatprep.subr.mxu0 0.0
    %3791 = vmatpush2.msra.mxu0 0.0
    %3792 = vmatprep.subr.mxu0 0.0
    %3793 = vmatpush2.msra.mxu0 0.0
    %3794 = vmatprep.subr.mxu0 0.0
    %3795 = vmatpush2.msra.mxu0 0.0
    %3796 = vmatprep.subr.mxu0 0.0
    %3797 = vmatpush2.msra.mxu0 0.0
    %3798 = vmatprep.subr.mxu0 0.0
    %3799 = vmatpush2.msra.mxu0 0.0
    %3800 = vmatprep.subr.mxu0 0.0
    %3801 = vmatpush2.msra.mxu0 0.0
    %3802 = vmatprep.subr.mxu0 0.0
    %3803 = vmatpush2.msra.mxu0 0.0
    %3804 = vmatprep.subr.mxu0 0.0
    %3805 = vmatpush2.msra.mxu0 0.0
    %3806 = vmatprep.mubr.f32.mxu0 0.0
    %3807 = vmatmul.mubr.f32.gmra.mxu0 %v3734
    %v3808 = vpop.f32.mrf.mxu0
    %v3809 = vadd.f32 0.0, %v3808
    %v3810 = vpop.f32.mrf.mxu0
    %3811 = vmatprep.mubr.f32.mxu0 0.0
    %3812 = vmatmul.mubr.f32.gmra.mxu0 %v3736
    %v3813 = vpop.f32.mrf.mxu0
    %v3814 = vadd.f32 0.0, %v3813
    %v3815 = vpop.f32.mrf.mxu0
    %3816 = vmatprep.mubr.f32.mxu0 0.0
    %3817 = vmatmul.mubr.f32.gmra.mxu0 %v3738
    %v3818 = vpop.f32.mrf.mxu0
    %v3819 = vadd.f32 0.0, %v3818
    %v3820 = vpop.f32.mrf.mxu0
    %3821 = vmatprep.mubr.f32.mxu0 0.0
    %3822 = vmatmul.mubr.f32.gmra.mxu0 %v3740
    %v3823 = vpop.f32.mrf.mxu0
    %v3824 = vadd.f32 0.0, %v3823
    %v3825 = vpop.f32.mrf.mxu0
    %3826 = vdwg.mxu0
    %v3827 = vmul.f32 %v3809, %v1600
    %v3828 = vmul.f32 %v3814, %v1605
    %v3829 = vmul.f32 %v3819, %v1610
    %v3830 = vmul.f32 %v3824, %v1615
    %v3831 = vmul.f32 %v3809, %v1624
    %v3832 = vmul.f32 %v3814, %v1629
    %v3833 = vmul.f32 %v3819, %v1634
    %v3834 = vmul.f32 %v3824, %v1639
    %3839 = vrot.lane.b32.xlu0 %v3831, 78
    %v3840 = vpop.permute.xlu0 %3839
    %3841 = vrot.lane.b32.xlu0 %v3832, 78
    %v3842 = vpop.permute.xlu0 %3841
    %3843 = vrot.lane.b32.xlu0 %v3833, 78
    %v3844 = vpop.permute.xlu0 %3843
    %3845 = vrot.lane.b32.xlu0 %v3834, 78
    %v3846 = vpop.permute.xlu0 %3845
    %v3851 = vadd.f32 %v3827, %v3840
    %v3852 = vadd.f32 %v3828, %v3842
    %v3853 = vadd.f32 %v3829, %v3844
    %v3854 = vadd.f32 %v3830, %v3846
    %v3855 = vadd.f32 %v3851, %v1124
    %v3856 = vadd.f32 %v3852, %v1125
    %v3857 = vadd.f32 %v3853, %v1126
    %v3858 = vadd.f32 %v3854, %v1127
    %3863 = vrot.lane.b32.xlu0 %v3670, 78
    %v3864 = vpop.permute.xlu0 %3863
    %3865 = vrot.lane.b32.xlu0 %v3671, 78
    %v3866 = vpop.permute.xlu0 %3865
    %3867 = vrot.lane.b32.xlu0 %v3672, 78
    %v3868 = vpop.permute.xlu0 %3867
    %3869 = vrot.lane.b32.xlu0 %v3673, 78
    %v3870 = vpop.permute.xlu0 %3869
    %v3871 = vsel %vm1139, %v3864, 0
    %v3873 = vsel %vm1139, %v3866, 0
    %v3875 = vsel %vm1139, %v3868, 0
    %v3877 = vsel %vm1139, %v3870, 0
    %3879 = vmatprep.subr.mxu0 0.0
    %3880 = vmatpush1.msra.mxu0 0.0
    %3881 = vmatprep.subr.mxu0 0.0
    %3882 = vmatpush1.msra.mxu0 0.0
    %3883 = vmatprep.subr.mxu0 0.0
    %3884 = vmatpush1.msra.mxu0 0.0
    %3885 = vmatprep.subr.mxu0 0.0
    %3886 = vmatpush1.msra.mxu0 0.0
    %3887 = vmatprep.subr.mxu0 0.0
    %3888 = vmatpush1.msra.mxu0 0.0
    %3889 = vmatprep.subr.mxu0 0.0
    %3890 = vmatpush1.msra.mxu0 0.0
    %3891 = vmatprep.subr.mxu0 0.0
    %3892 = vmatpush1.msra.mxu0 0.0
    %3893 = vmatprep.subr.mxu0 0.0
    %3894 = vmatpush1.msra.mxu0 0.0
    %3895 = vmatprep.subr.mxu0 0.0
    %3896 = vmatpush1.msra.mxu0 0.0
    %3897 = vmatprep.subr.mxu0 %v1148
    %3898 = vmatpush1.msra.mxu0 %v1145
    %3899 = vmatprep.subr.mxu0 %v1089
    %3900 = vmatpush1.msra.mxu0 %v1088
    %3901 = vmatprep.subr.mxu0 %v1087
    %3902 = vmatpush1.msra.mxu0 %v1086
    %3903 = vmatprep.subr.mxu0 %v1085
    %3904 = vmatpush1.msra.mxu0 %v1084
    %3905 = vmatprep.subr.mxu0 %v1083
    %3906 = vmatpush1.msra.mxu0 %v1082
    %3907 = vmatprep.subr.mxu0 %v1081
    %3908 = vmatpush1.msra.mxu0 %v1080
    %3909 = vmatprep.subr.mxu0 %v1079
    %3910 = vmatpush1.msra.mxu0 %v1078
    %3911 = vmatprep.subr.mxu0 0.0
    %3912 = vmatpush2.msra.mxu0 0.0
    %3913 = vmatprep.subr.mxu0 0.0
    %3914 = vmatpush2.msra.mxu0 0.0
    %3915 = vmatprep.subr.mxu0 0.0
    %3916 = vmatpush2.msra.mxu0 0.0
    %3917 = vmatprep.subr.mxu0 0.0
    %3918 = vmatpush2.msra.mxu0 0.0
    %3919 = vmatprep.subr.mxu0 0.0
    %3920 = vmatpush2.msra.mxu0 0.0
    %3921 = vmatprep.subr.mxu0 0.0
    %3922 = vmatpush2.msra.mxu0 0.0
    %3923 = vmatprep.subr.mxu0 0.0
    %3924 = vmatpush2.msra.mxu0 0.0
    %3925 = vmatprep.subr.mxu0 0.0
    %3926 = vmatpush2.msra.mxu0 0.0
    %3927 = vmatprep.subr.mxu0 0.0
    %3928 = vmatpush2.msra.mxu0 0.0
    %3929 = vmatprep.subr.mxu0 0.0
    %3930 = vmatpush2.msra.mxu0 0.0
    %3931 = vmatprep.subr.mxu0 0.0
    %3932 = vmatpush2.msra.mxu0 0.0
    %3933 = vmatprep.subr.mxu0 0.0
    %3934 = vmatpush2.msra.mxu0 0.0
    %3935 = vmatprep.subr.mxu0 0.0
    %3936 = vmatpush2.msra.mxu0 0.0
    %3937 = vmatprep.subr.mxu0 0.0
    %3938 = vmatpush2.msra.mxu0 0.0
    %3939 = vmatprep.subr.mxu0 0.0
    %3940 = vmatpush2.msra.mxu0 0.0
    %3941 = vmatprep.subr.mxu0 0.0
    %3942 = vmatpush2.msra.mxu0 0.0
    %3943 = vmatprep.mubr.f32.mxu0 0.0
    %3944 = vmatmul.mubr.f32.gmra.mxu0 %v3871
    %v3945 = vpop.f32.mrf.mxu0
    %v3946 = vadd.f32 %v1132, %v3945
    %v3947 = vpop.f32.mrf.mxu0
    %v3948 = vadd.f32 %v1136, %v3947
    %3949 = vmatprep.mubr.f32.mxu0 0.0
    %3950 = vmatmul.mubr.f32.gmra.mxu0 %v3873
    %v3951 = vpop.f32.mrf.mxu0
    %v3952 = vadd.f32 %v1132, %v3951
    %v3953 = vpop.f32.mrf.mxu0
    %v3954 = vadd.f32 %v1136, %v3953
    %3955 = vmatprep.mubr.f32.mxu0 0.0
    %3956 = vmatmul.mubr.f32.gmra.mxu0 %v3875
    %v3957 = vpop.f32.mrf.mxu0
    %v3958 = vadd.f32 %v1132, %v3957
    %v3959 = vpop.f32.mrf.mxu0
    %v3960 = vadd.f32 %v1136, %v3959
    %3961 = vmatprep.mubr.f32.mxu0 0.0
    %3962 = vmatmul.mubr.f32.gmra.mxu0 %v3877
    %v3963 = vpop.f32.mrf.mxu0
    %v3964 = vadd.f32 %v1132, %v3963
    %v3965 = vpop.f32.mrf.mxu0
    %v3966 = vadd.f32 %v1136, %v3965
    %3967 = vdwg.mxu0
    %v3968 = vadd.f32 %v1032, %v3946
    %v3969 = vadd.f32 %v1038, %v3952
    %v3970 = vadd.f32 %v1044, %v3958
    %v3971 = vadd.f32 %v1050, %v3964
    %v3972 = vxor.u32 %v3968, 2147483648
    %v3973 = vxor.u32 %v3969, 2147483648
    %v3974 = vxor.u32 %v3970, 2147483648
    %v3975 = vxor.u32 %v3971, 2147483648
    %v3976 = vmul.f32 %v3972, 1.442695
    %v3977 = vpow.pop %v3976
    %v3978 = vmul.f32 %v3973, 1.442695
    %v3979 = vpow.pop %v3978
    %v3980 = vmul.f32 %v3974, 1.442695
    %v3981 = vpow.pop %v3980
    %v3982 = vmul.f32 %v3975, 1.442695
    %v3983 = vpow.pop %v3982
    %v3984 = vadd.f32 %v3977, 1.0
    %v3985 = vadd.f32 %v3979, 1.0
    %v3986 = vadd.f32 %v3981, 1.0
    %v3987 = vadd.f32 %v3983, 1.0
    %v3988 = vrcp.pop %v3984
    %v3989 = vmul.f32 1.0, %v3988
    %v3990 = vrcp.pop %v3985
    %v3991 = vmul.f32 1.0, %v3990
    %v3992 = vrcp.pop %v3986
    %v3993 = vmul.f32 1.0, %v3992
    %v3994 = vrcp.pop %v3987
    %v3995 = vmul.f32 1.0, %v3994
    %4004 = vrot.lane.b32.xlu0 %v3946, 28
    %v4005 = vpop.permute.xlu0 %4004
    %4006 = vrot.lane.b32.xlu0 %v3948, 28
    %v4007 = vpop.permute.xlu0 %4006
    %4008 = vrot.lane.b32.xlu0 %v3952, 28
    %v4009 = vpop.permute.xlu0 %4008
    %4010 = vrot.lane.b32.xlu0 %v3954, 28
    %v4011 = vpop.permute.xlu0 %4010
    %4012 = vrot.lane.b32.xlu0 %v3958, 28
    %v4013 = vpop.permute.xlu0 %4012
    %4014 = vrot.lane.b32.xlu0 %v3960, 28
    %v4015 = vpop.permute.xlu0 %4014
    %4016 = vrot.lane.b32.xlu0 %v3964, 28
    %v4017 = vpop.permute.xlu0 %4016
    %4018 = vrot.lane.b32.xlu0 %v3966, 28
    %v4019 = vpop.permute.xlu0 %4018
    %v4020 = vsel %vm1291, %v4005, %v4007
    %v4021 = vsel %vm1291, %v4009, %v4011
    %v4022 = vsel %vm1291, %v4013, %v4015
    %v4023 = vsel %vm1291, %v4017, %v4019
    %v4028 = vmul.f32 %v3989, %v4020
    %v4029 = vmul.f32 %v3991, %v4021
    %v4030 = vmul.f32 %v3993, %v4022
    %v4031 = vmul.f32 %v3995, %v4023
    %4036 = vrot.lane.b32.xlu0 %v4028, 100
    %v4037 = vpop.permute.xlu0 %4036
    %4038 = vrot.lane.b32.xlu0 %v4029, 100
    %v4039 = vpop.permute.xlu0 %4038
    %4040 = vrot.lane.b32.xlu0 %v4030, 100
    %v4041 = vpop.permute.xlu0 %4040
    %4042 = vrot.lane.b32.xlu0 %v4031, 100
    %v4043 = vpop.permute.xlu0 %4042
    %v4048 = vadd.f32 %v1032, %v4037
    %v4049 = vadd.f32 %v1034, %v4037
    %v4050 = vadd.f32 %v1038, %v4039
    %v4051 = vadd.f32 %v1040, %v4039
    %v4052 = vadd.f32 %v1044, %v4041
    %v4053 = vadd.f32 %v1046, %v4041
    %v4054 = vadd.f32 %v1050, %v4043
    %v4055 = vadd.f32 %v1052, %v4043
    %v4056 = vtanh.pop %v4048
    %v4057 = vtanh.pop %v4049
    %v4058 = vtanh.pop %v4050
    %v4059 = vtanh.pop %v4051
    %v4060 = vtanh.pop %v4052
    %v4061 = vtanh.pop %v4053
    %v4062 = vtanh.pop %v4054
    %v4063 = vtanh.pop %v4055
    %v4064 = vsub.f32 1.0, %v3989
    %v4065 = vsub.f32 1.0, %v3991
    %v4066 = vsub.f32 1.0, %v3993
    %v4067 = vsub.f32 1.0, %v3995
    %4076 = vrot.lane.b32.xlu0 %v4056, 78
    %v4077 = vpop.permute.xlu0 %4076
    %4078 = vrot.lane.b32.xlu0 %v4057, 78
    %v4079 = vpop.permute.xlu0 %4078
    %4080 = vrot.lane.b32.xlu0 %v4058, 78
    %v4081 = vpop.permute.xlu0 %4080
    %4082 = vrot.lane.b32.xlu0 %v4059, 78
    %v4083 = vpop.permute.xlu0 %4082
    %4084 = vrot.lane.b32.xlu0 %v4060, 78
    %v4085 = vpop.permute.xlu0 %4084
    %4086 = vrot.lane.b32.xlu0 %v4061, 78
    %v4087 = vpop.permute.xlu0 %4086
    %4088 = vrot.lane.b32.xlu0 %v4062, 78
    %v4089 = vpop.permute.xlu0 %4088
    %4090 = vrot.lane.b32.xlu0 %v4063, 78
    %v4091 = vpop.permute.xlu0 %4090
    %v4092 = vsel %vm1364, %v4077, %v4079
    %v4093 = vsel %vm1364, %v4081, %v4083
    %v4094 = vsel %vm1364, %v4085, %v4087
    %v4095 = vsel %vm1364, %v4089, %v4091
    %v4100 = vmul.f32 %v4064, %v4092
    %v4101 = vmul.f32 %v4065, %v4093
    %v4102 = vmul.f32 %v4066, %v4094
    %v4103 = vmul.f32 %v4067, %v4095
    %v4104 = vmul.f32 %v3989, %v3670
    %v4105 = vmul.f32 %v3991, %v3671
    %v4106 = vmul.f32 %v3993, %v3672
    %v4107 = vmul.f32 %v3995, %v3673
    %v4108 = vadd.f32 %v4100, %v4104
    %v4109 = vadd.f32 %v4101, %v4105
    %v4110 = vadd.f32 %v4102, %v4106
    %v4111 = vadd.f32 %v4103, %v4107
    %v4112 = vmul.f32 %v4108, %v1388
    %v4113 = vmul.f32 %v4109, %v1393
    %v4114 = vmul.f32 %v4110, %v1398
    %v4115 = vmul.f32 %v4111, %v1403
    %v4116 = vadd.f32 %v4112, %v1412
    %v4117 = vadd.f32 %v4113, %v1417
    %v4118 = vadd.f32 %v4114, %v1422
    %v4119 = vadd.f32 %v4115, %v1427
    %v4120 = vmax.f32 %v4116, 0.0
    %v4121 = vmax.f32 %v4117, 0.0
    %v4122 = vmax.f32 %v4118, 0.0
    %v4123 = vmax.f32 %v4119, 0.0
    %v4124 = vmul.f32 %v4120, %v1442
    %v4125 = vmul.f32 %v4121, %v1444
    %v4126 = vmul.f32 %v4122, %v1446
    %v4127 = vmul.f32 %v4123, %v1448
    %4132 = vrot.lane.b32.xlu0 %v4124, 78
    %v4133 = vpop.permute.xlu0 %4132
    %4134 = vrot.lane.b32.xlu0 %v4125, 78
    %v4135 = vpop.permute.xlu0 %4134
    %4136 = vrot.lane.b32.xlu0 %v4126, 78
    %v4137 = vpop.permute.xlu0 %4136
    %4138 = vrot.lane.b32.xlu0 %v4127, 78
    %v4139 = vpop.permute.xlu0 %4138
    %v4144 = vsel %vm1139, %v4133, 0.0
    %4145 = vadd.xlane.f32.xlu0 %v4144
    %v4146 = vpop.xlane.xlu0 %4145
    %v4147 = vsel %vm1139, %v4135, 0.0
    %4148 = vadd.xlane.f32.xlu0 %v4147
    %v4149 = vpop.xlane.xlu0 %4148
    %v4150 = vsel %vm1139, %v4137, 0.0
    %4151 = vadd.xlane.f32.xlu0 %v4150
    %v4152 = vpop.xlane.xlu0 %4151
    %v4153 = vsel %vm1139, %v4139, 0.0
    %4154 = vadd.xlane.f32.xlu0 %v4153
    %v4155 = vpop.xlane.xlu0 %4154
    %v4156 = vadd.f32 %v4146, %v1105
    %v4157 = vadd.f32 %v4149, %v1106
    %v4158 = vadd.f32 %v4152, %v1107
    %v4159 = vadd.f32 %v4155, %v1108
    %4164 = vrot.lane.b32.xlu0 %v4120, 78
    %v4165 = vpop.permute.xlu0 %4164
    %4166 = vrot.lane.b32.xlu0 %v4121, 78
    %v4167 = vpop.permute.xlu0 %4166
    %4168 = vrot.lane.b32.xlu0 %v4122, 78
    %v4169 = vpop.permute.xlu0 %4168
    %4170 = vrot.lane.b32.xlu0 %v4123, 78
    %v4171 = vpop.permute.xlu0 %4170
    %v4172 = vsel %vm1139, %v4165, 0
    %v4174 = vsel %vm1139, %v4167, 0
    %v4176 = vsel %vm1139, %v4169, 0
    %v4178 = vsel %vm1139, %v4171, 0
    %4180 = vmatprep.subr.mxu0 0.0
    %4181 = vmatpush1.msra.mxu0 0.0
    %4182 = vmatprep.subr.mxu0 0.0
    %4183 = vmatpush1.msra.mxu0 0.0
    %4184 = vmatprep.subr.mxu0 0.0
    %4185 = vmatpush1.msra.mxu0 0.0
    %4186 = vmatprep.subr.mxu0 0.0
    %4187 = vmatpush1.msra.mxu0 0.0
    %4188 = vmatprep.subr.mxu0 0.0
    %4189 = vmatpush1.msra.mxu0 0.0
    %4190 = vmatprep.subr.mxu0 0.0
    %4191 = vmatpush1.msra.mxu0 0.0
    %4192 = vmatprep.subr.mxu0 0.0
    %4193 = vmatpush1.msra.mxu0 0.0
    %4194 = vmatprep.subr.mxu0 0.0
    %4195 = vmatpush1.msra.mxu0 0.0
    %4196 = vmatprep.subr.mxu0 0.0
    %4197 = vmatpush1.msra.mxu0 0.0
    %4198 = vmatprep.subr.mxu0 0.0
    %4199 = vmatpush1.msra.mxu0 %v1510
    %4200 = vmatprep.subr.mxu0 0.0
    %4201 = vmatpush1.msra.mxu0 %v1122
    %4202 = vmatprep.subr.mxu0 0.0
    %4203 = vmatpush1.msra.mxu0 %v1121
    %4204 = vmatprep.subr.mxu0 0.0
    %4205 = vmatpush1.msra.mxu0 %v1120
    %4206 = vmatprep.subr.mxu0 0.0
    %4207 = vmatpush1.msra.mxu0 %v1119
    %4208 = vmatprep.subr.mxu0 0.0
    %4209 = vmatpush1.msra.mxu0 %v1118
    %4210 = vmatprep.subr.mxu0 0.0
    %4211 = vmatpush1.msra.mxu0 %v1117
    %4212 = vmatprep.subr.mxu0 0.0
    %4213 = vmatpush2.msra.mxu0 0.0
    %4214 = vmatprep.subr.mxu0 0.0
    %4215 = vmatpush2.msra.mxu0 0.0
    %4216 = vmatprep.subr.mxu0 0.0
    %4217 = vmatpush2.msra.mxu0 0.0
    %4218 = vmatprep.subr.mxu0 0.0
    %4219 = vmatpush2.msra.mxu0 0.0
    %4220 = vmatprep.subr.mxu0 0.0
    %4221 = vmatpush2.msra.mxu0 0.0
    %4222 = vmatprep.subr.mxu0 0.0
    %4223 = vmatpush2.msra.mxu0 0.0
    %4224 = vmatprep.subr.mxu0 0.0
    %4225 = vmatpush2.msra.mxu0 0.0
    %4226 = vmatprep.subr.mxu0 0.0
    %4227 = vmatpush2.msra.mxu0 0.0
    %4228 = vmatprep.subr.mxu0 0.0
    %4229 = vmatpush2.msra.mxu0 0.0
    %4230 = vmatprep.subr.mxu0 0.0
    %4231 = vmatpush2.msra.mxu0 0.0
    %4232 = vmatprep.subr.mxu0 0.0
    %4233 = vmatpush2.msra.mxu0 0.0
    %4234 = vmatprep.subr.mxu0 0.0
    %4235 = vmatpush2.msra.mxu0 0.0
    %4236 = vmatprep.subr.mxu0 0.0
    %4237 = vmatpush2.msra.mxu0 0.0
    %4238 = vmatprep.subr.mxu0 0.0
    %4239 = vmatpush2.msra.mxu0 0.0
    %4240 = vmatprep.subr.mxu0 0.0
    %4241 = vmatpush2.msra.mxu0 0.0
    %4242 = vmatprep.subr.mxu0 0.0
    %4243 = vmatpush2.msra.mxu0 0.0
    %4244 = vmatprep.mubr.f32.mxu0 0.0
    %4245 = vmatmul.mubr.f32.gmra.mxu0 %v4172
    %v4246 = vpop.f32.mrf.mxu0
    %v4247 = vadd.f32 0.0, %v4246
    %v4248 = vpop.f32.mrf.mxu0
    %4249 = vmatprep.mubr.f32.mxu0 0.0
    %4250 = vmatmul.mubr.f32.gmra.mxu0 %v4174
    %v4251 = vpop.f32.mrf.mxu0
    %v4252 = vadd.f32 0.0, %v4251
    %v4253 = vpop.f32.mrf.mxu0
    %4254 = vmatprep.mubr.f32.mxu0 0.0
    %4255 = vmatmul.mubr.f32.gmra.mxu0 %v4176
    %v4256 = vpop.f32.mrf.mxu0
    %v4257 = vadd.f32 0.0, %v4256
    %v4258 = vpop.f32.mrf.mxu0
    %4259 = vmatprep.mubr.f32.mxu0 0.0
    %4260 = vmatmul.mubr.f32.gmra.mxu0 %v4178
    %v4261 = vpop.f32.mrf.mxu0
    %v4262 = vadd.f32 0.0, %v4261
    %v4263 = vpop.f32.mrf.mxu0
    %4264 = vdwg.mxu0
    %v4265 = vmul.f32 %v4247, %v1600
    %v4266 = vmul.f32 %v4252, %v1605
    %v4267 = vmul.f32 %v4257, %v1610
    %v4268 = vmul.f32 %v4262, %v1615
    %v4269 = vmul.f32 %v4247, %v1624
    %v4270 = vmul.f32 %v4252, %v1629
    %v4271 = vmul.f32 %v4257, %v1634
    %v4272 = vmul.f32 %v4262, %v1639
    %4277 = vrot.lane.b32.xlu0 %v4269, 78
    %v4278 = vpop.permute.xlu0 %4277
    %4279 = vrot.lane.b32.xlu0 %v4270, 78
    %v4280 = vpop.permute.xlu0 %4279
    %4281 = vrot.lane.b32.xlu0 %v4271, 78
    %v4282 = vpop.permute.xlu0 %4281
    %4283 = vrot.lane.b32.xlu0 %v4272, 78
    %v4284 = vpop.permute.xlu0 %4283
    %v4289 = vadd.f32 %v4265, %v4278
    %v4290 = vadd.f32 %v4266, %v4280
    %v4291 = vadd.f32 %v4267, %v4282
    %v4292 = vadd.f32 %v4268, %v4284
    %v4293 = vadd.f32 %v4289, %v1124
    %v4294 = vadd.f32 %v4290, %v1125
    %v4295 = vadd.f32 %v4291, %v1126
    %v4296 = vadd.f32 %v4292, %v1127
    %4301 = vrot.lane.b32.xlu0 %v4108, 78
    %v4302 = vpop.permute.xlu0 %4301
    %4303 = vrot.lane.b32.xlu0 %v4109, 78
    %v4304 = vpop.permute.xlu0 %4303
    %4305 = vrot.lane.b32.xlu0 %v4110, 78
    %v4306 = vpop.permute.xlu0 %4305
    %4307 = vrot.lane.b32.xlu0 %v4111, 78
    %v4308 = vpop.permute.xlu0 %4307
    %v4309 = vsel %vm1139, %v4302, 0
    %v4311 = vsel %vm1139, %v4304, 0
    %v4313 = vsel %vm1139, %v4306, 0
    %v4315 = vsel %vm1139, %v4308, 0
    %4317 = vmatprep.subr.mxu0 0.0
    %4318 = vmatpush1.msra.mxu0 0.0
    %4319 = vmatprep.subr.mxu0 0.0
    %4320 = vmatpush1.msra.mxu0 0.0
    %4321 = vmatprep.subr.mxu0 0.0
    %4322 = vmatpush1.msra.mxu0 0.0
    %4323 = vmatprep.subr.mxu0 0.0
    %4324 = vmatpush1.msra.mxu0 0.0
    %4325 = vmatprep.subr.mxu0 0.0
    %4326 = vmatpush1.msra.mxu0 0.0
    %4327 = vmatprep.subr.mxu0 0.0
    %4328 = vmatpush1.msra.mxu0 0.0
    %4329 = vmatprep.subr.mxu0 0.0
    %4330 = vmatpush1.msra.mxu0 0.0
    %4331 = vmatprep.subr.mxu0 0.0
    %4332 = vmatpush1.msra.mxu0 0.0
    %4333 = vmatprep.subr.mxu0 0.0
    %4334 = vmatpush1.msra.mxu0 0.0
    %4335 = vmatprep.subr.mxu0 %v1148
    %4336 = vmatpush1.msra.mxu0 %v1145
    %4337 = vmatprep.subr.mxu0 %v1089
    %4338 = vmatpush1.msra.mxu0 %v1088
    %4339 = vmatprep.subr.mxu0 %v1087
    %4340 = vmatpush1.msra.mxu0 %v1086
    %4341 = vmatprep.subr.mxu0 %v1085
    %4342 = vmatpush1.msra.mxu0 %v1084
    %4343 = vmatprep.subr.mxu0 %v1083
    %4344 = vmatpush1.msra.mxu0 %v1082
    %4345 = vmatprep.subr.mxu0 %v1081
    %4346 = vmatpush1.msra.mxu0 %v1080
    %4347 = vmatprep.subr.mxu0 %v1079
    %4348 = vmatpush1.msra.mxu0 %v1078
    %4349 = vmatprep.subr.mxu0 0.0
    %4350 = vmatpush2.msra.mxu0 0.0
    %4351 = vmatprep.subr.mxu0 0.0
    %4352 = vmatpush2.msra.mxu0 0.0
    %4353 = vmatprep.subr.mxu0 0.0
    %4354 = vmatpush2.msra.mxu0 0.0
    %4355 = vmatprep.subr.mxu0 0.0
    %4356 = vmatpush2.msra.mxu0 0.0
    %4357 = vmatprep.subr.mxu0 0.0
    %4358 = vmatpush2.msra.mxu0 0.0
    %4359 = vmatprep.subr.mxu0 0.0
    %4360 = vmatpush2.msra.mxu0 0.0
    %4361 = vmatprep.subr.mxu0 0.0
    %4362 = vmatpush2.msra.mxu0 0.0
    %4363 = vmatprep.subr.mxu0 0.0
    %4364 = vmatpush2.msra.mxu0 0.0
    %4365 = vmatprep.subr.mxu0 0.0
    %4366 = vmatpush2.msra.mxu0 0.0
    %4367 = vmatprep.subr.mxu0 0.0
    %4368 = vmatpush2.msra.mxu0 0.0
    %4369 = vmatprep.subr.mxu0 0.0
    %4370 = vmatpush2.msra.mxu0 0.0
    %4371 = vmatprep.subr.mxu0 0.0
    %4372 = vmatpush2.msra.mxu0 0.0
    %4373 = vmatprep.subr.mxu0 0.0
    %4374 = vmatpush2.msra.mxu0 0.0
    %4375 = vmatprep.subr.mxu0 0.0
    %4376 = vmatpush2.msra.mxu0 0.0
    %4377 = vmatprep.subr.mxu0 0.0
    %4378 = vmatpush2.msra.mxu0 0.0
    %4379 = vmatprep.subr.mxu0 0.0
    %4380 = vmatpush2.msra.mxu0 0.0
    %4381 = vmatprep.mubr.f32.mxu0 0.0
    %4382 = vmatmul.mubr.f32.gmra.mxu0 %v4309
    %v4383 = vpop.f32.mrf.mxu0
    %v4384 = vadd.f32 %v1132, %v4383
    %v4385 = vpop.f32.mrf.mxu0
    %v4386 = vadd.f32 %v1136, %v4385
    %4387 = vmatprep.mubr.f32.mxu0 0.0
    %4388 = vmatmul.mubr.f32.gmra.mxu0 %v4311
    %v4389 = vpop.f32.mrf.mxu0
    %v4390 = vadd.f32 %v1132, %v4389
    %v4391 = vpop.f32.mrf.mxu0
    %v4392 = vadd.f32 %v1136, %v4391
    %4393 = vmatprep.mubr.f32.mxu0 0.0
    %4394 = vmatmul.mubr.f32.gmra.mxu0 %v4313
    %v4395 = vpop.f32.mrf.mxu0
    %v4396 = vadd.f32 %v1132, %v4395
    %v4397 = vpop.f32.mrf.mxu0
    %v4398 = vadd.f32 %v1136, %v4397
    %4399 = vmatprep.mubr.f32.mxu0 0.0
    %4400 = vmatmul.mubr.f32.gmra.mxu0 %v4315
    %v4401 = vpop.f32.mrf.mxu0
    %v4402 = vadd.f32 %v1132, %v4401
    %v4403 = vpop.f32.mrf.mxu0
    %v4404 = vadd.f32 %v1136, %v4403
    %4405 = vdwg.mxu0
    %v4406 = vadd.f32 %v1056, %v4384
    %v4407 = vadd.f32 %v1062, %v4390
    %v4408 = vadd.f32 %v1068, %v4396
    %v4409 = vadd.f32 %v1074, %v4402
    %v4410 = vxor.u32 %v4406, 2147483648
    %v4411 = vxor.u32 %v4407, 2147483648
    %v4412 = vxor.u32 %v4408, 2147483648
    %v4413 = vxor.u32 %v4409, 2147483648
    %v4414 = vmul.f32 %v4410, 1.442695
    %v4415 = vpow.pop %v4414
    %v4416 = vmul.f32 %v4411, 1.442695
    %v4417 = vpow.pop %v4416
    %v4418 = vmul.f32 %v4412, 1.442695
    %v4419 = vpow.pop %v4418
    %v4420 = vmul.f32 %v4413, 1.442695
    %v4421 = vpow.pop %v4420
    %v4422 = vadd.f32 %v4415, 1.0
    %v4423 = vadd.f32 %v4417, 1.0
    %v4424 = vadd.f32 %v4419, 1.0
    %v4425 = vadd.f32 %v4421, 1.0
    %v4426 = vrcp.pop %v4422
    %v4427 = vmul.f32 1.0, %v4426
    %v4428 = vrcp.pop %v4423
    %v4429 = vmul.f32 1.0, %v4428
    %v4430 = vrcp.pop %v4424
    %v4431 = vmul.f32 1.0, %v4430
    %v4432 = vrcp.pop %v4425
    %v4433 = vmul.f32 1.0, %v4432
    %4442 = vrot.lane.b32.xlu0 %v4384, 28
    %v4443 = vpop.permute.xlu0 %4442
    %4444 = vrot.lane.b32.xlu0 %v4386, 28
    %v4445 = vpop.permute.xlu0 %4444
    %4446 = vrot.lane.b32.xlu0 %v4390, 28
    %v4447 = vpop.permute.xlu0 %4446
    %4448 = vrot.lane.b32.xlu0 %v4392, 28
    %v4449 = vpop.permute.xlu0 %4448
    %4450 = vrot.lane.b32.xlu0 %v4396, 28
    %v4451 = vpop.permute.xlu0 %4450
    %4452 = vrot.lane.b32.xlu0 %v4398, 28
    %v4453 = vpop.permute.xlu0 %4452
    %4454 = vrot.lane.b32.xlu0 %v4402, 28
    %v4455 = vpop.permute.xlu0 %4454
    %4456 = vrot.lane.b32.xlu0 %v4404, 28
    %v4457 = vpop.permute.xlu0 %4456
    %v4458 = vsel %vm1291, %v4443, %v4445
    %v4459 = vsel %vm1291, %v4447, %v4449
    %v4460 = vsel %vm1291, %v4451, %v4453
    %v4461 = vsel %vm1291, %v4455, %v4457
    %v4466 = vmul.f32 %v4427, %v4458
    %v4467 = vmul.f32 %v4429, %v4459
    %v4468 = vmul.f32 %v4431, %v4460
    %v4469 = vmul.f32 %v4433, %v4461
    %4474 = vrot.lane.b32.xlu0 %v4466, 100
    %v4475 = vpop.permute.xlu0 %4474
    %4476 = vrot.lane.b32.xlu0 %v4467, 100
    %v4477 = vpop.permute.xlu0 %4476
    %4478 = vrot.lane.b32.xlu0 %v4468, 100
    %v4479 = vpop.permute.xlu0 %4478
    %4480 = vrot.lane.b32.xlu0 %v4469, 100
    %v4481 = vpop.permute.xlu0 %4480
    %v4486 = vadd.f32 %v1056, %v4475
    %v4487 = vadd.f32 %v1058, %v4475
    %v4488 = vadd.f32 %v1062, %v4477
    %v4489 = vadd.f32 %v1064, %v4477
    %v4490 = vadd.f32 %v1068, %v4479
    %v4491 = vadd.f32 %v1070, %v4479
    %v4492 = vadd.f32 %v1074, %v4481
    %v4493 = vadd.f32 %v1076, %v4481
    %v4494 = vtanh.pop %v4486
    %v4495 = vtanh.pop %v4487
    %v4496 = vtanh.pop %v4488
    %v4497 = vtanh.pop %v4489
    %v4498 = vtanh.pop %v4490
    %v4499 = vtanh.pop %v4491
    %v4500 = vtanh.pop %v4492
    %v4501 = vtanh.pop %v4493
    %v4502 = vsub.f32 1.0, %v4427
    %v4503 = vsub.f32 1.0, %v4429
    %v4504 = vsub.f32 1.0, %v4431
    %v4505 = vsub.f32 1.0, %v4433
    %4514 = vrot.lane.b32.xlu0 %v4494, 78
    %v4515 = vpop.permute.xlu0 %4514
    %4516 = vrot.lane.b32.xlu0 %v4495, 78
    %v4517 = vpop.permute.xlu0 %4516
    %4518 = vrot.lane.b32.xlu0 %v4496, 78
    %v4519 = vpop.permute.xlu0 %4518
    %4520 = vrot.lane.b32.xlu0 %v4497, 78
    %v4521 = vpop.permute.xlu0 %4520
    %4522 = vrot.lane.b32.xlu0 %v4498, 78
    %v4523 = vpop.permute.xlu0 %4522
    %4524 = vrot.lane.b32.xlu0 %v4499, 78
    %v4525 = vpop.permute.xlu0 %4524
    %4526 = vrot.lane.b32.xlu0 %v4500, 78
    %v4527 = vpop.permute.xlu0 %4526
    %4528 = vrot.lane.b32.xlu0 %v4501, 78
    %v4529 = vpop.permute.xlu0 %4528
    %v4530 = vsel %vm1364, %v4515, %v4517
    %v4531 = vsel %vm1364, %v4519, %v4521
    %v4532 = vsel %vm1364, %v4523, %v4525
    %v4533 = vsel %vm1364, %v4527, %v4529
    %v4538 = vmul.f32 %v4502, %v4530
    %v4539 = vmul.f32 %v4503, %v4531
    %v4540 = vmul.f32 %v4504, %v4532
    %v4541 = vmul.f32 %v4505, %v4533
    %v4542 = vmul.f32 %v4427, %v4108
    %v4543 = vmul.f32 %v4429, %v4109
    %v4544 = vmul.f32 %v4431, %v4110
    %v4545 = vmul.f32 %v4433, %v4111
    %v4546 = vadd.f32 %v4538, %v4542
    %v4547 = vadd.f32 %v4539, %v4543
    %v4548 = vadd.f32 %v4540, %v4544
    %v4549 = vadd.f32 %v4541, %v4545
    %v4550 = vmul.f32 %v4546, %v1388
    %v4551 = vmul.f32 %v4547, %v1393
    %v4552 = vmul.f32 %v4548, %v1398
    %v4553 = vmul.f32 %v4549, %v1403
    %v4554 = vadd.f32 %v4550, %v1412
    %v4555 = vadd.f32 %v4551, %v1417
    %v4556 = vadd.f32 %v4552, %v1422
    %v4557 = vadd.f32 %v4553, %v1427
    %v4558 = vmax.f32 %v4554, 0.0
    %v4559 = vmax.f32 %v4555, 0.0
    %v4560 = vmax.f32 %v4556, 0.0
    %v4561 = vmax.f32 %v4557, 0.0
    %v4562 = vmul.f32 %v4558, %v1442
    %v4563 = vmul.f32 %v4559, %v1444
    %v4564 = vmul.f32 %v4560, %v1446
    %v4565 = vmul.f32 %v4561, %v1448
    %4570 = vrot.lane.b32.xlu0 %v4562, 78
    %v4571 = vpop.permute.xlu0 %4570
    %4572 = vrot.lane.b32.xlu0 %v4563, 78
    %v4573 = vpop.permute.xlu0 %4572
    %4574 = vrot.lane.b32.xlu0 %v4564, 78
    %v4575 = vpop.permute.xlu0 %4574
    %4576 = vrot.lane.b32.xlu0 %v4565, 78
    %v4577 = vpop.permute.xlu0 %4576
    %v4582 = vsel %vm1139, %v4571, 0.0
    %4583 = vadd.xlane.f32.xlu0 %v4582
    %v4584 = vpop.xlane.xlu0 %4583
    %v4585 = vsel %vm1139, %v4573, 0.0
    %4586 = vadd.xlane.f32.xlu0 %v4585
    %v4587 = vpop.xlane.xlu0 %4586
    %v4588 = vsel %vm1139, %v4575, 0.0
    %4589 = vadd.xlane.f32.xlu0 %v4588
    %v4590 = vpop.xlane.xlu0 %4589
    %v4591 = vsel %vm1139, %v4577, 0.0
    %4592 = vadd.xlane.f32.xlu0 %v4591
    %v4593 = vpop.xlane.xlu0 %4592
    %v4594 = vadd.f32 %v4584, %v1105
    %v4595 = vadd.f32 %v4587, %v1106
    %v4596 = vadd.f32 %v4590, %v1107
    %v4597 = vadd.f32 %v4593, %v1108
    %4602 = vrot.lane.b32.xlu0 %v4558, 78
    %v4603 = vpop.permute.xlu0 %4602
    %4604 = vrot.lane.b32.xlu0 %v4559, 78
    %v4605 = vpop.permute.xlu0 %4604
    %4606 = vrot.lane.b32.xlu0 %v4560, 78
    %v4607 = vpop.permute.xlu0 %4606
    %4608 = vrot.lane.b32.xlu0 %v4561, 78
    %v4609 = vpop.permute.xlu0 %4608
    %v4610 = vsel %vm1139, %v4603, 0
    %v4612 = vsel %vm1139, %v4605, 0
    %v4614 = vsel %vm1139, %v4607, 0
    %v4616 = vsel %vm1139, %v4609, 0
    %4618 = vmatprep.subr.mxu0 0.0
    %4619 = vmatpush1.msra.mxu0 0.0
    %4620 = vmatprep.subr.mxu0 0.0
    %4621 = vmatpush1.msra.mxu0 0.0
    %4622 = vmatprep.subr.mxu0 0.0
    %4623 = vmatpush1.msra.mxu0 0.0
    %4624 = vmatprep.subr.mxu0 0.0
    %4625 = vmatpush1.msra.mxu0 0.0
    %4626 = vmatprep.subr.mxu0 0.0
    %4627 = vmatpush1.msra.mxu0 0.0
    %4628 = vmatprep.subr.mxu0 0.0
    %4629 = vmatpush1.msra.mxu0 0.0
    %4630 = vmatprep.subr.mxu0 0.0
    %4631 = vmatpush1.msra.mxu0 0.0
    %4632 = vmatprep.subr.mxu0 0.0
    %4633 = vmatpush1.msra.mxu0 0.0
    %4634 = vmatprep.subr.mxu0 0.0
    %4635 = vmatpush1.msra.mxu0 0.0
    %4636 = vmatprep.subr.mxu0 0.0
    %4637 = vmatpush1.msra.mxu0 %v1510
    %4638 = vmatprep.subr.mxu0 0.0
    %4639 = vmatpush1.msra.mxu0 %v1122
    %4640 = vmatprep.subr.mxu0 0.0
    %4641 = vmatpush1.msra.mxu0 %v1121
    %4642 = vmatprep.subr.mxu0 0.0
    %4643 = vmatpush1.msra.mxu0 %v1120
    %4644 = vmatprep.subr.mxu0 0.0
    %4645 = vmatpush1.msra.mxu0 %v1119
    %4646 = vmatprep.subr.mxu0 0.0
    %4647 = vmatpush1.msra.mxu0 %v1118
    %4648 = vmatprep.subr.mxu0 0.0
    %4649 = vmatpush1.msra.mxu0 %v1117
    %4650 = vmatprep.subr.mxu0 0.0
    %4651 = vmatpush2.msra.mxu0 0.0
    %4652 = vmatprep.subr.mxu0 0.0
    %4653 = vmatpush2.msra.mxu0 0.0
    %4654 = vmatprep.subr.mxu0 0.0
    %4655 = vmatpush2.msra.mxu0 0.0
    %4656 = vmatprep.subr.mxu0 0.0
    %4657 = vmatpush2.msra.mxu0 0.0
    %4658 = vmatprep.subr.mxu0 0.0
    %4659 = vmatpush2.msra.mxu0 0.0
    %4660 = vmatprep.subr.mxu0 0.0
    %4661 = vmatpush2.msra.mxu0 0.0
    %4662 = vmatprep.subr.mxu0 0.0
    %4663 = vmatpush2.msra.mxu0 0.0
    %4664 = vmatprep.subr.mxu0 0.0
    %4665 = vmatpush2.msra.mxu0 0.0
    %4666 = vmatprep.subr.mxu0 0.0
    %4667 = vmatpush2.msra.mxu0 0.0
    %4668 = vmatprep.subr.mxu0 0.0
    %4669 = vmatpush2.msra.mxu0 0.0
    %4670 = vmatprep.subr.mxu0 0.0
    %4671 = vmatpush2.msra.mxu0 0.0
    %4672 = vmatprep.subr.mxu0 0.0
    %4673 = vmatpush2.msra.mxu0 0.0
    %4674 = vmatprep.subr.mxu0 0.0
    %4675 = vmatpush2.msra.mxu0 0.0
    %4676 = vmatprep.subr.mxu0 0.0
    %4677 = vmatpush2.msra.mxu0 0.0
    %4678 = vmatprep.subr.mxu0 0.0
    %4679 = vmatpush2.msra.mxu0 0.0
    %4680 = vmatprep.subr.mxu0 0.0
    %4681 = vmatpush2.msra.mxu0 0.0
    %4682 = vmatprep.mubr.f32.mxu0 0.0
    %4683 = vmatmul.mubr.f32.gmra.mxu0 %v4610
    %v4684 = vpop.f32.mrf.mxu0
    %v4685 = vadd.f32 0.0, %v4684
    %v4686 = vpop.f32.mrf.mxu0
    %4687 = vmatprep.mubr.f32.mxu0 0.0
    %4688 = vmatmul.mubr.f32.gmra.mxu0 %v4612
    %v4689 = vpop.f32.mrf.mxu0
    %v4690 = vadd.f32 0.0, %v4689
    %v4691 = vpop.f32.mrf.mxu0
    %4692 = vmatprep.mubr.f32.mxu0 0.0
    %4693 = vmatmul.mubr.f32.gmra.mxu0 %v4614
    %v4694 = vpop.f32.mrf.mxu0
    %v4695 = vadd.f32 0.0, %v4694
    %v4696 = vpop.f32.mrf.mxu0
    %4697 = vmatprep.mubr.f32.mxu0 0.0
    %4698 = vmatmul.mubr.f32.gmra.mxu0 %v4616
    %v4699 = vpop.f32.mrf.mxu0
    %v4700 = vadd.f32 0.0, %v4699
    %v4701 = vpop.f32.mrf.mxu0
    %4702 = vdwg.mxu0
    %v4703 = vmul.f32 %v4685, %v1600
    %v4704 = vmul.f32 %v4690, %v1605
    %v4705 = vmul.f32 %v4695, %v1610
    %v4706 = vmul.f32 %v4700, %v1615
    %v4707 = vmul.f32 %v4685, %v1624
    %v4708 = vmul.f32 %v4690, %v1629
    %v4709 = vmul.f32 %v4695, %v1634
    %v4710 = vmul.f32 %v4700, %v1639
    %4715 = vrot.lane.b32.xlu0 %v4707, 78
    %v4716 = vpop.permute.xlu0 %4715
    %4717 = vrot.lane.b32.xlu0 %v4708, 78
    %v4718 = vpop.permute.xlu0 %4717
    %4719 = vrot.lane.b32.xlu0 %v4709, 78
    %v4720 = vpop.permute.xlu0 %4719
    %4721 = vrot.lane.b32.xlu0 %v4710, 78
    %v4722 = vpop.permute.xlu0 %4721
    %v4727 = vadd.f32 %v4703, %v4716
    %v4728 = vadd.f32 %v4704, %v4718
    %v4729 = vadd.f32 %v4705, %v4720
    %v4730 = vadd.f32 %v4706, %v4722
    %v4731 = vadd.f32 %v4727, %v1124
    %v4732 = vadd.f32 %v4728, %v1125
    %v4733 = vadd.f32 %v4729, %v1126
    %v4734 = vadd.f32 %v4730, %v1127
    %4739 = vrot.lane.b32.xlu0 %v1966, 1
    %v4740 = vpop.permute.xlu0 %4739
    %4741 = vrot.lane.b32.xlu0 %v1967, 1
    %v4742 = vpop.permute.xlu0 %4741
    %4743 = vrot.lane.b32.xlu0 %v1968, 1
    %v4744 = vpop.permute.xlu0 %4743
    %4745 = vrot.lane.b32.xlu0 %v1969, 1
    %v4746 = vpop.permute.xlu0 %4745
    %4755 = vrot.lane.b32.xlu0 %v2404, 2
    %v4756 = vpop.permute.xlu0 %4755
    %4757 = vrot.lane.b32.xlu0 %v2405, 2
    %v4758 = vpop.permute.xlu0 %4757
    %4759 = vrot.lane.b32.xlu0 %v2406, 2
    %v4760 = vpop.permute.xlu0 %4759
    %4761 = vrot.lane.b32.xlu0 %v2407, 2
    %v4762 = vpop.permute.xlu0 %4761
    %4771 = vrot.lane.b32.xlu0 %v2842, 3
    %v4772 = vpop.permute.xlu0 %4771
    %4773 = vrot.lane.b32.xlu0 %v2843, 3
    %v4774 = vpop.permute.xlu0 %4773
    %4775 = vrot.lane.b32.xlu0 %v2844, 3
    %v4776 = vpop.permute.xlu0 %4775
    %4777 = vrot.lane.b32.xlu0 %v2845, 3
    %v4778 = vpop.permute.xlu0 %4777
    %4787 = vrot.lane.b32.xlu0 %v3280, 4
    %v4788 = vpop.permute.xlu0 %4787
    %4789 = vrot.lane.b32.xlu0 %v3281, 4
    %v4790 = vpop.permute.xlu0 %4789
    %4791 = vrot.lane.b32.xlu0 %v3282, 4
    %v4792 = vpop.permute.xlu0 %4791
    %4793 = vrot.lane.b32.xlu0 %v3283, 4
    %v4794 = vpop.permute.xlu0 %4793
    %4803 = vrot.lane.b32.xlu0 %v3718, 5
    %v4804 = vpop.permute.xlu0 %4803
    %4805 = vrot.lane.b32.xlu0 %v3719, 5
    %v4806 = vpop.permute.xlu0 %4805
    %4807 = vrot.lane.b32.xlu0 %v3720, 5
    %v4808 = vpop.permute.xlu0 %4807
    %4809 = vrot.lane.b32.xlu0 %v3721, 5
    %v4810 = vpop.permute.xlu0 %4809
    %4819 = vrot.lane.b32.xlu0 %v4156, 6
    %v4820 = vpop.permute.xlu0 %4819
    %4821 = vrot.lane.b32.xlu0 %v4157, 6
    %v4822 = vpop.permute.xlu0 %4821
    %4823 = vrot.lane.b32.xlu0 %v4158, 6
    %v4824 = vpop.permute.xlu0 %4823
    %4825 = vrot.lane.b32.xlu0 %v4159, 6
    %v4826 = vpop.permute.xlu0 %4825
    %4835 = vrot.lane.b32.xlu0 %v4594, 7
    %v4836 = vpop.permute.xlu0 %4835
    %4837 = vrot.lane.b32.xlu0 %v4595, 7
    %v4838 = vpop.permute.xlu0 %4837
    %4839 = vrot.lane.b32.xlu0 %v4596, 7
    %v4840 = vpop.permute.xlu0 %4839
    %4841 = vrot.lane.b32.xlu0 %v4597, 7
    %v4842 = vpop.permute.xlu0 %4841
    %vm4847 = vcmask 7168
    %v4848 = vsel %vm4847, %v1485, %v4740
    %v4849 = vsel %vm4847, %v1486, %v4742
    %v4850 = vsel %vm4847, %v1487, %v4744
    %v4851 = vsel %vm4847, %v1488, %v4746
    %vm4852 = vcmask 15360
    %v4853 = vsel %vm4852, %v4848, %v4756
    %v4854 = vsel %vm4852, %v4849, %v4758
    %v4855 = vsel %vm4852, %v4850, %v4760
    %v4856 = vsel %vm4852, %v4851, %v4762
    %vm4857 = vcmask 23552
    %v4858 = vsel %vm4857, %v4853, %v4772
    %v4859 = vsel %vm4857, %v4854, %v4774
    %v4860 = vsel %vm4857, %v4855, %v4776
    %v4861 = vsel %vm4857, %v4856, %v4778
    %vm4862 = vcmask 31744
    %v4863 = vsel %vm4862, %v4858, %v4788
    %v4864 = vsel %vm4862, %v4859, %v4790
    %v4865 = vsel %vm4862, %v4860, %v4792
    %v4866 = vsel %vm4862, %v4861, %v4794
    %vm4867 = vcmask 39936
    %v4868 = vsel %vm4867, %v4863, %v4804
    %v4869 = vsel %vm4867, %v4864, %v4806
    %v4870 = vsel %vm4867, %v4865, %v4808
    %v4871 = vsel %vm4867, %v4866, %v4810
    %vm4872 = vcmask 48128
    %v4873 = vsel %vm4872, %v4868, %v4820
    %v4874 = vsel %vm4872, %v4869, %v4822
    %v4875 = vsel %vm4872, %v4870, %v4824
    %v4876 = vsel %vm4872, %v4871, %v4826
    %vm4877 = vcmask 56320
    %v4878 = vsel %vm4877, %v4873, %v4836
    %v4879 = vsel %vm4877, %v4874, %v4838
    %v4880 = vsel %vm4877, %v4875, %v4840
    %v4881 = vsel %vm4877, %v4876, %v4842
    %vm4882 = vcmask 64512
    %v4883 = vsel %vm4882, %v4878, -inf
    %4884 = vmax.xlane.f32.xlu0 %v4883
    %v4885 = vpop.xlane.xlu0 %4884
    %v4886 = vsel %vm4882, %v4879, -inf
    %4887 = vmax.xlane.f32.xlu0 %v4886
    %v4888 = vpop.xlane.xlu0 %4887
    %v4889 = vsel %vm4882, %v4880, -inf
    %4890 = vmax.xlane.f32.xlu0 %v4889
    %v4891 = vpop.xlane.xlu0 %4890
    %v4892 = vsel %vm4882, %v4881, -inf
    %4893 = vmax.xlane.f32.xlu0 %v4892
    %v4894 = vpop.xlane.xlu0 %4893
    %v4895 = vsub.f32 %v4878, %v4885
    %v4896 = vsub.f32 %v4879, %v4888
    %v4897 = vsub.f32 %v4880, %v4891
    %v4898 = vsub.f32 %v4881, %v4894
    %v4899 = vmul.f32 %v4895, 1.442695
    %v4900 = vpow.pop %v4899
    %v4901 = vmul.f32 %v4896, 1.442695
    %v4902 = vpow.pop %v4901
    %v4903 = vmul.f32 %v4897, 1.442695
    %v4904 = vpow.pop %v4903
    %v4905 = vmul.f32 %v4898, 1.442695
    %v4906 = vpow.pop %v4905
    %v4907 = vsel %vm4882, %v4900, 0.0
    %4908 = vadd.xlane.f32.xlu0 %v4907
    %v4909 = vpop.xlane.xlu0 %4908
    %v4910 = vsel %vm4882, %v4902, 0.0
    %4911 = vadd.xlane.f32.xlu0 %v4910
    %v4912 = vpop.xlane.xlu0 %4911
    %v4913 = vsel %vm4882, %v4904, 0.0
    %4914 = vadd.xlane.f32.xlu0 %v4913
    %v4915 = vpop.xlane.xlu0 %4914
    %v4916 = vsel %vm4882, %v4906, 0.0
    %4917 = vadd.xlane.f32.xlu0 %v4916
    %v4918 = vpop.xlane.xlu0 %4917
    %v4919 = vrcp.pop %v4909
    %v4920 = vmul.f32 %v4900, %v4919
    %v4921 = vrcp.pop %v4912
    %v4922 = vmul.f32 %v4902, %v4921
    %v4923 = vrcp.pop %v4915
    %v4924 = vmul.f32 %v4904, %v4923
    %v4925 = vrcp.pop %v4918
    %v4926 = vmul.f32 %v4906, %v4925
    %4928 = vset.pattern.permute.xlu0 0
    %4929 = vperm.xlu0 %4928, %v4920
    %v4930 = vpop.permute.xlu0 %4929
    %4933 = vset.pattern.permute.xlu0 0
    %4934 = vperm.xlu0 %4933, %v4922
    %v4935 = vpop.permute.xlu0 %4934
    %4938 = vset.pattern.permute.xlu0 0
    %4939 = vperm.xlu0 %4938, %v4924
    %v4940 = vpop.permute.xlu0 %4939
    %4943 = vset.pattern.permute.xlu0 0
    %4944 = vperm.xlu0 %4943, %v4926
    %v4945 = vpop.permute.xlu0 %4944
    %v4947 = vmul.f32 %v4930, %v1665
    %v4948 = vmul.f32 %v4935, %v1666
    %v4949 = vmul.f32 %v4940, %v1667
    %v4950 = vmul.f32 %v4945, %v1668
    %v4951 = vadd.f32 %v4947, 0.0
    %v4952 = vadd.f32 %v4948, 0.0
    %v4953 = vadd.f32 %v4949, 0.0
    %v4954 = vadd.f32 %v4950, 0.0
    %4955 = vset.pattern.permute.xlu0 1
    %4956 = vperm.xlu0 %4955, %v4920
    %v4957 = vpop.permute.xlu0 %4956
    %4959 = vset.pattern.permute.xlu0 1
    %4960 = vperm.xlu0 %4959, %v4922
    %v4961 = vpop.permute.xlu0 %4960
    %4963 = vset.pattern.permute.xlu0 1
    %4964 = vperm.xlu0 %4963, %v4924
    %v4965 = vpop.permute.xlu0 %4964
    %4967 = vset.pattern.permute.xlu0 1
    %4968 = vperm.xlu0 %4967, %v4926
    %v4969 = vpop.permute.xlu0 %4968
    %v4971 = vmul.f32 %v4957, %v2103
    %v4972 = vmul.f32 %v4961, %v2104
    %v4973 = vmul.f32 %v4965, %v2105
    %v4974 = vmul.f32 %v4969, %v2106
    %v4975 = vadd.f32 %v4951, %v4971
    %v4976 = vadd.f32 %v4952, %v4972
    %v4977 = vadd.f32 %v4953, %v4973
    %v4978 = vadd.f32 %v4954, %v4974
    %4979 = vset.pattern.permute.xlu0 2
    %4980 = vperm.xlu0 %4979, %v4920
    %v4981 = vpop.permute.xlu0 %4980
    %4983 = vset.pattern.permute.xlu0 2
    %4984 = vperm.xlu0 %4983, %v4922
    %v4985 = vpop.permute.xlu0 %4984
    %4987 = vset.pattern.permute.xlu0 2
    %4988 = vperm.xlu0 %4987, %v4924
    %v4989 = vpop.permute.xlu0 %4988
    %4991 = vset.pattern.permute.xlu0 2
    %4992 = vperm.xlu0 %4991, %v4926
    %v4993 = vpop.permute.xlu0 %4992
    %v4995 = vmul.f32 %v4981, %v2541
    %v4996 = vmul.f32 %v4985, %v2542
    %v4997 = vmul.f32 %v4989, %v2543
    %v4998 = vmul.f32 %v4993, %v2544
    %v4999 = vadd.f32 %v4975, %v4995
    %v5000 = vadd.f32 %v4976, %v4996
    %v5001 = vadd.f32 %v4977, %v4997
    %v5002 = vadd.f32 %v4978, %v4998
    %5003 = vset.pattern.permute.xlu0 3
    %5004 = vperm.xlu0 %5003, %v4920
    %v5005 = vpop.permute.xlu0 %5004
    %5007 = vset.pattern.permute.xlu0 3
    %5008 = vperm.xlu0 %5007, %v4922
    %v5009 = vpop.permute.xlu0 %5008
    %5011 = vset.pattern.permute.xlu0 3
    %5012 = vperm.xlu0 %5011, %v4924
    %v5013 = vpop.permute.xlu0 %5012
    %5015 = vset.pattern.permute.xlu0 3
    %5016 = vperm.xlu0 %5015, %v4926
    %v5017 = vpop.permute.xlu0 %5016
    %v5019 = vmul.f32 %v5005, %v2979
    %v5020 = vmul.f32 %v5009, %v2980
    %v5021 = vmul.f32 %v5013, %v2981
    %v5022 = vmul.f32 %v5017, %v2982
    %v5023 = vadd.f32 %v4999, %v5019
    %v5024 = vadd.f32 %v5000, %v5020
    %v5025 = vadd.f32 %v5001, %v5021
    %v5026 = vadd.f32 %v5002, %v5022
    %5027 = vset.pattern.permute.xlu0 4
    %5028 = vperm.xlu0 %5027, %v4920
    %v5029 = vpop.permute.xlu0 %5028
    %5031 = vset.pattern.permute.xlu0 4
    %5032 = vperm.xlu0 %5031, %v4922
    %v5033 = vpop.permute.xlu0 %5032
    %5035 = vset.pattern.permute.xlu0 4
    %5036 = vperm.xlu0 %5035, %v4924
    %v5037 = vpop.permute.xlu0 %5036
    %5039 = vset.pattern.permute.xlu0 4
    %5040 = vperm.xlu0 %5039, %v4926
    %v5041 = vpop.permute.xlu0 %5040
    %v5043 = vmul.f32 %v5029, %v3417
    %v5044 = vmul.f32 %v5033, %v3418
    %v5045 = vmul.f32 %v5037, %v3419
    %v5046 = vmul.f32 %v5041, %v3420
    %v5047 = vadd.f32 %v5023, %v5043
    %v5048 = vadd.f32 %v5024, %v5044
    %v5049 = vadd.f32 %v5025, %v5045
    %v5050 = vadd.f32 %v5026, %v5046
    %5051 = vset.pattern.permute.xlu0 5
    %5052 = vperm.xlu0 %5051, %v4920
    %v5053 = vpop.permute.xlu0 %5052
    %5055 = vset.pattern.permute.xlu0 5
    %5056 = vperm.xlu0 %5055, %v4922
    %v5057 = vpop.permute.xlu0 %5056
    %5059 = vset.pattern.permute.xlu0 5
    %5060 = vperm.xlu0 %5059, %v4924
    %v5061 = vpop.permute.xlu0 %5060
    %5063 = vset.pattern.permute.xlu0 5
    %5064 = vperm.xlu0 %5063, %v4926
    %v5065 = vpop.permute.xlu0 %5064
    %v5067 = vmul.f32 %v5053, %v3855
    %v5068 = vmul.f32 %v5057, %v3856
    %v5069 = vmul.f32 %v5061, %v3857
    %v5070 = vmul.f32 %v5065, %v3858
    %v5071 = vadd.f32 %v5047, %v5067
    %v5072 = vadd.f32 %v5048, %v5068
    %v5073 = vadd.f32 %v5049, %v5069
    %v5074 = vadd.f32 %v5050, %v5070
    %5075 = vset.pattern.permute.xlu0 6
    %5076 = vperm.xlu0 %5075, %v4920
    %v5077 = vpop.permute.xlu0 %5076
    %5079 = vset.pattern.permute.xlu0 6
    %5080 = vperm.xlu0 %5079, %v4922
    %v5081 = vpop.permute.xlu0 %5080
    %5083 = vset.pattern.permute.xlu0 6
    %5084 = vperm.xlu0 %5083, %v4924
    %v5085 = vpop.permute.xlu0 %5084
    %5087 = vset.pattern.permute.xlu0 6
    %5088 = vperm.xlu0 %5087, %v4926
    %v5089 = vpop.permute.xlu0 %5088
    %v5091 = vmul.f32 %v5077, %v4293
    %v5092 = vmul.f32 %v5081, %v4294
    %v5093 = vmul.f32 %v5085, %v4295
    %v5094 = vmul.f32 %v5089, %v4296
    %v5095 = vadd.f32 %v5071, %v5091
    %v5096 = vadd.f32 %v5072, %v5092
    %v5097 = vadd.f32 %v5073, %v5093
    %v5098 = vadd.f32 %v5074, %v5094
    %5099 = vset.pattern.permute.xlu0 7
    %5100 = vperm.xlu0 %5099, %v4920
    %v5101 = vpop.permute.xlu0 %5100
    %5103 = vset.pattern.permute.xlu0 7
    %5104 = vperm.xlu0 %5103, %v4922
    %v5105 = vpop.permute.xlu0 %5104
    %5107 = vset.pattern.permute.xlu0 7
    %5108 = vperm.xlu0 %5107, %v4924
    %v5109 = vpop.permute.xlu0 %5108
    %5111 = vset.pattern.permute.xlu0 7
    %5112 = vperm.xlu0 %5111, %v4926
    %v5113 = vpop.permute.xlu0 %5112
    %v5115 = vmul.f32 %v5101, %v4731
    %v5116 = vmul.f32 %v5105, %v4732
    %v5117 = vmul.f32 %v5109, %v4733
    %v5118 = vmul.f32 %v5113, %v4734
    %v5119 = vadd.f32 %v5095, %v5115
    %v5120 = vadd.f32 %v5096, %v5116
    %v5121 = vadd.f32 %v5097, %v5117
    %v5122 = vadd.f32 %v5098, %v5118
    %v5123 = vld [vmem:[%s27] sm:$0xff]
    %v5124 = vld [vmem:[%s27 + $0x8] sm:$0xff]
    %v5125 = vld [vmem:[%s27 + $0x10] sm:$0xff]
    %v5126 = vld [vmem:[%s27 + $0x18] sm:$0xff]
    %v5127 = vld [vmem:[%s27 + $0x20] sm:$0xff]
    %v5128 = vld [vmem:[%s27 + $0x28] sm:$0xff]
    %v5129 = vld [vmem:[%s27 + $0x30] sm:$0x3]
    %v5131 = vsel %vm1139, %v5119, 0
    %v5134 = vsel %vm1139, %v5120, 0
    %v5137 = vsel %vm1139, %v5121, 0
    %v5140 = vsel %vm1139, %v5122, 0
    %v5143 = vsel %vm1143, %v5129, 0
    %5145 = vmatprep.subr.mxu0 0.0
    %5146 = vmatpush1.msra.mxu0 0.0
    %5147 = vmatprep.subr.mxu0 0.0
    %5148 = vmatpush1.msra.mxu0 0.0
    %5149 = vmatprep.subr.mxu0 0.0
    %5150 = vmatpush1.msra.mxu0 0.0
    %5151 = vmatprep.subr.mxu0 0.0
    %5152 = vmatpush1.msra.mxu0 0.0
    %5153 = vmatprep.subr.mxu0 0.0
    %5154 = vmatpush1.msra.mxu0 0.0
    %5155 = vmatprep.subr.mxu0 0.0
    %5156 = vmatpush1.msra.mxu0 0.0
    %5157 = vmatprep.subr.mxu0 0.0
    %5158 = vmatpush1.msra.mxu0 0.0
    %5159 = vmatprep.subr.mxu0 0.0
    %5160 = vmatpush1.msra.mxu0 0.0
    %5161 = vmatprep.subr.mxu0 0.0
    %5162 = vmatpush1.msra.mxu0 0.0
    %5163 = vmatprep.subr.mxu0 0.0
    %5164 = vmatpush1.msra.mxu0 %v5143
    %5165 = vmatprep.subr.mxu0 0.0
    %5166 = vmatpush1.msra.mxu0 %v5128
    %5167 = vmatprep.subr.mxu0 0.0
    %5168 = vmatpush1.msra.mxu0 %v5127
    %5169 = vmatprep.subr.mxu0 0.0
    %5170 = vmatpush1.msra.mxu0 %v5126
    %5171 = vmatprep.subr.mxu0 0.0
    %5172 = vmatpush1.msra.mxu0 %v5125
    %5173 = vmatprep.subr.mxu0 0.0
    %5174 = vmatpush1.msra.mxu0 %v5124
    %5175 = vmatprep.subr.mxu0 0.0
    %5176 = vmatpush1.msra.mxu0 %v5123
    %5177 = vmatprep.subr.mxu0 0.0
    %5178 = vmatpush2.msra.mxu0 0.0
    %5179 = vmatprep.subr.mxu0 0.0
    %5180 = vmatpush2.msra.mxu0 0.0
    %5181 = vmatprep.subr.mxu0 0.0
    %5182 = vmatpush2.msra.mxu0 0.0
    %5183 = vmatprep.subr.mxu0 0.0
    %5184 = vmatpush2.msra.mxu0 0.0
    %5185 = vmatprep.subr.mxu0 0.0
    %5186 = vmatpush2.msra.mxu0 0.0
    %5187 = vmatprep.subr.mxu0 0.0
    %5188 = vmatpush2.msra.mxu0 0.0
    %5189 = vmatprep.subr.mxu0 0.0
    %5190 = vmatpush2.msra.mxu0 0.0
    %5191 = vmatprep.subr.mxu0 0.0
    %5192 = vmatpush2.msra.mxu0 0.0
    %5193 = vmatprep.subr.mxu0 0.0
    %5194 = vmatpush2.msra.mxu0 0.0
    %5195 = vmatprep.subr.mxu0 0.0
    %5196 = vmatpush2.msra.mxu0 0.0
    %5197 = vmatprep.subr.mxu0 0.0
    %5198 = vmatpush2.msra.mxu0 0.0
    %5199 = vmatprep.subr.mxu0 0.0
    %5200 = vmatpush2.msra.mxu0 0.0
    %5201 = vmatprep.subr.mxu0 0.0
    %5202 = vmatpush2.msra.mxu0 0.0
    %5203 = vmatprep.subr.mxu0 0.0
    %5204 = vmatpush2.msra.mxu0 0.0
    %5205 = vmatprep.subr.mxu0 0.0
    %5206 = vmatpush2.msra.mxu0 0.0
    %5207 = vmatprep.subr.mxu0 0.0
    %5208 = vmatpush2.msra.mxu0 0.0
    %5209 = vmatprep.mubr.f32.mxu0 0.0
    %5210 = vmatmul.mubr.f32.gmra.mxu0 %v5131
    %v5211 = vpop.f32.mrf.mxu0
    %v5212 = vadd.f32 0.0, %v5211
    %v5213 = vpop.f32.mrf.mxu0
    %5214 = vmatprep.mubr.f32.mxu0 0.0
    %5215 = vmatmul.mubr.f32.gmra.mxu0 %v5134
    %v5216 = vpop.f32.mrf.mxu0
    %v5217 = vadd.f32 0.0, %v5216
    %v5218 = vpop.f32.mrf.mxu0
    %5219 = vmatprep.mubr.f32.mxu0 0.0
    %5220 = vmatmul.mubr.f32.gmra.mxu0 %v5137
    %v5221 = vpop.f32.mrf.mxu0
    %v5222 = vadd.f32 0.0, %v5221
    %v5223 = vpop.f32.mrf.mxu0
    %5224 = vmatprep.mubr.f32.mxu0 0.0
    %5225 = vmatmul.mubr.f32.gmra.mxu0 %v5140
    %v5226 = vpop.f32.mrf.mxu0
    %v5227 = vadd.f32 0.0, %v5226
    %v5228 = vpop.f32.mrf.mxu0
    %5229 = vdwg.mxu0
    %v5230 = vmul.f32 %v5212, %v1600
    %v5231 = vmul.f32 %v5217, %v1605
    %v5232 = vmul.f32 %v5222, %v1610
    %v5233 = vmul.f32 %v5227, %v1615
    %v5234 = vmul.f32 %v5212, %v1624
    %v5235 = vmul.f32 %v5217, %v1629
    %v5236 = vmul.f32 %v5222, %v1634
    %v5237 = vmul.f32 %v5227, %v1639
    %5242 = vrot.lane.b32.xlu0 %v5234, 78
    %v5243 = vpop.permute.xlu0 %5242
    %5244 = vrot.lane.b32.xlu0 %v5235, 78
    %v5245 = vpop.permute.xlu0 %5244
    %5246 = vrot.lane.b32.xlu0 %v5236, 78
    %v5247 = vpop.permute.xlu0 %5246
    %5248 = vrot.lane.b32.xlu0 %v5237, 78
    %v5249 = vpop.permute.xlu0 %5248
    %v5254 = vadd.f32 %v5230, %v5243
    %v5255 = vadd.f32 %v5231, %v5245
    %v5256 = vadd.f32 %v5232, %v5247
    %v5257 = vadd.f32 %v5233, %v5249
    %v5258 = vld [vmem:[%s29] sm:$0xff]
    %v5259 = vld [vmem:[%s29 + $0x8] sm:$0xff]
    %v5260 = vld [vmem:[%s29 + $0x10] sm:$0xff]
    %v5261 = vld [vmem:[%s29 + $0x18] sm:$0xff]
    %v5262 = vadd.f32 %v5254, %v5258
    %v5263 = vadd.f32 %v5255, %v5259
    %v5264 = vadd.f32 %v5256, %v5260
    %v5265 = vadd.f32 %v5257, %v5261
    %v5266 = vld [vmem:[%s31] sm:$0xff]
    %v5267 = vld [vmem:[%s31 + $0x8] sm:$0xff]
    %v5268 = vld [vmem:[%s31 + $0x10] sm:$0xff]
    %v5269 = vld [vmem:[%s31 + $0x18] sm:$0xff]
    %v5270 = vld [vmem:[%s31 + $0x20] sm:$0xff]
    %v5271 = vld [vmem:[%s31 + $0x28] sm:$0xff]
    %v5272 = vld [vmem:[%s31 + $0x30] sm:$0x3]
    %v5273 = vld [vmem:[%s35] sm:$0xff]
    %v5274 = vld [vmem:[%s35 + $0x8] sm:$0xff]
    %v5275 = vld [vmem:[%s35 + $0x10] sm:$0xff]
    %v5276 = vld [vmem:[%s35 + $0x18] sm:$0xff]
    %v5277 = vld [vmem:[%s35 + $0x20] sm:$0xff]
    %v5278 = vld [vmem:[%s35 + $0x28] sm:$0xff]
    %v5279 = vld [vmem:[%s35 + $0x30] sm:$0x3]
    %v5281 = vsel %vm1139, %v5264, 0
    %v5284 = vsel %vm1139, %v5265, 0
    %v5287 = vsel %vm1143, %v5279, 0
    %5289 = vmatprep.subr.mxu0 0.0
    %5290 = vmatpush1.msra.mxu0 0.0
    %5291 = vmatprep.subr.mxu0 0.0
    %5292 = vmatpush1.msra.mxu0 0.0
    %5293 = vmatprep.subr.mxu0 0.0
    %5294 = vmatpush1.msra.mxu0 0.0
    %5295 = vmatprep.subr.mxu0 0.0
    %5296 = vmatpush1.msra.mxu0 0.0
    %5297 = vmatprep.subr.mxu0 0.0
    %5298 = vmatpush1.msra.mxu0 0.0
    %5299 = vmatprep.subr.mxu0 0.0
    %5300 = vmatpush1.msra.mxu0 0.0
    %5301 = vmatprep.subr.mxu0 0.0
    %5302 = vmatpush1.msra.mxu0 0.0
    %5303 = vmatprep.subr.mxu0 0.0
    %5304 = vmatpush1.msra.mxu0 0.0
    %5305 = vmatprep.subr.mxu0 0.0
    %5306 = vmatpush1.msra.mxu0 0.0
    %5307 = vmatprep.subr.mxu0 0.0
    %5308 = vmatpush1.msra.mxu0 %v5287
    %5309 = vmatprep.subr.mxu0 0.0
    %5310 = vmatpush1.msra.mxu0 %v5278
    %5311 = vmatprep.subr.mxu0 0.0
    %5312 = vmatpush1.msra.mxu0 %v5277
    %5313 = vmatprep.subr.mxu0 0.0
    %5314 = vmatpush1.msra.mxu0 %v5276
    %5315 = vmatprep.subr.mxu0 0.0
    %5316 = vmatpush1.msra.mxu0 %v5275
    %5317 = vmatprep.subr.mxu0 0.0
    %5318 = vmatpush1.msra.mxu0 %v5274
    %5319 = vmatprep.subr.mxu0 0.0
    %5320 = vmatpush1.msra.mxu0 %v5273
    %5321 = vmatprep.subr.mxu0 0.0
    %5322 = vmatpush2.msra.mxu0 0.0
    %5323 = vmatprep.subr.mxu0 0.0
    %5324 = vmatpush2.msra.mxu0 0.0
    %5325 = vmatprep.subr.mxu0 0.0
    %5326 = vmatpush2.msra.mxu0 0.0
    %5327 = vmatprep.subr.mxu0 0.0
    %5328 = vmatpush2.msra.mxu0 0.0
    %5329 = vmatprep.subr.mxu0 0.0
    %5330 = vmatpush2.msra.mxu0 0.0
    %5331 = vmatprep.subr.mxu0 0.0
    %5332 = vmatpush2.msra.mxu0 0.0
    %5333 = vmatprep.subr.mxu0 0.0
    %5334 = vmatpush2.msra.mxu0 0.0
    %5335 = vmatprep.subr.mxu0 0.0
    %5336 = vmatpush2.msra.mxu0 0.0
    %5337 = vmatprep.subr.mxu0 0.0
    %5338 = vmatpush2.msra.mxu0 0.0
    %5339 = vmatprep.subr.mxu0 0.0
    %5340 = vmatpush2.msra.mxu0 0.0
    %5341 = vmatprep.subr.mxu0 0.0
    %5342 = vmatpush2.msra.mxu0 0.0
    %5343 = vmatprep.subr.mxu0 0.0
    %5344 = vmatpush2.msra.mxu0 0.0
    %5345 = vmatprep.subr.mxu0 0.0
    %5346 = vmatpush2.msra.mxu0 0.0
    %5347 = vmatprep.subr.mxu0 0.0
    %5348 = vmatpush2.msra.mxu0 0.0
    %5349 = vmatprep.subr.mxu0 0.0
    %5350 = vmatpush2.msra.mxu0 0.0
    %5351 = vmatprep.subr.mxu0 0.0
    %5352 = vmatpush2.msra.mxu0 0.0
    %5353 = vmatprep.mubr.f32.mxu0 0.0
    %5354 = vmatmul.mubr.f32.gmra.mxu0 %v5281
    %v5355 = vpop.f32.mrf.mxu0
    %v5356 = vadd.f32 0.0, %v5355
    %v5357 = vpop.f32.mrf.mxu0
    %5358 = vmatprep.mubr.f32.mxu0 0.0
    %5359 = vmatmul.mubr.f32.gmra.mxu0 %v5284
    %v5360 = vpop.f32.mrf.mxu0
    %v5361 = vadd.f32 0.0, %v5360
    %v5362 = vpop.f32.mrf.mxu0
    %5363 = vdwg.mxu0
    %v5365 = vsel %vm1139, %v5262, 0
    %v5368 = vsel %vm1139, %v5263, 0
    %v5371 = vsel %vm1143, %v5272, 0
    %5373 = vmatprep.subr.mxu0 0.0
    %5374 = vmatpush1.msra.mxu0 0.0
    %5375 = vmatprep.subr.mxu0 0.0
    %5376 = vmatpush1.msra.mxu0 0.0
    %5377 = vmatprep.subr.mxu0 0.0
    %5378 = vmatpush1.msra.mxu0 0.0
    %5379 = vmatprep.subr.mxu0 0.0
    %5380 = vmatpush1.msra.mxu0 0.0
    %5381 = vmatprep.subr.mxu0 0.0
    %5382 = vmatpush1.msra.mxu0 0.0
    %5383 = vmatprep.subr.mxu0 0.0
    %5384 = vmatpush1.msra.mxu0 0.0
    %5385 = vmatprep.subr.mxu0 0.0
    %5386 = vmatpush1.msra.mxu0 0.0
    %5387 = vmatprep.subr.mxu0 0.0
    %5388 = vmatpush1.msra.mxu0 0.0
    %5389 = vmatprep.subr.mxu0 0.0
    %5390 = vmatpush1.msra.mxu0 0.0
    %5391 = vmatprep.subr.mxu0 0.0
    %5392 = vmatpush1.msra.mxu0 %v5371
    %5393 = vmatprep.subr.mxu0 0.0
    %5394 = vmatpush1.msra.mxu0 %v5271
    %5395 = vmatprep.subr.mxu0 0.0
    %5396 = vmatpush1.msra.mxu0 %v5270
    %5397 = vmatprep.subr.mxu0 0.0
    %5398 = vmatpush1.msra.mxu0 %v5269
    %5399 = vmatprep.subr.mxu0 0.0
    %5400 = vmatpush1.msra.mxu0 %v5268
    %5401 = vmatprep.subr.mxu0 0.0
    %5402 = vmatpush1.msra.mxu0 %v5267
    %5403 = vmatprep.subr.mxu0 0.0
    %5404 = vmatpush1.msra.mxu0 %v5266
    %5405 = vmatprep.subr.mxu0 0.0
    %5406 = vmatpush2.msra.mxu0 0.0
    %5407 = vmatprep.subr.mxu0 0.0
    %5408 = vmatpush2.msra.mxu0 0.0
    %5409 = vmatprep.subr.mxu0 0.0
    %5410 = vmatpush2.msra.mxu0 0.0
    %5411 = vmatprep.subr.mxu0 0.0
    %5412 = vmatpush2.msra.mxu0 0.0
    %5413 = vmatprep.subr.mxu0 0.0
    %5414 = vmatpush2.msra.mxu0 0.0
    %5415 = vmatprep.subr.mxu0 0.0
    %5416 = vmatpush2.msra.mxu0 0.0
    %5417 = vmatprep.subr.mxu0 0.0
    %5418 = vmatpush2.msra.mxu0 0.0
    %5419 = vmatprep.subr.mxu0 0.0
    %5420 = vmatpush2.msra.mxu0 0.0
    %5421 = vmatprep.subr.mxu0 0.0
    %5422 = vmatpush2.msra.mxu0 0.0
    %5423 = vmatprep.subr.mxu0 0.0
    %5424 = vmatpush2.msra.mxu0 0.0
    %5425 = vmatprep.subr.mxu0 0.0
    %5426 = vmatpush2.msra.mxu0 0.0
    %5427 = vmatprep.subr.mxu0 0.0
    %5428 = vmatpush2.msra.mxu0 0.0
    %5429 = vmatprep.subr.mxu0 0.0
    %5430 = vmatpush2.msra.mxu0 0.0
    %5431 = vmatprep.subr.mxu0 0.0
    %5432 = vmatpush2.msra.mxu0 0.0
    %5433 = vmatprep.subr.mxu0 0.0
    %5434 = vmatpush2.msra.mxu0 0.0
    %5435 = vmatprep.subr.mxu0 0.0
    %5436 = vmatpush2.msra.mxu0 0.0
    %5437 = vmatprep.mubr.f32.mxu0 0.0
    %5438 = vmatmul.mubr.f32.gmra.mxu0 %v5365
    %v5439 = vpop.f32.mrf.mxu0
    %v5440 = vadd.f32 %v5356, %v5439
    %v5441 = vpop.f32.mrf.mxu0
    %5442 = vmatprep.mubr.f32.mxu0 0.0
    %5443 = vmatmul.mubr.f32.gmra.mxu0 %v5368
    %v5444 = vpop.f32.mrf.mxu0
    %v5445 = vadd.f32 %v5361, %v5444
    %v5446 = vpop.f32.mrf.mxu0
    %5447 = vdwg.mxu0
    %v5448 = vld [vmem:[%s37] sm:$0x1]
    %v5450 = vlaneseq
    %v5451 = vshrl.u32 %v5450, 7
    %v5452 = vsub.s32 0, %v5451
    %v5453 = vrot.slane %v5448, %v5452
    %v5455 = vadd.f32 %v5440, %v5453
    %v5456 = vadd.f32 %v5445, %v5453
    %v5457 = vld [vmem:[%s33] sm:$0xff]
    %v5458 = vld [vmem:[%s33 + $0x8] sm:$0xff]
    %5459 = vmatprep.subr.mxu0 0.0
    %5460 = vmatpush1.msra.mxu0 0.0
    %5461 = vmatprep.subr.mxu0 0.0
    %5462 = vmatpush1.msra.mxu0 0.0
    %5463 = vmatprep.subr.mxu0 0.0
    %5464 = vmatpush1.msra.mxu0 0.0
    %5465 = vmatprep.subr.mxu0 0.0
    %5466 = vmatpush1.msra.mxu0 0.0
    %5467 = vmatprep.subr.mxu0 0.0
    %5468 = vmatpush1.msra.mxu0 0.0
    %5469 = vmatprep.subr.mxu0 0.0
    %5470 = vmatpush1.msra.mxu0 0.0
    %5471 = vmatprep.subr.mxu0 0.0
    %5472 = vmatpush1.msra.mxu0 0.0
    %5473 = vmatprep.subr.mxu0 0.0
    %5474 = vmatpush1.msra.mxu0 0.0
    %5475 = vmatprep.subr.mxu0 0.0
    %5476 = vmatpush1.msra.mxu0 0.0
    %5477 = vmatprep.subr.mxu0 0.0
    %5478 = vmatpush1.msra.mxu0 0.0
    %5479 = vmatprep.subr.mxu0 0.0
    %5480 = vmatpush1.msra.mxu0 0.0
    %5481 = vmatprep.subr.mxu0 0.0
    %5482 = vmatpush1.msra.mxu0 0.0
    %5483 = vmatprep.subr.mxu0 0.0
    %5484 = vmatpush1.msra.mxu0 0.0
    %5485 = vmatprep.subr.mxu0 0.0
    %5486 = vmatpush1.msra.mxu0 0.0
    %5487 = vmatprep.subr.mxu0 0.0
    %5488 = vmatpush1.msra.mxu0 %v5458
    %5489 = vmatprep.subr.mxu0 0.0
    %5490 = vmatpush1.msra.mxu0 %v5457
    %5491 = vmatprep.subr.mxu0 0.0
    %5492 = vmatpush2.msra.mxu0 0.0
    %5493 = vmatprep.subr.mxu0 0.0
    %5494 = vmatpush2.msra.mxu0 0.0
    %5495 = vmatprep.subr.mxu0 0.0
    %5496 = vmatpush2.msra.mxu0 0.0
    %5497 = vmatprep.subr.mxu0 0.0
    %5498 = vmatpush2.msra.mxu0 0.0
    %5499 = vmatprep.subr.mxu0 0.0
    %5500 = vmatpush2.msra.mxu0 0.0
    %5501 = vmatprep.subr.mxu0 0.0
    %5502 = vmatpush2.msra.mxu0 0.0
    %5503 = vmatprep.subr.mxu0 0.0
    %5504 = vmatpush2.msra.mxu0 0.0
    %5505 = vmatprep.subr.mxu0 0.0
    %5506 = vmatpush2.msra.mxu0 0.0
    %5507 = vmatprep.subr.mxu0 0.0
    %5508 = vmatpush2.msra.mxu0 0.0
    %5509 = vmatprep.subr.mxu0 0.0
    %5510 = vmatpush2.msra.mxu0 0.0
    %5511 = vmatprep.subr.mxu0 0.0
    %5512 = vmatpush2.msra.mxu0 0.0
    %5513 = vmatprep.subr.mxu0 0.0
    %5514 = vmatpush2.msra.mxu0 0.0
    %5515 = vmatprep.subr.mxu0 0.0
    %5516 = vmatpush2.msra.mxu0 0.0
    %5517 = vmatprep.subr.mxu0 0.0
    %5518 = vmatpush2.msra.mxu0 0.0
    %5519 = vmatprep.subr.mxu0 0.0
    %5520 = vmatpush2.msra.mxu0 0.0
    %5521 = vmatprep.subr.mxu0 0.0
    %5522 = vmatpush2.msra.mxu0 0.0
    %5523 = vmatprep.mubr.f32.mxu0 0.0
    %5524 = vmatmul.mubr.f32.gmra.mxu0 %v726
    %v5525 = vpop.f32.mrf.mxu0
    %v5526 = vadd.f32 0.0, %v5525
    %v5527 = vpop.f32.mrf.mxu0
    %5528 = vmatprep.mubr.f32.mxu0 0.0
    %5529 = vmatmul.mubr.f32.gmra.mxu0 %v729
    %v5530 = vpop.f32.mrf.mxu0
    %v5531 = vadd.f32 0.0, %v5530
    %v5532 = vpop.f32.mrf.mxu0
    %5533 = vdwg.mxu0
    %v5534 = vadd.f32 %v5455, %v5526
    %v5535 = vadd.f32 %v5456, %v5531
    %v5536 = vmax.f32 %v5534, 0.0
    %v5537 = vmax.f32 %v5535, 0.0
    %5538 = vmatprep.subr.mxu0 0.0
    %5539 = vmatpush1.msra.mxu0 0.0
    %5540 = vmatprep.subr.mxu0 0.0
    %5541 = vmatpush1.msra.mxu0 0.0
    %5542 = vmatprep.subr.mxu0 0.0
    %5543 = vmatpush1.msra.mxu0 0.0
    %5544 = vmatprep.subr.mxu0 0.0
    %5545 = vmatpush1.msra.mxu0 0.0
    %5546 = vmatprep.subr.mxu0 0.0
    %5547 = vmatpush1.msra.mxu0 0.0
    %5548 = vmatprep.subr.mxu0 0.0
    %5549 = vmatpush1.msra.mxu0 0.0
    %5550 = vmatprep.subr.mxu0 0.0
    %5551 = vmatpush1.msra.mxu0 0.0
    %5552 = vmatprep.subr.mxu0 0.0
    %5553 = vmatpush1.msra.mxu0 0.0
    %5554 = vmatprep.subr.mxu0 0.0
    %5555 = vmatpush1.msra.mxu0 0.0
    %5556 = vmatprep.subr.mxu0 0.0
    %5557 = vmatpush1.msra.mxu0 0.0
    %5558 = vmatprep.subr.mxu0 0.0
    %5559 = vmatpush1.msra.mxu0 0.0
    %5560 = vmatprep.subr.mxu0 0.0
    %5561 = vmatpush1.msra.mxu0 0.0
    %5562 = vmatprep.subr.mxu0 0.0
    %5563 = vmatpush1.msra.mxu0 0.0
    %5564 = vmatprep.subr.mxu0 0.0
    %5565 = vmatpush1.msra.mxu0 0.0
    %5566 = vmatprep.subr.mxu0 0.0
    %5567 = vmatpush1.msra.mxu0 %v5458
    %5568 = vmatprep.subr.mxu0 0.0
    %5569 = vmatpush1.msra.mxu0 %v5457
    %5570 = vmatprep.subr.mxu0 0.0
    %5571 = vmatpush2.msra.mxu0 0.0
    %5572 = vmatprep.subr.mxu0 0.0
    %5573 = vmatpush2.msra.mxu0 0.0
    %5574 = vmatprep.subr.mxu0 0.0
    %5575 = vmatpush2.msra.mxu0 0.0
    %5576 = vmatprep.subr.mxu0 0.0
    %5577 = vmatpush2.msra.mxu0 0.0
    %5578 = vmatprep.subr.mxu0 0.0
    %5579 = vmatpush2.msra.mxu0 0.0
    %5580 = vmatprep.subr.mxu0 0.0
    %5581 = vmatpush2.msra.mxu0 0.0
    %5582 = vmatprep.subr.mxu0 0.0
    %5583 = vmatpush2.msra.mxu0 0.0
    %5584 = vmatprep.subr.mxu0 0.0
    %5585 = vmatpush2.msra.mxu0 0.0
    %5586 = vmatprep.subr.mxu0 0.0
    %5587 = vmatpush2.msra.mxu0 0.0
    %5588 = vmatprep.subr.mxu0 0.0
    %5589 = vmatpush2.msra.mxu0 0.0
    %5590 = vmatprep.subr.mxu0 0.0
    %5591 = vmatpush2.msra.mxu0 0.0
    %5592 = vmatprep.subr.mxu0 0.0
    %5593 = vmatpush2.msra.mxu0 0.0
    %5594 = vmatprep.subr.mxu0 0.0
    %5595 = vmatpush2.msra.mxu0 0.0
    %5596 = vmatprep.subr.mxu0 0.0
    %5597 = vmatpush2.msra.mxu0 0.0
    %5598 = vmatprep.subr.mxu0 0.0
    %5599 = vmatpush2.msra.mxu0 0.0
    %5600 = vmatprep.subr.mxu0 0.0
    %5601 = vmatpush2.msra.mxu0 0.0
    %5602 = vmatprep.mubr.f32.mxu0 0.0
    %5603 = vmatmul.mubr.f32.gmra.mxu0 %v738
    %v5604 = vpop.f32.mrf.mxu0
    %v5605 = vadd.f32 0.0, %v5604
    %v5606 = vpop.f32.mrf.mxu0
    %5607 = vmatprep.mubr.f32.mxu0 0.0
    %5608 = vmatmul.mubr.f32.gmra.mxu0 %v741
    %v5609 = vpop.f32.mrf.mxu0
    %v5610 = vadd.f32 0.0, %v5609
    %v5611 = vpop.f32.mrf.mxu0
    %5612 = vdwg.mxu0
    %v5613 = vadd.f32 %v5455, %v5605
    %v5614 = vadd.f32 %v5456, %v5610
    %v5615 = vmax.f32 %v5613, 0.0
    %v5616 = vmax.f32 %v5614, 0.0
    %v5617 = vmax.f32 %v5536, %v5615
    %v5618 = vmax.f32 %v5537, %v5616
    %5619 = vmatprep.subr.mxu0 0.0
    %5620 = vmatpush1.msra.mxu0 0.0
    %5621 = vmatprep.subr.mxu0 0.0
    %5622 = vmatpush1.msra.mxu0 0.0
    %5623 = vmatprep.subr.mxu0 0.0
    %5624 = vmatpush1.msra.mxu0 0.0
    %5625 = vmatprep.subr.mxu0 0.0
    %5626 = vmatpush1.msra.mxu0 0.0
    %5627 = vmatprep.subr.mxu0 0.0
    %5628 = vmatpush1.msra.mxu0 0.0
    %5629 = vmatprep.subr.mxu0 0.0
    %5630 = vmatpush1.msra.mxu0 0.0
    %5631 = vmatprep.subr.mxu0 0.0
    %5632 = vmatpush1.msra.mxu0 0.0
    %5633 = vmatprep.subr.mxu0 0.0
    %5634 = vmatpush1.msra.mxu0 0.0
    %5635 = vmatprep.subr.mxu0 0.0
    %5636 = vmatpush1.msra.mxu0 0.0
    %5637 = vmatprep.subr.mxu0 0.0
    %5638 = vmatpush1.msra.mxu0 0.0
    %5639 = vmatprep.subr.mxu0 0.0
    %5640 = vmatpush1.msra.mxu0 0.0
    %5641 = vmatprep.subr.mxu0 0.0
    %5642 = vmatpush1.msra.mxu0 0.0
    %5643 = vmatprep.subr.mxu0 0.0
    %5644 = vmatpush1.msra.mxu0 0.0
    %5645 = vmatprep.subr.mxu0 0.0
    %5646 = vmatpush1.msra.mxu0 0.0
    %5647 = vmatprep.subr.mxu0 0.0
    %5648 = vmatpush1.msra.mxu0 %v5458
    %5649 = vmatprep.subr.mxu0 0.0
    %5650 = vmatpush1.msra.mxu0 %v5457
    %5651 = vmatprep.subr.mxu0 0.0
    %5652 = vmatpush2.msra.mxu0 0.0
    %5653 = vmatprep.subr.mxu0 0.0
    %5654 = vmatpush2.msra.mxu0 0.0
    %5655 = vmatprep.subr.mxu0 0.0
    %5656 = vmatpush2.msra.mxu0 0.0
    %5657 = vmatprep.subr.mxu0 0.0
    %5658 = vmatpush2.msra.mxu0 0.0
    %5659 = vmatprep.subr.mxu0 0.0
    %5660 = vmatpush2.msra.mxu0 0.0
    %5661 = vmatprep.subr.mxu0 0.0
    %5662 = vmatpush2.msra.mxu0 0.0
    %5663 = vmatprep.subr.mxu0 0.0
    %5664 = vmatpush2.msra.mxu0 0.0
    %5665 = vmatprep.subr.mxu0 0.0
    %5666 = vmatpush2.msra.mxu0 0.0
    %5667 = vmatprep.subr.mxu0 0.0
    %5668 = vmatpush2.msra.mxu0 0.0
    %5669 = vmatprep.subr.mxu0 0.0
    %5670 = vmatpush2.msra.mxu0 0.0
    %5671 = vmatprep.subr.mxu0 0.0
    %5672 = vmatpush2.msra.mxu0 0.0
    %5673 = vmatprep.subr.mxu0 0.0
    %5674 = vmatpush2.msra.mxu0 0.0
    %5675 = vmatprep.subr.mxu0 0.0
    %5676 = vmatpush2.msra.mxu0 0.0
    %5677 = vmatprep.subr.mxu0 0.0
    %5678 = vmatpush2.msra.mxu0 0.0
    %5679 = vmatprep.subr.mxu0 0.0
    %5680 = vmatpush2.msra.mxu0 0.0
    %5681 = vmatprep.subr.mxu0 0.0
    %5682 = vmatpush2.msra.mxu0 0.0
    %5683 = vmatprep.mubr.f32.mxu0 0.0
    %5684 = vmatmul.mubr.f32.gmra.mxu0 %v750
    %v5685 = vpop.f32.mrf.mxu0
    %v5686 = vadd.f32 0.0, %v5685
    %v5687 = vpop.f32.mrf.mxu0
    %5688 = vmatprep.mubr.f32.mxu0 0.0
    %5689 = vmatmul.mubr.f32.gmra.mxu0 %v753
    %v5690 = vpop.f32.mrf.mxu0
    %v5691 = vadd.f32 0.0, %v5690
    %v5692 = vpop.f32.mrf.mxu0
    %5693 = vdwg.mxu0
    %v5694 = vadd.f32 %v5455, %v5686
    %v5695 = vadd.f32 %v5456, %v5691
    %v5696 = vmax.f32 %v5694, 0.0
    %v5697 = vmax.f32 %v5695, 0.0
    %v5698 = vmax.f32 %v5617, %v5696
    %v5699 = vmax.f32 %v5618, %v5697
    %5700 = vmatprep.subr.mxu0 0.0
    %5701 = vmatpush1.msra.mxu0 0.0
    %5702 = vmatprep.subr.mxu0 0.0
    %5703 = vmatpush1.msra.mxu0 0.0
    %5704 = vmatprep.subr.mxu0 0.0
    %5705 = vmatpush1.msra.mxu0 0.0
    %5706 = vmatprep.subr.mxu0 0.0
    %5707 = vmatpush1.msra.mxu0 0.0
    %5708 = vmatprep.subr.mxu0 0.0
    %5709 = vmatpush1.msra.mxu0 0.0
    %5710 = vmatprep.subr.mxu0 0.0
    %5711 = vmatpush1.msra.mxu0 0.0
    %5712 = vmatprep.subr.mxu0 0.0
    %5713 = vmatpush1.msra.mxu0 0.0
    %5714 = vmatprep.subr.mxu0 0.0
    %5715 = vmatpush1.msra.mxu0 0.0
    %5716 = vmatprep.subr.mxu0 0.0
    %5717 = vmatpush1.msra.mxu0 0.0
    %5718 = vmatprep.subr.mxu0 0.0
    %5719 = vmatpush1.msra.mxu0 0.0
    %5720 = vmatprep.subr.mxu0 0.0
    %5721 = vmatpush1.msra.mxu0 0.0
    %5722 = vmatprep.subr.mxu0 0.0
    %5723 = vmatpush1.msra.mxu0 0.0
    %5724 = vmatprep.subr.mxu0 0.0
    %5725 = vmatpush1.msra.mxu0 0.0
    %5726 = vmatprep.subr.mxu0 0.0
    %5727 = vmatpush1.msra.mxu0 0.0
    %5728 = vmatprep.subr.mxu0 0.0
    %5729 = vmatpush1.msra.mxu0 %v5458
    %5730 = vmatprep.subr.mxu0 0.0
    %5731 = vmatpush1.msra.mxu0 %v5457
    %5732 = vmatprep.subr.mxu0 0.0
    %5733 = vmatpush2.msra.mxu0 0.0
    %5734 = vmatprep.subr.mxu0 0.0
    %5735 = vmatpush2.msra.mxu0 0.0
    %5736 = vmatprep.subr.mxu0 0.0
    %5737 = vmatpush2.msra.mxu0 0.0
    %5738 = vmatprep.subr.mxu0 0.0
    %5739 = vmatpush2.msra.mxu0 0.0
    %5740 = vmatprep.subr.mxu0 0.0
    %5741 = vmatpush2.msra.mxu0 0.0
    %5742 = vmatprep.subr.mxu0 0.0
    %5743 = vmatpush2.msra.mxu0 0.0
    %5744 = vmatprep.subr.mxu0 0.0
    %5745 = vmatpush2.msra.mxu0 0.0
    %5746 = vmatprep.subr.mxu0 0.0
    %5747 = vmatpush2.msra.mxu0 0.0
    %5748 = vmatprep.subr.mxu0 0.0
    %5749 = vmatpush2.msra.mxu0 0.0
    %5750 = vmatprep.subr.mxu0 0.0
    %5751 = vmatpush2.msra.mxu0 0.0
    %5752 = vmatprep.subr.mxu0 0.0
    %5753 = vmatpush2.msra.mxu0 0.0
    %5754 = vmatprep.subr.mxu0 0.0
    %5755 = vmatpush2.msra.mxu0 0.0
    %5756 = vmatprep.subr.mxu0 0.0
    %5757 = vmatpush2.msra.mxu0 0.0
    %5758 = vmatprep.subr.mxu0 0.0
    %5759 = vmatpush2.msra.mxu0 0.0
    %5760 = vmatprep.subr.mxu0 0.0
    %5761 = vmatpush2.msra.mxu0 0.0
    %5762 = vmatprep.subr.mxu0 0.0
    %5763 = vmatpush2.msra.mxu0 0.0
    %5764 = vmatprep.mubr.f32.mxu0 0.0
    %5765 = vmatmul.mubr.f32.gmra.mxu0 %v762
    %v5766 = vpop.f32.mrf.mxu0
    %v5767 = vadd.f32 0.0, %v5766
    %v5768 = vpop.f32.mrf.mxu0
    %5769 = vmatprep.mubr.f32.mxu0 0.0
    %5770 = vmatmul.mubr.f32.gmra.mxu0 %v765
    %v5771 = vpop.f32.mrf.mxu0
    %v5772 = vadd.f32 0.0, %v5771
    %v5773 = vpop.f32.mrf.mxu0
    %5774 = vdwg.mxu0
    %v5775 = vadd.f32 %v5455, %v5767
    %v5776 = vadd.f32 %v5456, %v5772
    %v5777 = vmax.f32 %v5775, 0.0
    %v5778 = vmax.f32 %v5776, 0.0
    %v5779 = vmax.f32 %v5698, %v5777
    %v5780 = vmax.f32 %v5699, %v5778
    %5781 = vmatprep.subr.mxu0 0.0
    %5782 = vmatpush1.msra.mxu0 0.0
    %5783 = vmatprep.subr.mxu0 0.0
    %5784 = vmatpush1.msra.mxu0 0.0
    %5785 = vmatprep.subr.mxu0 0.0
    %5786 = vmatpush1.msra.mxu0 0.0
    %5787 = vmatprep.subr.mxu0 0.0
    %5788 = vmatpush1.msra.mxu0 0.0
    %5789 = vmatprep.subr.mxu0 0.0
    %5790 = vmatpush1.msra.mxu0 0.0
    %5791 = vmatprep.subr.mxu0 0.0
    %5792 = vmatpush1.msra.mxu0 0.0
    %5793 = vmatprep.subr.mxu0 0.0
    %5794 = vmatpush1.msra.mxu0 0.0
    %5795 = vmatprep.subr.mxu0 0.0
    %5796 = vmatpush1.msra.mxu0 0.0
    %5797 = vmatprep.subr.mxu0 0.0
    %5798 = vmatpush1.msra.mxu0 0.0
    %5799 = vmatprep.subr.mxu0 0.0
    %5800 = vmatpush1.msra.mxu0 0.0
    %5801 = vmatprep.subr.mxu0 0.0
    %5802 = vmatpush1.msra.mxu0 0.0
    %5803 = vmatprep.subr.mxu0 0.0
    %5804 = vmatpush1.msra.mxu0 0.0
    %5805 = vmatprep.subr.mxu0 0.0
    %5806 = vmatpush1.msra.mxu0 0.0
    %5807 = vmatprep.subr.mxu0 0.0
    %5808 = vmatpush1.msra.mxu0 0.0
    %5809 = vmatprep.subr.mxu0 0.0
    %5810 = vmatpush1.msra.mxu0 %v5458
    %5811 = vmatprep.subr.mxu0 0.0
    %5812 = vmatpush1.msra.mxu0 %v5457
    %5813 = vmatprep.subr.mxu0 0.0
    %5814 = vmatpush2.msra.mxu0 0.0
    %5815 = vmatprep.subr.mxu0 0.0
    %5816 = vmatpush2.msra.mxu0 0.0
    %5817 = vmatprep.subr.mxu0 0.0
    %5818 = vmatpush2.msra.mxu0 0.0
    %5819 = vmatprep.subr.mxu0 0.0
    %5820 = vmatpush2.msra.mxu0 0.0
    %5821 = vmatprep.subr.mxu0 0.0
    %5822 = vmatpush2.msra.mxu0 0.0
    %5823 = vmatprep.subr.mxu0 0.0
    %5824 = vmatpush2.msra.mxu0 0.0
    %5825 = vmatprep.subr.mxu0 0.0
    %5826 = vmatpush2.msra.mxu0 0.0
    %5827 = vmatprep.subr.mxu0 0.0
    %5828 = vmatpush2.msra.mxu0 0.0
    %5829 = vmatprep.subr.mxu0 0.0
    %5830 = vmatpush2.msra.mxu0 0.0
    %5831 = vmatprep.subr.mxu0 0.0
    %5832 = vmatpush2.msra.mxu0 0.0
    %5833 = vmatprep.subr.mxu0 0.0
    %5834 = vmatpush2.msra.mxu0 0.0
    %5835 = vmatprep.subr.mxu0 0.0
    %5836 = vmatpush2.msra.mxu0 0.0
    %5837 = vmatprep.subr.mxu0 0.0
    %5838 = vmatpush2.msra.mxu0 0.0
    %5839 = vmatprep.subr.mxu0 0.0
    %5840 = vmatpush2.msra.mxu0 0.0
    %5841 = vmatprep.subr.mxu0 0.0
    %5842 = vmatpush2.msra.mxu0 0.0
    %5843 = vmatprep.subr.mxu0 0.0
    %5844 = vmatpush2.msra.mxu0 0.0
    %5845 = vmatprep.mubr.f32.mxu0 0.0
    %5846 = vmatmul.mubr.f32.gmra.mxu0 %v774
    %v5847 = vpop.f32.mrf.mxu0
    %v5848 = vadd.f32 0.0, %v5847
    %v5849 = vpop.f32.mrf.mxu0
    %5850 = vmatprep.mubr.f32.mxu0 0.0
    %5851 = vmatmul.mubr.f32.gmra.mxu0 %v777
    %v5852 = vpop.f32.mrf.mxu0
    %v5853 = vadd.f32 0.0, %v5852
    %v5854 = vpop.f32.mrf.mxu0
    %5855 = vdwg.mxu0
    %v5856 = vadd.f32 %v5455, %v5848
    %v5857 = vadd.f32 %v5456, %v5853
    %v5858 = vmax.f32 %v5856, 0.0
    %v5859 = vmax.f32 %v5857, 0.0
    %v5860 = vmax.f32 %v5779, %v5858
    %v5861 = vmax.f32 %v5780, %v5859
    %5862 = vmatprep.subr.mxu0 0.0
    %5863 = vmatpush1.msra.mxu0 0.0
    %5864 = vmatprep.subr.mxu0 0.0
    %5865 = vmatpush1.msra.mxu0 0.0
    %5866 = vmatprep.subr.mxu0 0.0
    %5867 = vmatpush1.msra.mxu0 0.0
    %5868 = vmatprep.subr.mxu0 0.0
    %5869 = vmatpush1.msra.mxu0 0.0
    %5870 = vmatprep.subr.mxu0 0.0
    %5871 = vmatpush1.msra.mxu0 0.0
    %5872 = vmatprep.subr.mxu0 0.0
    %5873 = vmatpush1.msra.mxu0 0.0
    %5874 = vmatprep.subr.mxu0 0.0
    %5875 = vmatpush1.msra.mxu0 0.0
    %5876 = vmatprep.subr.mxu0 0.0
    %5877 = vmatpush1.msra.mxu0 0.0
    %5878 = vmatprep.subr.mxu0 0.0
    %5879 = vmatpush1.msra.mxu0 0.0
    %5880 = vmatprep.subr.mxu0 0.0
    %5881 = vmatpush1.msra.mxu0 0.0
    %5882 = vmatprep.subr.mxu0 0.0
    %5883 = vmatpush1.msra.mxu0 0.0
    %5884 = vmatprep.subr.mxu0 0.0
    %5885 = vmatpush1.msra.mxu0 0.0
    %5886 = vmatprep.subr.mxu0 0.0
    %5887 = vmatpush1.msra.mxu0 0.0
    %5888 = vmatprep.subr.mxu0 0.0
    %5889 = vmatpush1.msra.mxu0 0.0
    %5890 = vmatprep.subr.mxu0 0.0
    %5891 = vmatpush1.msra.mxu0 %v5458
    %5892 = vmatprep.subr.mxu0 0.0
    %5893 = vmatpush1.msra.mxu0 %v5457
    %5894 = vmatprep.subr.mxu0 0.0
    %5895 = vmatpush2.msra.mxu0 0.0
    %5896 = vmatprep.subr.mxu0 0.0
    %5897 = vmatpush2.msra.mxu0 0.0
    %5898 = vmatprep.subr.mxu0 0.0
    %5899 = vmatpush2.msra.mxu0 0.0
    %5900 = vmatprep.subr.mxu0 0.0
    %5901 = vmatpush2.msra.mxu0 0.0
    %5902 = vmatprep.subr.mxu0 0.0
    %5903 = vmatpush2.msra.mxu0 0.0
    %5904 = vmatprep.subr.mxu0 0.0
    %5905 = vmatpush2.msra.mxu0 0.0
    %5906 = vmatprep.subr.mxu0 0.0
    %5907 = vmatpush2.msra.mxu0 0.0
    %5908 = vmatprep.subr.mxu0 0.0
    %5909 = vmatpush2.msra.mxu0 0.0
    %5910 = vmatprep.subr.mxu0 0.0
    %5911 = vmatpush2.msra.mxu0 0.0
    %5912 = vmatprep.subr.mxu0 0.0
    %5913 = vmatpush2.msra.mxu0 0.0
    %5914 = vmatprep.subr.mxu0 0.0
    %5915 = vmatpush2.msra.mxu0 0.0
    %5916 = vmatprep.subr.mxu0 0.0
    %5917 = vmatpush2.msra.mxu0 0.0
    %5918 = vmatprep.subr.mxu0 0.0
    %5919 = vmatpush2.msra.mxu0 0.0
    %5920 = vmatprep.subr.mxu0 0.0
    %5921 = vmatpush2.msra.mxu0 0.0
    %5922 = vmatprep.subr.mxu0 0.0
    %5923 = vmatpush2.msra.mxu0 0.0
    %5924 = vmatprep.subr.mxu0 0.0
    %5925 = vmatpush2.msra.mxu0 0.0
    %5926 = vmatprep.mubr.f32.mxu0 0.0
    %5927 = vmatmul.mubr.f32.gmra.mxu0 %v786
    %v5928 = vpop.f32.mrf.mxu0
    %v5929 = vadd.f32 0.0, %v5928
    %v5930 = vpop.f32.mrf.mxu0
    %5931 = vmatprep.mubr.f32.mxu0 0.0
    %5932 = vmatmul.mubr.f32.gmra.mxu0 %v789
    %v5933 = vpop.f32.mrf.mxu0
    %v5934 = vadd.f32 0.0, %v5933
    %v5935 = vpop.f32.mrf.mxu0
    %5936 = vdwg.mxu0
    %v5937 = vadd.f32 %v5455, %v5929
    %v5938 = vadd.f32 %v5456, %v5934
    %v5939 = vmax.f32 %v5937, 0.0
    %v5940 = vmax.f32 %v5938, 0.0
    %v5941 = vmax.f32 %v5860, %v5939
    %v5942 = vmax.f32 %v5861, %v5940
    %5943 = vmatprep.subr.mxu0 0.0
    %5944 = vmatpush1.msra.mxu0 0.0
    %5945 = vmatprep.subr.mxu0 0.0
    %5946 = vmatpush1.msra.mxu0 0.0
    %5947 = vmatprep.subr.mxu0 0.0
    %5948 = vmatpush1.msra.mxu0 0.0
    %5949 = vmatprep.subr.mxu0 0.0
    %5950 = vmatpush1.msra.mxu0 0.0
    %5951 = vmatprep.subr.mxu0 0.0
    %5952 = vmatpush1.msra.mxu0 0.0
    %5953 = vmatprep.subr.mxu0 0.0
    %5954 = vmatpush1.msra.mxu0 0.0
    %5955 = vmatprep.subr.mxu0 0.0
    %5956 = vmatpush1.msra.mxu0 0.0
    %5957 = vmatprep.subr.mxu0 0.0
    %5958 = vmatpush1.msra.mxu0 0.0
    %5959 = vmatprep.subr.mxu0 0.0
    %5960 = vmatpush1.msra.mxu0 0.0
    %5961 = vmatprep.subr.mxu0 0.0
    %5962 = vmatpush1.msra.mxu0 0.0
    %5963 = vmatprep.subr.mxu0 0.0
    %5964 = vmatpush1.msra.mxu0 0.0
    %5965 = vmatprep.subr.mxu0 0.0
    %5966 = vmatpush1.msra.mxu0 0.0
    %5967 = vmatprep.subr.mxu0 0.0
    %5968 = vmatpush1.msra.mxu0 0.0
    %5969 = vmatprep.subr.mxu0 0.0
    %5970 = vmatpush1.msra.mxu0 0.0
    %5971 = vmatprep.subr.mxu0 0.0
    %5972 = vmatpush1.msra.mxu0 %v5458
    %5973 = vmatprep.subr.mxu0 0.0
    %5974 = vmatpush1.msra.mxu0 %v5457
    %5975 = vmatprep.subr.mxu0 0.0
    %5976 = vmatpush2.msra.mxu0 0.0
    %5977 = vmatprep.subr.mxu0 0.0
    %5978 = vmatpush2.msra.mxu0 0.0
    %5979 = vmatprep.subr.mxu0 0.0
    %5980 = vmatpush2.msra.mxu0 0.0
    %5981 = vmatprep.subr.mxu0 0.0
    %5982 = vmatpush2.msra.mxu0 0.0
    %5983 = vmatprep.subr.mxu0 0.0
    %5984 = vmatpush2.msra.mxu0 0.0
    %5985 = vmatprep.subr.mxu0 0.0
    %5986 = vmatpush2.msra.mxu0 0.0
    %5987 = vmatprep.subr.mxu0 0.0
    %5988 = vmatpush2.msra.mxu0 0.0
    %5989 = vmatprep.subr.mxu0 0.0
    %5990 = vmatpush2.msra.mxu0 0.0
    %5991 = vmatprep.subr.mxu0 0.0
    %5992 = vmatpush2.msra.mxu0 0.0
    %5993 = vmatprep.subr.mxu0 0.0
    %5994 = vmatpush2.msra.mxu0 0.0
    %5995 = vmatprep.subr.mxu0 0.0
    %5996 = vmatpush2.msra.mxu0 0.0
    %5997 = vmatprep.subr.mxu0 0.0
    %5998 = vmatpush2.msra.mxu0 0.0
    %5999 = vmatprep.subr.mxu0 0.0
    %6000 = vmatpush2.msra.mxu0 0.0
    %6001 = vmatprep.subr.mxu0 0.0
    %6002 = vmatpush2.msra.mxu0 0.0
    %6003 = vmatprep.subr.mxu0 0.0
    %6004 = vmatpush2.msra.mxu0 0.0
    %6005 = vmatprep.subr.mxu0 0.0
    %6006 = vmatpush2.msra.mxu0 0.0
    %6007 = vmatprep.mubr.f32.mxu0 0.0
    %6008 = vmatmul.mubr.f32.gmra.mxu0 %v798
    %v6009 = vpop.f32.mrf.mxu0
    %v6010 = vadd.f32 0.0, %v6009
    %v6011 = vpop.f32.mrf.mxu0
    %6012 = vmatprep.mubr.f32.mxu0 0.0
    %6013 = vmatmul.mubr.f32.gmra.mxu0 %v801
    %v6014 = vpop.f32.mrf.mxu0
    %v6015 = vadd.f32 0.0, %v6014
    %v6016 = vpop.f32.mrf.mxu0
    %6017 = vdwg.mxu0
    %v6018 = vadd.f32 %v5455, %v6010
    %v6019 = vadd.f32 %v5456, %v6015
    %v6020 = vmax.f32 %v6018, 0.0
    %v6021 = vmax.f32 %v6019, 0.0
    %v6022 = vmax.f32 %v5941, %v6020
    %v6023 = vmax.f32 %v5942, %v6021
    %6024 = vmatprep.subr.mxu0 0.0
    %6025 = vmatpush1.msra.mxu0 0.0
    %6026 = vmatprep.subr.mxu0 0.0
    %6027 = vmatpush1.msra.mxu0 0.0
    %6028 = vmatprep.subr.mxu0 0.0
    %6029 = vmatpush1.msra.mxu0 0.0
    %6030 = vmatprep.subr.mxu0 0.0
    %6031 = vmatpush1.msra.mxu0 0.0
    %6032 = vmatprep.subr.mxu0 0.0
    %6033 = vmatpush1.msra.mxu0 0.0
    %6034 = vmatprep.subr.mxu0 0.0
    %6035 = vmatpush1.msra.mxu0 0.0
    %6036 = vmatprep.subr.mxu0 0.0
    %6037 = vmatpush1.msra.mxu0 0.0
    %6038 = vmatprep.subr.mxu0 0.0
    %6039 = vmatpush1.msra.mxu0 0.0
    %6040 = vmatprep.subr.mxu0 0.0
    %6041 = vmatpush1.msra.mxu0 0.0
    %6042 = vmatprep.subr.mxu0 0.0
    %6043 = vmatpush1.msra.mxu0 0.0
    %6044 = vmatprep.subr.mxu0 0.0
    %6045 = vmatpush1.msra.mxu0 0.0
    %6046 = vmatprep.subr.mxu0 0.0
    %6047 = vmatpush1.msra.mxu0 0.0
    %6048 = vmatprep.subr.mxu0 0.0
    %6049 = vmatpush1.msra.mxu0 0.0
    %6050 = vmatprep.subr.mxu0 0.0
    %6051 = vmatpush1.msra.mxu0 0.0
    %6052 = vmatprep.subr.mxu0 0.0
    %6053 = vmatpush1.msra.mxu0 %v5458
    %6054 = vmatprep.subr.mxu0 0.0
    %6055 = vmatpush1.msra.mxu0 %v5457
    %6056 = vmatprep.subr.mxu0 0.0
    %6057 = vmatpush2.msra.mxu0 0.0
    %6058 = vmatprep.subr.mxu0 0.0
    %6059 = vmatpush2.msra.mxu0 0.0
    %6060 = vmatprep.subr.mxu0 0.0
    %6061 = vmatpush2.msra.mxu0 0.0
    %6062 = vmatprep.subr.mxu0 0.0
    %6063 = vmatpush2.msra.mxu0 0.0
    %6064 = vmatprep.subr.mxu0 0.0
    %6065 = vmatpush2.msra.mxu0 0.0
    %6066 = vmatprep.subr.mxu0 0.0
    %6067 = vmatpush2.msra.mxu0 0.0
    %6068 = vmatprep.subr.mxu0 0.0
    %6069 = vmatpush2.msra.mxu0 0.0
    %6070 = vmatprep.subr.mxu0 0.0
    %6071 = vmatpush2.msra.mxu0 0.0
    %6072 = vmatprep.subr.mxu0 0.0
    %6073 = vmatpush2.msra.mxu0 0.0
    %6074 = vmatprep.subr.mxu0 0.0
    %6075 = vmatpush2.msra.mxu0 0.0
    %6076 = vmatprep.subr.mxu0 0.0
    %6077 = vmatpush2.msra.mxu0 0.0
    %6078 = vmatprep.subr.mxu0 0.0
    %6079 = vmatpush2.msra.mxu0 0.0
    %6080 = vmatprep.subr.mxu0 0.0
    %6081 = vmatpush2.msra.mxu0 0.0
    %6082 = vmatprep.subr.mxu0 0.0
    %6083 = vmatpush2.msra.mxu0 0.0
    %6084 = vmatprep.subr.mxu0 0.0
    %6085 = vmatpush2.msra.mxu0 0.0
    %6086 = vmatprep.subr.mxu0 0.0
    %6087 = vmatpush2.msra.mxu0 0.0
    %6088 = vmatprep.mubr.f32.mxu0 0.0
    %6089 = vmatmul.mubr.f32.gmra.mxu0 %v810
    %v6090 = vpop.f32.mrf.mxu0
    %v6091 = vadd.f32 0.0, %v6090
    %v6092 = vpop.f32.mrf.mxu0
    %6093 = vmatprep.mubr.f32.mxu0 0.0
    %6094 = vmatmul.mubr.f32.gmra.mxu0 %v813
    %v6095 = vpop.f32.mrf.mxu0
    %v6096 = vadd.f32 0.0, %v6095
    %v6097 = vpop.f32.mrf.mxu0
    %6098 = vdwg.mxu0
    %v6099 = vadd.f32 %v5455, %v6091
    %v6100 = vadd.f32 %v5456, %v6096
    %v6101 = vmax.f32 %v6099, 0.0
    %v6102 = vmax.f32 %v6100, 0.0
    %v6103 = vmax.f32 %v6022, %v6101
    %v6104 = vmax.f32 %v6023, %v6102
    %v6105 = vlaneseq
    %v6106 = vshrl.u32 %v6105, 7
    %v6107 = vadd.s32 %v6106, 8
    %v6108 = vand.u32 %v6106, 7
    %v6109 = vand.u32 %v6107, 7
    %vm6110 = vcmp.lt.s32.totalorder %v6108, 6
    %vm6111 = vcmp.lt.s32.totalorder %v6109, 6
    %v6112 = vand.u32 %v188, 7
    %vm6113 = vcmp.lt.s32.totalorder %v6112, 6
    %vm6114 = vmand %vm6110, %vm6113
    %vm6115 = vmand %vm6111, %vm6113
    %v6116 = vadd.s32 %v6106, 4294967294
    %v6117 = vadd.s32 %v6107, 4294967294
    %vm6118 = vcmp.eq.s32.totalorder %v188, %v6116
    %vm6119 = vcmp.eq.s32.totalorder %v188, %v6117
    %vm6120 = vmand %vm6118, %vm6114
    %vm6121 = vmand %vm6119, %vm6115
    %v6122 = vsel %vm6120, 1, 0
    %v6123 = vsel %vm6121, 1, 0
    %v6124 = vcvt.s32.f32 %v6122
    %v6125 = vcvt.s32.f32 %v6123
    %v6126 = vadd.s32 %v6106, 4294967295
    %v6127 = vadd.s32 %v6107, 4294967295
    %vm6128 = vcmp.eq.s32.totalorder %v188, %v6126
    %vm6129 = vcmp.eq.s32.totalorder %v188, %v6127
    %vm6130 = vmand %vm6128, %vm6114
    %vm6131 = vmand %vm6129, %vm6115
    %v6132 = vsel %vm6130, 1, 0
    %v6133 = vsel %vm6131, 1, 0
    %v6134 = vcvt.s32.f32 %v6132
    %v6135 = vcvt.s32.f32 %v6133
    %vm6136 = vcmp.eq.s32.totalorder %v188, %v6106
    %vm6137 = vcmp.eq.s32.totalorder %v188, %v6107
    %vm6138 = vmand %vm6136, %vm6114
    %vm6139 = vmand %vm6137, %vm6115
    %v6140 = vsel %vm6138, 1, 0
    %v6141 = vsel %vm6139, 1, 0
    %v6142 = vcvt.s32.f32 %v6140
    %v6143 = vcvt.s32.f32 %v6141
    %v6144 = vadd.s32 %v6106, 1
    %v6145 = vadd.s32 %v6107, 1
    %vm6146 = vcmp.eq.s32.totalorder %v188, %v6144
    %vm6147 = vcmp.eq.s32.totalorder %v188, %v6145
    %vm6148 = vmand %vm6146, %vm6114
    %vm6149 = vmand %vm6147, %vm6115
    %v6150 = vsel %vm6148, 1, 0
    %v6151 = vsel %vm6149, 1, 0
    %v6152 = vcvt.s32.f32 %v6150
    %v6153 = vcvt.s32.f32 %v6151
    %v6154 = vadd.s32 %v6106, 2
    %v6155 = vadd.s32 %v6107, 2
    %vm6156 = vcmp.eq.s32.totalorder %v188, %v6154
    %vm6157 = vcmp.eq.s32.totalorder %v188, %v6155
    %vm6158 = vmand %vm6156, %vm6114
    %vm6159 = vmand %vm6157, %vm6115
    %v6160 = vsel %vm6158, 1, 0
    %v6161 = vsel %vm6159, 1, 0
    %v6162 = vcvt.s32.f32 %v6160
    %v6163 = vcvt.s32.f32 %v6161
    %v6164 = vld [vmem:[%s41] sm:$0x1]
    %v6166 = vlaneseq
    %v6167 = vshrl.u32 %v6166, 7
    %v6168 = vsub.s32 0, %v6167
    %v6169 = vrot.slane %v6164, %v6168
    %v6171 = vld [vmem:[%s39] sm:$0xff]
    %v6172 = vld [vmem:[%s39 + $0x8] sm:$0xff]
    %v6173 = vld [vmem:[%s39 + $0x10] sm:$0xff]
    %v6174 = vld [vmem:[%s39 + $0x18] sm:$0xff]
    %v6175 = vld [vmem:[%s39 + $0x20] sm:$0xff]
    %v6176 = vld [vmem:[%s39 + $0x28] sm:$0xff]
    %v6177 = vld [vmem:[%s39 + $0x30] sm:$0xff]
    %v6178 = vld [vmem:[%s39 + $0x38] sm:$0xff]
    %v6179 = vld [vmem:[%s39 + $0x40] sm:$0xff]
    %v6180 = vld [vmem:[%s39 + $0x48] sm:$0xff]
    %v6181 = vld [vmem:[%s39 + $0x50] sm:$0xff]
    %v6182 = vld [vmem:[%s39 + $0x58] sm:$0xff]
    %v6183 = vld [vmem:[%s39 + $0x60] sm:$0xf]
    %vm6184 = vcmask 818176
    %v6186 = vsel %vm6184, %v6103, 0
    %v6189 = vsel %vm6184, %v6104, 0
    %vm6191 = vcmask 1043456
    %v6193 = vsel %vm6191, %v6183, 0
    %6195 = vmatprep.subr.mxu0 0.0
    %6196 = vmatpush1.msra.mxu0 0.0
    %6197 = vmatprep.subr.mxu0 0.0
    %6198 = vmatpush1.msra.mxu0 0.0
    %6199 = vmatprep.subr.mxu0 0.0
    %6200 = vmatpush1.msra.mxu0 0.0
    %6201 = vmatprep.subr.mxu0 0.0
    %6202 = vmatpush1.msra.mxu0 %v6193
    %6203 = vmatprep.subr.mxu0 0.0
    %6204 = vmatpush1.msra.mxu0 %v6182
    %6205 = vmatprep.subr.mxu0 0.0
    %6206 = vmatpush1.msra.mxu0 %v6181
    %6207 = vmatprep.subr.mxu0 0.0
    %6208 = vmatpush1.msra.mxu0 %v6180
    %6209 = vmatprep.subr.mxu0 0.0
    %6210 = vmatpush1.msra.mxu0 %v6179
    %6211 = vmatprep.subr.mxu0 0.0
    %6212 = vmatpush1.msra.mxu0 %v6178
    %6213 = vmatprep.subr.mxu0 0.0
    %6214 = vmatpush1.msra.mxu0 %v6177
    %6215 = vmatprep.subr.mxu0 0.0
    %6216 = vmatpush1.msra.mxu0 %v6176
    %6217 = vmatprep.subr.mxu0 0.0
    %6218 = vmatpush1.msra.mxu0 %v6175
    %6219 = vmatprep.subr.mxu0 0.0
    %6220 = vmatpush1.msra.mxu0 %v6174
    %6221 = vmatprep.subr.mxu0 0.0
    %6222 = vmatpush1.msra.mxu0 %v6173
    %6223 = vmatprep.subr.mxu0 0.0
    %6224 = vmatpush1.msra.mxu0 %v6172
    %6225 = vmatprep.subr.mxu0 0.0
    %6226 = vmatpush1.msra.mxu0 %v6171
    %6227 = vmatprep.subr.mxu0 0.0
    %6228 = vmatpush2.msra.mxu0 0.0
    %6229 = vmatprep.subr.mxu0 0.0
    %6230 = vmatpush2.msra.mxu0 0.0
    %6231 = vmatprep.subr.mxu0 0.0
    %6232 = vmatpush2.msra.mxu0 0.0
    %6233 = vmatprep.subr.mxu0 0.0
    %6234 = vmatpush2.msra.mxu0 0.0
    %6235 = vmatprep.subr.mxu0 0.0
    %6236 = vmatpush2.msra.mxu0 0.0
    %6237 = vmatprep.subr.mxu0 0.0
    %6238 = vmatpush2.msra.mxu0 0.0
    %6239 = vmatprep.subr.mxu0 0.0
    %6240 = vmatpush2.msra.mxu0 0.0
    %6241 = vmatprep.subr.mxu0 0.0
    %6242 = vmatpush2.msra.mxu0 0.0
    %6243 = vmatprep.subr.mxu0 0.0
    %6244 = vmatpush2.msra.mxu0 0.0
    %6245 = vmatprep.subr.mxu0 0.0
    %6246 = vmatpush2.msra.mxu0 0.0
    %6247 = vmatprep.subr.mxu0 0.0
    %6248 = vmatpush2.msra.mxu0 0.0
    %6249 = vmatprep.subr.mxu0 0.0
    %6250 = vmatpush2.msra.mxu0 0.0
    %6251 = vmatprep.subr.mxu0 0.0
    %6252 = vmatpush2.msra.mxu0 0.0
    %6253 = vmatprep.subr.mxu0 0.0
    %6254 = vmatpush2.msra.mxu0 0.0
    %6255 = vmatprep.subr.mxu0 0.0
    %6256 = vmatpush2.msra.mxu0 0.0
    %6257 = vmatprep.subr.mxu0 0.0
    %6258 = vmatpush2.msra.mxu0 0.0
    %6259 = vmatprep.mubr.f32.mxu0 0.0
    %6260 = vmatmul.mubr.f32.gmra.mxu0 %v6186
    %v6261 = vpop.f32.mrf.mxu0
    %v6262 = vadd.f32 0.0, %v6261
    %v6263 = vpop.f32.mrf.mxu0
    %6264 = vmatprep.mubr.f32.mxu0 0.0
    %6265 = vmatmul.mubr.f32.gmra.mxu0 %v6189
    %v6266 = vpop.f32.mrf.mxu0
    %v6267 = vadd.f32 0.0, %v6266
    %v6268 = vpop.f32.mrf.mxu0
    %6269 = vdwg.mxu0
    %v6270 = vadd.f32 %v6169, %v6262
    %v6271 = vadd.f32 %v6169, %v6267
    %v6272 = vld [vmem:[%s45] sm:$0x1]
    %v6274 = vlaneseq
    %v6275 = vshrl.u32 %v6274, 7
    %v6276 = vsub.s32 0, %v6275
    %v6277 = vrot.slane %v6272, %v6276
    %v6279 = vld [vmem:[%s43] sm:$0xff]
    %v6280 = vld [vmem:[%s43 + $0x8] sm:$0xff]
    %v6281 = vld [vmem:[%s43 + $0x10] sm:$0xff]
    %v6282 = vld [vmem:[%s43 + $0x18] sm:$0xff]
    %v6283 = vld [vmem:[%s43 + $0x20] sm:$0xff]
    %v6284 = vld [vmem:[%s43 + $0x28] sm:$0xff]
    %v6285 = vld [vmem:[%s43 + $0x30] sm:$0xff]
    %v6286 = vld [vmem:[%s43 + $0x38] sm:$0xff]
    %v6287 = vld [vmem:[%s43 + $0x40] sm:$0xff]
    %v6288 = vld [vmem:[%s43 + $0x48] sm:$0xff]
    %v6289 = vld [vmem:[%s43 + $0x50] sm:$0xff]
    %v6290 = vld [vmem:[%s43 + $0x58] sm:$0xff]
    %v6291 = vld [vmem:[%s43 + $0x60] sm:$0xf]
    %v6293 = vsel %vm6191, %v6291, 0
    %6295 = vmatprep.subr.mxu0 0.0
    %6296 = vmatpush1.msra.mxu0 0.0
    %6297 = vmatprep.subr.mxu0 0.0
    %6298 = vmatpush1.msra.mxu0 0.0
    %6299 = vmatprep.subr.mxu0 0.0
    %6300 = vmatpush1.msra.mxu0 0.0
    %6301 = vmatprep.subr.mxu0 0.0
    %6302 = vmatpush1.msra.mxu0 %v6293
    %6303 = vmatprep.subr.mxu0 0.0
    %6304 = vmatpush1.msra.mxu0 %v6290
    %6305 = vmatprep.subr.mxu0 0.0
    %6306 = vmatpush1.msra.mxu0 %v6289
    %6307 = vmatprep.subr.mxu0 0.0
    %6308 = vmatpush1.msra.mxu0 %v6288
    %6309 = vmatprep.subr.mxu0 0.0
    %6310 = vmatpush1.msra.mxu0 %v6287
    %6311 = vmatprep.subr.mxu0 0.0
    %6312 = vmatpush1.msra.mxu0 %v6286
    %6313 = vmatprep.subr.mxu0 0.0
    %6314 = vmatpush1.msra.mxu0 %v6285
    %6315 = vmatprep.subr.mxu0 0.0
    %6316 = vmatpush1.msra.mxu0 %v6284
    %6317 = vmatprep.subr.mxu0 0.0
    %6318 = vmatpush1.msra.mxu0 %v6283
    %6319 = vmatprep.subr.mxu0 0.0
    %6320 = vmatpush1.msra.mxu0 %v6282
    %6321 = vmatprep.subr.mxu0 0.0
    %6322 = vmatpush1.msra.mxu0 %v6281
    %6323 = vmatprep.subr.mxu0 0.0
    %6324 = vmatpush1.msra.mxu0 %v6280
    %6325 = vmatprep.subr.mxu0 0.0
    %6326 = vmatpush1.msra.mxu0 %v6279
    %6327 = vmatprep.subr.mxu0 0.0
    %6328 = vmatpush2.msra.mxu0 0.0
    %6329 = vmatprep.subr.mxu0 0.0
    %6330 = vmatpush2.msra.mxu0 0.0
    %6331 = vmatprep.subr.mxu0 0.0
    %6332 = vmatpush2.msra.mxu0 0.0
    %6333 = vmatprep.subr.mxu0 0.0
    %6334 = vmatpush2.msra.mxu0 0.0
    %6335 = vmatprep.subr.mxu0 0.0
    %6336 = vmatpush2.msra.mxu0 0.0
    %6337 = vmatprep.subr.mxu0 0.0
    %6338 = vmatpush2.msra.mxu0 0.0
    %6339 = vmatprep.subr.mxu0 0.0
    %6340 = vmatpush2.msra.mxu0 0.0
    %6341 = vmatprep.subr.mxu0 0.0
    %6342 = vmatpush2.msra.mxu0 0.0
    %6343 = vmatprep.subr.mxu0 0.0
    %6344 = vmatpush2.msra.mxu0 0.0
    %6345 = vmatprep.subr.mxu0 0.0
    %6346 = vmatpush2.msra.mxu0 0.0
    %6347 = vmatprep.subr.mxu0 0.0
    %6348 = vmatpush2.msra.mxu0 0.0
    %6349 = vmatprep.subr.mxu0 0.0
    %6350 = vmatpush2.msra.mxu0 0.0
    %6351 = vmatprep.subr.mxu0 0.0
    %6352 = vmatpush2.msra.mxu0 0.0
    %6353 = vmatprep.subr.mxu0 0.0
    %6354 = vmatpush2.msra.mxu0 0.0
    %6355 = vmatprep.subr.mxu0 0.0
    %6356 = vmatpush2.msra.mxu0 0.0
    %6357 = vmatprep.subr.mxu0 0.0
    %6358 = vmatpush2.msra.mxu0 0.0
    %6359 = vmatprep.mubr.f32.mxu0 0.0
    %6360 = vmatmul.mubr.f32.gmra.mxu0 %v6186
    %v6361 = vpop.f32.mrf.mxu0
    %v6362 = vadd.f32 0.0, %v6361
    %v6363 = vpop.f32.mrf.mxu0
    %6364 = vmatprep.mubr.f32.mxu0 0.0
    %6365 = vmatmul.mubr.f32.gmra.mxu0 %v6189
    %v6366 = vpop.f32.mrf.mxu0
    %v6367 = vadd.f32 0.0, %v6366
    %v6368 = vpop.f32.mrf.mxu0
    %6369 = vdwg.mxu0
    %v6370 = vadd.f32 %v6277, %v6362
    %v6371 = vadd.f32 %v6277, %v6367
    %v6372 = vmax.f32 %v6370, 0.0
    %v6373 = vmax.f32 %v6371, 0.0
    %v6374 = vld [vmem:[%s49] sm:$0x1]
    %v6376 = vlaneseq
    %v6377 = vshrl.u32 %v6376, 7
    %v6378 = vsub.s32 0, %v6377
    %v6379 = vrot.slane %v6374, %v6378
    %v6381 = vld [vmem:[%s47] sm:$0xff]
    %v6382 = vld [vmem:[%s47 + $0x8] sm:$0xff]
    %v6383 = vld [vmem:[%s47 + $0x10] sm:$0xff]
    %v6384 = vld [vmem:[%s47 + $0x18] sm:$0xff]
    %v6385 = vld [vmem:[%s47 + $0x20] sm:$0xff]
    %v6386 = vld [vmem:[%s47 + $0x28] sm:$0xff]
    %v6387 = vld [vmem:[%s47 + $0x30] sm:$0xff]
    %v6388 = vld [vmem:[%s47 + $0x38] sm:$0xff]
    %v6389 = vld [vmem:[%s47 + $0x40] sm:$0xff]
    %v6390 = vld [vmem:[%s47 + $0x48] sm:$0xff]
    %v6391 = vld [vmem:[%s47 + $0x50] sm:$0xff]
    %v6392 = vld [vmem:[%s47 + $0x58] sm:$0xff]
    %v6393 = vld [vmem:[%s47 + $0x60] sm:$0xf]
    %v6395 = vsel %vm6184, %v6372, 0
    %v6398 = vsel %vm6184, %v6373, 0
    %v6401 = vsel %vm6191, %v6393, 0
    %6403 = vmatprep.subr.mxu0 0.0
    %6404 = vmatpush1.msra.mxu0 0.0
    %6405 = vmatprep.subr.mxu0 0.0
    %6406 = vmatpush1.msra.mxu0 0.0
    %6407 = vmatprep.subr.mxu0 0.0
    %6408 = vmatpush1.msra.mxu0 0.0
    %6409 = vmatprep.subr.mxu0 0.0
    %6410 = vmatpush1.msra.mxu0 %v6401
    %6411 = vmatprep.subr.mxu0 0.0
    %6412 = vmatpush1.msra.mxu0 %v6392
    %6413 = vmatprep.subr.mxu0 0.0
    %6414 = vmatpush1.msra.mxu0 %v6391
    %6415 = vmatprep.subr.mxu0 0.0
    %6416 = vmatpush1.msra.mxu0 %v6390
    %6417 = vmatprep.subr.mxu0 0.0
    %6418 = vmatpush1.msra.mxu0 %v6389
    %6419 = vmatprep.subr.mxu0 0.0
    %6420 = vmatpush1.msra.mxu0 %v6388
    %6421 = vmatprep.subr.mxu0 0.0
    %6422 = vmatpush1.msra.mxu0 %v6387
    %6423 = vmatprep.subr.mxu0 0.0
    %6424 = vmatpush1.msra.mxu0 %v6386
    %6425 = vmatprep.subr.mxu0 0.0
    %6426 = vmatpush1.msra.mxu0 %v6385
    %6427 = vmatprep.subr.mxu0 0.0
    %6428 = vmatpush1.msra.mxu0 %v6384
    %6429 = vmatprep.subr.mxu0 0.0
    %6430 = vmatpush1.msra.mxu0 %v6383
    %6431 = vmatprep.subr.mxu0 0.0
    %6432 = vmatpush1.msra.mxu0 %v6382
    %6433 = vmatprep.subr.mxu0 0.0
    %6434 = vmatpush1.msra.mxu0 %v6381
    %6435 = vmatprep.subr.mxu0 0.0
    %6436 = vmatpush2.msra.mxu0 0.0
    %6437 = vmatprep.subr.mxu0 0.0
    %6438 = vmatpush2.msra.mxu0 0.0
    %6439 = vmatprep.subr.mxu0 0.0
    %6440 = vmatpush2.msra.mxu0 0.0
    %6441 = vmatprep.subr.mxu0 0.0
    %6442 = vmatpush2.msra.mxu0 0.0
    %6443 = vmatprep.subr.mxu0 0.0
    %6444 = vmatpush2.msra.mxu0 0.0
    %6445 = vmatprep.subr.mxu0 0.0
    %6446 = vmatpush2.msra.mxu0 0.0
    %6447 = vmatprep.subr.mxu0 0.0
    %6448 = vmatpush2.msra.mxu0 0.0
    %6449 = vmatprep.subr.mxu0 0.0
    %6450 = vmatpush2.msra.mxu0 0.0
    %6451 = vmatprep.subr.mxu0 0.0
    %6452 = vmatpush2.msra.mxu0 0.0
    %6453 = vmatprep.subr.mxu0 0.0
    %6454 = vmatpush2.msra.mxu0 0.0
    %6455 = vmatprep.subr.mxu0 0.0
    %6456 = vmatpush2.msra.mxu0 0.0
    %6457 = vmatprep.subr.mxu0 0.0
    %6458 = vmatpush2.msra.mxu0 0.0
    %6459 = vmatprep.subr.mxu0 0.0
    %6460 = vmatpush2.msra.mxu0 0.0
    %6461 = vmatprep.subr.mxu0 0.0
    %6462 = vmatpush2.msra.mxu0 0.0
    %6463 = vmatprep.subr.mxu0 0.0
    %6464 = vmatpush2.msra.mxu0 0.0
    %6465 = vmatprep.subr.mxu0 0.0
    %6466 = vmatpush2.msra.mxu0 0.0
    %6467 = vmatprep.mubr.f32.mxu0 0.0
    %6468 = vmatmul.mubr.f32.gmra.mxu0 %v6395
    %v6469 = vpop.f32.mrf.mxu0
    %v6470 = vadd.f32 0.0, %v6469
    %v6471 = vpop.f32.mrf.mxu0
    %6472 = vmatprep.mubr.f32.mxu0 0.0
    %6473 = vmatmul.mubr.f32.gmra.mxu0 %v6398
    %v6474 = vpop.f32.mrf.mxu0
    %v6475 = vadd.f32 0.0, %v6474
    %v6476 = vpop.f32.mrf.mxu0
    %6477 = vdwg.mxu0
    %v6479 = vsel %vm724, %v6134, 0
    %v6482 = vsel %vm724, %v6135, 0
    %6484 = vmatprep.subr.mxu0 0.0
    %6485 = vmatpush1.msra.mxu0 0.0
    %6486 = vmatprep.subr.mxu0 0.0
    %6487 = vmatpush1.msra.mxu0 0.0
    %6488 = vmatprep.subr.mxu0 0.0
    %6489 = vmatpush1.msra.mxu0 0.0
    %6490 = vmatprep.subr.mxu0 0.0
    %6491 = vmatpush1.msra.mxu0 0.0
    %6492 = vmatprep.subr.mxu0 0.0
    %6493 = vmatpush1.msra.mxu0 0.0
    %6494 = vmatprep.subr.mxu0 0.0
    %6495 = vmatpush1.msra.mxu0 0.0
    %6496 = vmatprep.subr.mxu0 0.0
    %6497 = vmatpush1.msra.mxu0 0.0
    %6498 = vmatprep.subr.mxu0 0.0
    %6499 = vmatpush1.msra.mxu0 0.0
    %6500 = vmatprep.subr.mxu0 0.0
    %6501 = vmatpush1.msra.mxu0 0.0
    %6502 = vmatprep.subr.mxu0 0.0
    %6503 = vmatpush1.msra.mxu0 0.0
    %6504 = vmatprep.subr.mxu0 0.0
    %6505 = vmatpush1.msra.mxu0 0.0
    %6506 = vmatprep.subr.mxu0 0.0
    %6507 = vmatpush1.msra.mxu0 0.0
    %6508 = vmatprep.subr.mxu0 0.0
    %6509 = vmatpush1.msra.mxu0 0.0
    %6510 = vmatprep.subr.mxu0 0.0
    %6511 = vmatpush1.msra.mxu0 0.0
    %6512 = vmatprep.subr.mxu0 0.0
    %6513 = vmatpush1.msra.mxu0 %v6475
    %6514 = vmatprep.subr.mxu0 0.0
    %6515 = vmatpush1.msra.mxu0 %v6470
    %6516 = vmatprep.subr.mxu0 0.0
    %6517 = vmatpush2.msra.mxu0 0.0
    %6518 = vmatprep.subr.mxu0 0.0
    %6519 = vmatpush2.msra.mxu0 0.0
    %6520 = vmatprep.subr.mxu0 0.0
    %6521 = vmatpush2.msra.mxu0 0.0
    %6522 = vmatprep.subr.mxu0 0.0
    %6523 = vmatpush2.msra.mxu0 0.0
    %6524 = vmatprep.subr.mxu0 0.0
    %6525 = vmatpush2.msra.mxu0 0.0
    %6526 = vmatprep.subr.mxu0 0.0
    %6527 = vmatpush2.msra.mxu0 0.0
    %6528 = vmatprep.subr.mxu0 0.0
    %6529 = vmatpush2.msra.mxu0 0.0
    %6530 = vmatprep.subr.mxu0 0.0
    %6531 = vmatpush2.msra.mxu0 0.0
    %6532 = vmatprep.subr.mxu0 0.0
    %6533 = vmatpush2.msra.mxu0 0.0
    %6534 = vmatprep.subr.mxu0 0.0
    %6535 = vmatpush2.msra.mxu0 0.0
    %6536 = vmatprep.subr.mxu0 0.0
    %6537 = vmatpush2.msra.mxu0 0.0
    %6538 = vmatprep.subr.mxu0 0.0
    %6539 = vmatpush2.msra.mxu0 0.0
    %6540 = vmatprep.subr.mxu0 0.0
    %6541 = vmatpush2.msra.mxu0 0.0
    %6542 = vmatprep.subr.mxu0 0.0
    %6543 = vmatpush2.msra.mxu0 0.0
    %6544 = vmatprep.subr.mxu0 0.0
    %6545 = vmatpush2.msra.mxu0 0.0
    %6546 = vmatprep.subr.mxu0 0.0
    %6547 = vmatpush2.msra.mxu0 0.0
    %6548 = vmatprep.mubr.f32.mxu0 0.0
    %6549 = vmatmul.mubr.f32.gmra.mxu0 %v6479
    %v6550 = vpop.f32.mrf.mxu0
    %v6551 = vadd.f32 0.0, %v6550
    %v6552 = vpop.f32.mrf.mxu0
    %6553 = vmatprep.mubr.f32.mxu0 0.0
    %6554 = vmatmul.mubr.f32.gmra.mxu0 %v6482
    %v6555 = vpop.f32.mrf.mxu0
    %v6556 = vadd.f32 0.0, %v6555
    %v6557 = vpop.f32.mrf.mxu0
    %6558 = vdwg.mxu0
    %v6559 = vadd.f32 %v6379, %v6551
    %v6560 = vadd.f32 %v6379, %v6556
    %s6561 = scalar_lea.vmem %s47, 104
    %v6562 = vld [vmem:[%s6561] sm:$0xff]
    %v6563 = vld [vmem:[%s6561 + $0x8] sm:$0xff]
    %v6564 = vld [vmem:[%s6561 + $0x10] sm:$0xff]
    %v6565 = vld [vmem:[%s6561 + $0x18] sm:$0xff]
    %v6566 = vld [vmem:[%s6561 + $0x20] sm:$0xff]
    %v6567 = vld [vmem:[%s6561 + $0x28] sm:$0xff]
    %v6568 = vld [vmem:[%s6561 + $0x30] sm:$0xff]
    %v6569 = vld [vmem:[%s6561 + $0x38] sm:$0xff]
    %v6570 = vld [vmem:[%s6561 + $0x40] sm:$0xff]
    %v6571 = vld [vmem:[%s6561 + $0x48] sm:$0xff]
    %v6572 = vld [vmem:[%s6561 + $0x50] sm:$0xff]
    %v6573 = vld [vmem:[%s6561 + $0x58] sm:$0xff]
    %v6574 = vld [vmem:[%s6561 + $0x60] sm:$0xf]
    %v6576 = vsel %vm6191, %v6574, 0
    %6578 = vmatprep.subr.mxu0 0.0
    %6579 = vmatpush1.msra.mxu0 0.0
    %6580 = vmatprep.subr.mxu0 0.0
    %6581 = vmatpush1.msra.mxu0 0.0
    %6582 = vmatprep.subr.mxu0 0.0
    %6583 = vmatpush1.msra.mxu0 0.0
    %6584 = vmatprep.subr.mxu0 0.0
    %6585 = vmatpush1.msra.mxu0 %v6576
    %6586 = vmatprep.subr.mxu0 0.0
    %6587 = vmatpush1.msra.mxu0 %v6573
    %6588 = vmatprep.subr.mxu0 0.0
    %6589 = vmatpush1.msra.mxu0 %v6572
    %6590 = vmatprep.subr.mxu0 0.0
    %6591 = vmatpush1.msra.mxu0 %v6571
    %6592 = vmatprep.subr.mxu0 0.0
    %6593 = vmatpush1.msra.mxu0 %v6570
    %6594 = vmatprep.subr.mxu0 0.0
    %6595 = vmatpush1.msra.mxu0 %v6569
    %6596 = vmatprep.subr.mxu0 0.0
    %6597 = vmatpush1.msra.mxu0 %v6568
    %6598 = vmatprep.subr.mxu0 0.0
    %6599 = vmatpush1.msra.mxu0 %v6567
    %6600 = vmatprep.subr.mxu0 0.0
    %6601 = vmatpush1.msra.mxu0 %v6566
    %6602 = vmatprep.subr.mxu0 0.0
    %6603 = vmatpush1.msra.mxu0 %v6565
    %6604 = vmatprep.subr.mxu0 0.0
    %6605 = vmatpush1.msra.mxu0 %v6564
    %6606 = vmatprep.subr.mxu0 0.0
    %6607 = vmatpush1.msra.mxu0 %v6563
    %6608 = vmatprep.subr.mxu0 0.0
    %6609 = vmatpush1.msra.mxu0 %v6562
    %6610 = vmatprep.subr.mxu0 0.0
    %6611 = vmatpush2.msra.mxu0 0.0
    %6612 = vmatprep.subr.mxu0 0.0
    %6613 = vmatpush2.msra.mxu0 0.0
    %6614 = vmatprep.subr.mxu0 0.0
    %6615 = vmatpush2.msra.mxu0 0.0
    %6616 = vmatprep.subr.mxu0 0.0
    %6617 = vmatpush2.msra.mxu0 0.0
    %6618 = vmatprep.subr.mxu0 0.0
    %6619 = vmatpush2.msra.mxu0 0.0
    %6620 = vmatprep.subr.mxu0 0.0
    %6621 = vmatpush2.msra.mxu0 0.0
    %6622 = vmatprep.subr.mxu0 0.0
    %6623 = vmatpush2.msra.mxu0 0.0
    %6624 = vmatprep.subr.mxu0 0.0
    %6625 = vmatpush2.msra.mxu0 0.0
    %6626 = vmatprep.subr.mxu0 0.0
    %6627 = vmatpush2.msra.mxu0 0.0
    %6628 = vmatprep.subr.mxu0 0.0
    %6629 = vmatpush2.msra.mxu0 0.0
    %6630 = vmatprep.subr.mxu0 0.0
    %6631 = vmatpush2.msra.mxu0 0.0
    %6632 = vmatprep.subr.mxu0 0.0
    %6633 = vmatpush2.msra.mxu0 0.0
    %6634 = vmatprep.subr.mxu0 0.0
    %6635 = vmatpush2.msra.mxu0 0.0
    %6636 = vmatprep.subr.mxu0 0.0
    %6637 = vmatpush2.msra.mxu0 0.0
    %6638 = vmatprep.subr.mxu0 0.0
    %6639 = vmatpush2.msra.mxu0 0.0
    %6640 = vmatprep.subr.mxu0 0.0
    %6641 = vmatpush2.msra.mxu0 0.0
    %6642 = vmatprep.mubr.f32.mxu0 0.0
    %6643 = vmatmul.mubr.f32.gmra.mxu0 %v6395
    %v6644 = vpop.f32.mrf.mxu0
    %v6645 = vadd.f32 0.0, %v6644
    %v6646 = vpop.f32.mrf.mxu0
    %6647 = vmatprep.mubr.f32.mxu0 0.0
    %6648 = vmatmul.mubr.f32.gmra.mxu0 %v6398
    %v6649 = vpop.f32.mrf.mxu0
    %v6650 = vadd.f32 0.0, %v6649
    %v6651 = vpop.f32.mrf.mxu0
    %6652 = vdwg.mxu0
    %v6654 = vsel %vm724, %v6142, 0
    %v6657 = vsel %vm724, %v6143, 0
    %6659 = vmatprep.subr.mxu0 0.0
    %6660 = vmatpush1.msra.mxu0 0.0
    %6661 = vmatprep.subr.mxu0 0.0
    %6662 = vmatpush1.msra.mxu0 0.0
    %6663 = vmatprep.subr.mxu0 0.0
    %6664 = vmatpush1.msra.mxu0 0.0
    %6665 = vmatprep.subr.mxu0 0.0
    %6666 = vmatpush1.msra.mxu0 0.0
    %6667 = vmatprep.subr.mxu0 0.0
    %6668 = vmatpush1.msra.mxu0 0.0
    %6669 = vmatprep.subr.mxu0 0.0
    %6670 = vmatpush1.msra.mxu0 0.0
    %6671 = vmatprep.subr.mxu0 0.0
    %6672 = vmatpush1.msra.mxu0 0.0
    %6673 = vmatprep.subr.mxu0 0.0
    %6674 = vmatpush1.msra.mxu0 0.0
    %6675 = vmatprep.subr.mxu0 0.0
    %6676 = vmatpush1.msra.mxu0 0.0
    %6677 = vmatprep.subr.mxu0 0.0
    %6678 = vmatpush1.msra.mxu0 0.0
    %6679 = vmatprep.subr.mxu0 0.0
    %6680 = vmatpush1.msra.mxu0 0.0
    %6681 = vmatprep.subr.mxu0 0.0
    %6682 = vmatpush1.msra.mxu0 0.0
    %6683 = vmatprep.subr.mxu0 0.0
    %6684 = vmatpush1.msra.mxu0 0.0
    %6685 = vmatprep.subr.mxu0 0.0
    %6686 = vmatpush1.msra.mxu0 0.0
    %6687 = vmatprep.subr.mxu0 0.0
    %6688 = vmatpush1.msra.mxu0 %v6650
    %6689 = vmatprep.subr.mxu0 0.0
    %6690 = vmatpush1.msra.mxu0 %v6645
    %6691 = vmatprep.subr.mxu0 0.0
    %6692 = vmatpush2.msra.mxu0 0.0
    %6693 = vmatprep.subr.mxu0 0.0
    %6694 = vmatpush2.msra.mxu0 0.0
    %6695 = vmatprep.subr.mxu0 0.0
    %6696 = vmatpush2.msra.mxu0 0.0
    %6697 = vmatprep.subr.mxu0 0.0
    %6698 = vmatpush2.msra.mxu0 0.0
    %6699 = vmatprep.subr.mxu0 0.0
    %6700 = vmatpush2.msra.mxu0 0.0
    %6701 = vmatprep.subr.mxu0 0.0
    %6702 = vmatpush2.msra.mxu0 0.0
    %6703 = vmatprep.subr.mxu0 0.0
    %6704 = vmatpush2.msra.mxu0 0.0
    %6705 = vmatprep.subr.mxu0 0.0
    %6706 = vmatpush2.msra.mxu0 0.0
    %6707 = vmatprep.subr.mxu0 0.0
    %6708 = vmatpush2.msra.mxu0 0.0
    %6709 = vmatprep.subr.mxu0 0.0
    %6710 = vmatpush2.msra.mxu0 0.0
    %6711 = vmatprep.subr.mxu0 0.0
    %6712 = vmatpush2.msra.mxu0 0.0
    %6713 = vmatprep.subr.mxu0 0.0
    %6714 = vmatpush2.msra.mxu0 0.0
    %6715 = vmatprep.subr.mxu0 0.0
    %6716 = vmatpush2.msra.mxu0 0.0
    %6717 = vmatprep.subr.mxu0 0.0
    %6718 = vmatpush2.msra.mxu0 0.0
    %6719 = vmatprep.subr.mxu0 0.0
    %6720 = vmatpush2.msra.mxu0 0.0
    %6721 = vmatprep.subr.mxu0 0.0
    %6722 = vmatpush2.msra.mxu0 0.0
    %6723 = vmatprep.mubr.f32.mxu0 0.0
    %6724 = vmatmul.mubr.f32.gmra.mxu0 %v6654
    %v6725 = vpop.f32.mrf.mxu0
    %v6726 = vadd.f32 0.0, %v6725
    %v6727 = vpop.f32.mrf.mxu0
    %6728 = vmatprep.mubr.f32.mxu0 0.0
    %6729 = vmatmul.mubr.f32.gmra.mxu0 %v6657
    %v6730 = vpop.f32.mrf.mxu0
    %v6731 = vadd.f32 0.0, %v6730
    %v6732 = vpop.f32.mrf.mxu0
    %6733 = vdwg.mxu0
    %v6734 = vadd.f32 %v6559, %v6726
    %v6735 = vadd.f32 %v6560, %v6731
    %s6736 = scalar_lea.vmem %s47, 208
    %v6737 = vld [vmem:[%s6736] sm:$0xff]
    %v6738 = vld [vmem:[%s6736 + $0x8] sm:$0xff]
    %v6739 = vld [vmem:[%s6736 + $0x10] sm:$0xff]
    %v6740 = vld [vmem:[%s6736 + $0x18] sm:$0xff]
    %v6741 = vld [vmem:[%s6736 + $0x20] sm:$0xff]
    %v6742 = vld [vmem:[%s6736 + $0x28] sm:$0xff]
    %v6743 = vld [vmem:[%s6736 + $0x30] sm:$0xff]
    %v6744 = vld [vmem:[%s6736 + $0x38] sm:$0xff]
    %v6745 = vld [vmem:[%s6736 + $0x40] sm:$0xff]
    %v6746 = vld [vmem:[%s6736 + $0x48] sm:$0xff]
    %v6747 = vld [vmem:[%s6736 + $0x50] sm:$0xff]
    %v6748 = vld [vmem:[%s6736 + $0x58] sm:$0xff]
    %v6749 = vld [vmem:[%s6736 + $0x60] sm:$0xf]
    %v6751 = vsel %vm6191, %v6749, 0
    %6753 = vmatprep.subr.mxu0 0.0
    %6754 = vmatpush1.msra.mxu0 0.0
    %6755 = vmatprep.subr.mxu0 0.0
    %6756 = vmatpush1.msra.mxu0 0.0
    %6757 = vmatprep.subr.mxu0 0.0
    %6758 = vmatpush1.msra.mxu0 0.0
    %6759 = vmatprep.subr.mxu0 0.0
    %6760 = vmatpush1.msra.mxu0 %v6751
    %6761 = vmatprep.subr.mxu0 0.0
    %6762 = vmatpush1.msra.mxu0 %v6748
    %6763 = vmatprep.subr.mxu0 0.0
    %6764 = vmatpush1.msra.mxu0 %v6747
    %6765 = vmatprep.subr.mxu0 0.0
    %6766 = vmatpush1.msra.mxu0 %v6746
    %6767 = vmatprep.subr.mxu0 0.0
    %6768 = vmatpush1.msra.mxu0 %v6745
    %6769 = vmatprep.subr.mxu0 0.0
    %6770 = vmatpush1.msra.mxu0 %v6744
    %6771 = vmatprep.subr.mxu0 0.0
    %6772 = vmatpush1.msra.mxu0 %v6743
    %6773 = vmatprep.subr.mxu0 0.0
    %6774 = vmatpush1.msra.mxu0 %v6742
    %6775 = vmatprep.subr.mxu0 0.0
    %6776 = vmatpush1.msra.mxu0 %v6741
    %6777 = vmatprep.subr.mxu0 0.0
    %6778 = vmatpush1.msra.mxu0 %v6740
    %6779 = vmatprep.subr.mxu0 0.0
    %6780 = vmatpush1.msra.mxu0 %v6739
    %6781 = vmatprep.subr.mxu0 0.0
    %6782 = vmatpush1.msra.mxu0 %v6738
    %6783 = vmatprep.subr.mxu0 0.0
    %6784 = vmatpush1.msra.mxu0 %v6737
    %6785 = vmatprep.subr.mxu0 0.0
    %6786 = vmatpush2.msra.mxu0 0.0
    %6787 = vmatprep.subr.mxu0 0.0
    %6788 = vmatpush2.msra.mxu0 0.0
    %6789 = vmatprep.subr.mxu0 0.0
    %6790 = vmatpush2.msra.mxu0 0.0
    %6791 = vmatprep.subr.mxu0 0.0
    %6792 = vmatpush2.msra.mxu0 0.0
    %6793 = vmatprep.subr.mxu0 0.0
    %6794 = vmatpush2.msra.mxu0 0.0
    %6795 = vmatprep.subr.mxu0 0.0
    %6796 = vmatpush2.msra.mxu0 0.0
    %6797 = vmatprep.subr.mxu0 0.0
    %6798 = vmatpush2.msra.mxu0 0.0
    %6799 = vmatprep.subr.mxu0 0.0
    %6800 = vmatpush2.msra.mxu0 0.0
    %6801 = vmatprep.subr.mxu0 0.0
    %6802 = vmatpush2.msra.mxu0 0.0
    %6803 = vmatprep.subr.mxu0 0.0
    %6804 = vmatpush2.msra.mxu0 0.0
    %6805 = vmatprep.subr.mxu0 0.0
    %6806 = vmatpush2.msra.mxu0 0.0
    %6807 = vmatprep.subr.mxu0 0.0
    %6808 = vmatpush2.msra.mxu0 0.0
    %6809 = vmatprep.subr.mxu0 0.0
    %6810 = vmatpush2.msra.mxu0 0.0
    %6811 = vmatprep.subr.mxu0 0.0
    %6812 = vmatpush2.msra.mxu0 0.0
    %6813 = vmatprep.subr.mxu0 0.0
    %6814 = vmatpush2.msra.mxu0 0.0
    %6815 = vmatprep.subr.mxu0 0.0
    %6816 = vmatpush2.msra.mxu0 0.0
    %6817 = vmatprep.mubr.f32.mxu0 0.0
    %6818 = vmatmul.mubr.f32.gmra.mxu0 %v6395
    %v6819 = vpop.f32.mrf.mxu0
    %v6820 = vadd.f32 0.0, %v6819
    %v6821 = vpop.f32.mrf.mxu0
    %6822 = vmatprep.mubr.f32.mxu0 0.0
    %6823 = vmatmul.mubr.f32.gmra.mxu0 %v6398
    %v6824 = vpop.f32.mrf.mxu0
    %v6825 = vadd.f32 0.0, %v6824
    %v6826 = vpop.f32.mrf.mxu0
    %6827 = vdwg.mxu0
    %v6829 = vsel %vm724, %v6152, 0
    %v6832 = vsel %vm724, %v6153, 0
    %6834 = vmatprep.subr.mxu0 0.0
    %6835 = vmatpush1.msra.mxu0 0.0
    %6836 = vmatprep.subr.mxu0 0.0
    %6837 = vmatpush1.msra.mxu0 0.0
    %6838 = vmatprep.subr.mxu0 0.0
    %6839 = vmatpush1.msra.mxu0 0.0
    %6840 = vmatprep.subr.mxu0 0.0
    %6841 = vmatpush1.msra.mxu0 0.0
    %6842 = vmatprep.subr.mxu0 0.0
    %6843 = vmatpush1.msra.mxu0 0.0
    %6844 = vmatprep.subr.mxu0 0.0
    %6845 = vmatpush1.msra.mxu0 0.0
    %6846 = vmatprep.subr.mxu0 0.0
    %6847 = vmatpush1.msra.mxu0 0.0
    %6848 = vmatprep.subr.mxu0 0.0
    %6849 = vmatpush1.msra.mxu0 0.0
    %6850 = vmatprep.subr.mxu0 0.0
    %6851 = vmatpush1.msra.mxu0 0.0
    %6852 = vmatprep.subr.mxu0 0.0
    %6853 = vmatpush1.msra.mxu0 0.0
    %6854 = vmatprep.subr.mxu0 0.0
    %6855 = vmatpush1.msra.mxu0 0.0
    %6856 = vmatprep.subr.mxu0 0.0
    %6857 = vmatpush1.msra.mxu0 0.0
    %6858 = vmatprep.subr.mxu0 0.0
    %6859 = vmatpush1.msra.mxu0 0.0
    %6860 = vmatprep.subr.mxu0 0.0
    %6861 = vmatpush1.msra.mxu0 0.0
    %6862 = vmatprep.subr.mxu0 0.0
    %6863 = vmatpush1.msra.mxu0 %v6825
    %6864 = vmatprep.subr.mxu0 0.0
    %6865 = vmatpush1.msra.mxu0 %v6820
    %6866 = vmatprep.subr.mxu0 0.0
    %6867 = vmatpush2.msra.mxu0 0.0
    %6868 = vmatprep.subr.mxu0 0.0
    %6869 = vmatpush2.msra.mxu0 0.0
    %6870 = vmatprep.subr.mxu0 0.0
    %6871 = vmatpush2.msra.mxu0 0.0
    %6872 = vmatprep.subr.mxu0 0.0
    %6873 = vmatpush2.msra.mxu0 0.0
    %6874 = vmatprep.subr.mxu0 0.0
    %6875 = vmatpush2.msra.mxu0 0.0
    %6876 = vmatprep.subr.mxu0 0.0
    %6877 = vmatpush2.msra.mxu0 0.0
    %6878 = vmatprep.subr.mxu0 0.0
    %6879 = vmatpush2.msra.mxu0 0.0
    %6880 = vmatprep.subr.mxu0 0.0
    %6881 = vmatpush2.msra.mxu0 0.0
    %6882 = vmatprep.subr.mxu0 0.0
    %6883 = vmatpush2.msra.mxu0 0.0
    %6884 = vmatprep.subr.mxu0 0.0
    %6885 = vmatpush2.msra.mxu0 0.0
    %6886 = vmatprep.subr.mxu0 0.0
    %6887 = vmatpush2.msra.mxu0 0.0
    %6888 = vmatprep.subr.mxu0 0.0
    %6889 = vmatpush2.msra.mxu0 0.0
    %6890 = vmatprep.subr.mxu0 0.0
    %6891 = vmatpush2.msra.mxu0 0.0
    %6892 = vmatprep.subr.mxu0 0.0
    %6893 = vmatpush2.msra.mxu0 0.0
    %6894 = vmatprep.subr.mxu0 0.0
    %6895 = vmatpush2.msra.mxu0 0.0
    %6896 = vmatprep.subr.mxu0 0.0
    %6897 = vmatpush2.msra.mxu0 0.0
    %6898 = vmatprep.mubr.f32.mxu0 0.0
    %6899 = vmatmul.mubr.f32.gmra.mxu0 %v6829
    %v6900 = vpop.f32.mrf.mxu0
    %v6901 = vadd.f32 0.0, %v6900
    %v6902 = vpop.f32.mrf.mxu0
    %6903 = vmatprep.mubr.f32.mxu0 0.0
    %6904 = vmatmul.mubr.f32.gmra.mxu0 %v6832
    %v6905 = vpop.f32.mrf.mxu0
    %v6906 = vadd.f32 0.0, %v6905
    %v6907 = vpop.f32.mrf.mxu0
    %6908 = vdwg.mxu0
    %v6909 = vadd.f32 %v6734, %v6901
    %v6910 = vadd.f32 %v6735, %v6906
    %v6911 = vld [vmem:[%s53] sm:$0x1]
    %v6913 = vlaneseq
    %v6914 = vshrl.u32 %v6913, 7
    %v6915 = vsub.s32 0, %v6914
    %v6916 = vrot.slane %v6911, %v6915
    %v6918 = vld [vmem:[%s51] sm:$0xff]
    %v6919 = vld [vmem:[%s51 + $0x8] sm:$0xff]
    %v6920 = vld [vmem:[%s51 + $0x10] sm:$0xff]
    %v6921 = vld [vmem:[%s51 + $0x18] sm:$0xff]
    %v6922 = vld [vmem:[%s51 + $0x20] sm:$0xff]
    %v6923 = vld [vmem:[%s51 + $0x28] sm:$0xff]
    %v6924 = vld [vmem:[%s51 + $0x30] sm:$0xff]
    %v6925 = vld [vmem:[%s51 + $0x38] sm:$0xff]
    %v6926 = vld [vmem:[%s51 + $0x40] sm:$0xff]
    %v6927 = vld [vmem:[%s51 + $0x48] sm:$0xff]
    %v6928 = vld [vmem:[%s51 + $0x50] sm:$0xff]
    %v6929 = vld [vmem:[%s51 + $0x58] sm:$0xff]
    %v6930 = vld [vmem:[%s51 + $0x60] sm:$0xf]
    %v6932 = vsel %vm6191, %v6930, 0
    %6934 = vmatprep.subr.mxu0 0.0
    %6935 = vmatpush1.msra.mxu0 0.0
    %6936 = vmatprep.subr.mxu0 0.0
    %6937 = vmatpush1.msra.mxu0 0.0
    %6938 = vmatprep.subr.mxu0 0.0
    %6939 = vmatpush1.msra.mxu0 0.0
    %6940 = vmatprep.subr.mxu0 0.0
    %6941 = vmatpush1.msra.mxu0 %v6932
    %6942 = vmatprep.subr.mxu0 0.0
    %6943 = vmatpush1.msra.mxu0 %v6929
    %6944 = vmatprep.subr.mxu0 0.0
    %6945 = vmatpush1.msra.mxu0 %v6928
    %6946 = vmatprep.subr.mxu0 0.0
    %6947 = vmatpush1.msra.mxu0 %v6927
    %6948 = vmatprep.subr.mxu0 0.0
    %6949 = vmatpush1.msra.mxu0 %v6926
    %6950 = vmatprep.subr.mxu0 0.0
    %6951 = vmatpush1.msra.mxu0 %v6925
    %6952 = vmatprep.subr.mxu0 0.0
    %6953 = vmatpush1.msra.mxu0 %v6924
    %6954 = vmatprep.subr.mxu0 0.0
    %6955 = vmatpush1.msra.mxu0 %v6923
    %6956 = vmatprep.subr.mxu0 0.0
    %6957 = vmatpush1.msra.mxu0 %v6922
    %6958 = vmatprep.subr.mxu0 0.0
    %6959 = vmatpush1.msra.mxu0 %v6921
    %6960 = vmatprep.subr.mxu0 0.0
    %6961 = vmatpush1.msra.mxu0 %v6920
    %6962 = vmatprep.subr.mxu0 0.0
    %6963 = vmatpush1.msra.mxu0 %v6919
    %6964 = vmatprep.subr.mxu0 0.0
    %6965 = vmatpush1.msra.mxu0 %v6918
    %6966 = vmatprep.subr.mxu0 0.0
    %6967 = vmatpush2.msra.mxu0 0.0
    %6968 = vmatprep.subr.mxu0 0.0
    %6969 = vmatpush2.msra.mxu0 0.0
    %6970 = vmatprep.subr.mxu0 0.0
    %6971 = vmatpush2.msra.mxu0 0.0
    %6972 = vmatprep.subr.mxu0 0.0
    %6973 = vmatpush2.msra.mxu0 0.0
    %6974 = vmatprep.subr.mxu0 0.0
    %6975 = vmatpush2.msra.mxu0 0.0
    %6976 = vmatprep.subr.mxu0 0.0
    %6977 = vmatpush2.msra.mxu0 0.0
    %6978 = vmatprep.subr.mxu0 0.0
    %6979 = vmatpush2.msra.mxu0 0.0
    %6980 = vmatprep.subr.mxu0 0.0
    %6981 = vmatpush2.msra.mxu0 0.0
    %6982 = vmatprep.subr.mxu0 0.0
    %6983 = vmatpush2.msra.mxu0 0.0
    %6984 = vmatprep.subr.mxu0 0.0
    %6985 = vmatpush2.msra.mxu0 0.0
    %6986 = vmatprep.subr.mxu0 0.0
    %6987 = vmatpush2.msra.mxu0 0.0
    %6988 = vmatprep.subr.mxu0 0.0
    %6989 = vmatpush2.msra.mxu0 0.0
    %6990 = vmatprep.subr.mxu0 0.0
    %6991 = vmatpush2.msra.mxu0 0.0
    %6992 = vmatprep.subr.mxu0 0.0
    %6993 = vmatpush2.msra.mxu0 0.0
    %6994 = vmatprep.subr.mxu0 0.0
    %6995 = vmatpush2.msra.mxu0 0.0
    %6996 = vmatprep.subr.mxu0 0.0
    %6997 = vmatpush2.msra.mxu0 0.0
    %6998 = vmatprep.mubr.f32.mxu0 0.0
    %6999 = vmatmul.mubr.f32.gmra.mxu0 %v6186
    %v7000 = vpop.f32.mrf.mxu0
    %v7001 = vadd.f32 0.0, %v7000
    %v7002 = vpop.f32.mrf.mxu0
    %7003 = vmatprep.mubr.f32.mxu0 0.0
    %7004 = vmatmul.mubr.f32.gmra.mxu0 %v6189
    %v7005 = vpop.f32.mrf.mxu0
    %v7006 = vadd.f32 0.0, %v7005
    %v7007 = vpop.f32.mrf.mxu0
    %7008 = vdwg.mxu0
    %7009 = vmatprep.subr.mxu0 0.0
    %7010 = vmatpush1.msra.mxu0 0.0
    %7011 = vmatprep.subr.mxu0 0.0
    %7012 = vmatpush1.msra.mxu0 0.0
    %7013 = vmatprep.subr.mxu0 0.0
    %7014 = vmatpush1.msra.mxu0 0.0
    %7015 = vmatprep.subr.mxu0 0.0
    %7016 = vmatpush1.msra.mxu0 0.0
    %7017 = vmatprep.subr.mxu0 0.0
    %7018 = vmatpush1.msra.mxu0 0.0
    %7019 = vmatprep.subr.mxu0 0.0
    %7020 = vmatpush1.msra.mxu0 0.0
    %7021 = vmatprep.subr.mxu0 0.0
    %7022 = vmatpush1.msra.mxu0 0.0
    %7023 = vmatprep.subr.mxu0 0.0
    %7024 = vmatpush1.msra.mxu0 0.0
    %7025 = vmatprep.subr.mxu0 0.0
    %7026 = vmatpush1.msra.mxu0 0.0
    %7027 = vmatprep.subr.mxu0 0.0
    %7028 = vmatpush1.msra.mxu0 0.0
    %7029 = vmatprep.subr.mxu0 0.0
    %7030 = vmatpush1.msra.mxu0 0.0
    %7031 = vmatprep.subr.mxu0 0.0
    %7032 = vmatpush1.msra.mxu0 0.0
    %7033 = vmatprep.subr.mxu0 0.0
    %7034 = vmatpush1.msra.mxu0 0.0
    %7035 = vmatprep.subr.mxu0 0.0
    %7036 = vmatpush1.msra.mxu0 0.0
    %7037 = vmatprep.subr.mxu0 0.0
    %7038 = vmatpush1.msra.mxu0 %v7006
    %7039 = vmatprep.subr.mxu0 0.0
    %7040 = vmatpush1.msra.mxu0 %v7001
    %7041 = vmatprep.subr.mxu0 0.0
    %7042 = vmatpush2.msra.mxu0 0.0
    %7043 = vmatprep.subr.mxu0 0.0
    %7044 = vmatpush2.msra.mxu0 0.0
    %7045 = vmatprep.subr.mxu0 0.0
    %7046 = vmatpush2.msra.mxu0 0.0
    %7047 = vmatprep.subr.mxu0 0.0
    %7048 = vmatpush2.msra.mxu0 0.0
    %7049 = vmatprep.subr.mxu0 0.0
    %7050 = vmatpush2.msra.mxu0 0.0
    %7051 = vmatprep.subr.mxu0 0.0
    %7052 = vmatpush2.msra.mxu0 0.0
    %7053 = vmatprep.subr.mxu0 0.0
    %7054 = vmatpush2.msra.mxu0 0.0
    %7055 = vmatprep.subr.mxu0 0.0
    %7056 = vmatpush2.msra.mxu0 0.0
    %7057 = vmatprep.subr.mxu0 0.0
    %7058 = vmatpush2.msra.mxu0 0.0
    %7059 = vmatprep.subr.mxu0 0.0
    %7060 = vmatpush2.msra.mxu0 0.0
    %7061 = vmatprep.subr.mxu0 0.0
    %7062 = vmatpush2.msra.mxu0 0.0
    %7063 = vmatprep.subr.mxu0 0.0
    %7064 = vmatpush2.msra.mxu0 0.0
    %7065 = vmatprep.subr.mxu0 0.0
    %7066 = vmatpush2.msra.mxu0 0.0
    %7067 = vmatprep.subr.mxu0 0.0
    %7068 = vmatpush2.msra.mxu0 0.0
    %7069 = vmatprep.subr.mxu0 0.0
    %7070 = vmatpush2.msra.mxu0 0.0
    %7071 = vmatprep.subr.mxu0 0.0
    %7072 = vmatpush2.msra.mxu0 0.0
    %7073 = vmatprep.mubr.f32.mxu0 0.0
    %7074 = vmatmul.mubr.f32.gmra.mxu0 %v6479
    %v7075 = vpop.f32.mrf.mxu0
    %v7076 = vadd.f32 0.0, %v7075
    %v7077 = vpop.f32.mrf.mxu0
    %7078 = vmatprep.mubr.f32.mxu0 0.0
    %7079 = vmatmul.mubr.f32.gmra.mxu0 %v6482
    %v7080 = vpop.f32.mrf.mxu0
    %v7081 = vadd.f32 0.0, %v7080
    %v7082 = vpop.f32.mrf.mxu0
    %7083 = vdwg.mxu0
    %v7084 = vadd.f32 %v6916, %v7076
    %v7085 = vadd.f32 %v6916, %v7081
    %s7086 = scalar_lea.vmem %s51, 104
    %v7087 = vld [vmem:[%s7086] sm:$0xff]
    %v7088 = vld [vmem:[%s7086 + $0x8] sm:$0xff]
    %v7089 = vld [vmem:[%s7086 + $0x10] sm:$0xff]
    %v7090 = vld [vmem:[%s7086 + $0x18] sm:$0xff]
    %v7091 = vld [vmem:[%s7086 + $0x20] sm:$0xff]
    %v7092 = vld [vmem:[%s7086 + $0x28] sm:$0xff]
    %v7093 = vld [vmem:[%s7086 + $0x30] sm:$0xff]
    %v7094 = vld [vmem:[%s7086 + $0x38] sm:$0xff]
    %v7095 = vld [vmem:[%s7086 + $0x40] sm:$0xff]
    %v7096 = vld [vmem:[%s7086 + $0x48] sm:$0xff]
    %v7097 = vld [vmem:[%s7086 + $0x50] sm:$0xff]
    %v7098 = vld [vmem:[%s7086 + $0x58] sm:$0xff]
    %v7099 = vld [vmem:[%s7086 + $0x60] sm:$0xf]
    %v7101 = vsel %vm6191, %v7099, 0
    %7103 = vmatprep.subr.mxu0 0.0
    %7104 = vmatpush1.msra.mxu0 0.0
    %7105 = vmatprep.subr.mxu0 0.0
    %7106 = vmatpush1.msra.mxu0 0.0
    %7107 = vmatprep.subr.mxu0 0.0
    %7108 = vmatpush1.msra.mxu0 0.0
    %7109 = vmatprep.subr.mxu0 0.0
    %7110 = vmatpush1.msra.mxu0 %v7101
    %7111 = vmatprep.subr.mxu0 0.0
    %7112 = vmatpush1.msra.mxu0 %v7098
    %7113 = vmatprep.subr.mxu0 0.0
    %7114 = vmatpush1.msra.mxu0 %v7097
    %7115 = vmatprep.subr.mxu0 0.0
    %7116 = vmatpush1.msra.mxu0 %v7096
    %7117 = vmatprep.subr.mxu0 0.0
    %7118 = vmatpush1.msra.mxu0 %v7095
    %7119 = vmatprep.subr.mxu0 0.0
    %7120 = vmatpush1.msra.mxu0 %v7094
    %7121 = vmatprep.subr.mxu0 0.0
    %7122 = vmatpush1.msra.mxu0 %v7093
    %7123 = vmatprep.subr.mxu0 0.0
    %7124 = vmatpush1.msra.mxu0 %v7092
    %7125 = vmatprep.subr.mxu0 0.0
    %7126 = vmatpush1.msra.mxu0 %v7091
    %7127 = vmatprep.subr.mxu0 0.0
    %7128 = vmatpush1.msra.mxu0 %v7090
    %7129 = vmatprep.subr.mxu0 0.0
    %7130 = vmatpush1.msra.mxu0 %v7089
    %7131 = vmatprep.subr.mxu0 0.0
    %7132 = vmatpush1.msra.mxu0 %v7088
    %7133 = vmatprep.subr.mxu0 0.0
    %7134 = vmatpush1.msra.mxu0 %v7087
    %7135 = vmatprep.subr.mxu0 0.0
    %7136 = vmatpush2.msra.mxu0 0.0
    %7137 = vmatprep.subr.mxu0 0.0
    %7138 = vmatpush2.msra.mxu0 0.0
    %7139 = vmatprep.subr.mxu0 0.0
    %7140 = vmatpush2.msra.mxu0 0.0
    %7141 = vmatprep.subr.mxu0 0.0
    %7142 = vmatpush2.msra.mxu0 0.0
    %7143 = vmatprep.subr.mxu0 0.0
    %7144 = vmatpush2.msra.mxu0 0.0
    %7145 = vmatprep.subr.mxu0 0.0
    %7146 = vmatpush2.msra.mxu0 0.0
    %7147 = vmatprep.subr.mxu0 0.0
    %7148 = vmatpush2.msra.mxu0 0.0
    %7149 = vmatprep.subr.mxu0 0.0
    %7150 = vmatpush2.msra.mxu0 0.0
    %7151 = vmatprep.subr.mxu0 0.0
    %7152 = vmatpush2.msra.mxu0 0.0
    %7153 = vmatprep.subr.mxu0 0.0
    %7154 = vmatpush2.msra.mxu0 0.0
    %7155 = vmatprep.subr.mxu0 0.0
    %7156 = vmatpush2.msra.mxu0 0.0
    %7157 = vmatprep.subr.mxu0 0.0
    %7158 = vmatpush2.msra.mxu0 0.0
    %7159 = vmatprep.subr.mxu0 0.0
    %7160 = vmatpush2.msra.mxu0 0.0
    %7161 = vmatprep.subr.mxu0 0.0
    %7162 = vmatpush2.msra.mxu0 0.0
    %7163 = vmatprep.subr.mxu0 0.0
    %7164 = vmatpush2.msra.mxu0 0.0
    %7165 = vmatprep.subr.mxu0 0.0
    %7166 = vmatpush2.msra.mxu0 0.0
    %7167 = vmatprep.mubr.f32.mxu0 0.0
    %7168 = vmatmul.mubr.f32.gmra.mxu0 %v6186
    %v7169 = vpop.f32.mrf.mxu0
    %v7170 = vadd.f32 0.0, %v7169
    %v7171 = vpop.f32.mrf.mxu0
    %7172 = vmatprep.mubr.f32.mxu0 0.0
    %7173 = vmatmul.mubr.f32.gmra.mxu0 %v6189
    %v7174 = vpop.f32.mrf.mxu0
    %v7175 = vadd.f32 0.0, %v7174
    %v7176 = vpop.f32.mrf.mxu0
    %7177 = vdwg.mxu0
    %7178 = vmatprep.subr.mxu0 0.0
    %7179 = vmatpush1.msra.mxu0 0.0
    %7180 = vmatprep.subr.mxu0 0.0
    %7181 = vmatpush1.msra.mxu0 0.0
    %7182 = vmatprep.subr.mxu0 0.0
    %7183 = vmatpush1.msra.mxu0 0.0
    %7184 = vmatprep.subr.mxu0 0.0
    %7185 = vmatpush1.msra.mxu0 0.0
    %7186 = vmatprep.subr.mxu0 0.0
    %7187 = vmatpush1.msra.mxu0 0.0
    %7188 = vmatprep.subr.mxu0 0.0
    %7189 = vmatpush1.msra.mxu0 0.0
    %7190 = vmatprep.subr.mxu0 0.0
    %7191 = vmatpush1.msra.mxu0 0.0
    %7192 = vmatprep.subr.mxu0 0.0
    %7193 = vmatpush1.msra.mxu0 0.0
    %7194 = vmatprep.subr.mxu0 0.0
    %7195 = vmatpush1.msra.mxu0 0.0
    %7196 = vmatprep.subr.mxu0 0.0
    %7197 = vmatpush1.msra.mxu0 0.0
    %7198 = vmatprep.subr.mxu0 0.0
    %7199 = vmatpush1.msra.mxu0 0.0
    %7200 = vmatprep.subr.mxu0 0.0
    %7201 = vmatpush1.msra.mxu0 0.0
    %7202 = vmatprep.subr.mxu0 0.0
    %7203 = vmatpush1.msra.mxu0 0.0
    %7204 = vmatprep.subr.mxu0 0.0
    %7205 = vmatpush1.msra.mxu0 0.0
    %7206 = vmatprep.subr.mxu0 0.0
    %7207 = vmatpush1.msra.mxu0 %v7175
    %7208 = vmatprep.subr.mxu0 0.0
    %7209 = vmatpush1.msra.mxu0 %v7170
    %7210 = vmatprep.subr.mxu0 0.0
    %7211 = vmatpush2.msra.mxu0 0.0
    %7212 = vmatprep.subr.mxu0 0.0
    %7213 = vmatpush2.msra.mxu0 0.0
    %7214 = vmatprep.subr.mxu0 0.0
    %7215 = vmatpush2.msra.mxu0 0.0
    %7216 = vmatprep.subr.mxu0 0.0
    %7217 = vmatpush2.msra.mxu0 0.0
    %7218 = vmatprep.subr.mxu0 0.0
    %7219 = vmatpush2.msra.mxu0 0.0
    %7220 = vmatprep.subr.mxu0 0.0
    %7221 = vmatpush2.msra.mxu0 0.0
    %7222 = vmatprep.subr.mxu0 0.0
    %7223 = vmatpush2.msra.mxu0 0.0
    %7224 = vmatprep.subr.mxu0 0.0
    %7225 = vmatpush2.msra.mxu0 0.0
    %7226 = vmatprep.subr.mxu0 0.0
    %7227 = vmatpush2.msra.mxu0 0.0
    %7228 = vmatprep.subr.mxu0 0.0
    %7229 = vmatpush2.msra.mxu0 0.0
    %7230 = vmatprep.subr.mxu0 0.0
    %7231 = vmatpush2.msra.mxu0 0.0
    %7232 = vmatprep.subr.mxu0 0.0
    %7233 = vmatpush2.msra.mxu0 0.0
    %7234 = vmatprep.subr.mxu0 0.0
    %7235 = vmatpush2.msra.mxu0 0.0
    %7236 = vmatprep.subr.mxu0 0.0
    %7237 = vmatpush2.msra.mxu0 0.0
    %7238 = vmatprep.subr.mxu0 0.0
    %7239 = vmatpush2.msra.mxu0 0.0
    %7240 = vmatprep.subr.mxu0 0.0
    %7241 = vmatpush2.msra.mxu0 0.0
    %7242 = vmatprep.mubr.f32.mxu0 0.0
    %7243 = vmatmul.mubr.f32.gmra.mxu0 %v6654
    %v7244 = vpop.f32.mrf.mxu0
    %v7245 = vadd.f32 0.0, %v7244
    %v7246 = vpop.f32.mrf.mxu0
    %7247 = vmatprep.mubr.f32.mxu0 0.0
    %7248 = vmatmul.mubr.f32.gmra.mxu0 %v6657
    %v7249 = vpop.f32.mrf.mxu0
    %v7250 = vadd.f32 0.0, %v7249
    %v7251 = vpop.f32.mrf.mxu0
    %7252 = vdwg.mxu0
    %v7253 = vadd.f32 %v7084, %v7245
    %v7254 = vadd.f32 %v7085, %v7250
    %s7255 = scalar_lea.vmem %s51, 208
    %v7256 = vld [vmem:[%s7255] sm:$0xff]
    %v7257 = vld [vmem:[%s7255 + $0x8] sm:$0xff]
    %v7258 = vld [vmem:[%s7255 + $0x10] sm:$0xff]
    %v7259 = vld [vmem:[%s7255 + $0x18] sm:$0xff]
    %v7260 = vld [vmem:[%s7255 + $0x20] sm:$0xff]
    %v7261 = vld [vmem:[%s7255 + $0x28] sm:$0xff]
    %v7262 = vld [vmem:[%s7255 + $0x30] sm:$0xff]
    %v7263 = vld [vmem:[%s7255 + $0x38] sm:$0xff]
    %v7264 = vld [vmem:[%s7255 + $0x40] sm:$0xff]
    %v7265 = vld [vmem:[%s7255 + $0x48] sm:$0xff]
    %v7266 = vld [vmem:[%s7255 + $0x50] sm:$0xff]
    %v7267 = vld [vmem:[%s7255 + $0x58] sm:$0xff]
    %v7268 = vld [vmem:[%s7255 + $0x60] sm:$0xf]
    %v7270 = vsel %vm6191, %v7268, 0
    %7272 = vmatprep.subr.mxu0 0.0
    %7273 = vmatpush1.msra.mxu0 0.0
    %7274 = vmatprep.subr.mxu0 0.0
    %7275 = vmatpush1.msra.mxu0 0.0
    %7276 = vmatprep.subr.mxu0 0.0
    %7277 = vmatpush1.msra.mxu0 0.0
    %7278 = vmatprep.subr.mxu0 0.0
    %7279 = vmatpush1.msra.mxu0 %v7270
    %7280 = vmatprep.subr.mxu0 0.0
    %7281 = vmatpush1.msra.mxu0 %v7267
    %7282 = vmatprep.subr.mxu0 0.0
    %7283 = vmatpush1.msra.mxu0 %v7266
    %7284 = vmatprep.subr.mxu0 0.0
    %7285 = vmatpush1.msra.mxu0 %v7265
    %7286 = vmatprep.subr.mxu0 0.0
    %7287 = vmatpush1.msra.mxu0 %v7264
    %7288 = vmatprep.subr.mxu0 0.0
    %7289 = vmatpush1.msra.mxu0 %v7263
    %7290 = vmatprep.subr.mxu0 0.0
    %7291 = vmatpush1.msra.mxu0 %v7262
    %7292 = vmatprep.subr.mxu0 0.0
    %7293 = vmatpush1.msra.mxu0 %v7261
    %7294 = vmatprep.subr.mxu0 0.0
    %7295 = vmatpush1.msra.mxu0 %v7260
    %7296 = vmatprep.subr.mxu0 0.0
    %7297 = vmatpush1.msra.mxu0 %v7259
    %7298 = vmatprep.subr.mxu0 0.0
    %7299 = vmatpush1.msra.mxu0 %v7258
    %7300 = vmatprep.subr.mxu0 0.0
    %7301 = vmatpush1.msra.mxu0 %v7257
    %7302 = vmatprep.subr.mxu0 0.0
    %7303 = vmatpush1.msra.mxu0 %v7256
    %7304 = vmatprep.subr.mxu0 0.0
    %7305 = vmatpush2.msra.mxu0 0.0
    %7306 = vmatprep.subr.mxu0 0.0
    %7307 = vmatpush2.msra.mxu0 0.0
    %7308 = vmatprep.subr.mxu0 0.0
    %7309 = vmatpush2.msra.mxu0 0.0
    %7310 = vmatprep.subr.mxu0 0.0
    %7311 = vmatpush2.msra.mxu0 0.0
    %7312 = vmatprep.subr.mxu0 0.0
    %7313 = vmatpush2.msra.mxu0 0.0
    %7314 = vmatprep.subr.mxu0 0.0
    %7315 = vmatpush2.msra.mxu0 0.0
    %7316 = vmatprep.subr.mxu0 0.0
    %7317 = vmatpush2.msra.mxu0 0.0
    %7318 = vmatprep.subr.mxu0 0.0
    %7319 = vmatpush2.msra.mxu0 0.0
    %7320 = vmatprep.subr.mxu0 0.0
    %7321 = vmatpush2.msra.mxu0 0.0
    %7322 = vmatprep.subr.mxu0 0.0
    %7323 = vmatpush2.msra.mxu0 0.0
    %7324 = vmatprep.subr.mxu0 0.0
    %7325 = vmatpush2.msra.mxu0 0.0
    %7326 = vmatprep.subr.mxu0 0.0
    %7327 = vmatpush2.msra.mxu0 0.0
    %7328 = vmatprep.subr.mxu0 0.0
    %7329 = vmatpush2.msra.mxu0 0.0
    %7330 = vmatprep.subr.mxu0 0.0
    %7331 = vmatpush2.msra.mxu0 0.0
    %7332 = vmatprep.subr.mxu0 0.0
    %7333 = vmatpush2.msra.mxu0 0.0
    %7334 = vmatprep.subr.mxu0 0.0
    %7335 = vmatpush2.msra.mxu0 0.0
    %7336 = vmatprep.mubr.f32.mxu0 0.0
    %7337 = vmatmul.mubr.f32.gmra.mxu0 %v6186
    %v7338 = vpop.f32.mrf.mxu0
    %v7339 = vadd.f32 0.0, %v7338
    %v7340 = vpop.f32.mrf.mxu0
    %7341 = vmatprep.mubr.f32.mxu0 0.0
    %7342 = vmatmul.mubr.f32.gmra.mxu0 %v6189
    %v7343 = vpop.f32.mrf.mxu0
    %v7344 = vadd.f32 0.0, %v7343
    %v7345 = vpop.f32.mrf.mxu0
    %7346 = vdwg.mxu0
    %7347 = vmatprep.subr.mxu0 0.0
    %7348 = vmatpush1.msra.mxu0 0.0
    %7349 = vmatprep.subr.mxu0 0.0
    %7350 = vmatpush1.msra.mxu0 0.0
    %7351 = vmatprep.subr.mxu0 0.0
    %7352 = vmatpush1.msra.mxu0 0.0
    %7353 = vmatprep.subr.mxu0 0.0
    %7354 = vmatpush1.msra.mxu0 0.0
    %7355 = vmatprep.subr.mxu0 0.0
    %7356 = vmatpush1.msra.mxu0 0.0
    %7357 = vmatprep.subr.mxu0 0.0
    %7358 = vmatpush1.msra.mxu0 0.0
    %7359 = vmatprep.subr.mxu0 0.0
    %7360 = vmatpush1.msra.mxu0 0.0
    %7361 = vmatprep.subr.mxu0 0.0
    %7362 = vmatpush1.msra.mxu0 0.0
    %7363 = vmatprep.subr.mxu0 0.0
    %7364 = vmatpush1.msra.mxu0 0.0
    %7365 = vmatprep.subr.mxu0 0.0
    %7366 = vmatpush1.msra.mxu0 0.0
    %7367 = vmatprep.subr.mxu0 0.0
    %7368 = vmatpush1.msra.mxu0 0.0
    %7369 = vmatprep.subr.mxu0 0.0
    %7370 = vmatpush1.msra.mxu0 0.0
    %7371 = vmatprep.subr.mxu0 0.0
    %7372 = vmatpush1.msra.mxu0 0.0
    %7373 = vmatprep.subr.mxu0 0.0
    %7374 = vmatpush1.msra.mxu0 0.0
    %7375 = vmatprep.subr.mxu0 0.0
    %7376 = vmatpush1.msra.mxu0 %v7344
    %7377 = vmatprep.subr.mxu0 0.0
    %7378 = vmatpush1.msra.mxu0 %v7339
    %7379 = vmatprep.subr.mxu0 0.0
    %7380 = vmatpush2.msra.mxu0 0.0
    %7381 = vmatprep.subr.mxu0 0.0
    %7382 = vmatpush2.msra.mxu0 0.0
    %7383 = vmatprep.subr.mxu0 0.0
    %7384 = vmatpush2.msra.mxu0 0.0
    %7385 = vmatprep.subr.mxu0 0.0
    %7386 = vmatpush2.msra.mxu0 0.0
    %7387 = vmatprep.subr.mxu0 0.0
    %7388 = vmatpush2.msra.mxu0 0.0
    %7389 = vmatprep.subr.mxu0 0.0
    %7390 = vmatpush2.msra.mxu0 0.0
    %7391 = vmatprep.subr.mxu0 0.0
    %7392 = vmatpush2.msra.mxu0 0.0
    %7393 = vmatprep.subr.mxu0 0.0
    %7394 = vmatpush2.msra.mxu0 0.0
    %7395 = vmatprep.subr.mxu0 0.0
    %7396 = vmatpush2.msra.mxu0 0.0
    %7397 = vmatprep.subr.mxu0 0.0
    %7398 = vmatpush2.msra.mxu0 0.0
    %7399 = vmatprep.subr.mxu0 0.0
    %7400 = vmatpush2.msra.mxu0 0.0
    %7401 = vmatprep.subr.mxu0 0.0
    %7402 = vmatpush2.msra.mxu0 0.0
    %7403 = vmatprep.subr.mxu0 0.0
    %7404 = vmatpush2.msra.mxu0 0.0
    %7405 = vmatprep.subr.mxu0 0.0
    %7406 = vmatpush2.msra.mxu0 0.0
    %7407 = vmatprep.subr.mxu0 0.0
    %7408 = vmatpush2.msra.mxu0 0.0
    %7409 = vmatprep.subr.mxu0 0.0
    %7410 = vmatpush2.msra.mxu0 0.0
    %7411 = vmatprep.mubr.f32.mxu0 0.0
    %7412 = vmatmul.mubr.f32.gmra.mxu0 %v6829
    %v7413 = vpop.f32.mrf.mxu0
    %v7414 = vadd.f32 0.0, %v7413
    %v7415 = vpop.f32.mrf.mxu0
    %7416 = vmatprep.mubr.f32.mxu0 0.0
    %7417 = vmatmul.mubr.f32.gmra.mxu0 %v6832
    %v7418 = vpop.f32.mrf.mxu0
    %v7419 = vadd.f32 0.0, %v7418
    %v7420 = vpop.f32.mrf.mxu0
    %7421 = vdwg.mxu0
    %v7422 = vadd.f32 %v7253, %v7414
    %v7423 = vadd.f32 %v7254, %v7419
    %v7424 = vmax.f32 %v7422, 0.0
    %v7425 = vmax.f32 %v7423, 0.0
    %v7426 = vld [vmem:[%s57] sm:$0x1]
    %v7428 = vlaneseq
    %v7429 = vshrl.u32 %v7428, 7
    %v7430 = vsub.s32 0, %v7429
    %v7431 = vrot.slane %v7426, %v7430
    %v7433 = vld [vmem:[%s55] sm:$0xff]
    %v7434 = vld [vmem:[%s55 + $0x8] sm:$0xff]
    %v7435 = vld [vmem:[%s55 + $0x10] sm:$0xff]
    %v7436 = vld [vmem:[%s55 + $0x18] sm:$0xff]
    %v7437 = vld [vmem:[%s55 + $0x20] sm:$0xff]
    %v7438 = vld [vmem:[%s55 + $0x28] sm:$0xff]
    %v7439 = vld [vmem:[%s55 + $0x30] sm:$0xff]
    %v7440 = vld [vmem:[%s55 + $0x38] sm:$0xff]
    %v7441 = vld [vmem:[%s55 + $0x40] sm:$0xff]
    %v7442 = vld [vmem:[%s55 + $0x48] sm:$0xff]
    %v7443 = vld [vmem:[%s55 + $0x50] sm:$0xff]
    %v7444 = vld [vmem:[%s55 + $0x58] sm:$0xff]
    %v7445 = vld [vmem:[%s55 + $0x60] sm:$0xf]
    %v7447 = vsel %vm6184, %v7424, 0
    %v7450 = vsel %vm6184, %v7425, 0
    %v7453 = vsel %vm6191, %v7445, 0
    %7455 = vmatprep.subr.mxu0 0.0
    %7456 = vmatpush1.msra.mxu0 0.0
    %7457 = vmatprep.subr.mxu0 0.0
    %7458 = vmatpush1.msra.mxu0 0.0
    %7459 = vmatprep.subr.mxu0 0.0
    %7460 = vmatpush1.msra.mxu0 0.0
    %7461 = vmatprep.subr.mxu0 0.0
    %7462 = vmatpush1.msra.mxu0 %v7453
    %7463 = vmatprep.subr.mxu0 0.0
    %7464 = vmatpush1.msra.mxu0 %v7444
    %7465 = vmatprep.subr.mxu0 0.0
    %7466 = vmatpush1.msra.mxu0 %v7443
    %7467 = vmatprep.subr.mxu0 0.0
    %7468 = vmatpush1.msra.mxu0 %v7442
    %7469 = vmatprep.subr.mxu0 0.0
    %7470 = vmatpush1.msra.mxu0 %v7441
    %7471 = vmatprep.subr.mxu0 0.0
    %7472 = vmatpush1.msra.mxu0 %v7440
    %7473 = vmatprep.subr.mxu0 0.0
    %7474 = vmatpush1.msra.mxu0 %v7439
    %7475 = vmatprep.subr.mxu0 0.0
    %7476 = vmatpush1.msra.mxu0 %v7438
    %7477 = vmatprep.subr.mxu0 0.0
    %7478 = vmatpush1.msra.mxu0 %v7437
    %7479 = vmatprep.subr.mxu0 0.0
    %7480 = vmatpush1.msra.mxu0 %v7436
    %7481 = vmatprep.subr.mxu0 0.0
    %7482 = vmatpush1.msra.mxu0 %v7435
    %7483 = vmatprep.subr.mxu0 0.0
    %7484 = vmatpush1.msra.mxu0 %v7434
    %7485 = vmatprep.subr.mxu0 0.0
    %7486 = vmatpush1.msra.mxu0 %v7433
    %7487 = vmatprep.subr.mxu0 0.0
    %7488 = vmatpush2.msra.mxu0 0.0
    %7489 = vmatprep.subr.mxu0 0.0
    %7490 = vmatpush2.msra.mxu0 0.0
    %7491 = vmatprep.subr.mxu0 0.0
    %7492 = vmatpush2.msra.mxu0 0.0
    %7493 = vmatprep.subr.mxu0 0.0
    %7494 = vmatpush2.msra.mxu0 0.0
    %7495 = vmatprep.subr.mxu0 0.0
    %7496 = vmatpush2.msra.mxu0 0.0
    %7497 = vmatprep.subr.mxu0 0.0
    %7498 = vmatpush2.msra.mxu0 0.0
    %7499 = vmatprep.subr.mxu0 0.0
    %7500 = vmatpush2.msra.mxu0 0.0
    %7501 = vmatprep.subr.mxu0 0.0
    %7502 = vmatpush2.msra.mxu0 0.0
    %7503 = vmatprep.subr.mxu0 0.0
    %7504 = vmatpush2.msra.mxu0 0.0
    %7505 = vmatprep.subr.mxu0 0.0
    %7506 = vmatpush2.msra.mxu0 0.0
    %7507 = vmatprep.subr.mxu0 0.0
    %7508 = vmatpush2.msra.mxu0 0.0
    %7509 = vmatprep.subr.mxu0 0.0
    %7510 = vmatpush2.msra.mxu0 0.0
    %7511 = vmatprep.subr.mxu0 0.0
    %7512 = vmatpush2.msra.mxu0 0.0
    %7513 = vmatprep.subr.mxu0 0.0
    %7514 = vmatpush2.msra.mxu0 0.0
    %7515 = vmatprep.subr.mxu0 0.0
    %7516 = vmatpush2.msra.mxu0 0.0
    %7517 = vmatprep.subr.mxu0 0.0
    %7518 = vmatpush2.msra.mxu0 0.0
    %7519 = vmatprep.mubr.f32.mxu0 0.0
    %7520 = vmatmul.mubr.f32.gmra.mxu0 %v7447
    %v7521 = vpop.f32.mrf.mxu0
    %v7522 = vadd.f32 0.0, %v7521
    %v7523 = vpop.f32.mrf.mxu0
    %7524 = vmatprep.mubr.f32.mxu0 0.0
    %7525 = vmatmul.mubr.f32.gmra.mxu0 %v7450
    %v7526 = vpop.f32.mrf.mxu0
    %v7527 = vadd.f32 0.0, %v7526
    %v7528 = vpop.f32.mrf.mxu0
    %7529 = vdwg.mxu0
    %v7531 = vsel %vm724, %v6124, 0
    %v7534 = vsel %vm724, %v6125, 0
    %7536 = vmatprep.subr.mxu0 0.0
    %7537 = vmatpush1.msra.mxu0 0.0
    %7538 = vmatprep.subr.mxu0 0.0
    %7539 = vmatpush1.msra.mxu0 0.0
    %7540 = vmatprep.subr.mxu0 0.0
    %7541 = vmatpush1.msra.mxu0 0.0
    %7542 = vmatprep.subr.mxu0 0.0
    %7543 = vmatpush1.msra.mxu0 0.0
    %7544 = vmatprep.subr.mxu0 0.0
    %7545 = vmatpush1.msra.mxu0 0.0
    %7546 = vmatprep.subr.mxu0 0.0
    %7547 = vmatpush1.msra.mxu0 0.0
    %7548 = vmatprep.subr.mxu0 0.0
    %7549 = vmatpush1.msra.mxu0 0.0
    %7550 = vmatprep.subr.mxu0 0.0
    %7551 = vmatpush1.msra.mxu0 0.0
    %7552 = vmatprep.subr.mxu0 0.0
    %7553 = vmatpush1.msra.mxu0 0.0
    %7554 = vmatprep.subr.mxu0 0.0
    %7555 = vmatpush1.msra.mxu0 0.0
    %7556 = vmatprep.subr.mxu0 0.0
    %7557 = vmatpush1.msra.mxu0 0.0
    %7558 = vmatprep.subr.mxu0 0.0
    %7559 = vmatpush1.msra.mxu0 0.0
    %7560 = vmatprep.subr.mxu0 0.0
    %7561 = vmatpush1.msra.mxu0 0.0
    %7562 = vmatprep.subr.mxu0 0.0
    %7563 = vmatpush1.msra.mxu0 0.0
    %7564 = vmatprep.subr.mxu0 0.0
    %7565 = vmatpush1.msra.mxu0 %v7527
    %7566 = vmatprep.subr.mxu0 0.0
    %7567 = vmatpush1.msra.mxu0 %v7522
    %7568 = vmatprep.subr.mxu0 0.0
    %7569 = vmatpush2.msra.mxu0 0.0
    %7570 = vmatprep.subr.mxu0 0.0
    %7571 = vmatpush2.msra.mxu0 0.0
    %7572 = vmatprep.subr.mxu0 0.0
    %7573 = vmatpush2.msra.mxu0 0.0
    %7574 = vmatprep.subr.mxu0 0.0
    %7575 = vmatpush2.msra.mxu0 0.0
    %7576 = vmatprep.subr.mxu0 0.0
    %7577 = vmatpush2.msra.mxu0 0.0
    %7578 = vmatprep.subr.mxu0 0.0
    %7579 = vmatpush2.msra.mxu0 0.0
    %7580 = vmatprep.subr.mxu0 0.0
    %7581 = vmatpush2.msra.mxu0 0.0
    %7582 = vmatprep.subr.mxu0 0.0
    %7583 = vmatpush2.msra.mxu0 0.0
    %7584 = vmatprep.subr.mxu0 0.0
    %7585 = vmatpush2.msra.mxu0 0.0
    %7586 = vmatprep.subr.mxu0 0.0
    %7587 = vmatpush2.msra.mxu0 0.0
    %7588 = vmatprep.subr.mxu0 0.0
    %7589 = vmatpush2.msra.mxu0 0.0
    %7590 = vmatprep.subr.mxu0 0.0
    %7591 = vmatpush2.msra.mxu0 0.0
    %7592 = vmatprep.subr.mxu0 0.0
    %7593 = vmatpush2.msra.mxu0 0.0
    %7594 = vmatprep.subr.mxu0 0.0
    %7595 = vmatpush2.msra.mxu0 0.0
    %7596 = vmatprep.subr.mxu0 0.0
    %7597 = vmatpush2.msra.mxu0 0.0
    %7598 = vmatprep.subr.mxu0 0.0
    %7599 = vmatpush2.msra.mxu0 0.0
    %7600 = vmatprep.mubr.f32.mxu0 0.0
    %7601 = vmatmul.mubr.f32.gmra.mxu0 %v7531
    %v7602 = vpop.f32.mrf.mxu0
    %v7603 = vadd.f32 0.0, %v7602
    %v7604 = vpop.f32.mrf.mxu0
    %7605 = vmatprep.mubr.f32.mxu0 0.0
    %7606 = vmatmul.mubr.f32.gmra.mxu0 %v7534
    %v7607 = vpop.f32.mrf.mxu0
    %v7608 = vadd.f32 0.0, %v7607
    %v7609 = vpop.f32.mrf.mxu0
    %7610 = vdwg.mxu0
    %v7611 = vadd.f32 %v7431, %v7603
    %v7612 = vadd.f32 %v7431, %v7608
    %s7613 = scalar_lea.vmem %s55, 104
    %v7614 = vld [vmem:[%s7613] sm:$0xff]
    %v7615 = vld [vmem:[%s7613 + $0x8] sm:$0xff]
    %v7616 = vld [vmem:[%s7613 + $0x10] sm:$0xff]
    %v7617 = vld [vmem:[%s7613 + $0x18] sm:$0xff]
    %v7618 = vld [vmem:[%s7613 + $0x20] sm:$0xff]
    %v7619 = vld [vmem:[%s7613 + $0x28] sm:$0xff]
    %v7620 = vld [vmem:[%s7613 + $0x30] sm:$0xff]
    %v7621 = vld [vmem:[%s7613 + $0x38] sm:$0xff]
    %v7622 = vld [vmem:[%s7613 + $0x40] sm:$0xff]
    %v7623 = vld [vmem:[%s7613 + $0x48] sm:$0xff]
    %v7624 = vld [vmem:[%s7613 + $0x50] sm:$0xff]
    %v7625 = vld [vmem:[%s7613 + $0x58] sm:$0xff]
    %v7626 = vld [vmem:[%s7613 + $0x60] sm:$0xf]
    %v7628 = vsel %vm6191, %v7626, 0
    %7630 = vmatprep.subr.mxu0 0.0
    %7631 = vmatpush1.msra.mxu0 0.0
    %7632 = vmatprep.subr.mxu0 0.0
    %7633 = vmatpush1.msra.mxu0 0.0
    %7634 = vmatprep.subr.mxu0 0.0
    %7635 = vmatpush1.msra.mxu0 0.0
    %7636 = vmatprep.subr.mxu0 0.0
    %7637 = vmatpush1.msra.mxu0 %v7628
    %7638 = vmatprep.subr.mxu0 0.0
    %7639 = vmatpush1.msra.mxu0 %v7625
    %7640 = vmatprep.subr.mxu0 0.0
    %7641 = vmatpush1.msra.mxu0 %v7624
    %7642 = vmatprep.subr.mxu0 0.0
    %7643 = vmatpush1.msra.mxu0 %v7623
    %7644 = vmatprep.subr.mxu0 0.0
    %7645 = vmatpush1.msra.mxu0 %v7622
    %7646 = vmatprep.subr.mxu0 0.0
    %7647 = vmatpush1.msra.mxu0 %v7621
    %7648 = vmatprep.subr.mxu0 0.0
    %7649 = vmatpush1.msra.mxu0 %v7620
    %7650 = vmatprep.subr.mxu0 0.0
    %7651 = vmatpush1.msra.mxu0 %v7619
    %7652 = vmatprep.subr.mxu0 0.0
    %7653 = vmatpush1.msra.mxu0 %v7618
    %7654 = vmatprep.subr.mxu0 0.0
    %7655 = vmatpush1.msra.mxu0 %v7617
    %7656 = vmatprep.subr.mxu0 0.0
    %7657 = vmatpush1.msra.mxu0 %v7616
    %7658 = vmatprep.subr.mxu0 0.0
    %7659 = vmatpush1.msra.mxu0 %v7615
    %7660 = vmatprep.subr.mxu0 0.0
    %7661 = vmatpush1.msra.mxu0 %v7614
    %7662 = vmatprep.subr.mxu0 0.0
    %7663 = vmatpush2.msra.mxu0 0.0
    %7664 = vmatprep.subr.mxu0 0.0
    %7665 = vmatpush2.msra.mxu0 0.0
    %7666 = vmatprep.subr.mxu0 0.0
    %7667 = vmatpush2.msra.mxu0 0.0
    %7668 = vmatprep.subr.mxu0 0.0
    %7669 = vmatpush2.msra.mxu0 0.0
    %7670 = vmatprep.subr.mxu0 0.0
    %7671 = vmatpush2.msra.mxu0 0.0
    %7672 = vmatprep.subr.mxu0 0.0
    %7673 = vmatpush2.msra.mxu0 0.0
    %7674 = vmatprep.subr.mxu0 0.0
    %7675 = vmatpush2.msra.mxu0 0.0
    %7676 = vmatprep.subr.mxu0 0.0
    %7677 = vmatpush2.msra.mxu0 0.0
    %7678 = vmatprep.subr.mxu0 0.0
    %7679 = vmatpush2.msra.mxu0 0.0
    %7680 = vmatprep.subr.mxu0 0.0
    %7681 = vmatpush2.msra.mxu0 0.0
    %7682 = vmatprep.subr.mxu0 0.0
    %7683 = vmatpush2.msra.mxu0 0.0
    %7684 = vmatprep.subr.mxu0 0.0
    %7685 = vmatpush2.msra.mxu0 0.0
    %7686 = vmatprep.subr.mxu0 0.0
    %7687 = vmatpush2.msra.mxu0 0.0
    %7688 = vmatprep.subr.mxu0 0.0
    %7689 = vmatpush2.msra.mxu0 0.0
    %7690 = vmatprep.subr.mxu0 0.0
    %7691 = vmatpush2.msra.mxu0 0.0
    %7692 = vmatprep.subr.mxu0 0.0
    %7693 = vmatpush2.msra.mxu0 0.0
    %7694 = vmatprep.mubr.f32.mxu0 0.0
    %7695 = vmatmul.mubr.f32.gmra.mxu0 %v7447
    %v7696 = vpop.f32.mrf.mxu0
    %v7697 = vadd.f32 0.0, %v7696
    %v7698 = vpop.f32.mrf.mxu0
    %7699 = vmatprep.mubr.f32.mxu0 0.0
    %7700 = vmatmul.mubr.f32.gmra.mxu0 %v7450
    %v7701 = vpop.f32.mrf.mxu0
    %v7702 = vadd.f32 0.0, %v7701
    %v7703 = vpop.f32.mrf.mxu0
    %7704 = vdwg.mxu0
    %7705 = vmatprep.subr.mxu0 0.0
    %7706 = vmatpush1.msra.mxu0 0.0
    %7707 = vmatprep.subr.mxu0 0.0
    %7708 = vmatpush1.msra.mxu0 0.0
    %7709 = vmatprep.subr.mxu0 0.0
    %7710 = vmatpush1.msra.mxu0 0.0
    %7711 = vmatprep.subr.mxu0 0.0
    %7712 = vmatpush1.msra.mxu0 0.0
    %7713 = vmatprep.subr.mxu0 0.0
    %7714 = vmatpush1.msra.mxu0 0.0
    %7715 = vmatprep.subr.mxu0 0.0
    %7716 = vmatpush1.msra.mxu0 0.0
    %7717 = vmatprep.subr.mxu0 0.0
    %7718 = vmatpush1.msra.mxu0 0.0
    %7719 = vmatprep.subr.mxu0 0.0
    %7720 = vmatpush1.msra.mxu0 0.0
    %7721 = vmatprep.subr.mxu0 0.0
    %7722 = vmatpush1.msra.mxu0 0.0
    %7723 = vmatprep.subr.mxu0 0.0
    %7724 = vmatpush1.msra.mxu0 0.0
    %7725 = vmatprep.subr.mxu0 0.0
    %7726 = vmatpush1.msra.mxu0 0.0
    %7727 = vmatprep.subr.mxu0 0.0
    %7728 = vmatpush1.msra.mxu0 0.0
    %7729 = vmatprep.subr.mxu0 0.0
    %7730 = vmatpush1.msra.mxu0 0.0
    %7731 = vmatprep.subr.mxu0 0.0
    %7732 = vmatpush1.msra.mxu0 0.0
    %7733 = vmatprep.subr.mxu0 0.0
    %7734 = vmatpush1.msra.mxu0 %v7702
    %7735 = vmatprep.subr.mxu0 0.0
    %7736 = vmatpush1.msra.mxu0 %v7697
    %7737 = vmatprep.subr.mxu0 0.0
    %7738 = vmatpush2.msra.mxu0 0.0
    %7739 = vmatprep.subr.mxu0 0.0
    %7740 = vmatpush2.msra.mxu0 0.0
    %7741 = vmatprep.subr.mxu0 0.0
    %7742 = vmatpush2.msra.mxu0 0.0
    %7743 = vmatprep.subr.mxu0 0.0
    %7744 = vmatpush2.msra.mxu0 0.0
    %7745 = vmatprep.subr.mxu0 0.0
    %7746 = vmatpush2.msra.mxu0 0.0
    %7747 = vmatprep.subr.mxu0 0.0
    %7748 = vmatpush2.msra.mxu0 0.0
    %7749 = vmatprep.subr.mxu0 0.0
    %7750 = vmatpush2.msra.mxu0 0.0
    %7751 = vmatprep.subr.mxu0 0.0
    %7752 = vmatpush2.msra.mxu0 0.0
    %7753 = vmatprep.subr.mxu0 0.0
    %7754 = vmatpush2.msra.mxu0 0.0
    %7755 = vmatprep.subr.mxu0 0.0
    %7756 = vmatpush2.msra.mxu0 0.0
    %7757 = vmatprep.subr.mxu0 0.0
    %7758 = vmatpush2.msra.mxu0 0.0
    %7759 = vmatprep.subr.mxu0 0.0
    %7760 = vmatpush2.msra.mxu0 0.0
    %7761 = vmatprep.subr.mxu0 0.0
    %7762 = vmatpush2.msra.mxu0 0.0
    %7763 = vmatprep.subr.mxu0 0.0
    %7764 = vmatpush2.msra.mxu0 0.0
    %7765 = vmatprep.subr.mxu0 0.0
    %7766 = vmatpush2.msra.mxu0 0.0
    %7767 = vmatprep.subr.mxu0 0.0
    %7768 = vmatpush2.msra.mxu0 0.0
    %7769 = vmatprep.mubr.f32.mxu0 0.0
    %7770 = vmatmul.mubr.f32.gmra.mxu0 %v6479
    %v7771 = vpop.f32.mrf.mxu0
    %v7772 = vadd.f32 0.0, %v7771
    %v7773 = vpop.f32.mrf.mxu0
    %7774 = vmatprep.mubr.f32.mxu0 0.0
    %7775 = vmatmul.mubr.f32.gmra.mxu0 %v6482
    %v7776 = vpop.f32.mrf.mxu0
    %v7777 = vadd.f32 0.0, %v7776
    %v7778 = vpop.f32.mrf.mxu0
    %7779 = vdwg.mxu0
    %v7780 = vadd.f32 %v7611, %v7772
    %v7781 = vadd.f32 %v7612, %v7777
    %s7782 = scalar_lea.vmem %s55, 208
    %v7783 = vld [vmem:[%s7782] sm:$0xff]
    %v7784 = vld [vmem:[%s7782 + $0x8] sm:$0xff]
    %v7785 = vld [vmem:[%s7782 + $0x10] sm:$0xff]
    %v7786 = vld [vmem:[%s7782 + $0x18] sm:$0xff]
    %v7787 = vld [vmem:[%s7782 + $0x20] sm:$0xff]
    %v7788 = vld [vmem:[%s7782 + $0x28] sm:$0xff]
    %v7789 = vld [vmem:[%s7782 + $0x30] sm:$0xff]
    %v7790 = vld [vmem:[%s7782 + $0x38] sm:$0xff]
    %v7791 = vld [vmem:[%s7782 + $0x40] sm:$0xff]
    %v7792 = vld [vmem:[%s7782 + $0x48] sm:$0xff]
    %v7793 = vld [vmem:[%s7782 + $0x50] sm:$0xff]
    %v7794 = vld [vmem:[%s7782 + $0x58] sm:$0xff]
    %v7795 = vld [vmem:[%s7782 + $0x60] sm:$0xf]
    %v7797 = vsel %vm6191, %v7795, 0
    %7799 = vmatprep.subr.mxu0 0.0
    %7800 = vmatpush1.msra.mxu0 0.0
    %7801 = vmatprep.subr.mxu0 0.0
    %7802 = vmatpush1.msra.mxu0 0.0
    %7803 = vmatprep.subr.mxu0 0.0
    %7804 = vmatpush1.msra.mxu0 0.0
    %7805 = vmatprep.subr.mxu0 0.0
    %7806 = vmatpush1.msra.mxu0 %v7797
    %7807 = vmatprep.subr.mxu0 0.0
    %7808 = vmatpush1.msra.mxu0 %v7794
    %7809 = vmatprep.subr.mxu0 0.0
    %7810 = vmatpush1.msra.mxu0 %v7793
    %7811 = vmatprep.subr.mxu0 0.0
    %7812 = vmatpush1.msra.mxu0 %v7792
    %7813 = vmatprep.subr.mxu0 0.0
    %7814 = vmatpush1.msra.mxu0 %v7791
    %7815 = vmatprep.subr.mxu0 0.0
    %7816 = vmatpush1.msra.mxu0 %v7790
    %7817 = vmatprep.subr.mxu0 0.0
    %7818 = vmatpush1.msra.mxu0 %v7789
    %7819 = vmatprep.subr.mxu0 0.0
    %7820 = vmatpush1.msra.mxu0 %v7788
    %7821 = vmatprep.subr.mxu0 0.0
    %7822 = vmatpush1.msra.mxu0 %v7787
    %7823 = vmatprep.subr.mxu0 0.0
    %7824 = vmatpush1.msra.mxu0 %v7786
    %7825 = vmatprep.subr.mxu0 0.0
    %7826 = vmatpush1.msra.mxu0 %v7785
    %7827 = vmatprep.subr.mxu0 0.0
    %7828 = vmatpush1.msra.mxu0 %v7784
    %7829 = vmatprep.subr.mxu0 0.0
    %7830 = vmatpush1.msra.mxu0 %v7783
    %7831 = vmatprep.subr.mxu0 0.0
    %7832 = vmatpush2.msra.mxu0 0.0
    %7833 = vmatprep.subr.mxu0 0.0
    %7834 = vmatpush2.msra.mxu0 0.0
    %7835 = vmatprep.subr.mxu0 0.0
    %7836 = vmatpush2.msra.mxu0 0.0
    %7837 = vmatprep.subr.mxu0 0.0
    %7838 = vmatpush2.msra.mxu0 0.0
    %7839 = vmatprep.subr.mxu0 0.0
    %7840 = vmatpush2.msra.mxu0 0.0
    %7841 = vmatprep.subr.mxu0 0.0
    %7842 = vmatpush2.msra.mxu0 0.0
    %7843 = vmatprep.subr.mxu0 0.0
    %7844 = vmatpush2.msra.mxu0 0.0
    %7845 = vmatprep.subr.mxu0 0.0
    %7846 = vmatpush2.msra.mxu0 0.0
    %7847 = vmatprep.subr.mxu0 0.0
    %7848 = vmatpush2.msra.mxu0 0.0
    %7849 = vmatprep.subr.mxu0 0.0
    %7850 = vmatpush2.msra.mxu0 0.0
    %7851 = vmatprep.subr.mxu0 0.0
    %7852 = vmatpush2.msra.mxu0 0.0
    %7853 = vmatprep.subr.mxu0 0.0
    %7854 = vmatpush2.msra.mxu0 0.0
    %7855 = vmatprep.subr.mxu0 0.0
    %7856 = vmatpush2.msra.mxu0 0.0
    %7857 = vmatprep.subr.mxu0 0.0
    %7858 = vmatpush2.msra.mxu0 0.0
    %7859 = vmatprep.subr.mxu0 0.0
    %7860 = vmatpush2.msra.mxu0 0.0
    %7861 = vmatprep.subr.mxu0 0.0
    %7862 = vmatpush2.msra.mxu0 0.0
    %7863 = vmatprep.mubr.f32.mxu0 0.0
    %7864 = vmatmul.mubr.f32.gmra.mxu0 %v7447
    %v7865 = vpop.f32.mrf.mxu0
    %v7866 = vadd.f32 0.0, %v7865
    %v7867 = vpop.f32.mrf.mxu0
    %7868 = vmatprep.mubr.f32.mxu0 0.0
    %7869 = vmatmul.mubr.f32.gmra.mxu0 %v7450
    %v7870 = vpop.f32.mrf.mxu0
    %v7871 = vadd.f32 0.0, %v7870
    %v7872 = vpop.f32.mrf.mxu0
    %7873 = vdwg.mxu0
    %7874 = vmatprep.subr.mxu0 0.0
    %7875 = vmatpush1.msra.mxu0 0.0
    %7876 = vmatprep.subr.mxu0 0.0
    %7877 = vmatpush1.msra.mxu0 0.0
    %7878 = vmatprep.subr.mxu0 0.0
    %7879 = vmatpush1.msra.mxu0 0.0
    %7880 = vmatprep.subr.mxu0 0.0
    %7881 = vmatpush1.msra.mxu0 0.0
    %7882 = vmatprep.subr.mxu0 0.0
    %7883 = vmatpush1.msra.mxu0 0.0
    %7884 = vmatprep.subr.mxu0 0.0
    %7885 = vmatpush1.msra.mxu0 0.0
    %7886 = vmatprep.subr.mxu0 0.0
    %7887 = vmatpush1.msra.mxu0 0.0
    %7888 = vmatprep.subr.mxu0 0.0
    %7889 = vmatpush1.msra.mxu0 0.0
    %7890 = vmatprep.subr.mxu0 0.0
    %7891 = vmatpush1.msra.mxu0 0.0
    %7892 = vmatprep.subr.mxu0 0.0
    %7893 = vmatpush1.msra.mxu0 0.0
    %7894 = vmatprep.subr.mxu0 0.0
    %7895 = vmatpush1.msra.mxu0 0.0
    %7896 = vmatprep.subr.mxu0 0.0
    %7897 = vmatpush1.msra.mxu0 0.0
    %7898 = vmatprep.subr.mxu0 0.0
    %7899 = vmatpush1.msra.mxu0 0.0
    %7900 = vmatprep.subr.mxu0 0.0
    %7901 = vmatpush1.msra.mxu0 0.0
    %7902 = vmatprep.subr.mxu0 0.0
    %7903 = vmatpush1.msra.mxu0 %v7871
    %7904 = vmatprep.subr.mxu0 0.0
    %7905 = vmatpush1.msra.mxu0 %v7866
    %7906 = vmatprep.subr.mxu0 0.0
    %7907 = vmatpush2.msra.mxu0 0.0
    %7908 = vmatprep.subr.mxu0 0.0
    %7909 = vmatpush2.msra.mxu0 0.0
    %7910 = vmatprep.subr.mxu0 0.0
    %7911 = vmatpush2.msra.mxu0 0.0
    %7912 = vmatprep.subr.mxu0 0.0
    %7913 = vmatpush2.msra.mxu0 0.0
    %7914 = vmatprep.subr.mxu0 0.0
    %7915 = vmatpush2.msra.mxu0 0.0
    %7916 = vmatprep.subr.mxu0 0.0
    %7917 = vmatpush2.msra.mxu0 0.0
    %7918 = vmatprep.subr.mxu0 0.0
    %7919 = vmatpush2.msra.mxu0 0.0
    %7920 = vmatprep.subr.mxu0 0.0
    %7921 = vmatpush2.msra.mxu0 0.0
    %7922 = vmatprep.subr.mxu0 0.0
    %7923 = vmatpush2.msra.mxu0 0.0
    %7924 = vmatprep.subr.mxu0 0.0
    %7925 = vmatpush2.msra.mxu0 0.0
    %7926 = vmatprep.subr.mxu0 0.0
    %7927 = vmatpush2.msra.mxu0 0.0
    %7928 = vmatprep.subr.mxu0 0.0
    %7929 = vmatpush2.msra.mxu0 0.0
    %7930 = vmatprep.subr.mxu0 0.0
    %7931 = vmatpush2.msra.mxu0 0.0
    %7932 = vmatprep.subr.mxu0 0.0
    %7933 = vmatpush2.msra.mxu0 0.0
    %7934 = vmatprep.subr.mxu0 0.0
    %7935 = vmatpush2.msra.mxu0 0.0
    %7936 = vmatprep.subr.mxu0 0.0
    %7937 = vmatpush2.msra.mxu0 0.0
    %7938 = vmatprep.mubr.f32.mxu0 0.0
    %7939 = vmatmul.mubr.f32.gmra.mxu0 %v6654
    %v7940 = vpop.f32.mrf.mxu0
    %v7941 = vadd.f32 0.0, %v7940
    %v7942 = vpop.f32.mrf.mxu0
    %7943 = vmatprep.mubr.f32.mxu0 0.0
    %7944 = vmatmul.mubr.f32.gmra.mxu0 %v6657
    %v7945 = vpop.f32.mrf.mxu0
    %v7946 = vadd.f32 0.0, %v7945
    %v7947 = vpop.f32.mrf.mxu0
    %7948 = vdwg.mxu0
    %v7949 = vadd.f32 %v7780, %v7941
    %v7950 = vadd.f32 %v7781, %v7946
    %s7951 = scalar_lea.vmem %s55, 312
    %v7952 = vld [vmem:[%s7951] sm:$0xff]
    %v7953 = vld [vmem:[%s7951 + $0x8] sm:$0xff]
    %v7954 = vld [vmem:[%s7951 + $0x10] sm:$0xff]
    %v7955 = vld [vmem:[%s7951 + $0x18] sm:$0xff]
    %v7956 = vld [vmem:[%s7951 + $0x20] sm:$0xff]
    %v7957 = vld [vmem:[%s7951 + $0x28] sm:$0xff]
    %v7958 = vld [vmem:[%s7951 + $0x30] sm:$0xff]
    %v7959 = vld [vmem:[%s7951 + $0x38] sm:$0xff]
    %v7960 = vld [vmem:[%s7951 + $0x40] sm:$0xff]
    %v7961 = vld [vmem:[%s7951 + $0x48] sm:$0xff]
    %v7962 = vld [vmem:[%s7951 + $0x50] sm:$0xff]
    %v7963 = vld [vmem:[%s7951 + $0x58] sm:$0xff]
    %v7964 = vld [vmem:[%s7951 + $0x60] sm:$0xf]
    %v7966 = vsel %vm6191, %v7964, 0
    %7968 = vmatprep.subr.mxu0 0.0
    %7969 = vmatpush1.msra.mxu0 0.0
    %7970 = vmatprep.subr.mxu0 0.0
    %7971 = vmatpush1.msra.mxu0 0.0
    %7972 = vmatprep.subr.mxu0 0.0
    %7973 = vmatpush1.msra.mxu0 0.0
    %7974 = vmatprep.subr.mxu0 0.0
    %7975 = vmatpush1.msra.mxu0 %v7966
    %7976 = vmatprep.subr.mxu0 0.0
    %7977 = vmatpush1.msra.mxu0 %v7963
    %7978 = vmatprep.subr.mxu0 0.0
    %7979 = vmatpush1.msra.mxu0 %v7962
    %7980 = vmatprep.subr.mxu0 0.0
    %7981 = vmatpush1.msra.mxu0 %v7961
    %7982 = vmatprep.subr.mxu0 0.0
    %7983 = vmatpush1.msra.mxu0 %v7960
    %7984 = vmatprep.subr.mxu0 0.0
    %7985 = vmatpush1.msra.mxu0 %v7959
    %7986 = vmatprep.subr.mxu0 0.0
    %7987 = vmatpush1.msra.mxu0 %v7958
    %7988 = vmatprep.subr.mxu0 0.0
    %7989 = vmatpush1.msra.mxu0 %v7957
    %7990 = vmatprep.subr.mxu0 0.0
    %7991 = vmatpush1.msra.mxu0 %v7956
    %7992 = vmatprep.subr.mxu0 0.0
    %7993 = vmatpush1.msra.mxu0 %v7955
    %7994 = vmatprep.subr.mxu0 0.0
    %7995 = vmatpush1.msra.mxu0 %v7954
    %7996 = vmatprep.subr.mxu0 0.0
    %7997 = vmatpush1.msra.mxu0 %v7953
    %7998 = vmatprep.subr.mxu0 0.0
    %7999 = vmatpush1.msra.mxu0 %v7952
    %8000 = vmatprep.subr.mxu0 0.0
    %8001 = vmatpush2.msra.mxu0 0.0
    %8002 = vmatprep.subr.mxu0 0.0
    %8003 = vmatpush2.msra.mxu0 0.0
    %8004 = vmatprep.subr.mxu0 0.0
    %8005 = vmatpush2.msra.mxu0 0.0
    %8006 = vmatprep.subr.mxu0 0.0
    %8007 = vmatpush2.msra.mxu0 0.0
    %8008 = vmatprep.subr.mxu0 0.0
    %8009 = vmatpush2.msra.mxu0 0.0
    %8010 = vmatprep.subr.mxu0 0.0
    %8011 = vmatpush2.msra.mxu0 0.0
    %8012 = vmatprep.subr.mxu0 0.0
    %8013 = vmatpush2.msra.mxu0 0.0
    %8014 = vmatprep.subr.mxu0 0.0
    %8015 = vmatpush2.msra.mxu0 0.0
    %8016 = vmatprep.subr.mxu0 0.0
    %8017 = vmatpush2.msra.mxu0 0.0
    %8018 = vmatprep.subr.mxu0 0.0
    %8019 = vmatpush2.msra.mxu0 0.0
    %8020 = vmatprep.subr.mxu0 0.0
    %8021 = vmatpush2.msra.mxu0 0.0
    %8022 = vmatprep.subr.mxu0 0.0
    %8023 = vmatpush2.msra.mxu0 0.0
    %8024 = vmatprep.subr.mxu0 0.0
    %8025 = vmatpush2.msra.mxu0 0.0
    %8026 = vmatprep.subr.mxu0 0.0
    %8027 = vmatpush2.msra.mxu0 0.0
    %8028 = vmatprep.subr.mxu0 0.0
    %8029 = vmatpush2.msra.mxu0 0.0
    %8030 = vmatprep.subr.mxu0 0.0
    %8031 = vmatpush2.msra.mxu0 0.0
    %8032 = vmatprep.mubr.f32.mxu0 0.0
    %8033 = vmatmul.mubr.f32.gmra.mxu0 %v7447
    %v8034 = vpop.f32.mrf.mxu0
    %v8035 = vadd.f32 0.0, %v8034
    %v8036 = vpop.f32.mrf.mxu0
    %8037 = vmatprep.mubr.f32.mxu0 0.0
    %8038 = vmatmul.mubr.f32.gmra.mxu0 %v7450
    %v8039 = vpop.f32.mrf.mxu0
    %v8040 = vadd.f32 0.0, %v8039
    %v8041 = vpop.f32.mrf.mxu0
    %8042 = vdwg.mxu0
    %8043 = vmatprep.subr.mxu0 0.0
    %8044 = vmatpush1.msra.mxu0 0.0
    %8045 = vmatprep.subr.mxu0 0.0
    %8046 = vmatpush1.msra.mxu0 0.0
    %8047 = vmatprep.subr.mxu0 0.0
    %8048 = vmatpush1.msra.mxu0 0.0
    %8049 = vmatprep.subr.mxu0 0.0
    %8050 = vmatpush1.msra.mxu0 0.0
    %8051 = vmatprep.subr.mxu0 0.0
    %8052 = vmatpush1.msra.mxu0 0.0
    %8053 = vmatprep.subr.mxu0 0.0
    %8054 = vmatpush1.msra.mxu0 0.0
    %8055 = vmatprep.subr.mxu0 0.0
    %8056 = vmatpush1.msra.mxu0 0.0
    %8057 = vmatprep.subr.mxu0 0.0
    %8058 = vmatpush1.msra.mxu0 0.0
    %8059 = vmatprep.subr.mxu0 0.0
    %8060 = vmatpush1.msra.mxu0 0.0
    %8061 = vmatprep.subr.mxu0 0.0
    %8062 = vmatpush1.msra.mxu0 0.0
    %8063 = vmatprep.subr.mxu0 0.0
    %8064 = vmatpush1.msra.mxu0 0.0
    %8065 = vmatprep.subr.mxu0 0.0
    %8066 = vmatpush1.msra.mxu0 0.0
    %8067 = vmatprep.subr.mxu0 0.0
    %8068 = vmatpush1.msra.mxu0 0.0
    %8069 = vmatprep.subr.mxu0 0.0
    %8070 = vmatpush1.msra.mxu0 0.0
    %8071 = vmatprep.subr.mxu0 0.0
    %8072 = vmatpush1.msra.mxu0 %v8040
    %8073 = vmatprep.subr.mxu0 0.0
    %8074 = vmatpush1.msra.mxu0 %v8035
    %8075 = vmatprep.subr.mxu0 0.0
    %8076 = vmatpush2.msra.mxu0 0.0
    %8077 = vmatprep.subr.mxu0 0.0
    %8078 = vmatpush2.msra.mxu0 0.0
    %8079 = vmatprep.subr.mxu0 0.0
    %8080 = vmatpush2.msra.mxu0 0.0
    %8081 = vmatprep.subr.mxu0 0.0
    %8082 = vmatpush2.msra.mxu0 0.0
    %8083 = vmatprep.subr.mxu0 0.0
    %8084 = vmatpush2.msra.mxu0 0.0
    %8085 = vmatprep.subr.mxu0 0.0
    %8086 = vmatpush2.msra.mxu0 0.0
    %8087 = vmatprep.subr.mxu0 0.0
    %8088 = vmatpush2.msra.mxu0 0.0
    %8089 = vmatprep.subr.mxu0 0.0
    %8090 = vmatpush2.msra.mxu0 0.0
    %8091 = vmatprep.subr.mxu0 0.0
    %8092 = vmatpush2.msra.mxu0 0.0
    %8093 = vmatprep.subr.mxu0 0.0
    %8094 = vmatpush2.msra.mxu0 0.0
    %8095 = vmatprep.subr.mxu0 0.0
    %8096 = vmatpush2.msra.mxu0 0.0
    %8097 = vmatprep.subr.mxu0 0.0
    %8098 = vmatpush2.msra.mxu0 0.0
    %8099 = vmatprep.subr.mxu0 0.0
    %8100 = vmatpush2.msra.mxu0 0.0
    %8101 = vmatprep.subr.mxu0 0.0
    %8102 = vmatpush2.msra.mxu0 0.0
    %8103 = vmatprep.subr.mxu0 0.0
    %8104 = vmatpush2.msra.mxu0 0.0
    %8105 = vmatprep.subr.mxu0 0.0
    %8106 = vmatpush2.msra.mxu0 0.0
    %8107 = vmatprep.mubr.f32.mxu0 0.0
    %8108 = vmatmul.mubr.f32.gmra.mxu0 %v6829
    %v8109 = vpop.f32.mrf.mxu0
    %v8110 = vadd.f32 0.0, %v8109
    %v8111 = vpop.f32.mrf.mxu0
    %8112 = vmatprep.mubr.f32.mxu0 0.0
    %8113 = vmatmul.mubr.f32.gmra.mxu0 %v6832
    %v8114 = vpop.f32.mrf.mxu0
    %v8115 = vadd.f32 0.0, %v8114
    %v8116 = vpop.f32.mrf.mxu0
    %8117 = vdwg.mxu0
    %v8118 = vadd.f32 %v7949, %v8110
    %v8119 = vadd.f32 %v7950, %v8115
    %s8120 = scalar_lea.vmem %s55, 416
    %v8121 = vld [vmem:[%s8120] sm:$0xff]
    %v8122 = vld [vmem:[%s8120 + $0x8] sm:$0xff]
    %v8123 = vld [vmem:[%s8120 + $0x10] sm:$0xff]
    %v8124 = vld [vmem:[%s8120 + $0x18] sm:$0xff]
    %v8125 = vld [vmem:[%s8120 + $0x20] sm:$0xff]
    %v8126 = vld [vmem:[%s8120 + $0x28] sm:$0xff]
    %v8127 = vld [vmem:[%s8120 + $0x30] sm:$0xff]
    %v8128 = vld [vmem:[%s8120 + $0x38] sm:$0xff]
    %v8129 = vld [vmem:[%s8120 + $0x40] sm:$0xff]
    %v8130 = vld [vmem:[%s8120 + $0x48] sm:$0xff]
    %v8131 = vld [vmem:[%s8120 + $0x50] sm:$0xff]
    %v8132 = vld [vmem:[%s8120 + $0x58] sm:$0xff]
    %v8133 = vld [vmem:[%s8120 + $0x60] sm:$0xf]
    %v8135 = vsel %vm6191, %v8133, 0
    %8137 = vmatprep.subr.mxu0 0.0
    %8138 = vmatpush1.msra.mxu0 0.0
    %8139 = vmatprep.subr.mxu0 0.0
    %8140 = vmatpush1.msra.mxu0 0.0
    %8141 = vmatprep.subr.mxu0 0.0
    %8142 = vmatpush1.msra.mxu0 0.0
    %8143 = vmatprep.subr.mxu0 0.0
    %8144 = vmatpush1.msra.mxu0 %v8135
    %8145 = vmatprep.subr.mxu0 0.0
    %8146 = vmatpush1.msra.mxu0 %v8132
    %8147 = vmatprep.subr.mxu0 0.0
    %8148 = vmatpush1.msra.mxu0 %v8131
    %8149 = vmatprep.subr.mxu0 0.0
    %8150 = vmatpush1.msra.mxu0 %v8130
    %8151 = vmatprep.subr.mxu0 0.0
    %8152 = vmatpush1.msra.mxu0 %v8129
    %8153 = vmatprep.subr.mxu0 0.0
    %8154 = vmatpush1.msra.mxu0 %v8128
    %8155 = vmatprep.subr.mxu0 0.0
    %8156 = vmatpush1.msra.mxu0 %v8127
    %8157 = vmatprep.subr.mxu0 0.0
    %8158 = vmatpush1.msra.mxu0 %v8126
    %8159 = vmatprep.subr.mxu0 0.0
    %8160 = vmatpush1.msra.mxu0 %v8125
    %8161 = vmatprep.subr.mxu0 0.0
    %8162 = vmatpush1.msra.mxu0 %v8124
    %8163 = vmatprep.subr.mxu0 0.0
    %8164 = vmatpush1.msra.mxu0 %v8123
    %8165 = vmatprep.subr.mxu0 0.0
    %8166 = vmatpush1.msra.mxu0 %v8122
    %8167 = vmatprep.subr.mxu0 0.0
    %8168 = vmatpush1.msra.mxu0 %v8121
    %8169 = vmatprep.subr.mxu0 0.0
    %8170 = vmatpush2.msra.mxu0 0.0
    %8171 = vmatprep.subr.mxu0 0.0
    %8172 = vmatpush2.msra.mxu0 0.0
    %8173 = vmatprep.subr.mxu0 0.0
    %8174 = vmatpush2.msra.mxu0 0.0
    %8175 = vmatprep.subr.mxu0 0.0
    %8176 = vmatpush2.msra.mxu0 0.0
    %8177 = vmatprep.subr.mxu0 0.0
    %8178 = vmatpush2.msra.mxu0 0.0
    %8179 = vmatprep.subr.mxu0 0.0
    %8180 = vmatpush2.msra.mxu0 0.0
    %8181 = vmatprep.subr.mxu0 0.0
    %8182 = vmatpush2.msra.mxu0 0.0
    %8183 = vmatprep.subr.mxu0 0.0
    %8184 = vmatpush2.msra.mxu0 0.0
    %8185 = vmatprep.subr.mxu0 0.0
    %8186 = vmatpush2.msra.mxu0 0.0
    %8187 = vmatprep.subr.mxu0 0.0
    %8188 = vmatpush2.msra.mxu0 0.0
    %8189 = vmatprep.subr.mxu0 0.0
    %8190 = vmatpush2.msra.mxu0 0.0
    %8191 = vmatprep.subr.mxu0 0.0
    %8192 = vmatpush2.msra.mxu0 0.0
    %8193 = vmatprep.subr.mxu0 0.0
    %8194 = vmatpush2.msra.mxu0 0.0
    %8195 = vmatprep.subr.mxu0 0.0
    %8196 = vmatpush2.msra.mxu0 0.0
    %8197 = vmatprep.subr.mxu0 0.0
    %8198 = vmatpush2.msra.mxu0 0.0
    %8199 = vmatprep.subr.mxu0 0.0
    %8200 = vmatpush2.msra.mxu0 0.0
    %8201 = vmatprep.mubr.f32.mxu0 0.0
    %8202 = vmatmul.mubr.f32.gmra.mxu0 %v7447
    %v8203 = vpop.f32.mrf.mxu0
    %v8204 = vadd.f32 0.0, %v8203
    %v8205 = vpop.f32.mrf.mxu0
    %8206 = vmatprep.mubr.f32.mxu0 0.0
    %8207 = vmatmul.mubr.f32.gmra.mxu0 %v7450
    %v8208 = vpop.f32.mrf.mxu0
    %v8209 = vadd.f32 0.0, %v8208
    %v8210 = vpop.f32.mrf.mxu0
    %8211 = vdwg.mxu0
    %v8213 = vsel %vm724, %v6162, 0
    %v8216 = vsel %vm724, %v6163, 0
    %8218 = vmatprep.subr.mxu0 0.0
    %8219 = vmatpush1.msra.mxu0 0.0
    %8220 = vmatprep.subr.mxu0 0.0
    %8221 = vmatpush1.msra.mxu0 0.0
    %8222 = vmatprep.subr.mxu0 0.0
    %8223 = vmatpush1.msra.mxu0 0.0
    %8224 = vmatprep.subr.mxu0 0.0
    %8225 = vmatpush1.msra.mxu0 0.0
    %8226 = vmatprep.subr.mxu0 0.0
    %8227 = vmatpush1.msra.mxu0 0.0
    %8228 = vmatprep.subr.mxu0 0.0
    %8229 = vmatpush1.msra.mxu0 0.0
    %8230 = vmatprep.subr.mxu0 0.0
    %8231 = vmatpush1.msra.mxu0 0.0
    %8232 = vmatprep.subr.mxu0 0.0
    %8233 = vmatpush1.msra.mxu0 0.0
    %8234 = vmatprep.subr.mxu0 0.0
    %8235 = vmatpush1.msra.mxu0 0.0
    %8236 = vmatprep.subr.mxu0 0.0
    %8237 = vmatpush1.msra.mxu0 0.0
    %8238 = vmatprep.subr.mxu0 0.0
    %8239 = vmatpush1.msra.mxu0 0.0
    %8240 = vmatprep.subr.mxu0 0.0
    %8241 = vmatpush1.msra.mxu0 0.0
    %8242 = vmatprep.subr.mxu0 0.0
    %8243 = vmatpush1.msra.mxu0 0.0
    %8244 = vmatprep.subr.mxu0 0.0
    %8245 = vmatpush1.msra.mxu0 0.0
    %8246 = vmatprep.subr.mxu0 0.0
    %8247 = vmatpush1.msra.mxu0 %v8209
    %8248 = vmatprep.subr.mxu0 0.0
    %8249 = vmatpush1.msra.mxu0 %v8204
    %8250 = vmatprep.subr.mxu0 0.0
    %8251 = vmatpush2.msra.mxu0 0.0
    %8252 = vmatprep.subr.mxu0 0.0
    %8253 = vmatpush2.msra.mxu0 0.0
    %8254 = vmatprep.subr.mxu0 0.0
    %8255 = vmatpush2.msra.mxu0 0.0
    %8256 = vmatprep.subr.mxu0 0.0
    %8257 = vmatpush2.msra.mxu0 0.0
    %8258 = vmatprep.subr.mxu0 0.0
    %8259 = vmatpush2.msra.mxu0 0.0
    %8260 = vmatprep.subr.mxu0 0.0
    %8261 = vmatpush2.msra.mxu0 0.0
    %8262 = vmatprep.subr.mxu0 0.0
    %8263 = vmatpush2.msra.mxu0 0.0
    %8264 = vmatprep.subr.mxu0 0.0
    %8265 = vmatpush2.msra.mxu0 0.0
    %8266 = vmatprep.subr.mxu0 0.0
    %8267 = vmatpush2.msra.mxu0 0.0
    %8268 = vmatprep.subr.mxu0 0.0
    %8269 = vmatpush2.msra.mxu0 0.0
    %8270 = vmatprep.subr.mxu0 0.0
    %8271 = vmatpush2.msra.mxu0 0.0
    %8272 = vmatprep.subr.mxu0 0.0
    %8273 = vmatpush2.msra.mxu0 0.0
    %8274 = vmatprep.subr.mxu0 0.0
    %8275 = vmatpush2.msra.mxu0 0.0
    %8276 = vmatprep.subr.mxu0 0.0
    %8277 = vmatpush2.msra.mxu0 0.0
    %8278 = vmatprep.subr.mxu0 0.0
    %8279 = vmatpush2.msra.mxu0 0.0
    %8280 = vmatprep.subr.mxu0 0.0
    %8281 = vmatpush2.msra.mxu0 0.0
    %8282 = vmatprep.mubr.f32.mxu0 0.0
    %8283 = vmatmul.mubr.f32.gmra.mxu0 %v8213
    %v8284 = vpop.f32.mrf.mxu0
    %v8285 = vadd.f32 0.0, %v8284
    %v8286 = vpop.f32.mrf.mxu0
    %8287 = vmatprep.mubr.f32.mxu0 0.0
    %8288 = vmatmul.mubr.f32.gmra.mxu0 %v8216
    %v8289 = vpop.f32.mrf.mxu0
    %v8290 = vadd.f32 0.0, %v8289
    %v8291 = vpop.f32.mrf.mxu0
    %8292 = vdwg.mxu0
    %v8293 = vadd.f32 %v8118, %v8285
    %v8294 = vadd.f32 %v8119, %v8290
    %v8295 = vld [vmem:[%s61] sm:$0x1]
    %v8297 = vlaneseq
    %v8298 = vshrl.u32 %v8297, 7
    %v8299 = vsub.s32 0, %v8298
    %v8300 = vrot.slane %v8295, %v8299
    %v8302 = vld [vmem:[%s59] sm:$0xff]
    %v8303 = vld [vmem:[%s59 + $0x8] sm:$0xff]
    %v8304 = vld [vmem:[%s59 + $0x10] sm:$0xff]
    %v8305 = vld [vmem:[%s59 + $0x18] sm:$0xff]
    %v8306 = vld [vmem:[%s59 + $0x20] sm:$0xff]
    %v8307 = vld [vmem:[%s59 + $0x28] sm:$0xff]
    %v8308 = vld [vmem:[%s59 + $0x30] sm:$0xff]
    %v8309 = vld [vmem:[%s59 + $0x38] sm:$0xff]
    %v8310 = vld [vmem:[%s59 + $0x40] sm:$0xff]
    %v8311 = vld [vmem:[%s59 + $0x48] sm:$0xff]
    %v8312 = vld [vmem:[%s59 + $0x50] sm:$0xff]
    %v8313 = vld [vmem:[%s59 + $0x58] sm:$0xff]
    %v8314 = vld [vmem:[%s59 + $0x60] sm:$0xf]
    %v8316 = vsel %vm6191, %v8314, 0
    %8318 = vmatprep.subr.mxu0 0.0
    %8319 = vmatpush1.msra.mxu0 0.0
    %8320 = vmatprep.subr.mxu0 0.0
    %8321 = vmatpush1.msra.mxu0 0.0
    %8322 = vmatprep.subr.mxu0 0.0
    %8323 = vmatpush1.msra.mxu0 0.0
    %8324 = vmatprep.subr.mxu0 0.0
    %8325 = vmatpush1.msra.mxu0 %v8316
    %8326 = vmatprep.subr.mxu0 0.0
    %8327 = vmatpush1.msra.mxu0 %v8313
    %8328 = vmatprep.subr.mxu0 0.0
    %8329 = vmatpush1.msra.mxu0 %v8312
    %8330 = vmatprep.subr.mxu0 0.0
    %8331 = vmatpush1.msra.mxu0 %v8311
    %8332 = vmatprep.subr.mxu0 0.0
    %8333 = vmatpush1.msra.mxu0 %v8310
    %8334 = vmatprep.subr.mxu0 0.0
    %8335 = vmatpush1.msra.mxu0 %v8309
    %8336 = vmatprep.subr.mxu0 0.0
    %8337 = vmatpush1.msra.mxu0 %v8308
    %8338 = vmatprep.subr.mxu0 0.0
    %8339 = vmatpush1.msra.mxu0 %v8307
    %8340 = vmatprep.subr.mxu0 0.0
    %8341 = vmatpush1.msra.mxu0 %v8306
    %8342 = vmatprep.subr.mxu0 0.0
    %8343 = vmatpush1.msra.mxu0 %v8305
    %8344 = vmatprep.subr.mxu0 0.0
    %8345 = vmatpush1.msra.mxu0 %v8304
    %8346 = vmatprep.subr.mxu0 0.0
    %8347 = vmatpush1.msra.mxu0 %v8303
    %8348 = vmatprep.subr.mxu0 0.0
    %8349 = vmatpush1.msra.mxu0 %v8302
    %8350 = vmatprep.subr.mxu0 0.0
    %8351 = vmatpush2.msra.mxu0 0.0
    %8352 = vmatprep.subr.mxu0 0.0
    %8353 = vmatpush2.msra.mxu0 0.0
    %8354 = vmatprep.subr.mxu0 0.0
    %8355 = vmatpush2.msra.mxu0 0.0
    %8356 = vmatprep.subr.mxu0 0.0
    %8357 = vmatpush2.msra.mxu0 0.0
    %8358 = vmatprep.subr.mxu0 0.0
    %8359 = vmatpush2.msra.mxu0 0.0
    %8360 = vmatprep.subr.mxu0 0.0
    %8361 = vmatpush2.msra.mxu0 0.0
    %8362 = vmatprep.subr.mxu0 0.0
    %8363 = vmatpush2.msra.mxu0 0.0
    %8364 = vmatprep.subr.mxu0 0.0
    %8365 = vmatpush2.msra.mxu0 0.0
    %8366 = vmatprep.subr.mxu0 0.0
    %8367 = vmatpush2.msra.mxu0 0.0
    %8368 = vmatprep.subr.mxu0 0.0
    %8369 = vmatpush2.msra.mxu0 0.0
    %8370 = vmatprep.subr.mxu0 0.0
    %8371 = vmatpush2.msra.mxu0 0.0
    %8372 = vmatprep.subr.mxu0 0.0
    %8373 = vmatpush2.msra.mxu0 0.0
    %8374 = vmatprep.subr.mxu0 0.0
    %8375 = vmatpush2.msra.mxu0 0.0
    %8376 = vmatprep.subr.mxu0 0.0
    %8377 = vmatpush2.msra.mxu0 0.0
    %8378 = vmatprep.subr.mxu0 0.0
    %8379 = vmatpush2.msra.mxu0 0.0
    %8380 = vmatprep.subr.mxu0 0.0
    %8381 = vmatpush2.msra.mxu0 0.0
    %8382 = vmatprep.mubr.f32.mxu0 0.0
    %8383 = vmatmul.mubr.f32.gmra.mxu0 %v6186
    %v8384 = vpop.f32.mrf.mxu0
    %v8385 = vadd.f32 0.0, %v8384
    %v8386 = vpop.f32.mrf.mxu0
    %8387 = vmatprep.mubr.f32.mxu0 0.0
    %8388 = vmatmul.mubr.f32.gmra.mxu0 %v6189
    %v8389 = vpop.f32.mrf.mxu0
    %v8390 = vadd.f32 0.0, %v8389
    %v8391 = vpop.f32.mrf.mxu0
    %8392 = vdwg.mxu0
    %8393 = vmatprep.subr.mxu0 0.0
    %8394 = vmatpush1.msra.mxu0 0.0
    %8395 = vmatprep.subr.mxu0 0.0
    %8396 = vmatpush1.msra.mxu0 0.0
    %8397 = vmatprep.subr.mxu0 0.0
    %8398 = vmatpush1.msra.mxu0 0.0
    %8399 = vmatprep.subr.mxu0 0.0
    %8400 = vmatpush1.msra.mxu0 0.0
    %8401 = vmatprep.subr.mxu0 0.0
    %8402 = vmatpush1.msra.mxu0 0.0
    %8403 = vmatprep.subr.mxu0 0.0
    %8404 = vmatpush1.msra.mxu0 0.0
    %8405 = vmatprep.subr.mxu0 0.0
    %8406 = vmatpush1.msra.mxu0 0.0
    %8407 = vmatprep.subr.mxu0 0.0
    %8408 = vmatpush1.msra.mxu0 0.0
    %8409 = vmatprep.subr.mxu0 0.0
    %8410 = vmatpush1.msra.mxu0 0.0
    %8411 = vmatprep.subr.mxu0 0.0
    %8412 = vmatpush1.msra.mxu0 0.0
    %8413 = vmatprep.subr.mxu0 0.0
    %8414 = vmatpush1.msra.mxu0 0.0
    %8415 = vmatprep.subr.mxu0 0.0
    %8416 = vmatpush1.msra.mxu0 0.0
    %8417 = vmatprep.subr.mxu0 0.0
    %8418 = vmatpush1.msra.mxu0 0.0
    %8419 = vmatprep.subr.mxu0 0.0
    %8420 = vmatpush1.msra.mxu0 0.0
    %8421 = vmatprep.subr.mxu0 0.0
    %8422 = vmatpush1.msra.mxu0 %v8390
    %8423 = vmatprep.subr.mxu0 0.0
    %8424 = vmatpush1.msra.mxu0 %v8385
    %8425 = vmatprep.subr.mxu0 0.0
    %8426 = vmatpush2.msra.mxu0 0.0
    %8427 = vmatprep.subr.mxu0 0.0
    %8428 = vmatpush2.msra.mxu0 0.0
    %8429 = vmatprep.subr.mxu0 0.0
    %8430 = vmatpush2.msra.mxu0 0.0
    %8431 = vmatprep.subr.mxu0 0.0
    %8432 = vmatpush2.msra.mxu0 0.0
    %8433 = vmatprep.subr.mxu0 0.0
    %8434 = vmatpush2.msra.mxu0 0.0
    %8435 = vmatprep.subr.mxu0 0.0
    %8436 = vmatpush2.msra.mxu0 0.0
    %8437 = vmatprep.subr.mxu0 0.0
    %8438 = vmatpush2.msra.mxu0 0.0
    %8439 = vmatprep.subr.mxu0 0.0
    %8440 = vmatpush2.msra.mxu0 0.0
    %8441 = vmatprep.subr.mxu0 0.0
    %8442 = vmatpush2.msra.mxu0 0.0
    %8443 = vmatprep.subr.mxu0 0.0
    %8444 = vmatpush2.msra.mxu0 0.0
    %8445 = vmatprep.subr.mxu0 0.0
    %8446 = vmatpush2.msra.mxu0 0.0
    %8447 = vmatprep.subr.mxu0 0.0
    %8448 = vmatpush2.msra.mxu0 0.0
    %8449 = vmatprep.subr.mxu0 0.0
    %8450 = vmatpush2.msra.mxu0 0.0
    %8451 = vmatprep.subr.mxu0 0.0
    %8452 = vmatpush2.msra.mxu0 0.0
    %8453 = vmatprep.subr.mxu0 0.0
    %8454 = vmatpush2.msra.mxu0 0.0
    %8455 = vmatprep.subr.mxu0 0.0
    %8456 = vmatpush2.msra.mxu0 0.0
    %8457 = vmatprep.mubr.f32.mxu0 0.0
    %8458 = vmatmul.mubr.f32.gmra.mxu0 %v6479
    %v8459 = vpop.f32.mrf.mxu0
    %v8460 = vadd.f32 0.0, %v8459
    %v8461 = vpop.f32.mrf.mxu0
    %8462 = vmatprep.mubr.f32.mxu0 0.0
    %8463 = vmatmul.mubr.f32.gmra.mxu0 %v6482
    %v8464 = vpop.f32.mrf.mxu0
    %v8465 = vadd.f32 0.0, %v8464
    %v8466 = vpop.f32.mrf.mxu0
    %8467 = vdwg.mxu0
    %v8468 = vadd.f32 %v8300, %v8460
    %v8469 = vadd.f32 %v8300, %v8465
    %s8470 = scalar_lea.vmem %s59, 104
    %v8471 = vld [vmem:[%s8470] sm:$0xff]
    %v8472 = vld [vmem:[%s8470 + $0x8] sm:$0xff]
    %v8473 = vld [vmem:[%s8470 + $0x10] sm:$0xff]
    %v8474 = vld [vmem:[%s8470 + $0x18] sm:$0xff]
    %v8475 = vld [vmem:[%s8470 + $0x20] sm:$0xff]
    %v8476 = vld [vmem:[%s8470 + $0x28] sm:$0xff]
    %v8477 = vld [vmem:[%s8470 + $0x30] sm:$0xff]
    %v8478 = vld [vmem:[%s8470 + $0x38] sm:$0xff]
    %v8479 = vld [vmem:[%s8470 + $0x40] sm:$0xff]
    %v8480 = vld [vmem:[%s8470 + $0x48] sm:$0xff]
    %v8481 = vld [vmem:[%s8470 + $0x50] sm:$0xff]
    %v8482 = vld [vmem:[%s8470 + $0x58] sm:$0xff]
    %v8483 = vld [vmem:[%s8470 + $0x60] sm:$0xf]
    %v8485 = vsel %vm6191, %v8483, 0
    %8487 = vmatprep.subr.mxu0 0.0
    %8488 = vmatpush1.msra.mxu0 0.0
    %8489 = vmatprep.subr.mxu0 0.0
    %8490 = vmatpush1.msra.mxu0 0.0
    %8491 = vmatprep.subr.mxu0 0.0
    %8492 = vmatpush1.msra.mxu0 0.0
    %8493 = vmatprep.subr.mxu0 0.0
    %8494 = vmatpush1.msra.mxu0 %v8485
    %8495 = vmatprep.subr.mxu0 0.0
    %8496 = vmatpush1.msra.mxu0 %v8482
    %8497 = vmatprep.subr.mxu0 0.0
    %8498 = vmatpush1.msra.mxu0 %v8481
    %8499 = vmatprep.subr.mxu0 0.0
    %8500 = vmatpush1.msra.mxu0 %v8480
    %8501 = vmatprep.subr.mxu0 0.0
    %8502 = vmatpush1.msra.mxu0 %v8479
    %8503 = vmatprep.subr.mxu0 0.0
    %8504 = vmatpush1.msra.mxu0 %v8478
    %8505 = vmatprep.subr.mxu0 0.0
    %8506 = vmatpush1.msra.mxu0 %v8477
    %8507 = vmatprep.subr.mxu0 0.0
    %8508 = vmatpush1.msra.mxu0 %v8476
    %8509 = vmatprep.subr.mxu0 0.0
    %8510 = vmatpush1.msra.mxu0 %v8475
    %8511 = vmatprep.subr.mxu0 0.0
    %8512 = vmatpush1.msra.mxu0 %v8474
    %8513 = vmatprep.subr.mxu0 0.0
    %8514 = vmatpush1.msra.mxu0 %v8473
    %8515 = vmatprep.subr.mxu0 0.0
    %8516 = vmatpush1.msra.mxu0 %v8472
    %8517 = vmatprep.subr.mxu0 0.0
    %8518 = vmatpush1.msra.mxu0 %v8471
    %8519 = vmatprep.subr.mxu0 0.0
    %8520 = vmatpush2.msra.mxu0 0.0
    %8521 = vmatprep.subr.mxu0 0.0
    %8522 = vmatpush2.msra.mxu0 0.0
    %8523 = vmatprep.subr.mxu0 0.0
    %8524 = vmatpush2.msra.mxu0 0.0
    %8525 = vmatprep.subr.mxu0 0.0
    %8526 = vmatpush2.msra.mxu0 0.0
    %8527 = vmatprep.subr.mxu0 0.0
    %8528 = vmatpush2.msra.mxu0 0.0
    %8529 = vmatprep.subr.mxu0 0.0
    %8530 = vmatpush2.msra.mxu0 0.0
    %8531 = vmatprep.subr.mxu0 0.0
    %8532 = vmatpush2.msra.mxu0 0.0
    %8533 = vmatprep.subr.mxu0 0.0
    %8534 = vmatpush2.msra.mxu0 0.0
    %8535 = vmatprep.subr.mxu0 0.0
    %8536 = vmatpush2.msra.mxu0 0.0
    %8537 = vmatprep.subr.mxu0 0.0
    %8538 = vmatpush2.msra.mxu0 0.0
    %8539 = vmatprep.subr.mxu0 0.0
    %8540 = vmatpush2.msra.mxu0 0.0
    %8541 = vmatprep.subr.mxu0 0.0
    %8542 = vmatpush2.msra.mxu0 0.0
    %8543 = vmatprep.subr.mxu0 0.0
    %8544 = vmatpush2.msra.mxu0 0.0
    %8545 = vmatprep.subr.mxu0 0.0
    %8546 = vmatpush2.msra.mxu0 0.0
    %8547 = vmatprep.subr.mxu0 0.0
    %8548 = vmatpush2.msra.mxu0 0.0
    %8549 = vmatprep.subr.mxu0 0.0
    %8550 = vmatpush2.msra.mxu0 0.0
    %8551 = vmatprep.mubr.f32.mxu0 0.0
    %8552 = vmatmul.mubr.f32.gmra.mxu0 %v6186
    %v8553 = vpop.f32.mrf.mxu0
    %v8554 = vadd.f32 0.0, %v8553
    %v8555 = vpop.f32.mrf.mxu0
    %8556 = vmatprep.mubr.f32.mxu0 0.0
    %8557 = vmatmul.mubr.f32.gmra.mxu0 %v6189
    %v8558 = vpop.f32.mrf.mxu0
    %v8559 = vadd.f32 0.0, %v8558
    %v8560 = vpop.f32.mrf.mxu0
    %8561 = vdwg.mxu0
    %8562 = vmatprep.subr.mxu0 0.0
    %8563 = vmatpush1.msra.mxu0 0.0
    %8564 = vmatprep.subr.mxu0 0.0
    %8565 = vmatpush1.msra.mxu0 0.0
    %8566 = vmatprep.subr.mxu0 0.0
    %8567 = vmatpush1.msra.mxu0 0.0
    %8568 = vmatprep.subr.mxu0 0.0
    %8569 = vmatpush1.msra.mxu0 0.0
    %8570 = vmatprep.subr.mxu0 0.0
    %8571 = vmatpush1.msra.mxu0 0.0
    %8572 = vmatprep.subr.mxu0 0.0
    %8573 = vmatpush1.msra.mxu0 0.0
    %8574 = vmatprep.subr.mxu0 0.0
    %8575 = vmatpush1.msra.mxu0 0.0
    %8576 = vmatprep.subr.mxu0 0.0
    %8577 = vmatpush1.msra.mxu0 0.0
    %8578 = vmatprep.subr.mxu0 0.0
    %8579 = vmatpush1.msra.mxu0 0.0
    %8580 = vmatprep.subr.mxu0 0.0
    %8581 = vmatpush1.msra.mxu0 0.0
    %8582 = vmatprep.subr.mxu0 0.0
    %8583 = vmatpush1.msra.mxu0 0.0
    %8584 = vmatprep.subr.mxu0 0.0
    %8585 = vmatpush1.msra.mxu0 0.0
    %8586 = vmatprep.subr.mxu0 0.0
    %8587 = vmatpush1.msra.mxu0 0.0
    %8588 = vmatprep.subr.mxu0 0.0
    %8589 = vmatpush1.msra.mxu0 0.0
    %8590 = vmatprep.subr.mxu0 0.0
    %8591 = vmatpush1.msra.mxu0 %v8559
    %8592 = vmatprep.subr.mxu0 0.0
    %8593 = vmatpush1.msra.mxu0 %v8554
    %8594 = vmatprep.subr.mxu0 0.0
    %8595 = vmatpush2.msra.mxu0 0.0
    %8596 = vmatprep.subr.mxu0 0.0
    %8597 = vmatpush2.msra.mxu0 0.0
    %8598 = vmatprep.subr.mxu0 0.0
    %8599 = vmatpush2.msra.mxu0 0.0
    %8600 = vmatprep.subr.mxu0 0.0
    %8601 = vmatpush2.msra.mxu0 0.0
    %8602 = vmatprep.subr.mxu0 0.0
    %8603 = vmatpush2.msra.mxu0 0.0
    %8604 = vmatprep.subr.mxu0 0.0
    %8605 = vmatpush2.msra.mxu0 0.0
    %8606 = vmatprep.subr.mxu0 0.0
    %8607 = vmatpush2.msra.mxu0 0.0
    %8608 = vmatprep.subr.mxu0 0.0
    %8609 = vmatpush2.msra.mxu0 0.0
    %8610 = vmatprep.subr.mxu0 0.0
    %8611 = vmatpush2.msra.mxu0 0.0
    %8612 = vmatprep.subr.mxu0 0.0
    %8613 = vmatpush2.msra.mxu0 0.0
    %8614 = vmatprep.subr.mxu0 0.0
    %8615 = vmatpush2.msra.mxu0 0.0
    %8616 = vmatprep.subr.mxu0 0.0
    %8617 = vmatpush2.msra.mxu0 0.0
    %8618 = vmatprep.subr.mxu0 0.0
    %8619 = vmatpush2.msra.mxu0 0.0
    %8620 = vmatprep.subr.mxu0 0.0
    %8621 = vmatpush2.msra.mxu0 0.0
    %8622 = vmatprep.subr.mxu0 0.0
    %8623 = vmatpush2.msra.mxu0 0.0
    %8624 = vmatprep.subr.mxu0 0.0
    %8625 = vmatpush2.msra.mxu0 0.0
    %8626 = vmatprep.mubr.f32.mxu0 0.0
    %8627 = vmatmul.mubr.f32.gmra.mxu0 %v6654
    %v8628 = vpop.f32.mrf.mxu0
    %v8629 = vadd.f32 0.0, %v8628
    %v8630 = vpop.f32.mrf.mxu0
    %8631 = vmatprep.mubr.f32.mxu0 0.0
    %8632 = vmatmul.mubr.f32.gmra.mxu0 %v6657
    %v8633 = vpop.f32.mrf.mxu0
    %v8634 = vadd.f32 0.0, %v8633
    %v8635 = vpop.f32.mrf.mxu0
    %8636 = vdwg.mxu0
    %v8637 = vadd.f32 %v8468, %v8629
    %v8638 = vadd.f32 %v8469, %v8634
    %s8639 = scalar_lea.vmem %s59, 208
    %v8640 = vld [vmem:[%s8639] sm:$0xff]
    %v8641 = vld [vmem:[%s8639 + $0x8] sm:$0xff]
    %v8642 = vld [vmem:[%s8639 + $0x10] sm:$0xff]
    %v8643 = vld [vmem:[%s8639 + $0x18] sm:$0xff]
    %v8644 = vld [vmem:[%s8639 + $0x20] sm:$0xff]
    %v8645 = vld [vmem:[%s8639 + $0x28] sm:$0xff]
    %v8646 = vld [vmem:[%s8639 + $0x30] sm:$0xff]
    %v8647 = vld [vmem:[%s8639 + $0x38] sm:$0xff]
    %v8648 = vld [vmem:[%s8639 + $0x40] sm:$0xff]
    %v8649 = vld [vmem:[%s8639 + $0x48] sm:$0xff]
    %v8650 = vld [vmem:[%s8639 + $0x50] sm:$0xff]
    %v8651 = vld [vmem:[%s8639 + $0x58] sm:$0xff]
    %v8652 = vld [vmem:[%s8639 + $0x60] sm:$0xf]
    %v8654 = vsel %vm6191, %v8652, 0
    %8656 = vmatprep.subr.mxu0 0.0
    %8657 = vmatpush1.msra.mxu0 0.0
    %8658 = vmatprep.subr.mxu0 0.0
    %8659 = vmatpush1.msra.mxu0 0.0
    %8660 = vmatprep.subr.mxu0 0.0
    %8661 = vmatpush1.msra.mxu0 0.0
    %8662 = vmatprep.subr.mxu0 0.0
    %8663 = vmatpush1.msra.mxu0 %v8654
    %8664 = vmatprep.subr.mxu0 0.0
    %8665 = vmatpush1.msra.mxu0 %v8651
    %8666 = vmatprep.subr.mxu0 0.0
    %8667 = vmatpush1.msra.mxu0 %v8650
    %8668 = vmatprep.subr.mxu0 0.0
    %8669 = vmatpush1.msra.mxu0 %v8649
    %8670 = vmatprep.subr.mxu0 0.0
    %8671 = vmatpush1.msra.mxu0 %v8648
    %8672 = vmatprep.subr.mxu0 0.0
    %8673 = vmatpush1.msra.mxu0 %v8647
    %8674 = vmatprep.subr.mxu0 0.0
    %8675 = vmatpush1.msra.mxu0 %v8646
    %8676 = vmatprep.subr.mxu0 0.0
    %8677 = vmatpush1.msra.mxu0 %v8645
    %8678 = vmatprep.subr.mxu0 0.0
    %8679 = vmatpush1.msra.mxu0 %v8644
    %8680 = vmatprep.subr.mxu0 0.0
    %8681 = vmatpush1.msra.mxu0 %v8643
    %8682 = vmatprep.subr.mxu0 0.0
    %8683 = vmatpush1.msra.mxu0 %v8642
    %8684 = vmatprep.subr.mxu0 0.0
    %8685 = vmatpush1.msra.mxu0 %v8641
    %8686 = vmatprep.subr.mxu0 0.0
    %8687 = vmatpush1.msra.mxu0 %v8640
    %8688 = vmatprep.subr.mxu0 0.0
    %8689 = vmatpush2.msra.mxu0 0.0
    %8690 = vmatprep.subr.mxu0 0.0
    %8691 = vmatpush2.msra.mxu0 0.0
    %8692 = vmatprep.subr.mxu0 0.0
    %8693 = vmatpush2.msra.mxu0 0.0
    %8694 = vmatprep.subr.mxu0 0.0
    %8695 = vmatpush2.msra.mxu0 0.0
    %8696 = vmatprep.subr.mxu0 0.0
    %8697 = vmatpush2.msra.mxu0 0.0
    %8698 = vmatprep.subr.mxu0 0.0
    %8699 = vmatpush2.msra.mxu0 0.0
    %8700 = vmatprep.subr.mxu0 0.0
    %8701 = vmatpush2.msra.mxu0 0.0
    %8702 = vmatprep.subr.mxu0 0.0
    %8703 = vmatpush2.msra.mxu0 0.0
    %8704 = vmatprep.subr.mxu0 0.0
    %8705 = vmatpush2.msra.mxu0 0.0
    %8706 = vmatprep.subr.mxu0 0.0
    %8707 = vmatpush2.msra.mxu0 0.0
    %8708 = vmatprep.subr.mxu0 0.0
    %8709 = vmatpush2.msra.mxu0 0.0
    %8710 = vmatprep.subr.mxu0 0.0
    %8711 = vmatpush2.msra.mxu0 0.0
    %8712 = vmatprep.subr.mxu0 0.0
    %8713 = vmatpush2.msra.mxu0 0.0
    %8714 = vmatprep.subr.mxu0 0.0
    %8715 = vmatpush2.msra.mxu0 0.0
    %8716 = vmatprep.subr.mxu0 0.0
    %8717 = vmatpush2.msra.mxu0 0.0
    %8718 = vmatprep.subr.mxu0 0.0
    %8719 = vmatpush2.msra.mxu0 0.0
    %8720 = vmatprep.mubr.f32.mxu0 0.0
    %8721 = vmatmul.mubr.f32.gmra.mxu0 %v6186
    %v8722 = vpop.f32.mrf.mxu0
    %v8723 = vadd.f32 0.0, %v8722
    %v8724 = vpop.f32.mrf.mxu0
    %8725 = vmatprep.mubr.f32.mxu0 0.0
    %8726 = vmatmul.mubr.f32.gmra.mxu0 %v6189
    %v8727 = vpop.f32.mrf.mxu0
    %v8728 = vadd.f32 0.0, %v8727
    %v8729 = vpop.f32.mrf.mxu0
    %8730 = vdwg.mxu0
    %8731 = vmatprep.subr.mxu0 0.0
    %8732 = vmatpush1.msra.mxu0 0.0
    %8733 = vmatprep.subr.mxu0 0.0
    %8734 = vmatpush1.msra.mxu0 0.0
    %8735 = vmatprep.subr.mxu0 0.0
    %8736 = vmatpush1.msra.mxu0 0.0
    %8737 = vmatprep.subr.mxu0 0.0
    %8738 = vmatpush1.msra.mxu0 0.0
    %8739 = vmatprep.subr.mxu0 0.0
    %8740 = vmatpush1.msra.mxu0 0.0
    %8741 = vmatprep.subr.mxu0 0.0
    %8742 = vmatpush1.msra.mxu0 0.0
    %8743 = vmatprep.subr.mxu0 0.0
    %8744 = vmatpush1.msra.mxu0 0.0
    %8745 = vmatprep.subr.mxu0 0.0
    %8746 = vmatpush1.msra.mxu0 0.0
    %8747 = vmatprep.subr.mxu0 0.0
    %8748 = vmatpush1.msra.mxu0 0.0
    %8749 = vmatprep.subr.mxu0 0.0
    %8750 = vmatpush1.msra.mxu0 0.0
    %8751 = vmatprep.subr.mxu0 0.0
    %8752 = vmatpush1.msra.mxu0 0.0
    %8753 = vmatprep.subr.mxu0 0.0
    %8754 = vmatpush1.msra.mxu0 0.0
    %8755 = vmatprep.subr.mxu0 0.0
    %8756 = vmatpush1.msra.mxu0 0.0
    %8757 = vmatprep.subr.mxu0 0.0
    %8758 = vmatpush1.msra.mxu0 0.0
    %8759 = vmatprep.subr.mxu0 0.0
    %8760 = vmatpush1.msra.mxu0 %v8728
    %8761 = vmatprep.subr.mxu0 0.0
    %8762 = vmatpush1.msra.mxu0 %v8723
    %8763 = vmatprep.subr.mxu0 0.0
    %8764 = vmatpush2.msra.mxu0 0.0
    %8765 = vmatprep.subr.mxu0 0.0
    %8766 = vmatpush2.msra.mxu0 0.0
    %8767 = vmatprep.subr.mxu0 0.0
    %8768 = vmatpush2.msra.mxu0 0.0
    %8769 = vmatprep.subr.mxu0 0.0
    %8770 = vmatpush2.msra.mxu0 0.0
    %8771 = vmatprep.subr.mxu0 0.0
    %8772 = vmatpush2.msra.mxu0 0.0
    %8773 = vmatprep.subr.mxu0 0.0
    %8774 = vmatpush2.msra.mxu0 0.0
    %8775 = vmatprep.subr.mxu0 0.0
    %8776 = vmatpush2.msra.mxu0 0.0
    %8777 = vmatprep.subr.mxu0 0.0
    %8778 = vmatpush2.msra.mxu0 0.0
    %8779 = vmatprep.subr.mxu0 0.0
    %8780 = vmatpush2.msra.mxu0 0.0
    %8781 = vmatprep.subr.mxu0 0.0
    %8782 = vmatpush2.msra.mxu0 0.0
    %8783 = vmatprep.subr.mxu0 0.0
    %8784 = vmatpush2.msra.mxu0 0.0
    %8785 = vmatprep.subr.mxu0 0.0
    %8786 = vmatpush2.msra.mxu0 0.0
    %8787 = vmatprep.subr.mxu0 0.0
    %8788 = vmatpush2.msra.mxu0 0.0
    %8789 = vmatprep.subr.mxu0 0.0
    %8790 = vmatpush2.msra.mxu0 0.0
    %8791 = vmatprep.subr.mxu0 0.0
    %8792 = vmatpush2.msra.mxu0 0.0
    %8793 = vmatprep.subr.mxu0 0.0
    %8794 = vmatpush2.msra.mxu0 0.0
    %8795 = vmatprep.mubr.f32.mxu0 0.0
    %8796 = vmatmul.mubr.f32.gmra.mxu0 %v6829
    %v8797 = vpop.f32.mrf.mxu0
    %v8798 = vadd.f32 0.0, %v8797
    %v8799 = vpop.f32.mrf.mxu0
    %8800 = vmatprep.mubr.f32.mxu0 0.0
    %8801 = vmatmul.mubr.f32.gmra.mxu0 %v6832
    %v8802 = vpop.f32.mrf.mxu0
    %v8803 = vadd.f32 0.0, %v8802
    %v8804 = vpop.f32.mrf.mxu0
    %8805 = vdwg.mxu0
    %v8806 = vadd.f32 %v8637, %v8798
    %v8807 = vadd.f32 %v8638, %v8803
    %8810 = vrot.lane.b32.xlu0 %v6909, 50
    %v8811 = vpop.permute.xlu0 %8810
    %8812 = vrot.lane.b32.xlu0 %v6910, 50
    %v8813 = vpop.permute.xlu0 %8812
    %8818 = vrot.lane.b32.xlu0 %v8293, 100
    %v8819 = vpop.permute.xlu0 %8818
    %8820 = vrot.lane.b32.xlu0 %v8294, 100
    %v8821 = vpop.permute.xlu0 %8820
    %8826 = vrot.lane.b32.xlu0 %v8806, 22
    %v8827 = vpop.permute.xlu0 %8826
    %8828 = vrot.lane.b32.xlu0 %v8807, 22
    %v8829 = vpop.permute.xlu0 %8828
    %v8832 = vsel %vm1139, %v6270, %v8811
    %v8833 = vsel %vm1139, %v6271, %v8813
    %v8834 = vsel %vm6184, %v8832, %v8819
    %v8835 = vsel %vm6184, %v8833, %v8821
    %vm8836 = vcmask 179200
    %v8837 = vsel %vm8836, %v8819, %v8827
    %v8838 = vsel %vm8836, %v8821, %v8829
    %v8839 = vld [vmem:[%s65] sm:$0x1]
    %v8841 = vlaneseq
    %v8842 = vshrl.u32 %v8841, 7
    %v8843 = vsub.s32 0, %v8842
    %v8844 = vrot.slane %v8839, %v8843
    %v8846 = vmul.u32 %v6106, 8
    %vm8847 = vcmp.eq.s32.totalorder %v188, %v8846
    %v8848 = vsel %vm8847, 1, 0
    %v8849 = vcvt.s32.f32 %v8848
    %v8851 = vsel %vm724, %v8849, 0
    %8853 = vmatprep.subr.mxu0 0.0
    %8854 = vmatpush1.msra.mxu0 0.0
    %8855 = vmatprep.subr.mxu0 0.0
    %8856 = vmatpush1.msra.mxu0 0.0
    %8857 = vmatprep.subr.mxu0 0.0
    %8858 = vmatpush1.msra.mxu0 0.0
    %8859 = vmatprep.subr.mxu0 0.0
    %8860 = vmatpush1.msra.mxu0 0.0
    %8861 = vmatprep.subr.mxu0 0.0
    %8862 = vmatpush1.msra.mxu0 0.0
    %8863 = vmatprep.subr.mxu0 0.0
    %8864 = vmatpush1.msra.mxu0 0.0
    %8865 = vmatprep.subr.mxu0 0.0
    %8866 = vmatpush1.msra.mxu0 0.0
    %8867 = vmatprep.subr.mxu0 0.0
    %8868 = vmatpush1.msra.mxu0 0.0
    %8869 = vmatprep.subr.mxu0 0.0
    %8870 = vmatpush1.msra.mxu0 0.0
    %8871 = vmatprep.subr.mxu0 0.0
    %8872 = vmatpush1.msra.mxu0 0.0
    %8873 = vmatprep.subr.mxu0 0.0
    %8874 = vmatpush1.msra.mxu0 0.0
    %8875 = vmatprep.subr.mxu0 0.0
    %8876 = vmatpush1.msra.mxu0 0.0
    %8877 = vmatprep.subr.mxu0 0.0
    %8878 = vmatpush1.msra.mxu0 0.0
    %8879 = vmatprep.subr.mxu0 0.0
    %8880 = vmatpush1.msra.mxu0 0.0
    %8881 = vmatprep.subr.mxu0 %v8838
    %8882 = vmatpush1.msra.mxu0 %v8835
    %8883 = vmatprep.subr.mxu0 %v8837
    %8884 = vmatpush1.msra.mxu0 %v8834
    %8885 = vmatprep.subr.mxu0 0.0
    %8886 = vmatpush2.msra.mxu0 0.0
    %8887 = vmatprep.subr.mxu0 0.0
    %8888 = vmatpush2.msra.mxu0 0.0
    %8889 = vmatprep.subr.mxu0 0.0
    %8890 = vmatpush2.msra.mxu0 0.0
    %8891 = vmatprep.subr.mxu0 0.0
    %8892 = vmatpush2.msra.mxu0 0.0
    %8893 = vmatprep.subr.mxu0 0.0
    %8894 = vmatpush2.msra.mxu0 0.0
    %8895 = vmatprep.subr.mxu0 0.0
    %8896 = vmatpush2.msra.mxu0 0.0
    %8897 = vmatprep.subr.mxu0 0.0
    %8898 = vmatpush2.msra.mxu0 0.0
    %8899 = vmatprep.subr.mxu0 0.0
    %8900 = vmatpush2.msra.mxu0 0.0
    %8901 = vmatprep.subr.mxu0 0.0
    %8902 = vmatpush2.msra.mxu0 0.0
    %8903 = vmatprep.subr.mxu0 0.0
    %8904 = vmatpush2.msra.mxu0 0.0
    %8905 = vmatprep.subr.mxu0 0.0
    %8906 = vmatpush2.msra.mxu0 0.0
    %8907 = vmatprep.subr.mxu0 0.0
    %8908 = vmatpush2.msra.mxu0 0.0
    %8909 = vmatprep.subr.mxu0 0.0
    %8910 = vmatpush2.msra.mxu0 0.0
    %8911 = vmatprep.subr.mxu0 0.0
    %8912 = vmatpush2.msra.mxu0 0.0
    %8913 = vmatprep.subr.mxu0 0.0
    %8914 = vmatpush2.msra.mxu0 0.0
    %8915 = vmatprep.subr.mxu0 0.0
    %8916 = vmatpush2.msra.mxu0 0.0
    %8917 = vmatprep.mubr.f32.mxu0 0.0
    %8918 = vmatmul.mubr.f32.gmra.mxu0 %v8851
    %v8919 = vpop.f32.mrf.mxu0
    %v8920 = vadd.f32 0.0, %v8919
    %v8921 = vpop.f32.mrf.mxu0
    %v8922 = vadd.f32 0.0, %v8921
    %8923 = vdwg.mxu0
    %v8924 = vld [vmem:[%s63] sm:$0xff]
    %v8925 = vld [vmem:[%s63 + $0x8] sm:$0xff]
    %v8926 = vld [vmem:[%s63 + $0x10] sm:$0xff]
    %v8927 = vld [vmem:[%s63 + $0x18] sm:$0xff]
    %v8928 = vld [vmem:[%s63 + $0x20] sm:$0xff]
    %v8929 = vld [vmem:[%s63 + $0x28] sm:$0xff]
    %v8930 = vld [vmem:[%s63 + $0x30] sm:$0xff]
    %v8931 = vld [vmem:[%s63 + $0x38] sm:$0xff]
    %v8932 = vld [vmem:[%s63 + $0x40] sm:$0xff]
    %v8933 = vld [vmem:[%s63 + $0x48] sm:$0xff]
    %v8934 = vld [vmem:[%s63 + $0x50] sm:$0xff]
    %v8935 = vld [vmem:[%s63 + $0x58] sm:$0xff]
    %v8936 = vld [vmem:[%s63 + $0x60] sm:$0xff]
    %v8937 = vld [vmem:[%s63 + $0x68] sm:$0xff]
    %v8938 = vld [vmem:[%s63 + $0x70] sm:$0xff]
    %v8939 = vld [vmem:[%s63 + $0x78] sm:$0xff]
    %v8940 = vld [vmem:[%s63 + $0x80] sm:$0xff]
    %v8941 = vld [vmem:[%s63 + $0x88] sm:$0xff]
    %v8942 = vld [vmem:[%s63 + $0x90] sm:$0xff]
    %v8943 = vld [vmem:[%s63 + $0x98] sm:$0xff]
    %v8944 = vld [vmem:[%s63 + $0xa0] sm:$0xff]
    %v8945 = vld [vmem:[%s63 + $0xa8] sm:$0xff]
    %v8946 = vld [vmem:[%s63 + $0xb0] sm:$0xff]
    %v8947 = vld [vmem:[%s63 + $0xb8] sm:$0xff]
    %v8948 = vld [vmem:[%s63 + $0xc0] sm:$0xff]
    %vm8949 = vcmask 588800
    %v8951 = vsel %vm8949, %v8922, 0
    %8953 = vmatprep.subr.mxu0 0.0
    %8954 = vmatpush1.msra.mxu0 %v8939
    %8955 = vmatprep.subr.mxu0 0.0
    %8956 = vmatpush1.msra.mxu0 %v8938
    %8957 = vmatprep.subr.mxu0 0.0
    %8958 = vmatpush1.msra.mxu0 %v8937
    %8959 = vmatprep.subr.mxu0 0.0
    %8960 = vmatpush1.msra.mxu0 %v8936
    %8961 = vmatprep.subr.mxu0 0.0
    %8962 = vmatpush1.msra.mxu0 %v8935
    %8963 = vmatprep.subr.mxu0 0.0
    %8964 = vmatpush1.msra.mxu0 %v8934
    %8965 = vmatprep.subr.mxu0 0.0
    %8966 = vmatpush1.msra.mxu0 %v8933
    %8967 = vmatprep.subr.mxu0 0.0
    %8968 = vmatpush1.msra.mxu0 %v8932
    %8969 = vmatprep.subr.mxu0 0.0
    %8970 = vmatpush1.msra.mxu0 %v8931
    %8971 = vmatprep.subr.mxu0 0.0
    %8972 = vmatpush1.msra.mxu0 %v8930
    %8973 = vmatprep.subr.mxu0 0.0
    %8974 = vmatpush1.msra.mxu0 %v8929
    %8975 = vmatprep.subr.mxu0 0.0
    %8976 = vmatpush1.msra.mxu0 %v8928
    %8977 = vmatprep.subr.mxu0 0.0
    %8978 = vmatpush1.msra.mxu0 %v8927
    %8979 = vmatprep.subr.mxu0 0.0
    %8980 = vmatpush1.msra.mxu0 %v8926
    %8981 = vmatprep.subr.mxu0 0.0
    %8982 = vmatpush1.msra.mxu0 %v8925
    %8983 = vmatprep.subr.mxu0 0.0
    %8984 = vmatpush1.msra.mxu0 %v8924
    %8985 = vmatprep.subr.mxu0 0.0
    %8986 = vmatpush2.msra.mxu0 0.0
    %8987 = vmatprep.subr.mxu0 0.0
    %8988 = vmatpush2.msra.mxu0 0.0
    %8989 = vmatprep.subr.mxu0 0.0
    %8990 = vmatpush2.msra.mxu0 0.0
    %8991 = vmatprep.subr.mxu0 0.0
    %8992 = vmatpush2.msra.mxu0 0.0
    %8993 = vmatprep.subr.mxu0 0.0
    %8994 = vmatpush2.msra.mxu0 0.0
    %8995 = vmatprep.subr.mxu0 0.0
    %8996 = vmatpush2.msra.mxu0 0.0
    %8997 = vmatprep.subr.mxu0 0.0
    %8998 = vmatpush2.msra.mxu0 0.0
    %8999 = vmatprep.subr.mxu0 0.0
    %9000 = vmatpush2.msra.mxu0 %v8948
    %9001 = vmatprep.subr.mxu0 0.0
    %9002 = vmatpush2.msra.mxu0 %v8947
    %9003 = vmatprep.subr.mxu0 0.0
    %9004 = vmatpush2.msra.mxu0 %v8946
    %9005 = vmatprep.subr.mxu0 0.0
    %9006 = vmatpush2.msra.mxu0 %v8945
    %9007 = vmatprep.subr.mxu0 0.0
    %9008 = vmatpush2.msra.mxu0 %v8944
    %9009 = vmatprep.subr.mxu0 0.0
    %9010 = vmatpush2.msra.mxu0 %v8943
    %9011 = vmatprep.subr.mxu0 0.0
    %9012 = vmatpush2.msra.mxu0 %v8942
    %9013 = vmatprep.subr.mxu0 0.0
    %9014 = vmatpush2.msra.mxu0 %v8941
    %9015 = vmatprep.subr.mxu0 0.0
    %9016 = vmatpush2.msra.mxu0 %v8940
    %9017 = vmatprep.mubr.f32.mxu0 %v8951
    %9018 = vmatmul.mubr.f32.gmra.mxu0 %v8920
    %v9019 = vpop.f32.mrf.mxu0
    %v9020 = vadd.f32 0.0, %v9019
    %v9021 = vpop.f32.mrf.mxu0
    %9022 = vdwg.mxu0
    %v9023 = vadd.f32 %v8844, %v9020
    %v9024 = vadd.s32 %v8846, 1
    %vm9025 = vcmp.eq.s32.totalorder %v188, %v9024
    %v9026 = vsel %vm9025, 1, 0
    %v9027 = vcvt.s32.f32 %v9026
    %v9029 = vsel %vm724, %v9027, 0
    %9031 = vmatprep.subr.mxu0 0.0
    %9032 = vmatpush1.msra.mxu0 0.0
    %9033 = vmatprep.subr.mxu0 0.0
    %9034 = vmatpush1.msra.mxu0 0.0
    %9035 = vmatprep.subr.mxu0 0.0
    %9036 = vmatpush1.msra.mxu0 0.0
    %9037 = vmatprep.subr.mxu0 0.0
    %9038 = vmatpush1.msra.mxu0 0.0
    %9039 = vmatprep.subr.mxu0 0.0
    %9040 = vmatpush1.msra.mxu0 0.0
    %9041 = vmatprep.subr.mxu0 0.0
    %9042 = vmatpush1.msra.mxu0 0.0
    %9043 = vmatprep.subr.mxu0 0.0
    %9044 = vmatpush1.msra.mxu0 0.0
    %9045 = vmatprep.subr.mxu0 0.0
    %9046 = vmatpush1.msra.mxu0 0.0
    %9047 = vmatprep.subr.mxu0 0.0
    %9048 = vmatpush1.msra.mxu0 0.0
    %9049 = vmatprep.subr.mxu0 0.0
    %9050 = vmatpush1.msra.mxu0 0.0
    %9051 = vmatprep.subr.mxu0 0.0
    %9052 = vmatpush1.msra.mxu0 0.0
    %9053 = vmatprep.subr.mxu0 0.0
    %9054 = vmatpush1.msra.mxu0 0.0
    %9055 = vmatprep.subr.mxu0 0.0
    %9056 = vmatpush1.msra.mxu0 0.0
    %9057 = vmatprep.subr.mxu0 0.0
    %9058 = vmatpush1.msra.mxu0 0.0
    %9059 = vmatprep.subr.mxu0 %v8838
    %9060 = vmatpush1.msra.mxu0 %v8835
    %9061 = vmatprep.subr.mxu0 %v8837
    %9062 = vmatpush1.msra.mxu0 %v8834
    %9063 = vmatprep.subr.mxu0 0.0
    %9064 = vmatpush2.msra.mxu0 0.0
    %9065 = vmatprep.subr.mxu0 0.0
    %9066 = vmatpush2.msra.mxu0 0.0
    %9067 = vmatprep.subr.mxu0 0.0
    %9068 = vmatpush2.msra.mxu0 0.0
    %9069 = vmatprep.subr.mxu0 0.0
    %9070 = vmatpush2.msra.mxu0 0.0
    %9071 = vmatprep.subr.mxu0 0.0
    %9072 = vmatpush2.msra.mxu0 0.0
    %9073 = vmatprep.subr.mxu0 0.0
    %9074 = vmatpush2.msra.mxu0 0.0
    %9075 = vmatprep.subr.mxu0 0.0
    %9076 = vmatpush2.msra.mxu0 0.0
    %9077 = vmatprep.subr.mxu0 0.0
    %9078 = vmatpush2.msra.mxu0 0.0
    %9079 = vmatprep.subr.mxu0 0.0
    %9080 = vmatpush2.msra.mxu0 0.0
    %9081 = vmatprep.subr.mxu0 0.0
    %9082 = vmatpush2.msra.mxu0 0.0
    %9083 = vmatprep.subr.mxu0 0.0
    %9084 = vmatpush2.msra.mxu0 0.0
    %9085 = vmatprep.subr.mxu0 0.0
    %9086 = vmatpush2.msra.mxu0 0.0
    %9087 = vmatprep.subr.mxu0 0.0
    %9088 = vmatpush2.msra.mxu0 0.0
    %9089 = vmatprep.subr.mxu0 0.0
    %9090 = vmatpush2.msra.mxu0 0.0
    %9091 = vmatprep.subr.mxu0 0.0
    %9092 = vmatpush2.msra.mxu0 0.0
    %9093 = vmatprep.subr.mxu0 0.0
    %9094 = vmatpush2.msra.mxu0 0.0
    %9095 = vmatprep.mubr.f32.mxu0 0.0
    %9096 = vmatmul.mubr.f32.gmra.mxu0 %v9029
    %v9097 = vpop.f32.mrf.mxu0
    %v9098 = vadd.f32 0.0, %v9097
    %v9099 = vpop.f32.mrf.mxu0
    %v9100 = vadd.f32 0.0, %v9099
    %9101 = vdwg.mxu0
    %s9102 = scalar_lea.vmem %s63, 200
    %v9103 = vld [vmem:[%s9102] sm:$0xff]
    %v9104 = vld [vmem:[%s9102 + $0x8] sm:$0xff]
    %v9105 = vld [vmem:[%s9102 + $0x10] sm:$0xff]
    %v9106 = vld [vmem:[%s9102 + $0x18] sm:$0xff]
    %v9107 = vld [vmem:[%s9102 + $0x20] sm:$0xff]
    %v9108 = vld [vmem:[%s9102 + $0x28] sm:$0xff]
    %v9109 = vld [vmem:[%s9102 + $0x30] sm:$0xff]
    %v9110 = vld [vmem:[%s9102 + $0x38] sm:$0xff]
    %v9111 = vld [vmem:[%s9102 + $0x40] sm:$0xff]
    %v9112 = vld [vmem:[%s9102 + $0x48] sm:$0xff]
    %v9113 = vld [vmem:[%s9102 + $0x50] sm:$0xff]
    %v9114 = vld [vmem:[%s9102 + $0x58] sm:$0xff]
    %v9115 = vld [vmem:[%s9102 + $0x60] sm:$0xff]
    %v9116 = vld [vmem:[%s9102 + $0x68] sm:$0xff]
    %v9117 = vld [vmem:[%s9102 + $0x70] sm:$0xff]
    %v9118 = vld [vmem:[%s9102 + $0x78] sm:$0xff]
    %v9119 = vld [vmem:[%s9102 + $0x80] sm:$0xff]
    %v9120 = vld [vmem:[%s9102 + $0x88] sm:$0xff]
    %v9121 = vld [vmem:[%s9102 + $0x90] sm:$0xff]
    %v9122 = vld [vmem:[%s9102 + $0x98] sm:$0xff]
    %v9123 = vld [vmem:[%s9102 + $0xa0] sm:$0xff]
    %v9124 = vld [vmem:[%s9102 + $0xa8] sm:$0xff]
    %v9125 = vld [vmem:[%s9102 + $0xb0] sm:$0xff]
    %v9126 = vld [vmem:[%s9102 + $0xb8] sm:$0xff]
    %v9127 = vld [vmem:[%s9102 + $0xc0] sm:$0xff]
    %v9129 = vsel %vm8949, %v9100, 0
    %9131 = vmatprep.subr.mxu0 0.0
    %9132 = vmatpush1.msra.mxu0 %v9118
    %9133 = vmatprep.subr.mxu0 0.0
    %9134 = vmatpush1.msra.mxu0 %v9117
    %9135 = vmatprep.subr.mxu0 0.0
    %9136 = vmatpush1.msra.mxu0 %v9116
    %9137 = vmatprep.subr.mxu0 0.0
    %9138 = vmatpush1.msra.mxu0 %v9115
    %9139 = vmatprep.subr.mxu0 0.0
    %9140 = vmatpush1.msra.mxu0 %v9114
    %9141 = vmatprep.subr.mxu0 0.0
    %9142 = vmatpush1.msra.mxu0 %v9113
    %9143 = vmatprep.subr.mxu0 0.0
    %9144 = vmatpush1.msra.mxu0 %v9112
    %9145 = vmatprep.subr.mxu0 0.0
    %9146 = vmatpush1.msra.mxu0 %v9111
    %9147 = vmatprep.subr.mxu0 0.0
    %9148 = vmatpush1.msra.mxu0 %v9110
    %9149 = vmatprep.subr.mxu0 0.0
    %9150 = vmatpush1.msra.mxu0 %v9109
    %9151 = vmatprep.subr.mxu0 0.0
    %9152 = vmatpush1.msra.mxu0 %v9108
    %9153 = vmatprep.subr.mxu0 0.0
    %9154 = vmatpush1.msra.mxu0 %v9107
    %9155 = vmatprep.subr.mxu0 0.0
    %9156 = vmatpush1.msra.mxu0 %v9106
    %9157 = vmatprep.subr.mxu0 0.0
    %9158 = vmatpush1.msra.mxu0 %v9105
    %9159 = vmatprep.subr.mxu0 0.0
    %9160 = vmatpush1.msra.mxu0 %v9104
    %9161 = vmatprep.subr.mxu0 0.0
    %9162 = vmatpush1.msra.mxu0 %v9103
    %9163 = vmatprep.subr.mxu0 0.0
    %9164 = vmatpush2.msra.mxu0 0.0
    %9165 = vmatprep.subr.mxu0 0.0
    %9166 = vmatpush2.msra.mxu0 0.0
    %9167 = vmatprep.subr.mxu0 0.0
    %9168 = vmatpush2.msra.mxu0 0.0
    %9169 = vmatprep.subr.mxu0 0.0
    %9170 = vmatpush2.msra.mxu0 0.0
    %9171 = vmatprep.subr.mxu0 0.0
    %9172 = vmatpush2.msra.mxu0 0.0
    %9173 = vmatprep.subr.mxu0 0.0
    %9174 = vmatpush2.msra.mxu0 0.0
    %9175 = vmatprep.subr.mxu0 0.0
    %9176 = vmatpush2.msra.mxu0 0.0
    %9177 = vmatprep.subr.mxu0 0.0
    %9178 = vmatpush2.msra.mxu0 %v9127
    %9179 = vmatprep.subr.mxu0 0.0
    %9180 = vmatpush2.msra.mxu0 %v9126
    %9181 = vmatprep.subr.mxu0 0.0
    %9182 = vmatpush2.msra.mxu0 %v9125
    %9183 = vmatprep.subr.mxu0 0.0
    %9184 = vmatpush2.msra.mxu0 %v9124
    %9185 = vmatprep.subr.mxu0 0.0
    %9186 = vmatpush2.msra.mxu0 %v9123
    %9187 = vmatprep.subr.mxu0 0.0
    %9188 = vmatpush2.msra.mxu0 %v9122
    %9189 = vmatprep.subr.mxu0 0.0
    %9190 = vmatpush2.msra.mxu0 %v9121
    %9191 = vmatprep.subr.mxu0 0.0
    %9192 = vmatpush2.msra.mxu0 %v9120
    %9193 = vmatprep.subr.mxu0 0.0
    %9194 = vmatpush2.msra.mxu0 %v9119
    %9195 = vmatprep.mubr.f32.mxu0 %v9129
    %9196 = vmatmul.mubr.f32.gmra.mxu0 %v9098
    %v9197 = vpop.f32.mrf.mxu0
    %v9198 = vadd.f32 0.0, %v9197
    %v9199 = vpop.f32.mrf.mxu0
    %9200 = vdwg.mxu0
    %v9201 = vadd.f32 %v9023, %v9198
    %v9202 = vadd.s32 %v8846, 2
    %vm9203 = vcmp.eq.s32.totalorder %v188, %v9202
    %v9204 = vsel %vm9203, 1, 0
    %v9205 = vcvt.s32.f32 %v9204
    %v9207 = vsel %vm724, %v9205, 0
    %9209 = vmatprep.subr.mxu0 0.0
    %9210 = vmatpush1.msra.mxu0 0.0
    %9211 = vmatprep.subr.mxu0 0.0
    %9212 = vmatpush1.msra.mxu0 0.0
    %9213 = vmatprep.subr.mxu0 0.0
    %9214 = vmatpush1.msra.mxu0 0.0
    %9215 = vmatprep.subr.mxu0 0.0
    %9216 = vmatpush1.msra.mxu0 0.0
    %9217 = vmatprep.subr.mxu0 0.0
    %9218 = vmatpush1.msra.mxu0 0.0
    %9219 = vmatprep.subr.mxu0 0.0
    %9220 = vmatpush1.msra.mxu0 0.0
    %9221 = vmatprep.subr.mxu0 0.0
    %9222 = vmatpush1.msra.mxu0 0.0
    %9223 = vmatprep.subr.mxu0 0.0
    %9224 = vmatpush1.msra.mxu0 0.0
    %9225 = vmatprep.subr.mxu0 0.0
    %9226 = vmatpush1.msra.mxu0 0.0
    %9227 = vmatprep.subr.mxu0 0.0
    %9228 = vmatpush1.msra.mxu0 0.0
    %9229 = vmatprep.subr.mxu0 0.0
    %9230 = vmatpush1.msra.mxu0 0.0
    %9231 = vmatprep.subr.mxu0 0.0
    %9232 = vmatpush1.msra.mxu0 0.0
    %9233 = vmatprep.subr.mxu0 0.0
    %9234 = vmatpush1.msra.mxu0 0.0
    %9235 = vmatprep.subr.mxu0 0.0
    %9236 = vmatpush1.msra.mxu0 0.0
    %9237 = vmatprep.subr.mxu0 %v8838
    %9238 = vmatpush1.msra.mxu0 %v8835
    %9239 = vmatprep.subr.mxu0 %v8837
    %9240 = vmatpush1.msra.mxu0 %v8834
    %9241 = vmatprep.subr.mxu0 0.0
    %9242 = vmatpush2.msra.mxu0 0.0
    %9243 = vmatprep.subr.mxu0 0.0
    %9244 = vmatpush2.msra.mxu0 0.0
    %9245 = vmatprep.subr.mxu0 0.0
    %9246 = vmatpush2.msra.mxu0 0.0
    %9247 = vmatprep.subr.mxu0 0.0
    %9248 = vmatpush2.msra.mxu0 0.0
    %9249 = vmatprep.subr.mxu0 0.0
    %9250 = vmatpush2.msra.mxu0 0.0
    %9251 = vmatprep.subr.mxu0 0.0
    %9252 = vmatpush2.msra.mxu0 0.0
    %9253 = vmatprep.subr.mxu0 0.0
    %9254 = vmatpush2.msra.mxu0 0.0
    %9255 = vmatprep.subr.mxu0 0.0
    %9256 = vmatpush2.msra.mxu0 0.0
    %9257 = vmatprep.subr.mxu0 0.0
    %9258 = vmatpush2.msra.mxu0 0.0
    %9259 = vmatprep.subr.mxu0 0.0
    %9260 = vmatpush2.msra.mxu0 0.0
    %9261 = vmatprep.subr.mxu0 0.0
    %9262 = vmatpush2.msra.mxu0 0.0
    %9263 = vmatprep.subr.mxu0 0.0
    %9264 = vmatpush2.msra.mxu0 0.0
    %9265 = vmatprep.subr.mxu0 0.0
    %9266 = vmatpush2.msra.mxu0 0.0
    %9267 = vmatprep.subr.mxu0 0.0
    %9268 = vmatpush2.msra.mxu0 0.0
    %9269 = vmatprep.subr.mxu0 0.0
    %9270 = vmatpush2.msra.mxu0 0.0
    %9271 = vmatprep.subr.mxu0 0.0
    %9272 = vmatpush2.msra.mxu0 0.0
    %9273 = vmatprep.mubr.f32.mxu0 0.0
    %9274 = vmatmul.mubr.f32.gmra.mxu0 %v9207
    %v9275 = vpop.f32.mrf.mxu0
    %v9276 = vadd.f32 0.0, %v9275
    %v9277 = vpop.f32.mrf.mxu0
    %v9278 = vadd.f32 0.0, %v9277
    %9279 = vdwg.mxu0
    %s9280 = scalar_lea.vmem %s63, 400
    %v9281 = vld [vmem:[%s9280] sm:$0xff]
    %v9282 = vld [vmem:[%s9280 + $0x8] sm:$0xff]
    %v9283 = vld [vmem:[%s9280 + $0x10] sm:$0xff]
    %v9284 = vld [vmem:[%s9280 + $0x18] sm:$0xff]
    %v9285 = vld [vmem:[%s9280 + $0x20] sm:$0xff]
    %v9286 = vld [vmem:[%s9280 + $0x28] sm:$0xff]
    %v9287 = vld [vmem:[%s9280 + $0x30] sm:$0xff]
    %v9288 = vld [vmem:[%s9280 + $0x38] sm:$0xff]
    %v9289 = vld [vmem:[%s9280 + $0x40] sm:$0xff]
    %v9290 = vld [vmem:[%s9280 + $0x48] sm:$0xff]
    %v9291 = vld [vmem:[%s9280 + $0x50] sm:$0xff]
    %v9292 = vld [vmem:[%s9280 + $0x58] sm:$0xff]
    %v9293 = vld [vmem:[%s9280 + $0x60] sm:$0xff]
    %v9294 = vld [vmem:[%s9280 + $0x68] sm:$0xff]
    %v9295 = vld [vmem:[%s9280 + $0x70] sm:$0xff]
    %v9296 = vld [vmem:[%s9280 + $0x78] sm:$0xff]
    %v9297 = vld [vmem:[%s9280 + $0x80] sm:$0xff]
    %v9298 = vld [vmem:[%s9280 + $0x88] sm:$0xff]
    %v9299 = vld [vmem:[%s9280 + $0x90] sm:$0xff]
    %v9300 = vld [vmem:[%s9280 + $0x98] sm:$0xff]
    %v9301 = vld [vmem:[%s9280 + $0xa0] sm:$0xff]
    %v9302 = vld [vmem:[%s9280 + $0xa8] sm:$0xff]
    %v9303 = vld [vmem:[%s9280 + $0xb0] sm:$0xff]
    %v9304 = vld [vmem:[%s9280 + $0xb8] sm:$0xff]
    %v9305 = vld [vmem:[%s9280 + $0xc0] sm:$0xff]
    %v9307 = vsel %vm8949, %v9278, 0
    %9309 = vmatprep.subr.mxu0 0.0
    %9310 = vmatpush1.msra.mxu0 %v9296
    %9311 = vmatprep.subr.mxu0 0.0
    %9312 = vmatpush1.msra.mxu0 %v9295
    %9313 = vmatprep.subr.mxu0 0.0
    %9314 = vmatpush1.msra.mxu0 %v9294
    %9315 = vmatprep.subr.mxu0 0.0
    %9316 = vmatpush1.msra.mxu0 %v9293
    %9317 = vmatprep.subr.mxu0 0.0
    %9318 = vmatpush1.msra.mxu0 %v9292
    %9319 = vmatprep.subr.mxu0 0.0
    %9320 = vmatpush1.msra.mxu0 %v9291
    %9321 = vmatprep.subr.mxu0 0.0
    %9322 = vmatpush1.msra.mxu0 %v9290
    %9323 = vmatprep.subr.mxu0 0.0
    %9324 = vmatpush1.msra.mxu0 %v9289
    %9325 = vmatprep.subr.mxu0 0.0
    %9326 = vmatpush1.msra.mxu0 %v9288
    %9327 = vmatprep.subr.mxu0 0.0
    %9328 = vmatpush1.msra.mxu0 %v9287
    %9329 = vmatprep.subr.mxu0 0.0
    %9330 = vmatpush1.msra.mxu0 %v9286
    %9331 = vmatprep.subr.mxu0 0.0
    %9332 = vmatpush1.msra.mxu0 %v9285
    %9333 = vmatprep.subr.mxu0 0.0
    %9334 = vmatpush1.msra.mxu0 %v9284
    %9335 = vmatprep.subr.mxu0 0.0
    %9336 = vmatpush1.msra.mxu0 %v9283
    %9337 = vmatprep.subr.mxu0 0.0
    %9338 = vmatpush1.msra.mxu0 %v9282
    %9339 = vmatprep.subr.mxu0 0.0
    %9340 = vmatpush1.msra.mxu0 %v9281
    %9341 = vmatprep.subr.mxu0 0.0
    %9342 = vmatpush2.msra.mxu0 0.0
    %9343 = vmatprep.subr.mxu0 0.0
    %9344 = vmatpush2.msra.mxu0 0.0
    %9345 = vmatprep.subr.mxu0 0.0
    %9346 = vmatpush2.msra.mxu0 0.0
    %9347 = vmatprep.subr.mxu0 0.0
    %9348 = vmatpush2.msra.mxu0 0.0
    %9349 = vmatprep.subr.mxu0 0.0
    %9350 = vmatpush2.msra.mxu0 0.0
    %9351 = vmatprep.subr.mxu0 0.0
    %9352 = vmatpush2.msra.mxu0 0.0
    %9353 = vmatprep.subr.mxu0 0.0
    %9354 = vmatpush2.msra.mxu0 0.0
    %9355 = vmatprep.subr.mxu0 0.0
    %9356 = vmatpush2.msra.mxu0 %v9305
    %9357 = vmatprep.subr.mxu0 0.0
    %9358 = vmatpush2.msra.mxu0 %v9304
    %9359 = vmatprep.subr.mxu0 0.0
    %9360 = vmatpush2.msra.mxu0 %v9303
    %9361 = vmatprep.subr.mxu0 0.0
    %9362 = vmatpush2.msra.mxu0 %v9302
    %9363 = vmatprep.subr.mxu0 0.0
    %9364 = vmatpush2.msra.mxu0 %v9301
    %9365 = vmatprep.subr.mxu0 0.0
    %9366 = vmatpush2.msra.mxu0 %v9300
    %9367 = vmatprep.subr.mxu0 0.0
    %9368 = vmatpush2.msra.mxu0 %v9299
    %9369 = vmatprep.subr.mxu0 0.0
    %9370 = vmatpush2.msra.mxu0 %v9298
    %9371 = vmatprep.subr.mxu0 0.0
    %9372 = vmatpush2.msra.mxu0 %v9297
    %9373 = vmatprep.mubr.f32.mxu0 %v9307
    %9374 = vmatmul.mubr.f32.gmra.mxu0 %v9276
    %v9375 = vpop.f32.mrf.mxu0
    %v9376 = vadd.f32 0.0, %v9375
    %v9377 = vpop.f32.mrf.mxu0
    %9378 = vdwg.mxu0
    %v9379 = vadd.f32 %v9201, %v9376
    %v9380 = vadd.s32 %v8846, 3
    %vm9381 = vcmp.eq.s32.totalorder %v188, %v9380
    %v9382 = vsel %vm9381, 1, 0
    %v9383 = vcvt.s32.f32 %v9382
    %v9385 = vsel %vm724, %v9383, 0
    %9387 = vmatprep.subr.mxu0 0.0
    %9388 = vmatpush1.msra.mxu0 0.0
    %9389 = vmatprep.subr.mxu0 0.0
    %9390 = vmatpush1.msra.mxu0 0.0
    %9391 = vmatprep.subr.mxu0 0.0
    %9392 = vmatpush1.msra.mxu0 0.0
    %9393 = vmatprep.subr.mxu0 0.0
    %9394 = vmatpush1.msra.mxu0 0.0
    %9395 = vmatprep.subr.mxu0 0.0
    %9396 = vmatpush1.msra.mxu0 0.0
    %9397 = vmatprep.subr.mxu0 0.0
    %9398 = vmatpush1.msra.mxu0 0.0
    %9399 = vmatprep.subr.mxu0 0.0
    %9400 = vmatpush1.msra.mxu0 0.0
    %9401 = vmatprep.subr.mxu0 0.0
    %9402 = vmatpush1.msra.mxu0 0.0
    %9403 = vmatprep.subr.mxu0 0.0
    %9404 = vmatpush1.msra.mxu0 0.0
    %9405 = vmatprep.subr.mxu0 0.0
    %9406 = vmatpush1.msra.mxu0 0.0
    %9407 = vmatprep.subr.mxu0 0.0
    %9408 = vmatpush1.msra.mxu0 0.0
    %9409 = vmatprep.subr.mxu0 0.0
    %9410 = vmatpush1.msra.mxu0 0.0
    %9411 = vmatprep.subr.mxu0 0.0
    %9412 = vmatpush1.msra.mxu0 0.0
    %9413 = vmatprep.subr.mxu0 0.0
    %9414 = vmatpush1.msra.mxu0 0.0
    %9415 = vmatprep.subr.mxu0 %v8838
    %9416 = vmatpush1.msra.mxu0 %v8835
    %9417 = vmatprep.subr.mxu0 %v8837
    %9418 = vmatpush1.msra.mxu0 %v8834
    %9419 = vmatprep.subr.mxu0 0.0
    %9420 = vmatpush2.msra.mxu0 0.0
    %9421 = vmatprep.subr.mxu0 0.0
    %9422 = vmatpush2.msra.mxu0 0.0
    %9423 = vmatprep.subr.mxu0 0.0
    %9424 = vmatpush2.msra.mxu0 0.0
    %9425 = vmatprep.subr.mxu0 0.0
    %9426 = vmatpush2.msra.mxu0 0.0
    %9427 = vmatprep.subr.mxu0 0.0
    %9428 = vmatpush2.msra.mxu0 0.0
    %9429 = vmatprep.subr.mxu0 0.0
    %9430 = vmatpush2.msra.mxu0 0.0
    %9431 = vmatprep.subr.mxu0 0.0
    %9432 = vmatpush2.msra.mxu0 0.0
    %9433 = vmatprep.subr.mxu0 0.0
    %9434 = vmatpush2.msra.mxu0 0.0
    %9435 = vmatprep.subr.mxu0 0.0
    %9436 = vmatpush2.msra.mxu0 0.0
    %9437 = vmatprep.subr.mxu0 0.0
    %9438 = vmatpush2.msra.mxu0 0.0
    %9439 = vmatprep.subr.mxu0 0.0
    %9440 = vmatpush2.msra.mxu0 0.0
    %9441 = vmatprep.subr.mxu0 0.0
    %9442 = vmatpush2.msra.mxu0 0.0
    %9443 = vmatprep.subr.mxu0 0.0
    %9444 = vmatpush2.msra.mxu0 0.0
    %9445 = vmatprep.subr.mxu0 0.0
    %9446 = vmatpush2.msra.mxu0 0.0
    %9447 = vmatprep.subr.mxu0 0.0
    %9448 = vmatpush2.msra.mxu0 0.0
    %9449 = vmatprep.subr.mxu0 0.0
    %9450 = vmatpush2.msra.mxu0 0.0
    %9451 = vmatprep.mubr.f32.mxu0 0.0
    %9452 = vmatmul.mubr.f32.gmra.mxu0 %v9385
    %v9453 = vpop.f32.mrf.mxu0
    %v9454 = vadd.f32 0.0, %v9453
    %v9455 = vpop.f32.mrf.mxu0
    %v9456 = vadd.f32 0.0, %v9455
    %9457 = vdwg.mxu0
    %s9458 = scalar_lea.vmem %s63, 600
    %v9459 = vld [vmem:[%s9458] sm:$0xff]
    %v9460 = vld [vmem:[%s9458 + $0x8] sm:$0xff]
    %v9461 = vld [vmem:[%s9458 + $0x10] sm:$0xff]
    %v9462 = vld [vmem:[%s9458 + $0x18] sm:$0xff]
    %v9463 = vld [vmem:[%s9458 + $0x20] sm:$0xff]
    %v9464 = vld [vmem:[%s9458 + $0x28] sm:$0xff]
    %v9465 = vld [vmem:[%s9458 + $0x30] sm:$0xff]
    %v9466 = vld [vmem:[%s9458 + $0x38] sm:$0xff]
    %v9467 = vld [vmem:[%s9458 + $0x40] sm:$0xff]
    %v9468 = vld [vmem:[%s9458 + $0x48] sm:$0xff]
    %v9469 = vld [vmem:[%s9458 + $0x50] sm:$0xff]
    %v9470 = vld [vmem:[%s9458 + $0x58] sm:$0xff]
    %v9471 = vld [vmem:[%s9458 + $0x60] sm:$0xff]
    %v9472 = vld [vmem:[%s9458 + $0x68] sm:$0xff]
    %v9473 = vld [vmem:[%s9458 + $0x70] sm:$0xff]
    %v9474 = vld [vmem:[%s9458 + $0x78] sm:$0xff]
    %v9475 = vld [vmem:[%s9458 + $0x80] sm:$0xff]
    %v9476 = vld [vmem:[%s9458 + $0x88] sm:$0xff]
    %v9477 = vld [vmem:[%s9458 + $0x90] sm:$0xff]
    %v9478 = vld [vmem:[%s9458 + $0x98] sm:$0xff]
    %v9479 = vld [vmem:[%s9458 + $0xa0] sm:$0xff]
    %v9480 = vld [vmem:[%s9458 + $0xa8] sm:$0xff]
    %v9481 = vld [vmem:[%s9458 + $0xb0] sm:$0xff]
    %v9482 = vld [vmem:[%s9458 + $0xb8] sm:$0xff]
    %v9483 = vld [vmem:[%s9458 + $0xc0] sm:$0xff]
    %v9485 = vsel %vm8949, %v9456, 0
    %9487 = vmatprep.subr.mxu0 0.0
    %9488 = vmatpush1.msra.mxu0 %v9474
    %9489 = vmatprep.subr.mxu0 0.0
    %9490 = vmatpush1.msra.mxu0 %v9473
    %9491 = vmatprep.subr.mxu0 0.0
    %9492 = vmatpush1.msra.mxu0 %v9472
    %9493 = vmatprep.subr.mxu0 0.0
    %9494 = vmatpush1.msra.mxu0 %v9471
    %9495 = vmatprep.subr.mxu0 0.0
    %9496 = vmatpush1.msra.mxu0 %v9470
    %9497 = vmatprep.subr.mxu0 0.0
    %9498 = vmatpush1.msra.mxu0 %v9469
    %9499 = vmatprep.subr.mxu0 0.0
    %9500 = vmatpush1.msra.mxu0 %v9468
    %9501 = vmatprep.subr.mxu0 0.0
    %9502 = vmatpush1.msra.mxu0 %v9467
    %9503 = vmatprep.subr.mxu0 0.0
    %9504 = vmatpush1.msra.mxu0 %v9466
    %9505 = vmatprep.subr.mxu0 0.0
    %9506 = vmatpush1.msra.mxu0 %v9465
    %9507 = vmatprep.subr.mxu0 0.0
    %9508 = vmatpush1.msra.mxu0 %v9464
    %9509 = vmatprep.subr.mxu0 0.0
    %9510 = vmatpush1.msra.mxu0 %v9463
    %9511 = vmatprep.subr.mxu0 0.0
    %9512 = vmatpush1.msra.mxu0 %v9462
    %9513 = vmatprep.subr.mxu0 0.0
    %9514 = vmatpush1.msra.mxu0 %v9461
    %9515 = vmatprep.subr.mxu0 0.0
    %9516 = vmatpush1.msra.mxu0 %v9460
    %9517 = vmatprep.subr.mxu0 0.0
    %9518 = vmatpush1.msra.mxu0 %v9459
    %9519 = vmatprep.subr.mxu0 0.0
    %9520 = vmatpush2.msra.mxu0 0.0
    %9521 = vmatprep.subr.mxu0 0.0
    %9522 = vmatpush2.msra.mxu0 0.0
    %9523 = vmatprep.subr.mxu0 0.0
    %9524 = vmatpush2.msra.mxu0 0.0
    %9525 = vmatprep.subr.mxu0 0.0
    %9526 = vmatpush2.msra.mxu0 0.0
    %9527 = vmatprep.subr.mxu0 0.0
    %9528 = vmatpush2.msra.mxu0 0.0
    %9529 = vmatprep.subr.mxu0 0.0
    %9530 = vmatpush2.msra.mxu0 0.0
    %9531 = vmatprep.subr.mxu0 0.0
    %9532 = vmatpush2.msra.mxu0 0.0
    %9533 = vmatprep.subr.mxu0 0.0
    %9534 = vmatpush2.msra.mxu0 %v9483
    %9535 = vmatprep.subr.mxu0 0.0
    %9536 = vmatpush2.msra.mxu0 %v9482
    %9537 = vmatprep.subr.mxu0 0.0
    %9538 = vmatpush2.msra.mxu0 %v9481
    %9539 = vmatprep.subr.mxu0 0.0
    %9540 = vmatpush2.msra.mxu0 %v9480
    %9541 = vmatprep.subr.mxu0 0.0
    %9542 = vmatpush2.msra.mxu0 %v9479
    %9543 = vmatprep.subr.mxu0 0.0
    %9544 = vmatpush2.msra.mxu0 %v9478
    %9545 = vmatprep.subr.mxu0 0.0
    %9546 = vmatpush2.msra.mxu0 %v9477
    %9547 = vmatprep.subr.mxu0 0.0
    %9548 = vmatpush2.msra.mxu0 %v9476
    %9549 = vmatprep.subr.mxu0 0.0
    %9550 = vmatpush2.msra.mxu0 %v9475
    %9551 = vmatprep.mubr.f32.mxu0 %v9485
    %9552 = vmatmul.mubr.f32.gmra.mxu0 %v9454
    %v9553 = vpop.f32.mrf.mxu0
    %v9554 = vadd.f32 0.0, %v9553
    %v9555 = vpop.f32.mrf.mxu0
    %9556 = vdwg.mxu0
    %v9557 = vadd.f32 %v9379, %v9554
    %v9558 = vadd.s32 %v8846, 4
    %vm9559 = vcmp.eq.s32.totalorder %v188, %v9558
    %v9560 = vsel %vm9559, 1, 0
    %v9561 = vcvt.s32.f32 %v9560
    %v9563 = vsel %vm724, %v9561, 0
    %9565 = vmatprep.subr.mxu0 0.0
    %9566 = vmatpush1.msra.mxu0 0.0
    %9567 = vmatprep.subr.mxu0 0.0
    %9568 = vmatpush1.msra.mxu0 0.0
    %9569 = vmatprep.subr.mxu0 0.0
    %9570 = vmatpush1.msra.mxu0 0.0
    %9571 = vmatprep.subr.mxu0 0.0
    %9572 = vmatpush1.msra.mxu0 0.0
    %9573 = vmatprep.subr.mxu0 0.0
    %9574 = vmatpush1.msra.mxu0 0.0
    %9575 = vmatprep.subr.mxu0 0.0
    %9576 = vmatpush1.msra.mxu0 0.0
    %9577 = vmatprep.subr.mxu0 0.0
    %9578 = vmatpush1.msra.mxu0 0.0
    %9579 = vmatprep.subr.mxu0 0.0
    %9580 = vmatpush1.msra.mxu0 0.0
    %9581 = vmatprep.subr.mxu0 0.0
    %9582 = vmatpush1.msra.mxu0 0.0
    %9583 = vmatprep.subr.mxu0 0.0
    %9584 = vmatpush1.msra.mxu0 0.0
    %9585 = vmatprep.subr.mxu0 0.0
    %9586 = vmatpush1.msra.mxu0 0.0
    %9587 = vmatprep.subr.mxu0 0.0
    %9588 = vmatpush1.msra.mxu0 0.0
    %9589 = vmatprep.subr.mxu0 0.0
    %9590 = vmatpush1.msra.mxu0 0.0
    %9591 = vmatprep.subr.mxu0 0.0
    %9592 = vmatpush1.msra.mxu0 0.0
    %9593 = vmatprep.subr.mxu0 %v8838
    %9594 = vmatpush1.msra.mxu0 %v8835
    %9595 = vmatprep.subr.mxu0 %v8837
    %9596 = vmatpush1.msra.mxu0 %v8834
    %9597 = vmatprep.subr.mxu0 0.0
    %9598 = vmatpush2.msra.mxu0 0.0
    %9599 = vmatprep.subr.mxu0 0.0
    %9600 = vmatpush2.msra.mxu0 0.0
    %9601 = vmatprep.subr.mxu0 0.0
    %9602 = vmatpush2.msra.mxu0 0.0
    %9603 = vmatprep.subr.mxu0 0.0
    %9604 = vmatpush2.msra.mxu0 0.0
    %9605 = vmatprep.subr.mxu0 0.0
    %9606 = vmatpush2.msra.mxu0 0.0
    %9607 = vmatprep.subr.mxu0 0.0
    %9608 = vmatpush2.msra.mxu0 0.0
    %9609 = vmatprep.subr.mxu0 0.0
    %9610 = vmatpush2.msra.mxu0 0.0
    %9611 = vmatprep.subr.mxu0 0.0
    %9612 = vmatpush2.msra.mxu0 0.0
    %9613 = vmatprep.subr.mxu0 0.0
    %9614 = vmatpush2.msra.mxu0 0.0
    %9615 = vmatprep.subr.mxu0 0.0
    %9616 = vmatpush2.msra.mxu0 0.0
    %9617 = vmatprep.subr.mxu0 0.0
    %9618 = vmatpush2.msra.mxu0 0.0
    %9619 = vmatprep.subr.mxu0 0.0
    %9620 = vmatpush2.msra.mxu0 0.0
    %9621 = vmatprep.subr.mxu0 0.0
    %9622 = vmatpush2.msra.mxu0 0.0
    %9623 = vmatprep.subr.mxu0 0.0
    %9624 = vmatpush2.msra.mxu0 0.0
    %9625 = vmatprep.subr.mxu0 0.0
    %9626 = vmatpush2.msra.mxu0 0.0
    %9627 = vmatprep.subr.mxu0 0.0
    %9628 = vmatpush2.msra.mxu0 0.0
    %9629 = vmatprep.mubr.f32.mxu0 0.0
    %9630 = vmatmul.mubr.f32.gmra.mxu0 %v9563
    %v9631 = vpop.f32.mrf.mxu0
    %v9632 = vadd.f32 0.0, %v9631
    %v9633 = vpop.f32.mrf.mxu0
    %v9634 = vadd.f32 0.0, %v9633
    %9635 = vdwg.mxu0
    %s9636 = scalar_lea.vmem %s63, 800
    %v9637 = vld [vmem:[%s9636] sm:$0xff]
    %v9638 = vld [vmem:[%s9636 + $0x8] sm:$0xff]
    %v9639 = vld [vmem:[%s9636 + $0x10] sm:$0xff]
    %v9640 = vld [vmem:[%s9636 + $0x18] sm:$0xff]
    %v9641 = vld [vmem:[%s9636 + $0x20] sm:$0xff]
    %v9642 = vld [vmem:[%s9636 + $0x28] sm:$0xff]
    %v9643 = vld [vmem:[%s9636 + $0x30] sm:$0xff]
    %v9644 = vld [vmem:[%s9636 + $0x38] sm:$0xff]
    %v9645 = vld [vmem:[%s9636 + $0x40] sm:$0xff]
    %v9646 = vld [vmem:[%s9636 + $0x48] sm:$0xff]
    %v9647 = vld [vmem:[%s9636 + $0x50] sm:$0xff]
    %v9648 = vld [vmem:[%s9636 + $0x58] sm:$0xff]
    %v9649 = vld [vmem:[%s9636 + $0x60] sm:$0xff]
    %v9650 = vld [vmem:[%s9636 + $0x68] sm:$0xff]
    %v9651 = vld [vmem:[%s9636 + $0x70] sm:$0xff]
    %v9652 = vld [vmem:[%s9636 + $0x78] sm:$0xff]
    %v9653 = vld [vmem:[%s9636 + $0x80] sm:$0xff]
    %v9654 = vld [vmem:[%s9636 + $0x88] sm:$0xff]
    %v9655 = vld [vmem:[%s9636 + $0x90] sm:$0xff]
    %v9656 = vld [vmem:[%s9636 + $0x98] sm:$0xff]
    %v9657 = vld [vmem:[%s9636 + $0xa0] sm:$0xff]
    %v9658 = vld [vmem:[%s9636 + $0xa8] sm:$0xff]
    %v9659 = vld [vmem:[%s9636 + $0xb0] sm:$0xff]
    %v9660 = vld [vmem:[%s9636 + $0xb8] sm:$0xff]
    %v9661 = vld [vmem:[%s9636 + $0xc0] sm:$0xff]
    %v9663 = vsel %vm8949, %v9634, 0
    %9665 = vmatprep.subr.mxu0 0.0
    %9666 = vmatpush1.msra.mxu0 %v9652
    %9667 = vmatprep.subr.mxu0 0.0
    %9668 = vmatpush1.msra.mxu0 %v9651
    %9669 = vmatprep.subr.mxu0 0.0
    %9670 = vmatpush1.msra.mxu0 %v9650
    %9671 = vmatprep.subr.mxu0 0.0
    %9672 = vmatpush1.msra.mxu0 %v9649
    %9673 = vmatprep.subr.mxu0 0.0
    %9674 = vmatpush1.msra.mxu0 %v9648
    %9675 = vmatprep.subr.mxu0 0.0
    %9676 = vmatpush1.msra.mxu0 %v9647
    %9677 = vmatprep.subr.mxu0 0.0
    %9678 = vmatpush1.msra.mxu0 %v9646
    %9679 = vmatprep.subr.mxu0 0.0
    %9680 = vmatpush1.msra.mxu0 %v9645
    %9681 = vmatprep.subr.mxu0 0.0
    %9682 = vmatpush1.msra.mxu0 %v9644
    %9683 = vmatprep.subr.mxu0 0.0
    %9684 = vmatpush1.msra.mxu0 %v9643
    %9685 = vmatprep.subr.mxu0 0.0
    %9686 = vmatpush1.msra.mxu0 %v9642
    %9687 = vmatprep.subr.mxu0 0.0
    %9688 = vmatpush1.msra.mxu0 %v9641
    %9689 = vmatprep.subr.mxu0 0.0
    %9690 = vmatpush1.msra.mxu0 %v9640
    %9691 = vmatprep.subr.mxu0 0.0
    %9692 = vmatpush1.msra.mxu0 %v9639
    %9693 = vmatprep.subr.mxu0 0.0
    %9694 = vmatpush1.msra.mxu0 %v9638
    %9695 = vmatprep.subr.mxu0 0.0
    %9696 = vmatpush1.msra.mxu0 %v9637
    %9697 = vmatprep.subr.mxu0 0.0
    %9698 = vmatpush2.msra.mxu0 0.0
    %9699 = vmatprep.subr.mxu0 0.0
    %9700 = vmatpush2.msra.mxu0 0.0
    %9701 = vmatprep.subr.mxu0 0.0
    %9702 = vmatpush2.msra.mxu0 0.0
    %9703 = vmatprep.subr.mxu0 0.0
    %9704 = vmatpush2.msra.mxu0 0.0
    %9705 = vmatprep.subr.mxu0 0.0
    %9706 = vmatpush2.msra.mxu0 0.0
    %9707 = vmatprep.subr.mxu0 0.0
    %9708 = vmatpush2.msra.mxu0 0.0
    %9709 = vmatprep.subr.mxu0 0.0
    %9710 = vmatpush2.msra.mxu0 0.0
    %9711 = vmatprep.subr.mxu0 0.0
    %9712 = vmatpush2.msra.mxu0 %v9661
    %9713 = vmatprep.subr.mxu0 0.0
    %9714 = vmatpush2.msra.mxu0 %v9660
    %9715 = vmatprep.subr.mxu0 0.0
    %9716 = vmatpush2.msra.mxu0 %v9659
    %9717 = vmatprep.subr.mxu0 0.0
    %9718 = vmatpush2.msra.mxu0 %v9658
    %9719 = vmatprep.subr.mxu0 0.0
    %9720 = vmatpush2.msra.mxu0 %v9657
    %9721 = vmatprep.subr.mxu0 0.0
    %9722 = vmatpush2.msra.mxu0 %v9656
    %9723 = vmatprep.subr.mxu0 0.0
    %9724 = vmatpush2.msra.mxu0 %v9655
    %9725 = vmatprep.subr.mxu0 0.0
    %9726 = vmatpush2.msra.mxu0 %v9654
    %9727 = vmatprep.subr.mxu0 0.0
    %9728 = vmatpush2.msra.mxu0 %v9653
    %9729 = vmatprep.mubr.f32.mxu0 %v9663
    %9730 = vmatmul.mubr.f32.gmra.mxu0 %v9632
    %v9731 = vpop.f32.mrf.mxu0
    %v9732 = vadd.f32 0.0, %v9731
    %v9733 = vpop.f32.mrf.mxu0
    %9734 = vdwg.mxu0
    %v9735 = vadd.f32 %v9557, %v9732
    %v9736 = vadd.s32 %v8846, 5
    %vm9737 = vcmp.eq.s32.totalorder %v188, %v9736
    %v9738 = vsel %vm9737, 1, 0
    %v9739 = vcvt.s32.f32 %v9738
    %v9741 = vsel %vm724, %v9739, 0
    %9743 = vmatprep.subr.mxu0 0.0
    %9744 = vmatpush1.msra.mxu0 0.0
    %9745 = vmatprep.subr.mxu0 0.0
    %9746 = vmatpush1.msra.mxu0 0.0
    %9747 = vmatprep.subr.mxu0 0.0
    %9748 = vmatpush1.msra.mxu0 0.0
    %9749 = vmatprep.subr.mxu0 0.0
    %9750 = vmatpush1.msra.mxu0 0.0
    %9751 = vmatprep.subr.mxu0 0.0
    %9752 = vmatpush1.msra.mxu0 0.0
    %9753 = vmatprep.subr.mxu0 0.0
    %9754 = vmatpush1.msra.mxu0 0.0
    %9755 = vmatprep.subr.mxu0 0.0
    %9756 = vmatpush1.msra.mxu0 0.0
    %9757 = vmatprep.subr.mxu0 0.0
    %9758 = vmatpush1.msra.mxu0 0.0
    %9759 = vmatprep.subr.mxu0 0.0
    %9760 = vmatpush1.msra.mxu0 0.0
    %9761 = vmatprep.subr.mxu0 0.0
    %9762 = vmatpush1.msra.mxu0 0.0
    %9763 = vmatprep.subr.mxu0 0.0
    %9764 = vmatpush1.msra.mxu0 0.0
    %9765 = vmatprep.subr.mxu0 0.0
    %9766 = vmatpush1.msra.mxu0 0.0
    %9767 = vmatprep.subr.mxu0 0.0
    %9768 = vmatpush1.msra.mxu0 0.0
    %9769 = vmatprep.subr.mxu0 0.0
    %9770 = vmatpush1.msra.mxu0 0.0
    %9771 = vmatprep.subr.mxu0 %v8838
    %9772 = vmatpush1.msra.mxu0 %v8835
    %9773 = vmatprep.subr.mxu0 %v8837
    %9774 = vmatpush1.msra.mxu0 %v8834
    %9775 = vmatprep.subr.mxu0 0.0
    %9776 = vmatpush2.msra.mxu0 0.0
    %9777 = vmatprep.subr.mxu0 0.0
    %9778 = vmatpush2.msra.mxu0 0.0
    %9779 = vmatprep.subr.mxu0 0.0
    %9780 = vmatpush2.msra.mxu0 0.0
    %9781 = vmatprep.subr.mxu0 0.0
    %9782 = vmatpush2.msra.mxu0 0.0
    %9783 = vmatprep.subr.mxu0 0.0
    %9784 = vmatpush2.msra.mxu0 0.0
    %9785 = vmatprep.subr.mxu0 0.0
    %9786 = vmatpush2.msra.mxu0 0.0
    %9787 = vmatprep.subr.mxu0 0.0
    %9788 = vmatpush2.msra.mxu0 0.0
    %9789 = vmatprep.subr.mxu0 0.0
    %9790 = vmatpush2.msra.mxu0 0.0
    %9791 = vmatprep.subr.mxu0 0.0
    %9792 = vmatpush2.msra.mxu0 0.0
    %9793 = vmatprep.subr.mxu0 0.0
    %9794 = vmatpush2.msra.mxu0 0.0
    %9795 = vmatprep.subr.mxu0 0.0
    %9796 = vmatpush2.msra.mxu0 0.0
    %9797 = vmatprep.subr.mxu0 0.0
    %9798 = vmatpush2.msra.mxu0 0.0
    %9799 = vmatprep.subr.mxu0 0.0
    %9800 = vmatpush2.msra.mxu0 0.0
    %9801 = vmatprep.subr.mxu0 0.0
    %9802 = vmatpush2.msra.mxu0 0.0
    %9803 = vmatprep.subr.mxu0 0.0
    %9804 = vmatpush2.msra.mxu0 0.0
    %9805 = vmatprep.subr.mxu0 0.0
    %9806 = vmatpush2.msra.mxu0 0.0
    %9807 = vmatprep.mubr.f32.mxu0 0.0
    %9808 = vmatmul.mubr.f32.gmra.mxu0 %v9741
    %v9809 = vpop.f32.mrf.mxu0
    %v9810 = vadd.f32 0.0, %v9809
    %v9811 = vpop.f32.mrf.mxu0
    %v9812 = vadd.f32 0.0, %v9811
    %9813 = vdwg.mxu0
    %s9814 = scalar_lea.vmem %s63, 1000
    %v9815 = vld [vmem:[%s9814] sm:$0xff]
    %v9816 = vld [vmem:[%s9814 + $0x8] sm:$0xff]
    %v9817 = vld [vmem:[%s9814 + $0x10] sm:$0xff]
    %v9818 = vld [vmem:[%s9814 + $0x18] sm:$0xff]
    %v9819 = vld [vmem:[%s9814 + $0x20] sm:$0xff]
    %v9820 = vld [vmem:[%s9814 + $0x28] sm:$0xff]
    %v9821 = vld [vmem:[%s9814 + $0x30] sm:$0xff]
    %v9822 = vld [vmem:[%s9814 + $0x38] sm:$0xff]
    %v9823 = vld [vmem:[%s9814 + $0x40] sm:$0xff]
    %v9824 = vld [vmem:[%s9814 + $0x48] sm:$0xff]
    %v9825 = vld [vmem:[%s9814 + $0x50] sm:$0xff]
    %v9826 = vld [vmem:[%s9814 + $0x58] sm:$0xff]
    %v9827 = vld [vmem:[%s9814 + $0x60] sm:$0xff]
    %v9828 = vld [vmem:[%s9814 + $0x68] sm:$0xff]
    %v9829 = vld [vmem:[%s9814 + $0x70] sm:$0xff]
    %v9830 = vld [vmem:[%s9814 + $0x78] sm:$0xff]
    %v9831 = vld [vmem:[%s9814 + $0x80] sm:$0xff]
    %v9832 = vld [vmem:[%s9814 + $0x88] sm:$0xff]
    %v9833 = vld [vmem:[%s9814 + $0x90] sm:$0xff]
    %v9834 = vld [vmem:[%s9814 + $0x98] sm:$0xff]
    %v9835 = vld [vmem:[%s9814 + $0xa0] sm:$0xff]
    %v9836 = vld [vmem:[%s9814 + $0xa8] sm:$0xff]
    %v9837 = vld [vmem:[%s9814 + $0xb0] sm:$0xff]
    %v9838 = vld [vmem:[%s9814 + $0xb8] sm:$0xff]
    %v9839 = vld [vmem:[%s9814 + $0xc0] sm:$0xff]
    %v9841 = vsel %vm8949, %v9812, 0
    %9843 = vmatprep.subr.mxu0 0.0
    %9844 = vmatpush1.msra.mxu0 %v9830
    %9845 = vmatprep.subr.mxu0 0.0
    %9846 = vmatpush1.msra.mxu0 %v9829
    %9847 = vmatprep.subr.mxu0 0.0
    %9848 = vmatpush1.msra.mxu0 %v9828
    %9849 = vmatprep.subr.mxu0 0.0
    %9850 = vmatpush1.msra.mxu0 %v9827
    %9851 = vmatprep.subr.mxu0 0.0
    %9852 = vmatpush1.msra.mxu0 %v9826
    %9853 = vmatprep.subr.mxu0 0.0
    %9854 = vmatpush1.msra.mxu0 %v9825
    %9855 = vmatprep.subr.mxu0 0.0
    %9856 = vmatpush1.msra.mxu0 %v9824
    %9857 = vmatprep.subr.mxu0 0.0
    %9858 = vmatpush1.msra.mxu0 %v9823
    %9859 = vmatprep.subr.mxu0 0.0
    %9860 = vmatpush1.msra.mxu0 %v9822
    %9861 = vmatprep.subr.mxu0 0.0
    %9862 = vmatpush1.msra.mxu0 %v9821
    %9863 = vmatprep.subr.mxu0 0.0
    %9864 = vmatpush1.msra.mxu0 %v9820
    %9865 = vmatprep.subr.mxu0 0.0
    %9866 = vmatpush1.msra.mxu0 %v9819
    %9867 = vmatprep.subr.mxu0 0.0
    %9868 = vmatpush1.msra.mxu0 %v9818
    %9869 = vmatprep.subr.mxu0 0.0
    %9870 = vmatpush1.msra.mxu0 %v9817
    %9871 = vmatprep.subr.mxu0 0.0
    %9872 = vmatpush1.msra.mxu0 %v9816
    %9873 = vmatprep.subr.mxu0 0.0
    %9874 = vmatpush1.msra.mxu0 %v9815
    %9875 = vmatprep.subr.mxu0 0.0
    %9876 = vmatpush2.msra.mxu0 0.0
    %9877 = vmatprep.subr.mxu0 0.0
    %9878 = vmatpush2.msra.mxu0 0.0
    %9879 = vmatprep.subr.mxu0 0.0
    %9880 = vmatpush2.msra.mxu0 0.0
    %9881 = vmatprep.subr.mxu0 0.0
    %9882 = vmatpush2.msra.mxu0 0.0
    %9883 = vmatprep.subr.mxu0 0.0
    %9884 = vmatpush2.msra.mxu0 0.0
    %9885 = vmatprep.subr.mxu0 0.0
    %9886 = vmatpush2.msra.mxu0 0.0
    %9887 = vmatprep.subr.mxu0 0.0
    %9888 = vmatpush2.msra.mxu0 0.0
    %9889 = vmatprep.subr.mxu0 0.0
    %9890 = vmatpush2.msra.mxu0 %v9839
    %9891 = vmatprep.subr.mxu0 0.0
    %9892 = vmatpush2.msra.mxu0 %v9838
    %9893 = vmatprep.subr.mxu0 0.0
    %9894 = vmatpush2.msra.mxu0 %v9837
    %9895 = vmatprep.subr.mxu0 0.0
    %9896 = vmatpush2.msra.mxu0 %v9836
    %9897 = vmatprep.subr.mxu0 0.0
    %9898 = vmatpush2.msra.mxu0 %v9835
    %9899 = vmatprep.subr.mxu0 0.0
    %9900 = vmatpush2.msra.mxu0 %v9834
    %9901 = vmatprep.subr.mxu0 0.0
    %9902 = vmatpush2.msra.mxu0 %v9833
    %9903 = vmatprep.subr.mxu0 0.0
    %9904 = vmatpush2.msra.mxu0 %v9832
    %9905 = vmatprep.subr.mxu0 0.0
    %9906 = vmatpush2.msra.mxu0 %v9831
    %9907 = vmatprep.mubr.f32.mxu0 %v9841
    %9908 = vmatmul.mubr.f32.gmra.mxu0 %v9810
    %v9909 = vpop.f32.mrf.mxu0
    %v9910 = vadd.f32 0.0, %v9909
    %v9911 = vpop.f32.mrf.mxu0
    %9912 = vdwg.mxu0
    %v9913 = vadd.f32 %v9735, %v9910
    %v9914 = vmax.f32 %v9913, 0.0
    %v9915 = vld [vmem:[%s67] sm:$0xff]
    %v9916 = vld [vmem:[%s67 + $0x8] sm:$0xff]
    %v9917 = vld [vmem:[%s67 + $0x10] sm:$0xff]
    %v9918 = vld [vmem:[%s67 + $0x18] sm:$0xff]
    %v9919 = vld [vmem:[%s67 + $0x20] sm:$0xff]
    %v9920 = vld [vmem:[%s67 + $0x28] sm:$0xff]
    %v9921 = vld [vmem:[%s67 + $0x30] sm:$0xff]
    %v9922 = vld [vmem:[%s67 + $0x38] sm:$0xff]
    %v9923 = vld [vmem:[%s67 + $0x40] sm:$0xff]
    %v9924 = vld [vmem:[%s67 + $0x48] sm:$0xff]
    %v9925 = vld [vmem:[%s67 + $0x50] sm:$0xff]
    %v9926 = vld [vmem:[%s67 + $0x58] sm:$0xff]
    %v9927 = vld [vmem:[%s67 + $0x60] sm:$0xf]
    %v9928 = vld [vmem:[%s69] sm:$0x1]
    %v9930 = vlaneseq
    %v9931 = vshrl.u32 %v9930, 7
    %v9932 = vsub.s32 0, %v9931
    %v9933 = vrot.slane %v9928, %v9932
    %v9936 = vsel %vm6184, %v9914, 0
    %v9939 = vsel %vm6191, %v9927, 0
    %9941 = vmatprep.subr.mxu0 0.0
    %9942 = vmatpush1.msra.mxu0 0.0
    %9943 = vmatprep.subr.mxu0 0.0
    %9944 = vmatpush1.msra.mxu0 0.0
    %9945 = vmatprep.subr.mxu0 0.0
    %9946 = vmatpush1.msra.mxu0 0.0
    %9947 = vmatprep.subr.mxu0 0.0
    %9948 = vmatpush1.msra.mxu0 %v9939
    %9949 = vmatprep.subr.mxu0 0.0
    %9950 = vmatpush1.msra.mxu0 %v9926
    %9951 = vmatprep.subr.mxu0 0.0
    %9952 = vmatpush1.msra.mxu0 %v9925
    %9953 = vmatprep.subr.mxu0 0.0
    %9954 = vmatpush1.msra.mxu0 %v9924
    %9955 = vmatprep.subr.mxu0 0.0
    %9956 = vmatpush1.msra.mxu0 %v9923
    %9957 = vmatprep.subr.mxu0 0.0
    %9958 = vmatpush1.msra.mxu0 %v9922
    %9959 = vmatprep.subr.mxu0 0.0
    %9960 = vmatpush1.msra.mxu0 %v9921
    %9961 = vmatprep.subr.mxu0 0.0
    %9962 = vmatpush1.msra.mxu0 %v9920
    %9963 = vmatprep.subr.mxu0 0.0
    %9964 = vmatpush1.msra.mxu0 %v9919
    %9965 = vmatprep.subr.mxu0 0.0
    %9966 = vmatpush1.msra.mxu0 %v9918
    %9967 = vmatprep.subr.mxu0 0.0
    %9968 = vmatpush1.msra.mxu0 %v9917
    %9969 = vmatprep.subr.mxu0 0.0
    %9970 = vmatpush1.msra.mxu0 %v9916
    %9971 = vmatprep.subr.mxu0 0.0
    %9972 = vmatpush1.msra.mxu0 %v9915
    %9973 = vmatprep.subr.mxu0 0.0
    %9974 = vmatpush2.msra.mxu0 0.0
    %9975 = vmatprep.subr.mxu0 0.0
    %9976 = vmatpush2.msra.mxu0 0.0
    %9977 = vmatprep.subr.mxu0 0.0
    %9978 = vmatpush2.msra.mxu0 0.0
    %9979 = vmatprep.subr.mxu0 0.0
    %9980 = vmatpush2.msra.mxu0 0.0
    %9981 = vmatprep.subr.mxu0 0.0
    %9982 = vmatpush2.msra.mxu0 0.0
    %9983 = vmatprep.subr.mxu0 0.0
    %9984 = vmatpush2.msra.mxu0 0.0
    %9985 = vmatprep.subr.mxu0 0.0
    %9986 = vmatpush2.msra.mxu0 0.0
    %9987 = vmatprep.subr.mxu0 0.0
    %9988 = vmatpush2.msra.mxu0 0.0
    %9989 = vmatprep.subr.mxu0 0.0
    %9990 = vmatpush2.msra.mxu0 0.0
    %9991 = vmatprep.subr.mxu0 0.0
    %9992 = vmatpush2.msra.mxu0 0.0
    %9993 = vmatprep.subr.mxu0 0.0
    %9994 = vmatpush2.msra.mxu0 0.0
    %9995 = vmatprep.subr.mxu0 0.0
    %9996 = vmatpush2.msra.mxu0 0.0
    %9997 = vmatprep.subr.mxu0 0.0
    %9998 = vmatpush2.msra.mxu0 0.0
    %9999 = vmatprep.subr.mxu0 0.0
    %10000 = vmatpush2.msra.mxu0 0.0
    %10001 = vmatprep.subr.mxu0 0.0
    %10002 = vmatpush2.msra.mxu0 0.0
    %10003 = vmatprep.subr.mxu0 0.0
    %10004 = vmatpush2.msra.mxu0 0.0
    %10005 = vmatprep.mubr.f32.mxu0 0.0
    %10006 = vmatmul.mubr.f32.gmra.mxu0 %v9936
    %v10007 = vpop.f32.mrf.mxu0
    %v10008 = vadd.f32 %v9933, %v10007
    %v10009 = vpop.f32.mrf.mxu0
    %10010 = vdwg.mxu0
    %v10011 = vmax.f32 %v10008, 0.0
    %v10012 = vld [vmem:[%s71] sm:$0xff]
    %v10013 = vld [vmem:[%s71 + $0x8] sm:$0xff]
    %v10014 = vld [vmem:[%s71 + $0x10] sm:$0xff]
    %v10015 = vld [vmem:[%s71 + $0x18] sm:$0xff]
    %v10016 = vld [vmem:[%s71 + $0x20] sm:$0xff]
    %v10017 = vld [vmem:[%s71 + $0x28] sm:$0xff]
    %v10018 = vld [vmem:[%s71 + $0x30] sm:$0x3]
    %v10019 = vld [vmem:[%s73] sm:$0x1]
    %v10021 = vlaneseq
    %v10022 = vshrl.u32 %v10021, 7
    %v10023 = vsub.s32 0, %v10022
    %v10024 = vrot.slane %v10019, %v10023
    %v10027 = vsel %vm1139, %v10011, 0
    %v10030 = vsel %vm1143, %v10018, 0
    %10032 = vmatprep.subr.mxu0 0.0
    %10033 = vmatpush1.msra.mxu0 0.0
    %10034 = vmatprep.subr.mxu0 0.0
    %10035 = vmatpush1.msra.mxu0 0.0
    %10036 = vmatprep.subr.mxu0 0.0
    %10037 = vmatpush1.msra.mxu0 0.0
    %10038 = vmatprep.subr.mxu0 0.0
    %10039 = vmatpush1.msra.mxu0 0.0
    %10040 = vmatprep.subr.mxu0 0.0
    %10041 = vmatpush1.msra.mxu0 0.0
    %10042 = vmatprep.subr.mxu0 0.0
    %10043 = vmatpush1.msra.mxu0 0.0
    %10044 = vmatprep.subr.mxu0 0.0
    %10045 = vmatpush1.msra.mxu0 0.0
    %10046 = vmatprep.subr.mxu0 0.0
    %10047 = vmatpush1.msra.mxu0 0.0
    %10048 = vmatprep.subr.mxu0 0.0
    %10049 = vmatpush1.msra.mxu0 0.0
    %10050 = vmatprep.subr.mxu0 0.0
    %10051 = vmatpush1.msra.mxu0 %v10030
    %10052 = vmatprep.subr.mxu0 0.0
    %10053 = vmatpush1.msra.mxu0 %v10017
    %10054 = vmatprep.subr.mxu0 0.0
    %10055 = vmatpush1.msra.mxu0 %v10016
    %10056 = vmatprep.subr.mxu0 0.0
    %10057 = vmatpush1.msra.mxu0 %v10015
    %10058 = vmatprep.subr.mxu0 0.0
    %10059 = vmatpush1.msra.mxu0 %v10014
    %10060 = vmatprep.subr.mxu0 0.0
    %10061 = vmatpush1.msra.mxu0 %v10013
    %10062 = vmatprep.subr.mxu0 0.0
    %10063 = vmatpush1.msra.mxu0 %v10012
    %10064 = vmatprep.subr.mxu0 0.0
    %10065 = vmatpush2.msra.mxu0 0.0
    %10066 = vmatprep.subr.mxu0 0.0
    %10067 = vmatpush2.msra.mxu0 0.0
    %10068 = vmatprep.subr.mxu0 0.0
    %10069 = vmatpush2.msra.mxu0 0.0
    %10070 = vmatprep.subr.mxu0 0.0
    %10071 = vmatpush2.msra.mxu0 0.0
    %10072 = vmatprep.subr.mxu0 0.0
    %10073 = vmatpush2.msra.mxu0 0.0
    %10074 = vmatprep.subr.mxu0 0.0
    %10075 = vmatpush2.msra.mxu0 0.0
    %10076 = vmatprep.subr.mxu0 0.0
    %10077 = vmatpush2.msra.mxu0 0.0
    %10078 = vmatprep.subr.mxu0 0.0
    %10079 = vmatpush2.msra.mxu0 0.0
    %10080 = vmatprep.subr.mxu0 0.0
    %10081 = vmatpush2.msra.mxu0 0.0
    %10082 = vmatprep.subr.mxu0 0.0
    %10083 = vmatpush2.msra.mxu0 0.0
    %10084 = vmatprep.subr.mxu0 0.0
    %10085 = vmatpush2.msra.mxu0 0.0
    %10086 = vmatprep.subr.mxu0 0.0
    %10087 = vmatpush2.msra.mxu0 0.0
    %10088 = vmatprep.subr.mxu0 0.0
    %10089 = vmatpush2.msra.mxu0 0.0
    %10090 = vmatprep.subr.mxu0 0.0
    %10091 = vmatpush2.msra.mxu0 0.0
    %10092 = vmatprep.subr.mxu0 0.0
    %10093 = vmatpush2.msra.mxu0 0.0
    %10094 = vmatprep.subr.mxu0 0.0
    %10095 = vmatpush2.msra.mxu0 0.0
    %10096 = vmatprep.mubr.f32.mxu0 0.0
    %10097 = vmatmul.mubr.f32.gmra.mxu0 %v10027
    %v10098 = vpop.f32.mrf.mxu0
    %v10099 = vadd.f32 %v10024, %v10098
    %v10100 = vpop.f32.mrf.mxu0
    %10101 = vdwg.mxu0
    %vm10102 = vcmask 9216
    %v10103 = vsel %vm10102, %v10099, -inf
    %10104 = vmax.xlane.f32.xlu0 %v10103
    %v10105 = vpop.xlane.xlu0 %10104
    %v10106 = vsub.f32 %v10099, %v10105
    %v10107 = vmul.f32 %v10106, 1.442695
    %v10108 = vpow.pop %v10107
    %v10109 = vsel %vm10102, %v10108, 0.0
    %10110 = vadd.xlane.f32.xlu0 %v10109
    %v10111 = vpop.xlane.xlu0 %10110
    %v10112 = vrcp.pop %v10111
    %v10113 = vmul.f32 %v10108, %v10112
    %10114 = vst.msk [vmem:[#allocation2] sm:$0x3] %vm10102, %v10113
    // Predicated region
    $region150: #{attrcnn_forward.1} parent=1 // pred_check
      _
    $region151: #{attrcnn_forward.1} parent=1 // pred_check_branch
      %10116 = sbr.rel (0) target = $region153
    $region152: #{attrcnn_forward.1} parent=1 // pred_region
      %s10118 = ssub.s32 32, 32
      %10119 = vsyncadd [#allocation3], %s10118
      %s10121 = sshll.u32 [#allocation2], 4
      %s10122 = int_to_ptr.vmem [resolvable:$true] %s10121
      %10124 = dma.vmem_to_hbm [thread:$0]  %s10122, 32, %s75, [#allocation3]
    $region153: #{attrcnn_forward.1} parent=1 // pred_fallthru
      _
    // Predicated region
    $region154: #{attrcnn_forward.1} parent=1 // pred_check
      _
    $region155: #{attrcnn_forward.1} parent=1 // pred_check_branch
      %10126 = sbr.rel (0) target = $region157
    $region156: #{attrcnn_forward.1} parent=1 // pred_region
      %10127 = dma.done [#allocation3], 32
    $region157: #{attrcnn_forward.1} parent=1 // pred_fallthru
      _
    %10128 = vsyncpa [#allocation3], 1

</llo_original>
